<compile_context>
chip_gen: v7x
topology: tpu7x:2x2x1
jax: 0.10.0
libtpu: 0.0.40
codegen_flags: <defaults>
</compile_context>

<pallas_src>
import jax
import jax.numpy as jnp
import numpy as np
from jax import lax
from jax.experimental import pallas as pl
from jax.experimental.pallas import tpu as pltpu

C_PAD = 128     # every channel dim padded to one full lane tile
LP = 8          # left pad on the W (sublane) axis -> tile-aligned interior


def _conv3x3_relu(a_ref, h, w, w_ref, b_ref, p_ref):
    """3x3 'same' conv + bias + ReLU reading a zero-haloed activation scratch.

    a_ref: (h+2, w+2*LP, C_PAD) f32 scratch; interior at [1:h+1, LP:LP+w, :],
           columns LP-1 / LP+w and rows 0 / h+1 are zero halo.
    w_ref: (9*C_PAD, C_PAD) bf16 im2col weights, taps row-major over (dy, dx).
    b_ref: (1, C_PAD) f32 bias.
    p_ref: (>= h*w, 9*C_PAD) bf16 scratch holding the im2col patch matrix.
    returns (h*w, C_PAD) f32.
    """
    m = h * w
    # Build the patch matrix in VMEM: each tap is an (h, w, 128) slab shifted
    # by (dy, dx); the (h, w)->(h*w) merge is layout-free for f32 (8,128)
    # tiles, and the 128-aligned lane-slice store into p_ref is unmasked.
    for dy in range(3):
        for dx in range(3):
            t = dy * 3 + dx
            slab = a_ref[pl.ds(dy, h), pl.ds(LP - 1 + dx, w), :]
            p_ref[pl.ds(0, m), pl.ds(t * C_PAD, C_PAD)] = (
                slab.reshape(m, C_PAD).astype(jnp.bfloat16))
    # One MXU matmul with K = 9*128 instead of nine tiny-K matmuls.
    acc = jnp.dot(p_ref[pl.ds(0, m), :], w_ref[...],
                  preferred_element_type=jnp.float32)
    return jnp.maximum(acc + b_ref[...], 0.0)


def _unet_kernel(x_ref, w1_ref, b1_ref, w2_ref, b2_ref, w3_ref, b3_ref,
                 w4_ref, b4_ref, pool_ref, up_ref, o_ref,
                 a0_ref, a1_ref, p_ref):
    _, H, W, Cin = x_ref.shape
    H2, W2 = H // 2, W // 2

    # Scratch persists across grid steps (and is per-core under megacore), so
    # the zero halo and the padded channels [Cin:128] of the a0 interior must
    # be cleared every invocation.
    a0_ref[...] = jnp.zeros_like(a0_ref)
    a1_ref[...] = jnp.zeros_like(a1_ref)

    # Network input (Cin real channels) into the padded buffer interior.
    a0_ref[pl.ds(1, H), pl.ds(LP, W), pl.ds(0, Cin)] = x_ref[0]

    # ------------------------------ encoder ------------------------------
    y1 = _conv3x3_relu(a0_ref, H, W, w1_ref, b1_ref, p_ref)           # (H*W,128)
    a0_ref[pl.ds(1, H), pl.ds(LP, W), :] = y1.reshape(H, W, C_PAD)
    y2 = _conv3x3_relu(a0_ref, H, W, w2_ref, b2_ref, p_ref)           # (H*W,128)

    # ------------------------- maxpool 2x2 stride 2 -----------------------
    # pool_ref stacks four stride-2 0/1 sampling matrices: one MXU matmul
    # gathers the 4 corners of every 2x2 window; a leading-axis max reduces.
    corners = jnp.dot(pool_ref[...], y2.astype(jnp.bfloat16),
                      preferred_element_type=jnp.float32)             # (4*H2*W2,128)
    pooled = jnp.max(corners.reshape(4, H2 * W2, C_PAD), axis=0)      # (H2*W2,128)
    a1_ref[pl.ds(1, H2), pl.ds(LP, W2), :] = pooled.reshape(H2, W2, C_PAD)

    # ------------------------------ decoder ------------------------------
    y3 = _conv3x3_relu(a1_ref, H2, W2, w3_ref, b3_ref, p_ref)         # (H2*W2,128)
    a1_ref[pl.ds(1, H2), pl.ds(LP, W2), :] = y3.reshape(H2, W2, C_PAD)
    y4 = _conv3x3_relu(a1_ref, H2, W2, w4_ref, b4_ref, p_ref)         # (H2*W2,128)

    # --------------- nearest 2x upsample via 0/1 selection matmul ----------
    up = jnp.dot(up_ref[...], y4.astype(jnp.bfloat16),
                 preferred_element_type=jnp.float32)                  # (H*W,128)
    o_ref[0] = up.astype(o_ref.dtype)


# ------------------------------ host-side prep --------------------------------
def _prep_conv(w, b):
    """Zero-pad a (3,3,Cin,Cout) conv to 128x128 channels; flatten for im2col."""
    cin, cout = w.shape[2], w.shape[3]
    wp = jnp.zeros((3, 3, C_PAD, C_PAD), jnp.float32).at[:, :, :cin, :cout].set(w)
    bp = jnp.zeros((1, C_PAD), jnp.float32).at[0, :cout].set(b)
    return wp.reshape(9 * C_PAD, C_PAD).astype(jnp.bfloat16), bp


def _pool_select(h, w):
    """(4*h2*w2, h*w) 0/1 matrix; block t=2r+s picks y[2i+r, 2j+s]."""
    h2, w2 = h // 2, w // 2
    sel = np.zeros((4, h2 * w2, h * w), np.float32)
    rows = np.arange(h2 * w2)
    i, j = rows // w2, rows % w2
    for t in range(4):
        r, s = t // 2, t % 2
        sel[t, rows, (2 * i + r) * w + (2 * j + s)] = 1.0
    return jnp.asarray(sel.reshape(4 * h2 * w2, h * w), jnp.bfloat16)


def _upsample_select(h, w):
    """(h*w, h2*w2) 0/1 matrix: out[p, q] = y[p // 2, q // 2]."""
    h2, w2 = h // 2, w // 2
    rows = np.arange(h * w)
    p, q = rows // w, rows % w
    sel = np.zeros((h * w, h2 * w2), np.float32)
    sel[rows, (p // 2) * w2 + (q // 2)] = 1.0
    return jnp.asarray(sel, jnp.bfloat16)


@jax.jit
def unet_old_forward(params, block_f, action_f, reward_f, obstacle_f):
    """Inputs/outputs are NCHW (PyTorch convention)."""
    x = jnp.concatenate([block_f, action_f, reward_f, obstacle_f], axis=1)
    N, Cin, H, W = x.shape
    assert H % 2 == 0 and W % 2 == 0           # MaxPool(2)/Upsample(2) need even dims
    H2, W2 = H // 2, W // 2
    x = jnp.transpose(x, (0, 2, 3, 1)).astype(jnp.float32)      # NCHW -> NHWC

    w1, b1 = _prep_conv(*params["enc1"])
    w2, b2 = _prep_conv(*params["enc2"])
    w3, b3 = _prep_conv(*params["dec1"])
    w4, b4 = _prep_conv(*params["dec2"])
    pool_sel = _pool_select(H, W)
    up_sel = _upsample_select(H, W)
    cout = params["dec2"][0].shape[-1]

    def const2(shape):
        return pl.BlockSpec(shape, lambda n: (0, 0))

    out = pl.pallas_call(
        _unet_kernel,
        out_shape=jax.ShapeDtypeStruct((N, H * W, C_PAD), jnp.float32),
        grid_spec=pltpu.PrefetchScalarGridSpec(
            num_scalar_prefetch=0,
            grid=(N,),
            in_specs=[
                pl.BlockSpec((1, H, W, Cin), lambda n: (n, 0, 0, 0)),
                const2((9 * C_PAD, C_PAD)), const2((1, C_PAD)),
                const2((9 * C_PAD, C_PAD)), const2((1, C_PAD)),
                const2((9 * C_PAD, C_PAD)), const2((1, C_PAD)),
                const2((9 * C_PAD, C_PAD)), const2((1, C_PAD)),
                const2((4 * H2 * W2, H * W)),
                const2((H * W, H2 * W2)),
            ],
            out_specs=pl.BlockSpec((1, H * W, C_PAD), lambda n: (n, 0, 0)),
            scratch_shapes=[
                pltpu.VMEM((H + 2, W + 2 * LP, C_PAD), jnp.float32),   # a0 (haloed)
                pltpu.VMEM((H2 + 2, W2 + 2 * LP, C_PAD), jnp.float32), # a1 (haloed)
                pltpu.VMEM((H * W, 9 * C_PAD), jnp.bfloat16),          # im2col patches
            ],
        ),
        compiler_params=pltpu.CompilerParams(
            dimension_semantics=("parallel",)),
    )(x, w1, b1, w2, b2, w3, b3, w4, b4, pool_sel, up_sel)

    out = out.reshape(N, H, W, C_PAD)[..., :cout]
    return jnp.transpose(out, (0, 3, 1, 2))                     # NHWC -> NCHW


# ------------------------------ init + reference ------------------------------
def init_params(key, in_channels, out_channels):
    """Deterministic PyTorch-style (kaiming-uniform-ish) conv init."""
    def conv_init(k, cin, cout):
        kw, kb = jax.random.split(k)
        bound = 1.0 / jnp.sqrt(jnp.float32(cin * 9))
        w = jax.random.uniform(kw, (3, 3, cin, cout), jnp.float32, -bound, bound)
        b = jax.random.uniform(kb, (cout,), jnp.float32, -bound, bound)
        return w, b

    k1, k2, k3, k4 = jax.random.split(key, 4)
    return {
        "enc1": conv_init(k1, in_channels, 64),
        "enc2": conv_init(k2, 64, 64),
        "dec1": conv_init(k3, 64, 64),
        "dec2": conv_init(k4, 64, out_channels),
    }


def _conv_ref(x_nhwc, w, b):
    y = lax.conv_general_dilated(
        x_nhwc, w, window_strides=(1, 1), padding="SAME",
        dimension_numbers=("NHWC", "HWIO", "NHWC"))
    return jax.nn.relu(y + b)


def unet_old_ref(params, block_f, action_f, reward_f, obstacle_f):
    x = jnp.concatenate([block_f, action_f, reward_f, obstacle_f], axis=1)
    x = jnp.transpose(x, (0, 2, 3, 1))
    x = _conv_ref(x, *params["enc1"])
    x = _conv_ref(x, *params["enc2"])
    N, H, W, C = x.shape
    x = x.reshape(N, H // 2, 2, W // 2, 2, C).max(axis=(2, 4))
    x = _conv_ref(x, *params["dec1"])
    x = _conv_ref(x, *params["dec2"])
    x = jnp.repeat(jnp.repeat(x, 2, axis=1), 2, axis=2)
    return jnp.transpose(x, (0, 3, 1, 2))


if __name__ == "__main__":
    key = jax.random.PRNGKey(0)
    kp, kb, ka, kr, ko = jax.random.split(key, 5)

    N, H, W = 2, 16, 16
    out_channels = 3
    # each feature map contributes 1 channel -> in_channels = 4 after concat
    block_f = jax.random.normal(kb, (N, 1, H, W), jnp.float32)
    action_f = jax.random.normal(ka, (N, 1, H, W), jnp.float32)
    reward_f = jax.random.normal(kr, (N, 1, H, W), jnp.float32)
    obstacle_f = jax.random.normal(ko, (N, 1, H, W), jnp.float32)

    params = init_params(kp, in_channels=4, out_channels=out_channels)

    out = jax.block_until_ready(
        unet_old_forward(params, block_f, action_f, reward_f, obstacle_f))
    assert out.shape == (N, out_channels, H, W), out.shape

    ref = jax.block_until_ready(
        unet_old_ref(params, block_f, action_f, reward_f, obstacle_f))
    max_err = float(jnp.max(jnp.abs(out - ref)))
    # bf16 MXU operands -> loosened tolerance vs the pure-f32 reference
    assert jnp.allclose(out, ref, atol=5e-2, rtol=5e-2), max_err

    print("KERNEL_OK")
</pallas_src>

<mosaic_0001>
module attributes {stable_mosaic.version = 11 : i64} {
  func.func @_unet_kernel(%arg0: i32, %arg1: memref<1x16x16x4xf32, #tpu.memory_space<vmem>>, %arg2: memref<1152x128xbf16, #tpu.memory_space<vmem>>, %arg3: memref<1x128xf32, #tpu.memory_space<vmem>>, %arg4: memref<1152x128xbf16, #tpu.memory_space<vmem>>, %arg5: memref<1x128xf32, #tpu.memory_space<vmem>>, %arg6: memref<1152x128xbf16, #tpu.memory_space<vmem>>, %arg7: memref<1x128xf32, #tpu.memory_space<vmem>>, %arg8: memref<1152x128xbf16, #tpu.memory_space<vmem>>, %arg9: memref<1x128xf32, #tpu.memory_space<vmem>>, %arg10: memref<256x256xbf16, #tpu.memory_space<vmem>>, %arg11: memref<256x64xbf16, #tpu.memory_space<vmem>>, %arg12: memref<1x256x128xf32, #tpu.memory_space<vmem>>, %arg13: memref<18x32x128xf32, #tpu.memory_space<vmem>>, %arg14: memref<10x24x128xf32, #tpu.memory_space<vmem>>, %arg15: memref<256x1152xbf16, #tpu.memory_space<vmem>>) attributes {dimension_semantics = [#tpu.dimension_semantics<parallel>], iteration_bounds = array<i64: 2>, scalar_prefetch = 0 : i64, scratch_operands = 3 : i64, tpu.core_type = #tpu.core_type<tc>, window_params = [{transform_indices = @transform_0, window_bounds = array<i64: 1, 16, 16, 4>}, {pipeline_mode = #tpu.pipeline_mode<synchronous>, transform_indices = @transform_1, window_bounds = array<i64: 1152, 128>}, {pipeline_mode = #tpu.pipeline_mode<synchronous>, transform_indices = @transform_2, window_bounds = array<i64: 1, 128>}, {pipeline_mode = #tpu.pipeline_mode<synchronous>, transform_indices = @transform_3, window_bounds = array<i64: 1152, 128>}, {pipeline_mode = #tpu.pipeline_mode<synchronous>, transform_indices = @transform_4, window_bounds = array<i64: 1, 128>}, {pipeline_mode = #tpu.pipeline_mode<synchronous>, transform_indices = @transform_5, window_bounds = array<i64: 1152, 128>}, {pipeline_mode = #tpu.pipeline_mode<synchronous>, transform_indices = @transform_6, window_bounds = array<i64: 1, 128>}, {pipeline_mode = #tpu.pipeline_mode<synchronous>, transform_indices = @transform_7, window_bounds = array<i64: 1152, 128>}, {pipeline_mode = #tpu.pipeline_mode<synchronous>, transform_indices = @transform_8, window_bounds = array<i64: 1, 128>}, {pipeline_mode = #tpu.pipeline_mode<synchronous>, transform_indices = @transform_9, window_bounds = array<i64: 256, 256>}, {pipeline_mode = #tpu.pipeline_mode<synchronous>, transform_indices = @transform_10, window_bounds = array<i64: 256, 64>}, {transform_indices = @transform_11, window_bounds = array<i64: 1, 256, 128>}]} {
    %cst = arith.constant 0.000000e+00 : f32
    %0 = vector.broadcast %cst : f32 to vector<18x32x128xf32>
    %c0 = arith.constant 0 : index
    %c0_0 = arith.constant 0 : index
    %c0_1 = arith.constant 0 : index
    %1 = vector.load %arg13[%c0, %c0_0, %c0_1] : memref<18x32x128xf32, #tpu.memory_space<vmem>>, vector<18x32x128xf32>
    tpu.vector_store %arg13[%c0, %c0_0, %c0_1], %0 {strides = array<i32>} : memref<18x32x128xf32, #tpu.memory_space<vmem>>, vector<18x32x128xf32>,
    %cst_2 = arith.constant 0.000000e+00 : f32
    %2 = vector.broadcast %cst_2 : f32 to vector<10x24x128xf32>
    %c0_3 = arith.constant 0 : index
    %c0_4 = arith.constant 0 : index
    %c0_5 = arith.constant 0 : index
    %3 = vector.load %arg14[%c0_3, %c0_4, %c0_5] : memref<10x24x128xf32, #tpu.memory_space<vmem>>, vector<10x24x128xf32>
    tpu.vector_store %arg14[%c0_3, %c0_4, %c0_5], %2 {strides = array<i32>} : memref<10x24x128xf32, #tpu.memory_space<vmem>>, vector<10x24x128xf32>,
    %c0_6 = arith.constant 0 : index
    %c0_7 = arith.constant 0 : index
    %c0_8 = arith.constant 0 : index
    %c0_9 = arith.constant 0 : index
    %4 = vector.load %arg1[%c0_6, %c0_7, %c0_8, %c0_9] : memref<1x16x16x4xf32, #tpu.memory_space<vmem>>, vector<1x16x16x4xf32>
    %5 = vector.shape_cast %4 : vector<1x16x16x4xf32> to vector<16x16x4xf32>
    %c1 = arith.constant 1 : index
    %c8 = arith.constant 8 : index
    %c0_10 = arith.constant 0 : index
    %6 = vector.load %arg13[%c1, %c8, %c0_10] : memref<18x32x128xf32, #tpu.memory_space<vmem>>, vector<16x16x4xf32>
    tpu.vector_store %arg13[%c1, %c8, %c0_10], %5 {strides = array<i32>} : memref<18x32x128xf32, #tpu.memory_space<vmem>>, vector<16x16x4xf32>,
    %c0_11 = arith.constant 0 : index
    %c7 = arith.constant 7 : index
    %c0_12 = arith.constant 0 : index
    %7 = vector.load %arg13[%c0_11, %c7, %c0_12] : memref<18x32x128xf32, #tpu.memory_space<vmem>>, vector<16x16x128xf32>
    %8 = vector.shape_cast %7 : vector<16x16x128xf32> to vector<256x128xf32>
    %9 = arith.truncf %8 : vector<256x128xf32> to vector<256x128xbf16>
    %c0_13 = arith.constant 0 : index
    %c0_14 = arith.constant 0 : index
    %10 = vector.load %arg15[%c0_13, %c0_14] : memref<256x1152xbf16, #tpu.memory_space<vmem>>, vector<256x128xbf16>
    tpu.vector_store %arg15[%c0_13, %c0_14], %9 {strides = array<i32>} : memref<256x1152xbf16, #tpu.memory_space<vmem>>, vector<256x128xbf16>,
    %c0_15 = arith.constant 0 : index
    %c8_16 = arith.constant 8 : index
    %c0_17 = arith.constant 0 : index
    %11 = vector.load %arg13[%c0_15, %c8_16, %c0_17] : memref<18x32x128xf32, #tpu.memory_space<vmem>>, vector<16x16x128xf32>
    %12 = vector.shape_cast %11 : vector<16x16x128xf32> to vector<256x128xf32>
    %13 = arith.truncf %12 : vector<256x128xf32> to vector<256x128xbf16>
    %c0_18 = arith.constant 0 : index
    %c128 = arith.constant 128 : index
    %14 = vector.load %arg15[%c0_18, %c128] : memref<256x1152xbf16, #tpu.memory_space<vmem>>, vector<256x128xbf16>
    tpu.vector_store %arg15[%c0_18, %c128], %13 {strides = array<i32>} : memref<256x1152xbf16, #tpu.memory_space<vmem>>, vector<256x128xbf16>,
    %c0_19 = arith.constant 0 : index
    %c9 = arith.constant 9 : index
    %c0_20 = arith.constant 0 : index
    %15 = vector.load %arg13[%c0_19, %c9, %c0_20] : memref<18x32x128xf32, #tpu.memory_space<vmem>>, vector<16x16x128xf32>
    %16 = vector.shape_cast %15 : vector<16x16x128xf32> to vector<256x128xf32>
    %17 = arith.truncf %16 : vector<256x128xf32> to vector<256x128xbf16>
    %c0_21 = arith.constant 0 : index
    %c256 = arith.constant 256 : index
    %18 = vector.load %arg15[%c0_21, %c256] : memref<256x1152xbf16, #tpu.memory_space<vmem>>, vector<256x128xbf16>
    tpu.vector_store %arg15[%c0_21, %c256], %17 {strides = array<i32>} : memref<256x1152xbf16, #tpu.memory_space<vmem>>, vector<256x128xbf16>,
    %c1_22 = arith.constant 1 : index
    %c7_23 = arith.constant 7 : index
    %c0_24 = arith.constant 0 : index
    %19 = vector.load %arg13[%c1_22, %c7_23, %c0_24] : memref<18x32x128xf32, #tpu.memory_space<vmem>>, vector<16x16x128xf32>
    %20 = vector.shape_cast %19 : vector<16x16x128xf32> to vector<256x128xf32>
    %21 = arith.truncf %20 : vector<256x128xf32> to vector<256x128xbf16>
    %c0_25 = arith.constant 0 : index
    %c384 = arith.constant 384 : index
    %22 = vector.load %arg15[%c0_25, %c384] : memref<256x1152xbf16, #tpu.memory_space<vmem>>, vector<256x128xbf16>
    tpu.vector_store %arg15[%c0_25, %c384], %21 {strides = array<i32>} : memref<256x1152xbf16, #tpu.memory_space<vmem>>, vector<256x128xbf16>,
    %c1_26 = arith.constant 1 : index
    %c8_27 = arith.constant 8 : index
    %c0_28 = arith.constant 0 : index
    %23 = vector.load %arg13[%c1_26, %c8_27, %c0_28] : memref<18x32x128xf32, #tpu.memory_space<vmem>>, vector<16x16x128xf32>
    %24 = vector.shape_cast %23 : vector<16x16x128xf32> to vector<256x128xf32>
    %25 = arith.truncf %24 : vector<256x128xf32> to vector<256x128xbf16>
    %c0_29 = arith.constant 0 : index
    %c512 = arith.constant 512 : index
    %26 = vector.load %arg15[%c0_29, %c512] : memref<256x1152xbf16, #tpu.memory_space<vmem>>, vector<256x128xbf16>
    tpu.vector_store %arg15[%c0_29, %c512], %25 {strides = array<i32>} : memref<256x1152xbf16, #tpu.memory_space<vmem>>, vector<256x128xbf16>,
    %c1_30 = arith.constant 1 : index
    %c9_31 = arith.constant 9 : index
    %c0_32 = arith.constant 0 : index
    %27 = vector.load %arg13[%c1_30, %c9_31, %c0_32] : memref<18x32x128xf32, #tpu.memory_space<vmem>>, vector<16x16x128xf32>
    %28 = vector.shape_cast %27 : vector<16x16x128xf32> to vector<256x128xf32>
    %29 = arith.truncf %28 : vector<256x128xf32> to vector<256x128xbf16>
    %c0_33 = arith.constant 0 : index
    %c640 = arith.constant 640 : index
    %30 = vector.load %arg15[%c0_33, %c640] : memref<256x1152xbf16, #tpu.memory_space<vmem>>, vector<256x128xbf16>
    tpu.vector_store %arg15[%c0_33, %c640], %29 {strides = array<i32>} : memref<256x1152xbf16, #tpu.memory_space<vmem>>, vector<256x128xbf16>,
    %c2 = arith.constant 2 : index
    %c7_34 = arith.constant 7 : index
    %c0_35 = arith.constant 0 : index
    %31 = vector.load %arg13[%c2, %c7_34, %c0_35] : memref<18x32x128xf32, #tpu.memory_space<vmem>>, vector<16x16x128xf32>
    %32 = vector.shape_cast %31 : vector<16x16x128xf32> to vector<256x128xf32>
    %33 = arith.truncf %32 : vector<256x128xf32> to vector<256x128xbf16>
    %c0_36 = arith.constant 0 : index
    %c768 = arith.constant 768 : index
    %34 = vector.load %arg15[%c0_36, %c768] : memref<256x1152xbf16, #tpu.memory_space<vmem>>, vector<256x128xbf16>
    tpu.vector_store %arg15[%c0_36, %c768], %33 {strides = array<i32>} : memref<256x1152xbf16, #tpu.memory_space<vmem>>, vector<256x128xbf16>,
    %c2_37 = arith.constant 2 : index
    %c8_38 = arith.constant 8 : index
    %c0_39 = arith.constant 0 : index
    %35 = vector.load %arg13[%c2_37, %c8_38, %c0_39] : memref<18x32x128xf32, #tpu.memory_space<vmem>>, vector<16x16x128xf32>
    %36 = vector.shape_cast %35 : vector<16x16x128xf32> to vector<256x128xf32>
    %37 = arith.truncf %36 : vector<256x128xf32> to vector<256x128xbf16>
    %c0_40 = arith.constant 0 : index
    %c896 = arith.constant 896 : index
    %38 = vector.load %arg15[%c0_40, %c896] : memref<256x1152xbf16, #tpu.memory_space<vmem>>, vector<256x128xbf16>
    tpu.vector_store %arg15[%c0_40, %c896], %37 {strides = array<i32>} : memref<256x1152xbf16, #tpu.memory_space<vmem>>, vector<256x128xbf16>,
    %c2_41 = arith.constant 2 : index
    %c9_42 = arith.constant 9 : index
    %c0_43 = arith.constant 0 : index
    %39 = vector.load %arg13[%c2_41, %c9_42, %c0_43] : memref<18x32x128xf32, #tpu.memory_space<vmem>>, vector<16x16x128xf32>
    %40 = vector.shape_cast %39 : vector<16x16x128xf32> to vector<256x128xf32>
    %41 = arith.truncf %40 : vector<256x128xf32> to vector<256x128xbf16>
    %c0_44 = arith.constant 0 : index
    %c1024 = arith.constant 1024 : index
    %42 = vector.load %arg15[%c0_44, %c1024] : memref<256x1152xbf16, #tpu.memory_space<vmem>>, vector<256x128xbf16>
    tpu.vector_store %arg15[%c0_44, %c1024], %41 {strides = array<i32>} : memref<256x1152xbf16, #tpu.memory_space<vmem>>, vector<256x128xbf16>,
    %c0_45 = arith.constant 0 : index
    %c0_46 = arith.constant 0 : index
    %43 = vector.load %arg15[%c0_45, %c0_46] : memref<256x1152xbf16, #tpu.memory_space<vmem>>, vector<256x1152xbf16>
    %c0_47 = arith.constant 0 : index
    %c0_48 = arith.constant 0 : index
    %44 = vector.load %arg2[%c0_47, %c0_48] : memref<1152x128xbf16, #tpu.memory_space<vmem>>, vector<1152x128xbf16>
    %cst_49 = arith.constant dense<0.000000e+00> : vector<256x128xf32>
    %45 = tpu.matmul %43, %44, %cst_49 {dimension_numbers = #tpu.dot_dimension_numbers<[1], [0], [0], [1], [0, 0, 1, 1], [], []>} : vector<256x1152xbf16>, vector<1152x128xbf16>, vector<256x128xf32> -> vector<256x128xf32>
    %c0_50 = arith.constant 0 : index
    %c0_51 = arith.constant 0 : index
    %46 = vector.load %arg3[%c0_50, %c0_51] : memref<1x128xf32, #tpu.memory_space<vmem>>, vector<1x128xf32>
    %47 = vector.broadcast %46 : vector<1x128xf32> to vector<256x128xf32>
    %48 = arith.addf %45, %47 : vector<256x128xf32>
    %cst_52 = arith.constant 0.000000e+00 : f32
    %49 = vector.broadcast %cst_52 : f32 to vector<256x128xf32>
    %50 = arith.maximumf %48, %49 : vector<256x128xf32>
    %51 = vector.shape_cast %50 : vector<256x128xf32> to vector<16x16x128xf32>
    %c1_53 = arith.constant 1 : index
    %c8_54 = arith.constant 8 : index
    %c0_55 = arith.constant 0 : index
    %52 = vector.load %arg13[%c1_53, %c8_54, %c0_55] : memref<18x32x128xf32, #tpu.memory_space<vmem>>, vector<16x16x128xf32>
    tpu.vector_store %arg13[%c1_53, %c8_54, %c0_55], %51 {strides = array<i32>} : memref<18x32x128xf32, #tpu.memory_space<vmem>>, vector<16x16x128xf32>,
    %c0_56 = arith.constant 0 : index
    %c7_57 = arith.constant 7 : index
    %c0_58 = arith.constant 0 : index
    %53 = vector.load %arg13[%c0_56, %c7_57, %c0_58] : memref<18x32x128xf32, #tpu.memory_space<vmem>>, vector<16x16x128xf32>
    %54 = vector.shape_cast %53 : vector<16x16x128xf32> to vector<256x128xf32>
    %55 = arith.truncf %54 : vector<256x128xf32> to vector<256x128xbf16>
    %c0_59 = arith.constant 0 : index
    %c0_60 = arith.constant 0 : index
    %56 = vector.load %arg15[%c0_59, %c0_60] : memref<256x1152xbf16, #tpu.memory_space<vmem>>, vector<256x128xbf16>
    tpu.vector_store %arg15[%c0_59, %c0_60], %55 {strides = array<i32>} : memref<256x1152xbf16, #tpu.memory_space<vmem>>, vector<256x128xbf16>,
    %c0_61 = arith.constant 0 : index
    %c8_62 = arith.constant 8 : index
    %c0_63 = arith.constant 0 : index
    %57 = vector.load %arg13[%c0_61, %c8_62, %c0_63] : memref<18x32x128xf32, #tpu.memory_space<vmem>>, vector<16x16x128xf32>
    %58 = vector.shape_cast %57 : vector<16x16x128xf32> to vector<256x128xf32>
    %59 = arith.truncf %58 : vector<256x128xf32> to vector<256x128xbf16>
    %c0_64 = arith.constant 0 : index
    %c128_65 = arith.constant 128 : index
    %60 = vector.load %arg15[%c0_64, %c128_65] : memref<256x1152xbf16, #tpu.memory_space<vmem>>, vector<256x128xbf16>
    tpu.vector_store %arg15[%c0_64, %c128_65], %59 {strides = array<i32>} : memref<256x1152xbf16, #tpu.memory_space<vmem>>, vector<256x128xbf16>,
    %c0_66 = arith.constant 0 : index
    %c9_67 = arith.constant 9 : index
    %c0_68 = arith.constant 0 : index
    %61 = vector.load %arg13[%c0_66, %c9_67, %c0_68] : memref<18x32x128xf32, #tpu.memory_space<vmem>>, vector<16x16x128xf32>
    %62 = vector.shape_cast %61 : vector<16x16x128xf32> to vector<256x128xf32>
    %63 = arith.truncf %62 : vector<256x128xf32> to vector<256x128xbf16>
    %c0_69 = arith.constant 0 : index
    %c256_70 = arith.constant 256 : index
    %64 = vector.load %arg15[%c0_69, %c256_70] : memref<256x1152xbf16, #tpu.memory_space<vmem>>, vector<256x128xbf16>
    tpu.vector_store %arg15[%c0_69, %c256_70], %63 {strides = array<i32>} : memref<256x1152xbf16, #tpu.memory_space<vmem>>, vector<256x128xbf16>,
    %c1_71 = arith.constant 1 : index
    %c7_72 = arith.constant 7 : index
    %c0_73 = arith.constant 0 : index
    %65 = vector.load %arg13[%c1_71, %c7_72, %c0_73] : memref<18x32x128xf32, #tpu.memory_space<vmem>>, vector<16x16x128xf32>
    %66 = vector.shape_cast %65 : vector<16x16x128xf32> to vector<256x128xf32>
    %67 = arith.truncf %66 : vector<256x128xf32> to vector<256x128xbf16>
    %c0_74 = arith.constant 0 : index
    %c384_75 = arith.constant 384 : index
    %68 = vector.load %arg15[%c0_74, %c384_75] : memref<256x1152xbf16, #tpu.memory_space<vmem>>, vector<256x128xbf16>
    tpu.vector_store %arg15[%c0_74, %c384_75], %67 {strides = array<i32>} : memref<256x1152xbf16, #tpu.memory_space<vmem>>, vector<256x128xbf16>,
    %c1_76 = arith.constant 1 : index
    %c8_77 = arith.constant 8 : index
    %c0_78 = arith.constant 0 : index
    %69 = vector.load %arg13[%c1_76, %c8_77, %c0_78] : memref<18x32x128xf32, #tpu.memory_space<vmem>>, vector<16x16x128xf32>
    %70 = vector.shape_cast %69 : vector<16x16x128xf32> to vector<256x128xf32>
    %71 = arith.truncf %70 : vector<256x128xf32> to vector<256x128xbf16>
    %c0_79 = arith.constant 0 : index
    %c512_80 = arith.constant 512 : index
    %72 = vector.load %arg15[%c0_79, %c512_80] : memref<256x1152xbf16, #tpu.memory_space<vmem>>, vector<256x128xbf16>
    tpu.vector_store %arg15[%c0_79, %c512_80], %71 {strides = array<i32>} : memref<256x1152xbf16, #tpu.memory_space<vmem>>, vector<256x128xbf16>,
    %c1_81 = arith.constant 1 : index
    %c9_82 = arith.constant 9 : index
    %c0_83 = arith.constant 0 : index
    %73 = vector.load %arg13[%c1_81, %c9_82, %c0_83] : memref<18x32x128xf32, #tpu.memory_space<vmem>>, vector<16x16x128xf32>
    %74 = vector.shape_cast %73 : vector<16x16x128xf32> to vector<256x128xf32>
    %75 = arith.truncf %74 : vector<256x128xf32> to vector<256x128xbf16>
    %c0_84 = arith.constant 0 : index
    %c640_85 = arith.constant 640 : index
    %76 = vector.load %arg15[%c0_84, %c640_85] : memref<256x1152xbf16, #tpu.memory_space<vmem>>, vector<256x128xbf16>
    tpu.vector_store %arg15[%c0_84, %c640_85], %75 {strides = array<i32>} : memref<256x1152xbf16, #tpu.memory_space<vmem>>, vector<256x128xbf16>,
    %c2_86 = arith.constant 2 : index
    %c7_87 = arith.constant 7 : index
    %c0_88 = arith.constant 0 : index
    %77 = vector.load %arg13[%c2_86, %c7_87, %c0_88] : memref<18x32x128xf32, #tpu.memory_space<vmem>>, vector<16x16x128xf32>
    %78 = vector.shape_cast %77 : vector<16x16x128xf32> to vector<256x128xf32>
    %79 = arith.truncf %78 : vector<256x128xf32> to vector<256x128xbf16>
    %c0_89 = arith.constant 0 : index
    %c768_90 = arith.constant 768 : index
    %80 = vector.load %arg15[%c0_89, %c768_90] : memref<256x1152xbf16, #tpu.memory_space<vmem>>, vector<256x128xbf16>
    tpu.vector_store %arg15[%c0_89, %c768_90], %79 {strides = array<i32>} : memref<256x1152xbf16, #tpu.memory_space<vmem>>, vector<256x128xbf16>,
    %c2_91 = arith.constant 2 : index
    %c8_92 = arith.constant 8 : index
    %c0_93 = arith.constant 0 : index
    %81 = vector.load %arg13[%c2_91, %c8_92, %c0_93] : memref<18x32x128xf32, #tpu.memory_space<vmem>>, vector<16x16x128xf32>
    %82 = vector.shape_cast %81 : vector<16x16x128xf32> to vector<256x128xf32>
    %83 = arith.truncf %82 : vector<256x128xf32> to vector<256x128xbf16>
    %c0_94 = arith.constant 0 : index
    %c896_95 = arith.constant 896 : index
    %84 = vector.load %arg15[%c0_94, %c896_95] : memref<256x1152xbf16, #tpu.memory_space<vmem>>, vector<256x128xbf16>
    tpu.vector_store %arg15[%c0_94, %c896_95], %83 {strides = array<i32>} : memref<256x1152xbf16, #tpu.memory_space<vmem>>, vector<256x128xbf16>,
    %c2_96 = arith.constant 2 : index
    %c9_97 = arith.constant 9 : index
    %c0_98 = arith.constant 0 : index
    %85 = vector.load %arg13[%c2_96, %c9_97, %c0_98] : memref<18x32x128xf32, #tpu.memory_space<vmem>>, vector<16x16x128xf32>
    %86 = vector.shape_cast %85 : vector<16x16x128xf32> to vector<256x128xf32>
    %87 = arith.truncf %86 : vector<256x128xf32> to vector<256x128xbf16>
    %c0_99 = arith.constant 0 : index
    %c1024_100 = arith.constant 1024 : index
    %88 = vector.load %arg15[%c0_99, %c1024_100] : memref<256x1152xbf16, #tpu.memory_space<vmem>>, vector<256x128xbf16>
    tpu.vector_store %arg15[%c0_99, %c1024_100], %87 {strides = array<i32>} : memref<256x1152xbf16, #tpu.memory_space<vmem>>, vector<256x128xbf16>,
    %c0_101 = arith.constant 0 : index
    %c0_102 = arith.constant 0 : index
    %89 = vector.load %arg15[%c0_101, %c0_102] : memref<256x1152xbf16, #tpu.memory_space<vmem>>, vector<256x1152xbf16>
    %c0_103 = arith.constant 0 : index
    %c0_104 = arith.constant 0 : index
    %90 = vector.load %arg4[%c0_103, %c0_104] : memref<1152x128xbf16, #tpu.memory_space<vmem>>, vector<1152x128xbf16>
    %cst_105 = arith.constant dense<0.000000e+00> : vector<256x128xf32>
    %91 = tpu.matmul %89, %90, %cst_105 {dimension_numbers = #tpu.dot_dimension_numbers<[1], [0], [0], [1], [0, 0, 1, 1], [], []>} : vector<256x1152xbf16>, vector<1152x128xbf16>, vector<256x128xf32> -> vector<256x128xf32>
    %c0_106 = arith.constant 0 : index
    %c0_107 = arith.constant 0 : index
    %92 = vector.load %arg5[%c0_106, %c0_107] : memref<1x128xf32, #tpu.memory_space<vmem>>, vector<1x128xf32>
    %93 = vector.broadcast %92 : vector<1x128xf32> to vector<256x128xf32>
    %94 = arith.addf %91, %93 : vector<256x128xf32>
    %cst_108 = arith.constant 0.000000e+00 : f32
    %95 = vector.broadcast %cst_108 : f32 to vector<256x128xf32>
    %96 = arith.maximumf %94, %95 : vector<256x128xf32>
    %c0_109 = arith.constant 0 : index
    %c0_110 = arith.constant 0 : index
    %97 = vector.load %arg10[%c0_109, %c0_110] : memref<256x256xbf16, #tpu.memory_space<vmem>>, vector<256x256xbf16>
    %98 = arith.truncf %96 : vector<256x128xf32> to vector<256x128xbf16>
    %cst_111 = arith.constant dense<0.000000e+00> : vector<256x128xf32>
    %99 = tpu.matmul %97, %98, %cst_111 {dimension_numbers = #tpu.dot_dimension_numbers<[1], [0], [0], [1], [0, 0, 1, 1], [], []>} : vector<256x256xbf16>, vector<256x128xbf16>, vector<256x128xf32> -> vector<256x128xf32>
    %100 = vector.shape_cast %99 : vector<256x128xf32> to vector<4x64x128xf32>
    %cst_112 = arith.constant dense<0xFF800000> : vector<64x128xf32>
    %101 = vector.multi_reduction <maximumf>, %100, %cst_112 [0] : vector<4x64x128xf32> to vector<64x128xf32>
    %102 = vector.shape_cast %101 : vector<64x128xf32> to vector<8x8x128xf32>
    %c1_113 = arith.constant 1 : index
    %c8_114 = arith.constant 8 : index
    %c0_115 = arith.constant 0 : index
    %103 = vector.load %arg14[%c1_113, %c8_114, %c0_115] : memref<10x24x128xf32, #tpu.memory_space<vmem>>, vector<8x8x128xf32>
    tpu.vector_store %arg14[%c1_113, %c8_114, %c0_115], %102 {strides = array<i32>} : memref<10x24x128xf32, #tpu.memory_space<vmem>>, vector<8x8x128xf32>,
    %c0_116 = arith.constant 0 : index
    %c7_117 = arith.constant 7 : index
    %c0_118 = arith.constant 0 : index
    %104 = vector.load %arg14[%c0_116, %c7_117, %c0_118] : memref<10x24x128xf32, #tpu.memory_space<vmem>>, vector<8x8x128xf32>
    %105 = vector.shape_cast %104 : vector<8x8x128xf32> to vector<64x128xf32>
    %106 = arith.truncf %105 : vector<64x128xf32> to vector<64x128xbf16>
    %c0_119 = arith.constant 0 : index
    %c0_120 = arith.constant 0 : index
    %107 = vector.load %arg15[%c0_119, %c0_120] : memref<256x1152xbf16, #tpu.memory_space<vmem>>, vector<64x128xbf16>
    tpu.vector_store %arg15[%c0_119, %c0_120], %106 {strides = array<i32>} : memref<256x1152xbf16, #tpu.memory_space<vmem>>, vector<64x128xbf16>,
    %c0_121 = arith.constant 0 : index
    %c8_122 = arith.constant 8 : index
    %c0_123 = arith.constant 0 : index
    %108 = vector.load %arg14[%c0_121, %c8_122, %c0_123] : memref<10x24x128xf32, #tpu.memory_space<vmem>>, vector<8x8x128xf32>
    %109 = vector.shape_cast %108 : vector<8x8x128xf32> to vector<64x128xf32>
    %110 = arith.truncf %109 : vector<64x128xf32> to vector<64x128xbf16>
    %c0_124 = arith.constant 0 : index
    %c128_125 = arith.constant 128 : index
    %111 = vector.load %arg15[%c0_124, %c128_125] : memref<256x1152xbf16, #tpu.memory_space<vmem>>, vector<64x128xbf16>
    tpu.vector_store %arg15[%c0_124, %c128_125], %110 {strides = array<i32>} : memref<256x1152xbf16, #tpu.memory_space<vmem>>, vector<64x128xbf16>,
    %c0_126 = arith.constant 0 : index
    %c9_127 = arith.constant 9 : index
    %c0_128 = arith.constant 0 : index
    %112 = vector.load %arg14[%c0_126, %c9_127, %c0_128] : memref<10x24x128xf32, #tpu.memory_space<vmem>>, vector<8x8x128xf32>
    %113 = vector.shape_cast %112 : vector<8x8x128xf32> to vector<64x128xf32>
    %114 = arith.truncf %113 : vector<64x128xf32> to vector<64x128xbf16>
    %c0_129 = arith.constant 0 : index
    %c256_130 = arith.constant 256 : index
    %115 = vector.load %arg15[%c0_129, %c256_130] : memref<256x1152xbf16, #tpu.memory_space<vmem>>, vector<64x128xbf16>
    tpu.vector_store %arg15[%c0_129, %c256_130], %114 {strides = array<i32>} : memref<256x1152xbf16, #tpu.memory_space<vmem>>, vector<64x128xbf16>,
    %c1_131 = arith.constant 1 : index
    %c7_132 = arith.constant 7 : index
    %c0_133 = arith.constant 0 : index
    %116 = vector.load %arg14[%c1_131, %c7_132, %c0_133] : memref<10x24x128xf32, #tpu.memory_space<vmem>>, vector<8x8x128xf32>
    %117 = vector.shape_cast %116 : vector<8x8x128xf32> to vector<64x128xf32>
    %118 = arith.truncf %117 : vector<64x128xf32> to vector<64x128xbf16>
    %c0_134 = arith.constant 0 : index
    %c384_135 = arith.constant 384 : index
    %119 = vector.load %arg15[%c0_134, %c384_135] : memref<256x1152xbf16, #tpu.memory_space<vmem>>, vector<64x128xbf16>
    tpu.vector_store %arg15[%c0_134, %c384_135], %118 {strides = array<i32>} : memref<256x1152xbf16, #tpu.memory_space<vmem>>, vector<64x128xbf16>,
    %c1_136 = arith.constant 1 : index
    %c8_137 = arith.constant 8 : index
    %c0_138 = arith.constant 0 : index
    %120 = vector.load %arg14[%c1_136, %c8_137, %c0_138] : memref<10x24x128xf32, #tpu.memory_space<vmem>>, vector<8x8x128xf32>
    %121 = vector.shape_cast %120 : vector<8x8x128xf32> to vector<64x128xf32>
    %122 = arith.truncf %121 : vector<64x128xf32> to vector<64x128xbf16>
    %c0_139 = arith.constant 0 : index
    %c512_140 = arith.constant 512 : index
    %123 = vector.load %arg15[%c0_139, %c512_140] : memref<256x1152xbf16, #tpu.memory_space<vmem>>, vector<64x128xbf16>
    tpu.vector_store %arg15[%c0_139, %c512_140], %122 {strides = array<i32>} : memref<256x1152xbf16, #tpu.memory_space<vmem>>, vector<64x128xbf16>,
    %c1_141 = arith.constant 1 : index
    %c9_142 = arith.constant 9 : index
    %c0_143 = arith.constant 0 : index
    %124 = vector.load %arg14[%c1_141, %c9_142, %c0_143] : memref<10x24x128xf32, #tpu.memory_space<vmem>>, vector<8x8x128xf32>
    %125 = vector.shape_cast %124 : vector<8x8x128xf32> to vector<64x128xf32>
    %126 = arith.truncf %125 : vector<64x128xf32> to vector<64x128xbf16>
    %c0_144 = arith.constant 0 : index
    %c640_145 = arith.constant 640 : index
    %127 = vector.load %arg15[%c0_144, %c640_145] : memref<256x1152xbf16, #tpu.memory_space<vmem>>, vector<64x128xbf16>
    tpu.vector_store %arg15[%c0_144, %c640_145], %126 {strides = array<i32>} : memref<256x1152xbf16, #tpu.memory_space<vmem>>, vector<64x128xbf16>,
    %c2_146 = arith.constant 2 : index
    %c7_147 = arith.constant 7 : index
    %c0_148 = arith.constant 0 : index
    %128 = vector.load %arg14[%c2_146, %c7_147, %c0_148] : memref<10x24x128xf32, #tpu.memory_space<vmem>>, vector<8x8x128xf32>
    %129 = vector.shape_cast %128 : vector<8x8x128xf32> to vector<64x128xf32>
    %130 = arith.truncf %129 : vector<64x128xf32> to vector<64x128xbf16>
    %c0_149 = arith.constant 0 : index
    %c768_150 = arith.constant 768 : index
    %131 = vector.load %arg15[%c0_149, %c768_150] : memref<256x1152xbf16, #tpu.memory_space<vmem>>, vector<64x128xbf16>
    tpu.vector_store %arg15[%c0_149, %c768_150], %130 {strides = array<i32>} : memref<256x1152xbf16, #tpu.memory_space<vmem>>, vector<64x128xbf16>,
    %c2_151 = arith.constant 2 : index
    %c8_152 = arith.constant 8 : index
    %c0_153 = arith.constant 0 : index
    %132 = vector.load %arg14[%c2_151, %c8_152, %c0_153] : memref<10x24x128xf32, #tpu.memory_space<vmem>>, vector<8x8x128xf32>
    %133 = vector.shape_cast %132 : vector<8x8x128xf32> to vector<64x128xf32>
    %134 = arith.truncf %133 : vector<64x128xf32> to vector<64x128xbf16>
    %c0_154 = arith.constant 0 : index
    %c896_155 = arith.constant 896 : index
    %135 = vector.load %arg15[%c0_154, %c896_155] : memref<256x1152xbf16, #tpu.memory_space<vmem>>, vector<64x128xbf16>
    tpu.vector_store %arg15[%c0_154, %c896_155], %134 {strides = array<i32>} : memref<256x1152xbf16, #tpu.memory_space<vmem>>, vector<64x128xbf16>,
    %c2_156 = arith.constant 2 : index
    %c9_157 = arith.constant 9 : index
    %c0_158 = arith.constant 0 : index
    %136 = vector.load %arg14[%c2_156, %c9_157, %c0_158] : memref<10x24x128xf32, #tpu.memory_space<vmem>>, vector<8x8x128xf32>
    %137 = vector.shape_cast %136 : vector<8x8x128xf32> to vector<64x128xf32>
    %138 = arith.truncf %137 : vector<64x128xf32> to vector<64x128xbf16>
    %c0_159 = arith.constant 0 : index
    %c1024_160 = arith.constant 1024 : index
    %139 = vector.load %arg15[%c0_159, %c1024_160] : memref<256x1152xbf16, #tpu.memory_space<vmem>>, vector<64x128xbf16>
    tpu.vector_store %arg15[%c0_159, %c1024_160], %138 {strides = array<i32>} : memref<256x1152xbf16, #tpu.memory_space<vmem>>, vector<64x128xbf16>,
    %c0_161 = arith.constant 0 : index
    %c0_162 = arith.constant 0 : index
    %140 = vector.load %arg15[%c0_161, %c0_162] : memref<256x1152xbf16, #tpu.memory_space<vmem>>, vector<64x1152xbf16>
    %c0_163 = arith.constant 0 : index
    %c0_164 = arith.constant 0 : index
    %141 = vector.load %arg6[%c0_163, %c0_164] : memref<1152x128xbf16, #tpu.memory_space<vmem>>, vector<1152x128xbf16>
    %cst_165 = arith.constant dense<0.000000e+00> : vector<64x128xf32>
    %142 = tpu.matmul %140, %141, %cst_165 {dimension_numbers = #tpu.dot_dimension_numbers<[1], [0], [0], [1], [0, 0, 1, 1], [], []>} : vector<64x1152xbf16>, vector<1152x128xbf16>, vector<64x128xf32> -> vector<64x128xf32>
    %c0_166 = arith.constant 0 : index
    %c0_167 = arith.constant 0 : index
    %143 = vector.load %arg7[%c0_166, %c0_167] : memref<1x128xf32, #tpu.memory_space<vmem>>, vector<1x128xf32>
    %144 = vector.broadcast %143 : vector<1x128xf32> to vector<64x128xf32>
    %145 = arith.addf %142, %144 : vector<64x128xf32>
    %cst_168 = arith.constant 0.000000e+00 : f32
    %146 = vector.broadcast %cst_168 : f32 to vector<64x128xf32>
    %147 = arith.maximumf %145, %146 : vector<64x128xf32>
    %148 = vector.shape_cast %147 : vector<64x128xf32> to vector<8x8x128xf32>
    %c1_169 = arith.constant 1 : index
    %c8_170 = arith.constant 8 : index
    %c0_171 = arith.constant 0 : index
    %149 = vector.load %arg14[%c1_169, %c8_170, %c0_171] : memref<10x24x128xf32, #tpu.memory_space<vmem>>, vector<8x8x128xf32>
    tpu.vector_store %arg14[%c1_169, %c8_170, %c0_171], %148 {strides = array<i32>} : memref<10x24x128xf32, #tpu.memory_space<vmem>>, vector<8x8x128xf32>,
    %c0_172 = arith.constant 0 : index
    %c7_173 = arith.constant 7 : index
    %c0_174 = arith.constant 0 : index
    %150 = vector.load %arg14[%c0_172, %c7_173, %c0_174] : memref<10x24x128xf32, #tpu.memory_space<vmem>>, vector<8x8x128xf32>
    %151 = vector.shape_cast %150 : vector<8x8x128xf32> to vector<64x128xf32>
    %152 = arith.truncf %151 : vector<64x128xf32> to vector<64x128xbf16>
    %c0_175 = arith.constant 0 : index
    %c0_176 = arith.constant 0 : index
    %153 = vector.load %arg15[%c0_175, %c0_176] : memref<256x1152xbf16, #tpu.memory_space<vmem>>, vector<64x128xbf16>
    tpu.vector_store %arg15[%c0_175, %c0_176], %152 {strides = array<i32>} : memref<256x1152xbf16, #tpu.memory_space<vmem>>, vector<64x128xbf16>,
    %c0_177 = arith.constant 0 : index
    %c8_178 = arith.constant 8 : index
    %c0_179 = arith.constant 0 : index
    %154 = vector.load %arg14[%c0_177, %c8_178, %c0_179] : memref<10x24x128xf32, #tpu.memory_space<vmem>>, vector<8x8x128xf32>
    %155 = vector.shape_cast %154 : vector<8x8x128xf32> to vector<64x128xf32>
    %156 = arith.truncf %155 : vector<64x128xf32> to vector<64x128xbf16>
    %c0_180 = arith.constant 0 : index
    %c128_181 = arith.constant 128 : index
    %157 = vector.load %arg15[%c0_180, %c128_181] : memref<256x1152xbf16, #tpu.memory_space<vmem>>, vector<64x128xbf16>
    tpu.vector_store %arg15[%c0_180, %c128_181], %156 {strides = array<i32>} : memref<256x1152xbf16, #tpu.memory_space<vmem>>, vector<64x128xbf16>,
    %c0_182 = arith.constant 0 : index
    %c9_183 = arith.constant 9 : index
    %c0_184 = arith.constant 0 : index
    %158 = vector.load %arg14[%c0_182, %c9_183, %c0_184] : memref<10x24x128xf32, #tpu.memory_space<vmem>>, vector<8x8x128xf32>
    %159 = vector.shape_cast %158 : vector<8x8x128xf32> to vector<64x128xf32>
    %160 = arith.truncf %159 : vector<64x128xf32> to vector<64x128xbf16>
    %c0_185 = arith.constant 0 : index
    %c256_186 = arith.constant 256 : index
    %161 = vector.load %arg15[%c0_185, %c256_186] : memref<256x1152xbf16, #tpu.memory_space<vmem>>, vector<64x128xbf16>
    tpu.vector_store %arg15[%c0_185, %c256_186], %160 {strides = array<i32>} : memref<256x1152xbf16, #tpu.memory_space<vmem>>, vector<64x128xbf16>,
    %c1_187 = arith.constant 1 : index
    %c7_188 = arith.constant 7 : index
    %c0_189 = arith.constant 0 : index
    %162 = vector.load %arg14[%c1_187, %c7_188, %c0_189] : memref<10x24x128xf32, #tpu.memory_space<vmem>>, vector<8x8x128xf32>
    %163 = vector.shape_cast %162 : vector<8x8x128xf32> to vector<64x128xf32>
    %164 = arith.truncf %163 : vector<64x128xf32> to vector<64x128xbf16>
    %c0_190 = arith.constant 0 : index
    %c384_191 = arith.constant 384 : index
    %165 = vector.load %arg15[%c0_190, %c384_191] : memref<256x1152xbf16, #tpu.memory_space<vmem>>, vector<64x128xbf16>
    tpu.vector_store %arg15[%c0_190, %c384_191], %164 {strides = array<i32>} : memref<256x1152xbf16, #tpu.memory_space<vmem>>, vector<64x128xbf16>,
    %c1_192 = arith.constant 1 : index
    %c8_193 = arith.constant 8 : index
    %c0_194 = arith.constant 0 : index
    %166 = vector.load %arg14[%c1_192, %c8_193, %c0_194] : memref<10x24x128xf32, #tpu.memory_space<vmem>>, vector<8x8x128xf32>
    %167 = vector.shape_cast %166 : vector<8x8x128xf32> to vector<64x128xf32>
    %168 = arith.truncf %167 : vector<64x128xf32> to vector<64x128xbf16>
    %c0_195 = arith.constant 0 : index
    %c512_196 = arith.constant 512 : index
    %169 = vector.load %arg15[%c0_195, %c512_196] : memref<256x1152xbf16, #tpu.memory_space<vmem>>, vector<64x128xbf16>
    tpu.vector_store %arg15[%c0_195, %c512_196], %168 {strides = array<i32>} : memref<256x1152xbf16, #tpu.memory_space<vmem>>, vector<64x128xbf16>,
    %c1_197 = arith.constant 1 : index
    %c9_198 = arith.constant 9 : index
    %c0_199 = arith.constant 0 : index
    %170 = vector.load %arg14[%c1_197, %c9_198, %c0_199] : memref<10x24x128xf32, #tpu.memory_space<vmem>>, vector<8x8x128xf32>
    %171 = vector.shape_cast %170 : vector<8x8x128xf32> to vector<64x128xf32>
    %172 = arith.truncf %171 : vector<64x128xf32> to vector<64x128xbf16>
    %c0_200 = arith.constant 0 : index
    %c640_201 = arith.constant 640 : index
    %173 = vector.load %arg15[%c0_200, %c640_201] : memref<256x1152xbf16, #tpu.memory_space<vmem>>, vector<64x128xbf16>
    tpu.vector_store %arg15[%c0_200, %c640_201], %172 {strides = array<i32>} : memref<256x1152xbf16, #tpu.memory_space<vmem>>, vector<64x128xbf16>,
    %c2_202 = arith.constant 2 : index
    %c7_203 = arith.constant 7 : index
    %c0_204 = arith.constant 0 : index
    %174 = vector.load %arg14[%c2_202, %c7_203, %c0_204] : memref<10x24x128xf32, #tpu.memory_space<vmem>>, vector<8x8x128xf32>
    %175 = vector.shape_cast %174 : vector<8x8x128xf32> to vector<64x128xf32>
    %176 = arith.truncf %175 : vector<64x128xf32> to vector<64x128xbf16>
    %c0_205 = arith.constant 0 : index
    %c768_206 = arith.constant 768 : index
    %177 = vector.load %arg15[%c0_205, %c768_206] : memref<256x1152xbf16, #tpu.memory_space<vmem>>, vector<64x128xbf16>
    tpu.vector_store %arg15[%c0_205, %c768_206], %176 {strides = array<i32>} : memref<256x1152xbf16, #tpu.memory_space<vmem>>, vector<64x128xbf16>,
    %c2_207 = arith.constant 2 : index
    %c8_208 = arith.constant 8 : index
    %c0_209 = arith.constant 0 : index
    %178 = vector.load %arg14[%c2_207, %c8_208, %c0_209] : memref<10x24x128xf32, #tpu.memory_space<vmem>>, vector<8x8x128xf32>
    %179 = vector.shape_cast %178 : vector<8x8x128xf32> to vector<64x128xf32>
    %180 = arith.truncf %179 : vector<64x128xf32> to vector<64x128xbf16>
    %c0_210 = arith.constant 0 : index
    %c896_211 = arith.constant 896 : index
    %181 = vector.load %arg15[%c0_210, %c896_211] : memref<256x1152xbf16, #tpu.memory_space<vmem>>, vector<64x128xbf16>
    tpu.vector_store %arg15[%c0_210, %c896_211], %180 {strides = array<i32>} : memref<256x1152xbf16, #tpu.memory_space<vmem>>, vector<64x128xbf16>,
    %c2_212 = arith.constant 2 : index
    %c9_213 = arith.constant 9 : index
    %c0_214 = arith.constant 0 : index
    %182 = vector.load %arg14[%c2_212, %c9_213, %c0_214] : memref<10x24x128xf32, #tpu.memory_space<vmem>>, vector<8x8x128xf32>
    %183 = vector.shape_cast %182 : vector<8x8x128xf32> to vector<64x128xf32>
    %184 = arith.truncf %183 : vector<64x128xf32> to vector<64x128xbf16>
    %c0_215 = arith.constant 0 : index
    %c1024_216 = arith.constant 1024 : index
    %185 = vector.load %arg15[%c0_215, %c1024_216] : memref<256x1152xbf16, #tpu.memory_space<vmem>>, vector<64x128xbf16>
    tpu.vector_store %arg15[%c0_215, %c1024_216], %184 {strides = array<i32>} : memref<256x1152xbf16, #tpu.memory_space<vmem>>, vector<64x128xbf16>,
    %c0_217 = arith.constant 0 : index
    %c0_218 = arith.constant 0 : index
    %186 = vector.load %arg15[%c0_217, %c0_218] : memref<256x1152xbf16, #tpu.memory_space<vmem>>, vector<64x1152xbf16>
    %c0_219 = arith.constant 0 : index
    %c0_220 = arith.constant 0 : index
    %187 = vector.load %arg8[%c0_219, %c0_220] : memref<1152x128xbf16, #tpu.memory_space<vmem>>, vector<1152x128xbf16>
    %cst_221 = arith.constant dense<0.000000e+00> : vector<64x128xf32>
    %188 = tpu.matmul %186, %187, %cst_221 {dimension_numbers = #tpu.dot_dimension_numbers<[1], [0], [0], [1], [0, 0, 1, 1], [], []>} : vector<64x1152xbf16>, vector<1152x128xbf16>, vector<64x128xf32> -> vector<64x128xf32>
    %c0_222 = arith.constant 0 : index
    %c0_223 = arith.constant 0 : index
    %189 = vector.load %arg9[%c0_222, %c0_223] : memref<1x128xf32, #tpu.memory_space<vmem>>, vector<1x128xf32>
    %190 = vector.broadcast %189 : vector<1x128xf32> to vector<64x128xf32>
    %191 = arith.addf %188, %190 : vector<64x128xf32>
    %cst_224 = arith.constant 0.000000e+00 : f32
    %192 = vector.broadcast %cst_224 : f32 to vector<64x128xf32>
    %193 = arith.maximumf %191, %192 : vector<64x128xf32>
    %c0_225 = arith.constant 0 : index
    %c0_226 = arith.constant 0 : index
    %194 = vector.load %arg11[%c0_225, %c0_226] : memref<256x64xbf16, #tpu.memory_space<vmem>>, vector<256x64xbf16>
    %195 = arith.truncf %193 : vector<64x128xf32> to vector<64x128xbf16>
    %cst_227 = arith.constant dense<0.000000e+00> : vector<256x128xf32>
    %196 = tpu.matmul %194, %195, %cst_227 {dimension_numbers = #tpu.dot_dimension_numbers<[1], [0], [0], [1], [0, 0, 1, 1], [], []>} : vector<256x64xbf16>, vector<64x128xbf16>, vector<256x128xf32> -> vector<256x128xf32>
    %c0_228 = arith.constant 0 : index
    %c0_229 = arith.constant 0 : index
    %c0_230 = arith.constant 0 : index
    %197 = vector.load %arg12[%c0_228, %c0_229, %c0_230] : memref<1x256x128xf32, #tpu.memory_space<vmem>>, vector<1x256x128xf32>
    %198 = vector.shape_cast %197 : vector<1x256x128xf32> to vector<256x128xf32>
    %199 = vector.shape_cast %196 : vector<256x128xf32> to vector<1x256x128xf32>
    tpu.vector_store %arg12[%c0_228, %c0_229, %c0_230], %199 {strides = array<i32>} : memref<1x256x128xf32, #tpu.memory_space<vmem>>, vector<1x256x128xf32>,
    return
  }
  func.func @transform_0(%arg0: i32) -> (i32, i32, i32, i32) {
    %c0_i32 = arith.constant 0 : i32
    %c0_i32_0 = arith.constant 0 : i32
    %c0_i32_1 = arith.constant 0 : i32
    %c0_i32_2 = arith.constant 0 : i32
    return %arg0, %c0_i32, %c0_i32_0, %c0_i32_1 : i32, i32, i32, i32
  }
  func.func @transform_1(%arg0: i32) -> (i32, i32) {
    %c0_i32 = arith.constant 0 : i32
    %c0_i32_0 = arith.constant 0 : i32
    %c0_i32_1 = arith.constant 0 : i32
    return %c0_i32, %c0_i32_0 : i32, i32
  }
  func.func @transform_2(%arg0: i32) -> (i32, i32) {
    %c0_i32 = arith.constant 0 : i32
    %c0_i32_0 = arith.constant 0 : i32
    %c0_i32_1 = arith.constant 0 : i32
    return %c0_i32, %c0_i32_0 : i32, i32
  }
  func.func @transform_3(%arg0: i32) -> (i32, i32) {
    %c0_i32 = arith.constant 0 : i32
    %c0_i32_0 = arith.constant 0 : i32
    %c0_i32_1 = arith.constant 0 : i32
    return %c0_i32, %c0_i32_0 : i32, i32
  }
  func.func @transform_4(%arg0: i32) -> (i32, i32) {
    %c0_i32 = arith.constant 0 : i32
    %c0_i32_0 = arith.constant 0 : i32
    %c0_i32_1 = arith.constant 0 : i32
    return %c0_i32, %c0_i32_0 : i32, i32
  }
  func.func @transform_5(%arg0: i32) -> (i32, i32) {
    %c0_i32 = arith.constant 0 : i32
    %c0_i32_0 = arith.constant 0 : i32
    %c0_i32_1 = arith.constant 0 : i32
    return %c0_i32, %c0_i32_0 : i32, i32
  }
  func.func @transform_6(%arg0: i32) -> (i32, i32) {
    %c0_i32 = arith.constant 0 : i32
    %c0_i32_0 = arith.constant 0 : i32
    %c0_i32_1 = arith.constant 0 : i32
    return %c0_i32, %c0_i32_0 : i32, i32
  }
  func.func @transform_7(%arg0: i32) -> (i32, i32) {
    %c0_i32 = arith.constant 0 : i32
    %c0_i32_0 = arith.constant 0 : i32
    %c0_i32_1 = arith.constant 0 : i32
    return %c0_i32, %c0_i32_0 : i32, i32
  }
  func.func @transform_8(%arg0: i32) -> (i32, i32) {
    %c0_i32 = arith.constant 0 : i32
    %c0_i32_0 = arith.constant 0 : i32
    %c0_i32_1 = arith.constant 0 : i32
    return %c0_i32, %c0_i32_0 : i32, i32
  }
  func.func @transform_9(%arg0: i32) -> (i32, i32) {
    %c0_i32 = arith.constant 0 : i32
    %c0_i32_0 = arith.constant 0 : i32
    %c0_i32_1 = arith.constant 0 : i32
    return %c0_i32, %c0_i32_0 : i32, i32
  }
  func.func @transform_10(%arg0: i32) -> (i32, i32) {
    %c0_i32 = arith.constant 0 : i32
    %c0_i32_0 = arith.constant 0 : i32
    %c0_i32_1 = arith.constant 0 : i32
    return %c0_i32, %c0_i32_0 : i32, i32
  }
  func.func @transform_11(%arg0: i32) -> (i32, i32, i32) {
    %c0_i32 = arith.constant 0 : i32
    %c0_i32_0 = arith.constant 0 : i32
    %c0_i32_1 = arith.constant 0 : i32
    return %arg0, %c0_i32, %c0_i32_0 : i32, i32, i32
  }
}

</mosaic_0001>

<llo_original>
// kernel: unet_old_forward.1
$region0: #{unet_old_forward.1}
  #allocation0 [shape = 'u32[]', space=smem, size = 0x4, offset = 0x4, fixed_abs, tag = 'smem constant byte address 0x4 - core index']
  #allocation1 [shape = 'u32[144,128]{1,0:T(1,128)}', space=vmem, size = 0x12000, scoped, tag = 'internal scratch']
  #allocation2 [shape = 'f32[18,32,128]{2,1,0:T(8,128)}', space=vmem, size = 0x48000, scoped, tag = 'scratch operand']
  #allocation3 [shape = 'f32[10,24,128]{2,1,0:T(8,128)}', space=vmem, size = 0x1e000, scoped, tag = 'scratch operand']
  #allocation4 [shape = 'bf16[256,1152]{1,0:T(16,128)(2,1)}', space=vmem, size = 0x90000, scoped, tag = 'scratch operand']
  %s0 = inlined_call_operand.vmem [shape: f32[2,16,16,4], index: 0, kind: input, shape index: {}]
  %s1 = inlined_call_operand.vmem [shape: bf16[1152,128], index: 1, kind: input, shape index: {}]
  %s2 = inlined_call_operand.vmem [shape: f32[1,128], index: 2, kind: input, shape index: {}]
  %s3 = inlined_call_operand.vmem [shape: bf16[1152,128], index: 3, kind: input, shape index: {}]
  %s4 = inlined_call_operand.vmem [shape: f32[1,128], index: 4, kind: input, shape index: {}]
  %s5 = inlined_call_operand.vmem [shape: bf16[1152,128], index: 5, kind: input, shape index: {}]
  %s6 = inlined_call_operand.vmem [shape: f32[1,128], index: 6, kind: input, shape index: {}]
  %s7 = inlined_call_operand.vmem [shape: bf16[1152,128], index: 7, kind: input, shape index: {}]
  %s8 = inlined_call_operand.vmem [shape: f32[1,128], index: 8, kind: input, shape index: {}]
  %s9 = inlined_call_operand.vmem [shape: bf16[256,256], index: 9, kind: input, shape index: {}]
  %s10 = inlined_call_operand.vmem [shape: bf16[256,64], index: 10, kind: input, shape index: {}]
  %s11 = inlined_call_operand.vmem [shape: f32[2,256,128], index: 11, kind: output, shape index: {}]
  %s12 = sld [smem:[#allocation0]]
  $region77: #{unet_old_forward.1} parent=0
    _
  %s14 = ssub.s32 1, %s12
  %s15 = scalar_select 0, %s14, %s12
  loop: start=0, step=1, limit=4
  $region2: #{unet_old_forward.1} parent=0 // loop_pre_header
    _
  $region3: #{unet_old_forward.1} parent=0 // loop_header
    %s17 = sphi 0, %s21
    %p18 = scmp.ge.s32.totalorder %s17, 4
    %s27 = sphi 0, %s29
    %s30 = sphi 0, %s27
    %s31 = sphi 0, %s30
    %s47 = sphi 0, %s31
    %s51 = sphi 0, %s51
    %s53 = sphi 0, %s51
    %s54 = sphi 0, %s53
    %s68 = sphi 0, %s54
    %s72 = sphi 0, %s72
    %s74 = sphi 0, %s72
    %s75 = sphi 0, %s74
    %s89 = sphi 0, %s75
    %s93 = sphi 0, %s93
    %s95 = sphi 0, %s93
    %s96 = sphi 0, %s95
    %s110 = sphi 0, %s96
    %s114 = sphi 0, %s114
    %s116 = sphi 0, %s114
    %s117 = sphi 0, %s116
    %s131 = sphi 0, %s117
    %s135 = sphi 0, %s135
    %s137 = sphi 0, %s135
    %s138 = sphi 0, %s137
    %s152 = sphi 0, %s138
    %s156 = sphi 0, %s156
    %s158 = sphi 0, %s156
    %s159 = sphi 0, %s158
    %s173 = sphi 0, %s159
    %s177 = sphi 0, %s177
    %s179 = sphi 0, %s177
    %s180 = sphi 0, %s179
    %s194 = sphi 0, %s180
    %s198 = sphi 0, %s198
    %s200 = sphi 0, %s198
    %s201 = sphi 0, %s200
    %s215 = sphi 0, %s201
    %s219 = sphi 0, %s219
    %s221 = sphi 0, %s219
    %s222 = sphi 0, %s221
    %s236 = sphi 0, %s222
    %s240 = sphi 0, %s240
    %s242 = sphi 0, %s240
    %s243 = sphi 0, %s242
    %s257 = sphi 0, %s243
    %s263 = sphi 0, %s265
    %s266 = sphi 0, %s263
    %s267 = sphi 0, %s266
    %s283 = sphi 0, %s267
  $region4: #{unet_old_forward.1} parent=0 // loop_header_branch
    %20 = sbr.rel (%p18) target = $region8
  $region5: #{unet_old_forward.1} parent=0 // loop_body
    %s22 = ssub.s32 %s17, 1
    %s23 = ssub.s32 %s17, 2
    %s24 = sadd.s32 %s17, 1
    %s25 = ssub.s32 %s17, %s24
    %p26 = scmp.eq.s32.totalorder %s25, 0
    %s28 = sadd.s32 %s27, 1
    %s29 = scalar_select %p26, %s27, %s28
    %p32 = pneg %p26
    %p33 = scmp.eq.s32.totalorder %s17, 1
    %p34 = por %p32, %p33
    %p35 = scmp.ne.s32.totalorder %s27, %s30
    %p36 = scmp.eq.s32.totalorder %s17, 0
    %p37 = por %p35, %p36
    %p38 = scmp.ne.s32.totalorder %s27, %s30
    %p39 = scmp.eq.s32.totalorder %s22, 1
    %p40 = por %p38, %p39
    %p41 = scmp.ne.s32.totalorder %s30, %s31
    %p42 = scmp.eq.s32.totalorder %s22, 0
    %p43 = por %p41, %p42
    %p44 = scmp.ne.s32.totalorder %s30, %s31
    %p45 = scmp.eq.s32.totalorder %s23, 1
    %p46 = por %p44, %p45
    %p48 = scmp.ne.s32.totalorder %s31, %s47
    %p49 = scmp.eq.s32.totalorder %s23, 0
    %p50 = por %p48, %p49
    %s52 = sadd.s32 %s51, 1
    %p55 = scmp.eq.s32.totalorder %s17, 1
    %p56 = scmp.ne.s32.totalorder %s51, %s53
    %p57 = scmp.eq.s32.totalorder %s17, 0
    %p58 = por %p56, %p57
    %p59 = scmp.ne.s32.totalorder %s51, %s53
    %p60 = scmp.eq.s32.totalorder %s22, 1
    %p61 = por %p59, %p60
    %p62 = scmp.ne.s32.totalorder %s53, %s54
    %p63 = scmp.eq.s32.totalorder %s22, 0
    %p64 = por %p62, %p63
    %p65 = scmp.ne.s32.totalorder %s53, %s54
    %p66 = scmp.eq.s32.totalorder %s23, 1
    %p67 = por %p65, %p66
    %p69 = scmp.ne.s32.totalorder %s54, %s68
    %p70 = scmp.eq.s32.totalorder %s23, 0
    %p71 = por %p69, %p70
    %s73 = sadd.s32 %s72, 1
    %p76 = scmp.eq.s32.totalorder %s17, 1
    %p77 = scmp.ne.s32.totalorder %s72, %s74
    %p78 = scmp.eq.s32.totalorder %s17, 0
    %p79 = por %p77, %p78
    %p80 = scmp.ne.s32.totalorder %s72, %s74
    %p81 = scmp.eq.s32.totalorder %s22, 1
    %p82 = por %p80, %p81
    %p83 = scmp.ne.s32.totalorder %s74, %s75
    %p84 = scmp.eq.s32.totalorder %s22, 0
    %p85 = por %p83, %p84
    %p86 = scmp.ne.s32.totalorder %s74, %s75
    %p87 = scmp.eq.s32.totalorder %s23, 1
    %p88 = por %p86, %p87
    %p90 = scmp.ne.s32.totalorder %s75, %s89
    %p91 = scmp.eq.s32.totalorder %s23, 0
    %p92 = por %p90, %p91
    %s94 = sadd.s32 %s93, 1
    %p97 = scmp.eq.s32.totalorder %s17, 1
    %p98 = scmp.ne.s32.totalorder %s93, %s95
    %p99 = scmp.eq.s32.totalorder %s17, 0
    %p100 = por %p98, %p99
    %p101 = scmp.ne.s32.totalorder %s93, %s95
    %p102 = scmp.eq.s32.totalorder %s22, 1
    %p103 = por %p101, %p102
    %p104 = scmp.ne.s32.totalorder %s95, %s96
    %p105 = scmp.eq.s32.totalorder %s22, 0
    %p106 = por %p104, %p105
    %p107 = scmp.ne.s32.totalorder %s95, %s96
    %p108 = scmp.eq.s32.totalorder %s23, 1
    %p109 = por %p107, %p108
    %p111 = scmp.ne.s32.totalorder %s96, %s110
    %p112 = scmp.eq.s32.totalorder %s23, 0
    %p113 = por %p111, %p112
    %s115 = sadd.s32 %s114, 1
    %p118 = scmp.eq.s32.totalorder %s17, 1
    %p119 = scmp.ne.s32.totalorder %s114, %s116
    %p120 = scmp.eq.s32.totalorder %s17, 0
    %p121 = por %p119, %p120
    %p122 = scmp.ne.s32.totalorder %s114, %s116
    %p123 = scmp.eq.s32.totalorder %s22, 1
    %p124 = por %p122, %p123
    %p125 = scmp.ne.s32.totalorder %s116, %s117
    %p126 = scmp.eq.s32.totalorder %s22, 0
    %p127 = por %p125, %p126
    %p128 = scmp.ne.s32.totalorder %s116, %s117
    %p129 = scmp.eq.s32.totalorder %s23, 1
    %p130 = por %p128, %p129
    %p132 = scmp.ne.s32.totalorder %s117, %s131
    %p133 = scmp.eq.s32.totalorder %s23, 0
    %p134 = por %p132, %p133
    %s136 = sadd.s32 %s135, 1
    %p139 = scmp.eq.s32.totalorder %s17, 1
    %p140 = scmp.ne.s32.totalorder %s135, %s137
    %p141 = scmp.eq.s32.totalorder %s17, 0
    %p142 = por %p140, %p141
    %p143 = scmp.ne.s32.totalorder %s135, %s137
    %p144 = scmp.eq.s32.totalorder %s22, 1
    %p145 = por %p143, %p144
    %p146 = scmp.ne.s32.totalorder %s137, %s138
    %p147 = scmp.eq.s32.totalorder %s22, 0
    %p148 = por %p146, %p147
    %p149 = scmp.ne.s32.totalorder %s137, %s138
    %p150 = scmp.eq.s32.totalorder %s23, 1
    %p151 = por %p149, %p150
    %p153 = scmp.ne.s32.totalorder %s138, %s152
    %p154 = scmp.eq.s32.totalorder %s23, 0
    %p155 = por %p153, %p154
    %s157 = sadd.s32 %s156, 1
    %p160 = scmp.eq.s32.totalorder %s17, 1
    %p161 = scmp.ne.s32.totalorder %s156, %s158
    %p162 = scmp.eq.s32.totalorder %s17, 0
    %p163 = por %p161, %p162
    %p164 = scmp.ne.s32.totalorder %s156, %s158
    %p165 = scmp.eq.s32.totalorder %s22, 1
    %p166 = por %p164, %p165
    %p167 = scmp.ne.s32.totalorder %s158, %s159
    %p168 = scmp.eq.s32.totalorder %s22, 0
    %p169 = por %p167, %p168
    %p170 = scmp.ne.s32.totalorder %s158, %s159
    %p171 = scmp.eq.s32.totalorder %s23, 1
    %p172 = por %p170, %p171
    %p174 = scmp.ne.s32.totalorder %s159, %s173
    %p175 = scmp.eq.s32.totalorder %s23, 0
    %p176 = por %p174, %p175
    %s178 = sadd.s32 %s177, 1
    %p181 = scmp.eq.s32.totalorder %s17, 1
    %p182 = scmp.ne.s32.totalorder %s177, %s179
    %p183 = scmp.eq.s32.totalorder %s17, 0
    %p184 = por %p182, %p183
    %p185 = scmp.ne.s32.totalorder %s177, %s179
    %p186 = scmp.eq.s32.totalorder %s22, 1
    %p187 = por %p185, %p186
    %p188 = scmp.ne.s32.totalorder %s179, %s180
    %p189 = scmp.eq.s32.totalorder %s22, 0
    %p190 = por %p188, %p189
    %p191 = scmp.ne.s32.totalorder %s179, %s180
    %p192 = scmp.eq.s32.totalorder %s23, 1
    %p193 = por %p191, %p192
    %p195 = scmp.ne.s32.totalorder %s180, %s194
    %p196 = scmp.eq.s32.totalorder %s23, 0
    %p197 = por %p195, %p196
    %s199 = sadd.s32 %s198, 1
    %p202 = scmp.eq.s32.totalorder %s17, 1
    %p203 = scmp.ne.s32.totalorder %s198, %s200
    %p204 = scmp.eq.s32.totalorder %s17, 0
    %p205 = por %p203, %p204
    %p206 = scmp.ne.s32.totalorder %s198, %s200
    %p207 = scmp.eq.s32.totalorder %s22, 1
    %p208 = por %p206, %p207
    %p209 = scmp.ne.s32.totalorder %s200, %s201
    %p210 = scmp.eq.s32.totalorder %s22, 0
    %p211 = por %p209, %p210
    %p212 = scmp.ne.s32.totalorder %s200, %s201
    %p213 = scmp.eq.s32.totalorder %s23, 1
    %p214 = por %p212, %p213
    %p216 = scmp.ne.s32.totalorder %s201, %s215
    %p217 = scmp.eq.s32.totalorder %s23, 0
    %p218 = por %p216, %p217
    %s220 = sadd.s32 %s219, 1
    %p223 = scmp.eq.s32.totalorder %s17, 1
    %p224 = scmp.ne.s32.totalorder %s219, %s221
    %p225 = scmp.eq.s32.totalorder %s17, 0
    %p226 = por %p224, %p225
    %p227 = scmp.ne.s32.totalorder %s219, %s221
    %p228 = scmp.eq.s32.totalorder %s22, 1
    %p229 = por %p227, %p228
    %p230 = scmp.ne.s32.totalorder %s221, %s222
    %p231 = scmp.eq.s32.totalorder %s22, 0
    %p232 = por %p230, %p231
    %p233 = scmp.ne.s32.totalorder %s221, %s222
    %p234 = scmp.eq.s32.totalorder %s23, 1
    %p235 = por %p233, %p234
    %p237 = scmp.ne.s32.totalorder %s222, %s236
    %p238 = scmp.eq.s32.totalorder %s23, 0
    %p239 = por %p237, %p238
    %s241 = sadd.s32 %s240, 1
    %p244 = scmp.eq.s32.totalorder %s17, 1
    %p245 = scmp.ne.s32.totalorder %s240, %s242
    %p246 = scmp.eq.s32.totalorder %s17, 0
    %p247 = por %p245, %p246
    %p248 = scmp.ne.s32.totalorder %s240, %s242
    %p249 = scmp.eq.s32.totalorder %s22, 1
    %p250 = por %p248, %p249
    %p251 = scmp.ne.s32.totalorder %s242, %s243
    %p252 = scmp.eq.s32.totalorder %s22, 0
    %p253 = por %p251, %p252
    %p254 = scmp.ne.s32.totalorder %s242, %s243
    %p255 = scmp.eq.s32.totalorder %s23, 1
    %p256 = por %p254, %p255
    %p258 = scmp.ne.s32.totalorder %s243, %s257
    %p259 = scmp.eq.s32.totalorder %s23, 0
    %p260 = por %p258, %p259
    %s261 = ssub.s32 %s17, %s24
    %p262 = scmp.eq.s32.totalorder %s261, 0
    %s264 = sadd.s32 %s263, 1
    %s265 = scalar_select %p262, %s263, %s264
    %p268 = pneg %p262
    %p269 = scmp.eq.s32.totalorder %s17, 1
    %p270 = por %p268, %p269
    %p271 = scmp.ne.s32.totalorder %s263, %s266
    %p272 = scmp.eq.s32.totalorder %s17, 0
    %p273 = por %p271, %p272
    %p274 = scmp.ne.s32.totalorder %s263, %s266
    %p275 = scmp.eq.s32.totalorder %s22, 1
    %p276 = por %p274, %p275
    %p277 = scmp.ne.s32.totalorder %s266, %s267
    %p278 = scmp.eq.s32.totalorder %s22, 0
    %p279 = por %p277, %p278
    %p280 = scmp.ne.s32.totalorder %s266, %s267
    %p281 = scmp.eq.s32.totalorder %s23, 1
    %p282 = por %p280, %p281
    %p284 = scmp.ne.s32.totalorder %s267, %s283
    %p285 = scmp.eq.s32.totalorder %s23, 0
    %p286 = por %p284, %p285
    %p287 = scmp.le.s32.totalorder 1, %s17
    %p288 = scmp.lt.s32.totalorder %s17, 3
    %p289 = pnand %p287, %p288
    %p290 = pneg %p289
    // Predicated region
    $region9: #{unet_old_forward.1} parent=5 // pred_check
      _
    $region10: #{unet_old_forward.1} parent=5 // pred_check_branch
      %292 = sbr.rel (%p289) target = $region12
    $region11: #{unet_old_forward.1} parent=5 // pred_region
      %s293 = ssub.s32 %s17, 1
      // Predicated region
      $region13: #{unet_old_forward.1} parent=11 // pred_check
        %p294 = pneg %p64
      $region14: #{unet_old_forward.1} parent=11 // pred_check_branch
        %296 = sbr.rel (%p294) target = $region16
      $region15: #{unet_old_forward.1} parent=11 // pred_region
        _
      $region16: #{unet_old_forward.1} parent=11 // pred_fallthru
        _
      // Predicated region
      $region17: #{unet_old_forward.1} parent=11 // pred_check
        %p297 = pneg %p85
      $region18: #{unet_old_forward.1} parent=11 // pred_check_branch
        %299 = sbr.rel (%p297) target = $region20
      $region19: #{unet_old_forward.1} parent=11 // pred_region
        _
      $region20: #{unet_old_forward.1} parent=11 // pred_fallthru
        _
      // Predicated region
      $region21: #{unet_old_forward.1} parent=11 // pred_check
        %p300 = pneg %p106
      $region22: #{unet_old_forward.1} parent=11 // pred_check_branch
        %302 = sbr.rel (%p300) target = $region24
      $region23: #{unet_old_forward.1} parent=11 // pred_region
        _
      $region24: #{unet_old_forward.1} parent=11 // pred_fallthru
        _
      // Predicated region
      $region25: #{unet_old_forward.1} parent=11 // pred_check
        %p303 = pneg %p127
      $region26: #{unet_old_forward.1} parent=11 // pred_check_branch
        %305 = sbr.rel (%p303) target = $region28
      $region27: #{unet_old_forward.1} parent=11 // pred_region
        _
      $region28: #{unet_old_forward.1} parent=11 // pred_fallthru
        _
      // Predicated region
      $region29: #{unet_old_forward.1} parent=11 // pred_check
        %p306 = pneg %p148
      $region30: #{unet_old_forward.1} parent=11 // pred_check_branch
        %308 = sbr.rel (%p306) target = $region32
      $region31: #{unet_old_forward.1} parent=11 // pred_region
        _
      $region32: #{unet_old_forward.1} parent=11 // pred_fallthru
        _
      // Predicated region
      $region33: #{unet_old_forward.1} parent=11 // pred_check
        %p309 = pneg %p169
      $region34: #{unet_old_forward.1} parent=11 // pred_check_branch
        %311 = sbr.rel (%p309) target = $region36
      $region35: #{unet_old_forward.1} parent=11 // pred_region
        _
      $region36: #{unet_old_forward.1} parent=11 // pred_fallthru
        _
      // Predicated region
      $region37: #{unet_old_forward.1} parent=11 // pred_check
        %p312 = pneg %p190
      $region38: #{unet_old_forward.1} parent=11 // pred_check_branch
        %314 = sbr.rel (%p312) target = $region40
      $region39: #{unet_old_forward.1} parent=11 // pred_region
        _
      $region40: #{unet_old_forward.1} parent=11 // pred_fallthru
        _
      // Predicated region
      $region41: #{unet_old_forward.1} parent=11 // pred_check
        %p315 = pneg %p211
      $region42: #{unet_old_forward.1} parent=11 // pred_check_branch
        %317 = sbr.rel (%p315) target = $region44
      $region43: #{unet_old_forward.1} parent=11 // pred_region
        _
      $region44: #{unet_old_forward.1} parent=11 // pred_fallthru
        _
      // Predicated region
      $region45: #{unet_old_forward.1} parent=11 // pred_check
        %p318 = pneg %p232
      $region46: #{unet_old_forward.1} parent=11 // pred_check_branch
        %320 = sbr.rel (%p318) target = $region48
      $region47: #{unet_old_forward.1} parent=11 // pred_region
        _
      $region48: #{unet_old_forward.1} parent=11 // pred_fallthru
        _
      // Predicated region
      $region49: #{unet_old_forward.1} parent=11 // pred_check
        %p321 = pneg %p253
      $region50: #{unet_old_forward.1} parent=11 // pred_check_branch
        %323 = sbr.rel (%p321) target = $region52
      $region51: #{unet_old_forward.1} parent=11 // pred_region
        _
      $region52: #{unet_old_forward.1} parent=11 // pred_fallthru
        _
    $region12: #{unet_old_forward.1} parent=5 // pred_fallthru
      _
    %p324 = scmp.lt.s32.totalorder %s17, 2
    // Predicated region
    $region53: #{unet_old_forward.1} parent=5 // pred_check
      %p325 = pneg %p324
    $region54: #{unet_old_forward.1} parent=5 // pred_check_branch
      %327 = sbr.rel (%p325) target = $region56
    $region55: #{unet_old_forward.1} parent=5 // pred_region
      // Predicated region
      $region57: #{unet_old_forward.1} parent=55 // pred_check
        %p328 = pneg %p37
      $region58: #{unet_old_forward.1} parent=55 // pred_check_branch
        %330 = sbr.rel (%p328) target = $region60
      $region59: #{unet_old_forward.1} parent=55 // pred_region
        %p331 = scmp.lt.s32.totalorder %s17, 1
        %s332 = scalar_select %p331, %s17, 1
        %s333 = smul.addr %s332, 32
        %s334 = smul.addr %s333, 8
        %s335 = scalar_lea.vmem %s0, %s334
      $region60: #{unet_old_forward.1} parent=55 // pred_fallthru
        _
    $region56: #{unet_old_forward.1} parent=5 // pred_fallthru
      _
    %p336 = scmp.le.s32.totalorder 1, %s17
    %p337 = scmp.lt.s32.totalorder %s17, 3
    %p338 = pnand %p336, %p337
    %p339 = pneg %p338
    // Predicated region
    $region61: #{unet_old_forward.1} parent=5 // pred_check
      _
    $region62: #{unet_old_forward.1} parent=5 // pred_check_branch
      %341 = sbr.rel (%p338) target = $region64
    $region63: #{unet_old_forward.1} parent=5 // pred_region
      %s342 = ssub.s32 %s17, 1
      %p343 = scmp.lt.s32.totalorder %s22, 1
      %s344 = scalar_select %p343, %s22, 1
      %s345 = smul.addr %s344, 32
      %s346 = smul.addr %s345, 8
      %s347 = scalar_lea.vmem %s0, %s346
      %p348 = pneg %p43
      %p349 = pneg %p40
      %p350 = pneg %p64
      %p351 = pneg %p61
      %p352 = pneg %p85
      %p353 = pneg %p82
      %p354 = pneg %p106
      %p355 = pneg %p103
      %p356 = pneg %p127
      %p357 = pneg %p124
      %p358 = pneg %p148
      %p359 = pneg %p145
      %p360 = pneg %p169
      %p361 = pneg %p166
      %p362 = pneg %p190
      %p363 = pneg %p187
      %p364 = pneg %p211
      %p365 = pneg %p208
      %p366 = pneg %p232
      %p367 = pneg %p229
      %p368 = pneg %p253
      %p369 = pneg %p250
      %p370 = pneg %p279
      %p371 = pneg %p276
      %p372 = scmp.lt.s32.totalorder %s22, 1
      %s373 = scalar_select %p372, %s22, 1
      %s374 = smul.addr %s373, 32
      %s375 = smul.addr %s374, 8
      %s376 = scalar_lea.vmem %s11, %s375
      %p377 = scmp.lt.s32.totalorder %s22, 1
      %s378 = scalar_select %p377, %s22, 1
      %s379 = smul.addr %s378, 32
      %s380 = smul.addr %s379, 8
      %s381 = scalar_lea.vmem %s0, %s380
      %p382 = scmp.lt.s32.totalorder %s22, 1
      %s383 = scalar_select %p382, %s22, 1
      %s384 = smul.addr %s383, 32
      %s385 = smul.addr %s384, 8
      %s386 = scalar_lea.vmem %s11, %s385
      %388 = vst [vmem:[#allocation2] sm:$0xff] 0.0
      %389 = vst [vmem:[#allocation2 + $0x8] sm:$0xff] 0.0
      %390 = vst [vmem:[#allocation2 + $0x10] sm:$0xff] 0.0
      %391 = vst [vmem:[#allocation2 + $0x18] sm:$0xff] 0.0
      %392 = vst [vmem:[#allocation2 + $0x20] sm:$0xff] 0.0
      %393 = vst [vmem:[#allocation2 + $0x28] sm:$0xff] 0.0
      %394 = vst [vmem:[#allocation2 + $0x30] sm:$0xff] 0.0
      %395 = vst [vmem:[#allocation2 + $0x38] sm:$0xff] 0.0
      %396 = vst [vmem:[#allocation2 + $0x40] sm:$0xff] 0.0
      %397 = vst [vmem:[#allocation2 + $0x48] sm:$0xff] 0.0
      %398 = vst [vmem:[#allocation2 + $0x50] sm:$0xff] 0.0
      %399 = vst [vmem:[#allocation2 + $0x58] sm:$0xff] 0.0
      %400 = vst [vmem:[#allocation2 + $0x60] sm:$0xff] 0.0
      %401 = vst [vmem:[#allocation2 + $0x68] sm:$0xff] 0.0
      %402 = vst [vmem:[#allocation2 + $0x70] sm:$0xff] 0.0
      %403 = vst [vmem:[#allocation2 + $0x78] sm:$0xff] 0.0
      %404 = vst [vmem:[#allocation2 + $0x80] sm:$0xff] 0.0
      %405 = vst [vmem:[#allocation2 + $0x88] sm:$0xff] 0.0
      %406 = vst [vmem:[#allocation2 + $0x90] sm:$0xff] 0.0
      %407 = vst [vmem:[#allocation2 + $0x98] sm:$0xff] 0.0
      %408 = vst [vmem:[#allocation2 + $0xa0] sm:$0xff] 0.0
      %409 = vst [vmem:[#allocation2 + $0xa8] sm:$0xff] 0.0
      %410 = vst [vmem:[#allocation2 + $0xb0] sm:$0xff] 0.0
      %411 = vst [vmem:[#allocation2 + $0xb8] sm:$0xff] 0.0
      %412 = vst [vmem:[#allocation2 + $0xc0] sm:$0xff] 0.0
      %413 = vst [vmem:[#allocation2 + $0xc8] sm:$0xff] 0.0
      %414 = vst [vmem:[#allocation2 + $0xd0] sm:$0xff] 0.0
      %415 = vst [vmem:[#allocation2 + $0xd8] sm:$0xff] 0.0
      %416 = vst [vmem:[#allocation2 + $0xe0] sm:$0xff] 0.0
      %417 = vst [vmem:[#allocation2 + $0xe8] sm:$0xff] 0.0
      %418 = vst [vmem:[#allocation2 + $0xf0] sm:$0xff] 0.0
      %419 = vst [vmem:[#allocation2 + $0xf8] sm:$0xff] 0.0
      %420 = vst [vmem:[#allocation2 + $0x100] sm:$0xff] 0.0
      %421 = vst [vmem:[#allocation2 + $0x108] sm:$0xff] 0.0
      %422 = vst [vmem:[#allocation2 + $0x110] sm:$0xff] 0.0
      %423 = vst [vmem:[#allocation2 + $0x118] sm:$0xff] 0.0
      %424 = vst [vmem:[#allocation2 + $0x120] sm:$0xff] 0.0
      %425 = vst [vmem:[#allocation2 + $0x128] sm:$0xff] 0.0
      %426 = vst [vmem:[#allocation2 + $0x130] sm:$0xff] 0.0
      %427 = vst [vmem:[#allocation2 + $0x138] sm:$0xff] 0.0
      %428 = vst [vmem:[#allocation2 + $0x140] sm:$0xff] 0.0
      %429 = vst [vmem:[#allocation2 + $0x148] sm:$0xff] 0.0
      %430 = vst [vmem:[#allocation2 + $0x150] sm:$0xff] 0.0
      %431 = vst [vmem:[#allocation2 + $0x158] sm:$0xff] 0.0
      %432 = vst [vmem:[#allocation2 + $0x160] sm:$0xff] 0.0
      %433 = vst [vmem:[#allocation2 + $0x168] sm:$0xff] 0.0
      %434 = vst [vmem:[#allocation2 + $0x170] sm:$0xff] 0.0
      %435 = vst [vmem:[#allocation2 + $0x178] sm:$0xff] 0.0
      %436 = vst [vmem:[#allocation2 + $0x180] sm:$0xff] 0.0
      %437 = vst [vmem:[#allocation2 + $0x188] sm:$0xff] 0.0
      %438 = vst [vmem:[#allocation2 + $0x190] sm:$0xff] 0.0
      %439 = vst [vmem:[#allocation2 + $0x198] sm:$0xff] 0.0
      %440 = vst [vmem:[#allocation2 + $0x1a0] sm:$0xff] 0.0
      %441 = vst [vmem:[#allocation2 + $0x1a8] sm:$0xff] 0.0
      %442 = vst [vmem:[#allocation2 + $0x1b0] sm:$0xff] 0.0
      %443 = vst [vmem:[#allocation2 + $0x1b8] sm:$0xff] 0.0
      %444 = vst [vmem:[#allocation2 + $0x1c0] sm:$0xff] 0.0
      %445 = vst [vmem:[#allocation2 + $0x1c8] sm:$0xff] 0.0
      %446 = vst [vmem:[#allocation2 + $0x1d0] sm:$0xff] 0.0
      %447 = vst [vmem:[#allocation2 + $0x1d8] sm:$0xff] 0.0
      %448 = vst [vmem:[#allocation2 + $0x1e0] sm:$0xff] 0.0
      %449 = vst [vmem:[#allocation2 + $0x1e8] sm:$0xff] 0.0
      %450 = vst [vmem:[#allocation2 + $0x1f0] sm:$0xff] 0.0
      %451 = vst [vmem:[#allocation2 + $0x1f8] sm:$0xff] 0.0
      %452 = vst [vmem:[#allocation2 + $0x200] sm:$0xff] 0.0
      %453 = vst [vmem:[#allocation2 + $0x208] sm:$0xff] 0.0
      %454 = vst [vmem:[#allocation2 + $0x210] sm:$0xff] 0.0
      %455 = vst [vmem:[#allocation2 + $0x218] sm:$0xff] 0.0
      %456 = vst [vmem:[#allocation2 + $0x220] sm:$0xff] 0.0
      %457 = vst [vmem:[#allocation2 + $0x228] sm:$0xff] 0.0
      %458 = vst [vmem:[#allocation2 + $0x230] sm:$0xff] 0.0
      %459 = vst [vmem:[#allocation2 + $0x238] sm:$0xff] 0.0
      %460 = vst [vmem:[#allocation3] sm:$0xff] 0.0
      %461 = vst [vmem:[#allocation3 + $0x8] sm:$0xff] 0.0
      %462 = vst [vmem:[#allocation3 + $0x10] sm:$0xff] 0.0
      %463 = vst [vmem:[#allocation3 + $0x18] sm:$0xff] 0.0
      %464 = vst [vmem:[#allocation3 + $0x20] sm:$0xff] 0.0
      %465 = vst [vmem:[#allocation3 + $0x28] sm:$0xff] 0.0
      %466 = vst [vmem:[#allocation3 + $0x30] sm:$0xff] 0.0
      %467 = vst [vmem:[#allocation3 + $0x38] sm:$0xff] 0.0
      %468 = vst [vmem:[#allocation3 + $0x40] sm:$0xff] 0.0
      %469 = vst [vmem:[#allocation3 + $0x48] sm:$0xff] 0.0
      %470 = vst [vmem:[#allocation3 + $0x50] sm:$0xff] 0.0
      %471 = vst [vmem:[#allocation3 + $0x58] sm:$0xff] 0.0
      %472 = vst [vmem:[#allocation3 + $0x60] sm:$0xff] 0.0
      %473 = vst [vmem:[#allocation3 + $0x68] sm:$0xff] 0.0
      %474 = vst [vmem:[#allocation3 + $0x70] sm:$0xff] 0.0
      %475 = vst [vmem:[#allocation3 + $0x78] sm:$0xff] 0.0
      %476 = vst [vmem:[#allocation3 + $0x80] sm:$0xff] 0.0
      %477 = vst [vmem:[#allocation3 + $0x88] sm:$0xff] 0.0
      %478 = vst [vmem:[#allocation3 + $0x90] sm:$0xff] 0.0
      %479 = vst [vmem:[#allocation3 + $0x98] sm:$0xff] 0.0
      %480 = vst [vmem:[#allocation3 + $0xa0] sm:$0xff] 0.0
      %481 = vst [vmem:[#allocation3 + $0xa8] sm:$0xff] 0.0
      %482 = vst [vmem:[#allocation3 + $0xb0] sm:$0xff] 0.0
      %483 = vst [vmem:[#allocation3 + $0xb8] sm:$0xff] 0.0
      %484 = vst [vmem:[#allocation3 + $0xc0] sm:$0xff] 0.0
      %485 = vst [vmem:[#allocation3 + $0xc8] sm:$0xff] 0.0
      %486 = vst [vmem:[#allocation3 + $0xd0] sm:$0xff] 0.0
      %487 = vst [vmem:[#allocation3 + $0xd8] sm:$0xff] 0.0
      %488 = vst [vmem:[#allocation3 + $0xe0] sm:$0xff] 0.0
      %489 = vst [vmem:[#allocation3 + $0xe8] sm:$0xff] 0.0
      %v490 = vld [vmem:[%s381] sm:$0xff]
      %v491 = vld [vmem:[%s381 + $0x8] sm:$0xff]
      %v492 = vld [vmem:[%s381 + $0x10] sm:$0xff]
      %v493 = vld [vmem:[%s381 + $0x18] sm:$0xff]
      %v494 = vld [vmem:[%s381 + $0x20] sm:$0xff]
      %v495 = vld [vmem:[%s381 + $0x28] sm:$0xff]
      %v496 = vld [vmem:[%s381 + $0x30] sm:$0xff]
      %v497 = vld [vmem:[%s381 + $0x38] sm:$0xff]
      %v498 = vld [vmem:[%s381 + $0x40] sm:$0xff]
      %v499 = vld [vmem:[%s381 + $0x48] sm:$0xff]
      %v500 = vld [vmem:[%s381 + $0x50] sm:$0xff]
      %v501 = vld [vmem:[%s381 + $0x58] sm:$0xff]
      %v502 = vld [vmem:[%s381 + $0x60] sm:$0xff]
      %v503 = vld [vmem:[%s381 + $0x68] sm:$0xff]
      %v504 = vld [vmem:[%s381 + $0x70] sm:$0xff]
      %v505 = vld [vmem:[%s381 + $0x78] sm:$0xff]
      %v506 = vld [vmem:[%s381 + $0x80] sm:$0xff]
      %v507 = vld [vmem:[%s381 + $0x88] sm:$0xff]
      %v508 = vld [vmem:[%s381 + $0x90] sm:$0xff]
      %v509 = vld [vmem:[%s381 + $0x98] sm:$0xff]
      %v510 = vld [vmem:[%s381 + $0xa0] sm:$0xff]
      %v511 = vld [vmem:[%s381 + $0xa8] sm:$0xff]
      %v512 = vld [vmem:[%s381 + $0xb0] sm:$0xff]
      %v513 = vld [vmem:[%s381 + $0xb8] sm:$0xff]
      %v514 = vld [vmem:[%s381 + $0xc0] sm:$0xff]
      %v515 = vld [vmem:[%s381 + $0xc8] sm:$0xff]
      %v516 = vld [vmem:[%s381 + $0xd0] sm:$0xff]
      %v517 = vld [vmem:[%s381 + $0xd8] sm:$0xff]
      %v518 = vld [vmem:[%s381 + $0xe0] sm:$0xff]
      %v519 = vld [vmem:[%s381 + $0xe8] sm:$0xff]
      %v520 = vld [vmem:[%s381 + $0xf0] sm:$0xff]
      %v521 = vld [vmem:[%s381 + $0xf8] sm:$0xff]
      %s522 = scalar_lea.vmem [#allocation2], 32
      %vm523 = vcmask 31744
      %524 = vst.msk [vmem:[%s522 + $0x8] sm:$0xff] %vm523, %v490
      %525 = vst.msk [vmem:[%s522 + $0x10] sm:$0xff] %vm523, %v491
      %526 = vst.msk [vmem:[%s522 + $0x28] sm:$0xff] %vm523, %v492
      %527 = vst.msk [vmem:[%s522 + $0x30] sm:$0xff] %vm523, %v493
      %528 = vst.msk [vmem:[%s522 + $0x48] sm:$0xff] %vm523, %v494
      %529 = vst.msk [vmem:[%s522 + $0x50] sm:$0xff] %vm523, %v495
      %530 = vst.msk [vmem:[%s522 + $0x68] sm:$0xff] %vm523, %v496
      %531 = vst.msk [vmem:[%s522 + $0x70] sm:$0xff] %vm523, %v497
      %532 = vst.msk [vmem:[%s522 + $0x88] sm:$0xff] %vm523, %v498
      %533 = vst.msk [vmem:[%s522 + $0x90] sm:$0xff] %vm523, %v499
      %534 = vst.msk [vmem:[%s522 + $0xa8] sm:$0xff] %vm523, %v500
      %535 = vst.msk [vmem:[%s522 + $0xb0] sm:$0xff] %vm523, %v501
      %536 = vst.msk [vmem:[%s522 + $0xc8] sm:$0xff] %vm523, %v502
      %537 = vst.msk [vmem:[%s522 + $0xd0] sm:$0xff] %vm523, %v503
      %538 = vst.msk [vmem:[%s522 + $0xe8] sm:$0xff] %vm523, %v504
      %539 = vst.msk [vmem:[%s522 + $0xf0] sm:$0xff] %vm523, %v505
      %540 = vst.msk [vmem:[%s522 + $0x108] sm:$0xff] %vm523, %v506
      %541 = vst.msk [vmem:[%s522 + $0x110] sm:$0xff] %vm523, %v507
      %542 = vst.msk [vmem:[%s522 + $0x128] sm:$0xff] %vm523, %v508
      %543 = vst.msk [vmem:[%s522 + $0x130] sm:$0xff] %vm523, %v509
      %544 = vst.msk [vmem:[%s522 + $0x148] sm:$0xff] %vm523, %v510
      %545 = vst.msk [vmem:[%s522 + $0x150] sm:$0xff] %vm523, %v511
      %546 = vst.msk [vmem:[%s522 + $0x168] sm:$0xff] %vm523, %v512
      %547 = vst.msk [vmem:[%s522 + $0x170] sm:$0xff] %vm523, %v513
      %548 = vst.msk [vmem:[%s522 + $0x188] sm:$0xff] %vm523, %v514
      %549 = vst.msk [vmem:[%s522 + $0x190] sm:$0xff] %vm523, %v515
      %550 = vst.msk [vmem:[%s522 + $0x1a8] sm:$0xff] %vm523, %v516
      %551 = vst.msk [vmem:[%s522 + $0x1b0] sm:$0xff] %vm523, %v517
      %552 = vst.msk [vmem:[%s522 + $0x1c8] sm:$0xff] %vm523, %v518
      %553 = vst.msk [vmem:[%s522 + $0x1d0] sm:$0xff] %vm523, %v519
      %554 = vst.msk [vmem:[%s522 + $0x1e8] sm:$0xff] %vm523, %v520
      %555 = vst.msk [vmem:[%s522 + $0x1f0] sm:$0xff] %vm523, %v521
      %v556 = vld [vmem:[#allocation2 + $0x7] sm:$0xff]
      %v557 = vld [vmem:[#allocation2 + $0xf] sm:$0xff]
      %v558 = vld [vmem:[#allocation2 + $0x27] sm:$0xff]
      %v559 = vld [vmem:[#allocation2 + $0x2f] sm:$0xff]
      %v560 = vld [vmem:[#allocation2 + $0x47] sm:$0xff]
      %v561 = vld [vmem:[#allocation2 + $0x4f] sm:$0xff]
      %v562 = vld [vmem:[#allocation2 + $0x67] sm:$0xff]
      %v563 = vld [vmem:[#allocation2 + $0x6f] sm:$0xff]
      %v564 = vld [vmem:[#allocation2 + $0x87] sm:$0xff]
      %v565 = vld [vmem:[#allocation2 + $0x8f] sm:$0xff]
      %v566 = vld [vmem:[#allocation2 + $0xa7] sm:$0xff]
      %v567 = vld [vmem:[#allocation2 + $0xaf] sm:$0xff]
      %v568 = vld [vmem:[#allocation2 + $0xc7] sm:$0xff]
      %v569 = vld [vmem:[#allocation2 + $0xcf] sm:$0xff]
      %v570 = vld [vmem:[#allocation2 + $0xe7] sm:$0xff]
      %v571 = vld [vmem:[#allocation2 + $0xef] sm:$0xff]
      %v572 = vld [vmem:[#allocation2 + $0x107] sm:$0xff]
      %v573 = vld [vmem:[#allocation2 + $0x10f] sm:$0xff]
      %v574 = vld [vmem:[#allocation2 + $0x127] sm:$0xff]
      %v575 = vld [vmem:[#allocation2 + $0x12f] sm:$0xff]
      %v576 = vld [vmem:[#allocation2 + $0x147] sm:$0xff]
      %v577 = vld [vmem:[#allocation2 + $0x14f] sm:$0xff]
      %v578 = vld [vmem:[#allocation2 + $0x167] sm:$0xff]
      %v579 = vld [vmem:[#allocation2 + $0x16f] sm:$0xff]
      %v580 = vld [vmem:[#allocation2 + $0x187] sm:$0xff]
      %v581 = vld [vmem:[#allocation2 + $0x18f] sm:$0xff]
      %v582 = vld [vmem:[#allocation2 + $0x1a7] sm:$0xff]
      %v583 = vld [vmem:[#allocation2 + $0x1af] sm:$0xff]
      %v584 = vld [vmem:[#allocation2 + $0x1c7] sm:$0xff]
      %v585 = vld [vmem:[#allocation2 + $0x1cf] sm:$0xff]
      %v586 = vld [vmem:[#allocation2 + $0x1e7] sm:$0xff]
      %v587 = vld [vmem:[#allocation2 + $0x1ef] sm:$0xff]
      %v588 = vpack.c.bf16 %v557, %v556
      %v589 = vpack.c.bf16 %v559, %v558
      %v590 = vpack.c.bf16 %v561, %v560
      %v591 = vpack.c.bf16 %v563, %v562
      %v592 = vpack.c.bf16 %v565, %v564
      %v593 = vpack.c.bf16 %v567, %v566
      %v594 = vpack.c.bf16 %v569, %v568
      %v595 = vpack.c.bf16 %v571, %v570
      %v596 = vpack.c.bf16 %v573, %v572
      %v597 = vpack.c.bf16 %v575, %v574
      %v598 = vpack.c.bf16 %v577, %v576
      %v599 = vpack.c.bf16 %v579, %v578
      %v600 = vpack.c.bf16 %v581, %v580
      %v601 = vpack.c.bf16 %v583, %v582
      %v602 = vpack.c.bf16 %v585, %v584
      %v603 = vpack.c.bf16 %v587, %v586
      %604 = vst [vmem:[#allocation4] sm:$0xff] %v588
      %605 = vst [vmem:[#allocation4 + $0x48] sm:$0xff] %v589
      %606 = vst [vmem:[#allocation4 + $0x90] sm:$0xff] %v590
      %607 = vst [vmem:[#allocation4 + $0xd8] sm:$0xff] %v591
      %608 = vst [vmem:[#allocation4 + $0x120] sm:$0xff] %v592
      %609 = vst [vmem:[#allocation4 + $0x168] sm:$0xff] %v593
      %610 = vst [vmem:[#allocation4 + $0x1b0] sm:$0xff] %v594
      %611 = vst [vmem:[#allocation4 + $0x1f8] sm:$0xff] %v595
      %612 = vst [vmem:[#allocation4 + $0x240] sm:$0xff] %v596
      %613 = vst [vmem:[#allocation4 + $0x288] sm:$0xff] %v597
      %614 = vst [vmem:[#allocation4 + $0x2d0] sm:$0xff] %v598
      %615 = vst [vmem:[#allocation4 + $0x318] sm:$0xff] %v599
      %616 = vst [vmem:[#allocation4 + $0x360] sm:$0xff] %v600
      %617 = vst [vmem:[#allocation4 + $0x3a8] sm:$0xff] %v601
      %618 = vst [vmem:[#allocation4 + $0x3f0] sm:$0xff] %v602
      %619 = vst [vmem:[#allocation4 + $0x438] sm:$0xff] %v603
      %v620 = vld [vmem:[#allocation2 + $0x8] sm:$0xff]
      %v621 = vld [vmem:[#allocation2 + $0x10] sm:$0xff]
      %v622 = vld [vmem:[#allocation2 + $0x28] sm:$0xff]
      %v623 = vld [vmem:[#allocation2 + $0x30] sm:$0xff]
      %v624 = vld [vmem:[#allocation2 + $0x48] sm:$0xff]
      %v625 = vld [vmem:[#allocation2 + $0x50] sm:$0xff]
      %v626 = vld [vmem:[#allocation2 + $0x68] sm:$0xff]
      %v627 = vld [vmem:[#allocation2 + $0x70] sm:$0xff]
      %v628 = vld [vmem:[#allocation2 + $0x88] sm:$0xff]
      %v629 = vld [vmem:[#allocation2 + $0x90] sm:$0xff]
      %v630 = vld [vmem:[#allocation2 + $0xa8] sm:$0xff]
      %v631 = vld [vmem:[#allocation2 + $0xb0] sm:$0xff]
      %v632 = vld [vmem:[#allocation2 + $0xc8] sm:$0xff]
      %v633 = vld [vmem:[#allocation2 + $0xd0] sm:$0xff]
      %v634 = vld [vmem:[#allocation2 + $0xe8] sm:$0xff]
      %v635 = vld [vmem:[#allocation2 + $0xf0] sm:$0xff]
      %v636 = vld [vmem:[#allocation2 + $0x108] sm:$0xff]
      %v637 = vld [vmem:[#allocation2 + $0x110] sm:$0xff]
      %v638 = vld [vmem:[#allocation2 + $0x128] sm:$0xff]
      %v639 = vld [vmem:[#allocation2 + $0x130] sm:$0xff]
      %v640 = vld [vmem:[#allocation2 + $0x148] sm:$0xff]
      %v641 = vld [vmem:[#allocation2 + $0x150] sm:$0xff]
      %v642 = vld [vmem:[#allocation2 + $0x168] sm:$0xff]
      %v643 = vld [vmem:[#allocation2 + $0x170] sm:$0xff]
      %v644 = vld [vmem:[#allocation2 + $0x188] sm:$0xff]
      %v645 = vld [vmem:[#allocation2 + $0x190] sm:$0xff]
      %v646 = vld [vmem:[#allocation2 + $0x1a8] sm:$0xff]
      %v647 = vld [vmem:[#allocation2 + $0x1b0] sm:$0xff]
      %v648 = vld [vmem:[#allocation2 + $0x1c8] sm:$0xff]
      %v649 = vld [vmem:[#allocation2 + $0x1d0] sm:$0xff]
      %v650 = vld [vmem:[#allocation2 + $0x1e8] sm:$0xff]
      %v651 = vld [vmem:[#allocation2 + $0x1f0] sm:$0xff]
      %v652 = vpack.c.bf16 %v621, %v620
      %v653 = vpack.c.bf16 %v623, %v622
      %v654 = vpack.c.bf16 %v625, %v624
      %v655 = vpack.c.bf16 %v627, %v626
      %v656 = vpack.c.bf16 %v629, %v628
      %v657 = vpack.c.bf16 %v631, %v630
      %v658 = vpack.c.bf16 %v633, %v632
      %v659 = vpack.c.bf16 %v635, %v634
      %v660 = vpack.c.bf16 %v637, %v636
      %v661 = vpack.c.bf16 %v639, %v638
      %v662 = vpack.c.bf16 %v641, %v640
      %v663 = vpack.c.bf16 %v643, %v642
      %v664 = vpack.c.bf16 %v645, %v644
      %v665 = vpack.c.bf16 %v647, %v646
      %v666 = vpack.c.bf16 %v649, %v648
      %v667 = vpack.c.bf16 %v651, %v650
      %668 = vst [vmem:[#allocation4 + $0x8] sm:$0xff] %v652
      %669 = vst [vmem:[#allocation4 + $0x50] sm:$0xff] %v653
      %670 = vst [vmem:[#allocation4 + $0x98] sm:$0xff] %v654
      %671 = vst [vmem:[#allocation4 + $0xe0] sm:$0xff] %v655
      %672 = vst [vmem:[#allocation4 + $0x128] sm:$0xff] %v656
      %673 = vst [vmem:[#allocation4 + $0x170] sm:$0xff] %v657
      %674 = vst [vmem:[#allocation4 + $0x1b8] sm:$0xff] %v658
      %675 = vst [vmem:[#allocation4 + $0x200] sm:$0xff] %v659
      %676 = vst [vmem:[#allocation4 + $0x248] sm:$0xff] %v660
      %677 = vst [vmem:[#allocation4 + $0x290] sm:$0xff] %v661
      %678 = vst [vmem:[#allocation4 + $0x2d8] sm:$0xff] %v662
      %679 = vst [vmem:[#allocation4 + $0x320] sm:$0xff] %v663
      %680 = vst [vmem:[#allocation4 + $0x368] sm:$0xff] %v664
      %681 = vst [vmem:[#allocation4 + $0x3b0] sm:$0xff] %v665
      %682 = vst [vmem:[#allocation4 + $0x3f8] sm:$0xff] %v666
      %683 = vst [vmem:[#allocation4 + $0x440] sm:$0xff] %v667
      %v684 = vld [vmem:[#allocation2 + $0x9] sm:$0xff]
      %v685 = vld [vmem:[#allocation2 + $0x11] sm:$0xff]
      %v686 = vld [vmem:[#allocation2 + $0x29] sm:$0xff]
      %v687 = vld [vmem:[#allocation2 + $0x31] sm:$0xff]
      %v688 = vld [vmem:[#allocation2 + $0x49] sm:$0xff]
      %v689 = vld [vmem:[#allocation2 + $0x51] sm:$0xff]
      %v690 = vld [vmem:[#allocation2 + $0x69] sm:$0xff]
      %v691 = vld [vmem:[#allocation2 + $0x71] sm:$0xff]
      %v692 = vld [vmem:[#allocation2 + $0x89] sm:$0xff]
      %v693 = vld [vmem:[#allocation2 + $0x91] sm:$0xff]
      %v694 = vld [vmem:[#allocation2 + $0xa9] sm:$0xff]
      %v695 = vld [vmem:[#allocation2 + $0xb1] sm:$0xff]
      %v696 = vld [vmem:[#allocation2 + $0xc9] sm:$0xff]
      %v697 = vld [vmem:[#allocation2 + $0xd1] sm:$0xff]
      %v698 = vld [vmem:[#allocation2 + $0xe9] sm:$0xff]
      %v699 = vld [vmem:[#allocation2 + $0xf1] sm:$0xff]
      %v700 = vld [vmem:[#allocation2 + $0x109] sm:$0xff]
      %v701 = vld [vmem:[#allocation2 + $0x111] sm:$0xff]
      %v702 = vld [vmem:[#allocation2 + $0x129] sm:$0xff]
      %v703 = vld [vmem:[#allocation2 + $0x131] sm:$0xff]
      %v704 = vld [vmem:[#allocation2 + $0x149] sm:$0xff]
      %v705 = vld [vmem:[#allocation2 + $0x151] sm:$0xff]
      %v706 = vld [vmem:[#allocation2 + $0x169] sm:$0xff]
      %v707 = vld [vmem:[#allocation2 + $0x171] sm:$0xff]
      %v708 = vld [vmem:[#allocation2 + $0x189] sm:$0xff]
      %v709 = vld [vmem:[#allocation2 + $0x191] sm:$0xff]
      %v710 = vld [vmem:[#allocation2 + $0x1a9] sm:$0xff]
      %v711 = vld [vmem:[#allocation2 + $0x1b1] sm:$0xff]
      %v712 = vld [vmem:[#allocation2 + $0x1c9] sm:$0xff]
      %v713 = vld [vmem:[#allocation2 + $0x1d1] sm:$0xff]
      %v714 = vld [vmem:[#allocation2 + $0x1e9] sm:$0xff]
      %v715 = vld [vmem:[#allocation2 + $0x1f1] sm:$0xff]
      %v716 = vpack.c.bf16 %v685, %v684
      %v717 = vpack.c.bf16 %v687, %v686
      %v718 = vpack.c.bf16 %v689, %v688
      %v719 = vpack.c.bf16 %v691, %v690
      %v720 = vpack.c.bf16 %v693, %v692
      %v721 = vpack.c.bf16 %v695, %v694
      %v722 = vpack.c.bf16 %v697, %v696
      %v723 = vpack.c.bf16 %v699, %v698
      %v724 = vpack.c.bf16 %v701, %v700
      %v725 = vpack.c.bf16 %v703, %v702
      %v726 = vpack.c.bf16 %v705, %v704
      %v727 = vpack.c.bf16 %v707, %v706
      %v728 = vpack.c.bf16 %v709, %v708
      %v729 = vpack.c.bf16 %v711, %v710
      %v730 = vpack.c.bf16 %v713, %v712
      %v731 = vpack.c.bf16 %v715, %v714
      %732 = vst [vmem:[#allocation4 + $0x10] sm:$0xff] %v716
      %733 = vst [vmem:[#allocation4 + $0x58] sm:$0xff] %v717
      %734 = vst [vmem:[#allocation4 + $0xa0] sm:$0xff] %v718
      %735 = vst [vmem:[#allocation4 + $0xe8] sm:$0xff] %v719
      %736 = vst [vmem:[#allocation4 + $0x130] sm:$0xff] %v720
      %737 = vst [vmem:[#allocation4 + $0x178] sm:$0xff] %v721
      %738 = vst [vmem:[#allocation4 + $0x1c0] sm:$0xff] %v722
      %739 = vst [vmem:[#allocation4 + $0x208] sm:$0xff] %v723
      %740 = vst [vmem:[#allocation4 + $0x250] sm:$0xff] %v724
      %741 = vst [vmem:[#allocation4 + $0x298] sm:$0xff] %v725
      %742 = vst [vmem:[#allocation4 + $0x2e0] sm:$0xff] %v726
      %743 = vst [vmem:[#allocation4 + $0x328] sm:$0xff] %v727
      %744 = vst [vmem:[#allocation4 + $0x370] sm:$0xff] %v728
      %745 = vst [vmem:[#allocation4 + $0x3b8] sm:$0xff] %v729
      %746 = vst [vmem:[#allocation4 + $0x400] sm:$0xff] %v730
      %747 = vst [vmem:[#allocation4 + $0x448] sm:$0xff] %v731
      %v748 = vld [vmem:[%s522 + $0x7] sm:$0xff]
      %v749 = vld [vmem:[%s522 + $0xf] sm:$0xff]
      %v750 = vld [vmem:[%s522 + $0x27] sm:$0xff]
      %v751 = vld [vmem:[%s522 + $0x2f] sm:$0xff]
      %v752 = vld [vmem:[%s522 + $0x47] sm:$0xff]
      %v753 = vld [vmem:[%s522 + $0x4f] sm:$0xff]
      %v754 = vld [vmem:[%s522 + $0x67] sm:$0xff]
      %v755 = vld [vmem:[%s522 + $0x6f] sm:$0xff]
      %v756 = vld [vmem:[%s522 + $0x87] sm:$0xff]
      %v757 = vld [vmem:[%s522 + $0x8f] sm:$0xff]
      %v758 = vld [vmem:[%s522 + $0xa7] sm:$0xff]
      %v759 = vld [vmem:[%s522 + $0xaf] sm:$0xff]
      %v760 = vld [vmem:[%s522 + $0xc7] sm:$0xff]
      %v761 = vld [vmem:[%s522 + $0xcf] sm:$0xff]
      %v762 = vld [vmem:[%s522 + $0xe7] sm:$0xff]
      %v763 = vld [vmem:[%s522 + $0xef] sm:$0xff]
      %v764 = vld [vmem:[%s522 + $0x107] sm:$0xff]
      %v765 = vld [vmem:[%s522 + $0x10f] sm:$0xff]
      %v766 = vld [vmem:[%s522 + $0x127] sm:$0xff]
      %v767 = vld [vmem:[%s522 + $0x12f] sm:$0xff]
      %v768 = vld [vmem:[%s522 + $0x147] sm:$0xff]
      %v769 = vld [vmem:[%s522 + $0x14f] sm:$0xff]
      %v770 = vld [vmem:[%s522 + $0x167] sm:$0xff]
      %v771 = vld [vmem:[%s522 + $0x16f] sm:$0xff]
      %v772 = vld [vmem:[%s522 + $0x187] sm:$0xff]
      %v773 = vld [vmem:[%s522 + $0x18f] sm:$0xff]
      %v774 = vld [vmem:[%s522 + $0x1a7] sm:$0xff]
      %v775 = vld [vmem:[%s522 + $0x1af] sm:$0xff]
      %v776 = vld [vmem:[%s522 + $0x1c7] sm:$0xff]
      %v777 = vld [vmem:[%s522 + $0x1cf] sm:$0xff]
      %v778 = vld [vmem:[%s522 + $0x1e7] sm:$0xff]
      %v779 = vld [vmem:[%s522 + $0x1ef] sm:$0xff]
      %v780 = vpack.c.bf16 %v749, %v748
      %v781 = vpack.c.bf16 %v751, %v750
      %v782 = vpack.c.bf16 %v753, %v752
      %v783 = vpack.c.bf16 %v755, %v754
      %v784 = vpack.c.bf16 %v757, %v756
      %v785 = vpack.c.bf16 %v759, %v758
      %v786 = vpack.c.bf16 %v761, %v760
      %v787 = vpack.c.bf16 %v763, %v762
      %v788 = vpack.c.bf16 %v765, %v764
      %v789 = vpack.c.bf16 %v767, %v766
      %v790 = vpack.c.bf16 %v769, %v768
      %v791 = vpack.c.bf16 %v771, %v770
      %v792 = vpack.c.bf16 %v773, %v772
      %v793 = vpack.c.bf16 %v775, %v774
      %v794 = vpack.c.bf16 %v777, %v776
      %v795 = vpack.c.bf16 %v779, %v778
      %796 = vst [vmem:[#allocation4 + $0x18] sm:$0xff] %v780
      %797 = vst [vmem:[#allocation4 + $0x60] sm:$0xff] %v781
      %798 = vst [vmem:[#allocation4 + $0xa8] sm:$0xff] %v782
      %799 = vst [vmem:[#allocation4 + $0xf0] sm:$0xff] %v783
      %800 = vst [vmem:[#allocation4 + $0x138] sm:$0xff] %v784
      %801 = vst [vmem:[#allocation4 + $0x180] sm:$0xff] %v785
      %802 = vst [vmem:[#allocation4 + $0x1c8] sm:$0xff] %v786
      %803 = vst [vmem:[#allocation4 + $0x210] sm:$0xff] %v787
      %804 = vst [vmem:[#allocation4 + $0x258] sm:$0xff] %v788
      %805 = vst [vmem:[#allocation4 + $0x2a0] sm:$0xff] %v789
      %806 = vst [vmem:[#allocation4 + $0x2e8] sm:$0xff] %v790
      %807 = vst [vmem:[#allocation4 + $0x330] sm:$0xff] %v791
      %808 = vst [vmem:[#allocation4 + $0x378] sm:$0xff] %v792
      %809 = vst [vmem:[#allocation4 + $0x3c0] sm:$0xff] %v793
      %810 = vst [vmem:[#allocation4 + $0x408] sm:$0xff] %v794
      %811 = vst [vmem:[#allocation4 + $0x450] sm:$0xff] %v795
      %v812 = vld [vmem:[%s522 + $0x8] sm:$0xff]
      %v813 = vld [vmem:[%s522 + $0x10] sm:$0xff]
      %v814 = vld [vmem:[%s522 + $0x28] sm:$0xff]
      %v815 = vld [vmem:[%s522 + $0x30] sm:$0xff]
      %v816 = vld [vmem:[%s522 + $0x48] sm:$0xff]
      %v817 = vld [vmem:[%s522 + $0x50] sm:$0xff]
      %v818 = vld [vmem:[%s522 + $0x68] sm:$0xff]
      %v819 = vld [vmem:[%s522 + $0x70] sm:$0xff]
      %v820 = vld [vmem:[%s522 + $0x88] sm:$0xff]
      %v821 = vld [vmem:[%s522 + $0x90] sm:$0xff]
      %v822 = vld [vmem:[%s522 + $0xa8] sm:$0xff]
      %v823 = vld [vmem:[%s522 + $0xb0] sm:$0xff]
      %v824 = vld [vmem:[%s522 + $0xc8] sm:$0xff]
      %v825 = vld [vmem:[%s522 + $0xd0] sm:$0xff]
      %v826 = vld [vmem:[%s522 + $0xe8] sm:$0xff]
      %v827 = vld [vmem:[%s522 + $0xf0] sm:$0xff]
      %v828 = vld [vmem:[%s522 + $0x108] sm:$0xff]
      %v829 = vld [vmem:[%s522 + $0x110] sm:$0xff]
      %v830 = vld [vmem:[%s522 + $0x128] sm:$0xff]
      %v831 = vld [vmem:[%s522 + $0x130] sm:$0xff]
      %v832 = vld [vmem:[%s522 + $0x148] sm:$0xff]
      %v833 = vld [vmem:[%s522 + $0x150] sm:$0xff]
      %v834 = vld [vmem:[%s522 + $0x168] sm:$0xff]
      %v835 = vld [vmem:[%s522 + $0x170] sm:$0xff]
      %v836 = vld [vmem:[%s522 + $0x188] sm:$0xff]
      %v837 = vld [vmem:[%s522 + $0x190] sm:$0xff]
      %v838 = vld [vmem:[%s522 + $0x1a8] sm:$0xff]
      %v839 = vld [vmem:[%s522 + $0x1b0] sm:$0xff]
      %v840 = vld [vmem:[%s522 + $0x1c8] sm:$0xff]
      %v841 = vld [vmem:[%s522 + $0x1d0] sm:$0xff]
      %v842 = vld [vmem:[%s522 + $0x1e8] sm:$0xff]
      %v843 = vld [vmem:[%s522 + $0x1f0] sm:$0xff]
      %v844 = vpack.c.bf16 %v813, %v812
      %v845 = vpack.c.bf16 %v815, %v814
      %v846 = vpack.c.bf16 %v817, %v816
      %v847 = vpack.c.bf16 %v819, %v818
      %v848 = vpack.c.bf16 %v821, %v820
      %v849 = vpack.c.bf16 %v823, %v822
      %v850 = vpack.c.bf16 %v825, %v824
      %v851 = vpack.c.bf16 %v827, %v826
      %v852 = vpack.c.bf16 %v829, %v828
      %v853 = vpack.c.bf16 %v831, %v830
      %v854 = vpack.c.bf16 %v833, %v832
      %v855 = vpack.c.bf16 %v835, %v834
      %v856 = vpack.c.bf16 %v837, %v836
      %v857 = vpack.c.bf16 %v839, %v838
      %v858 = vpack.c.bf16 %v841, %v840
      %v859 = vpack.c.bf16 %v843, %v842
      %860 = vst [vmem:[#allocation4 + $0x20] sm:$0xff] %v844
      %861 = vst [vmem:[#allocation4 + $0x68] sm:$0xff] %v845
      %862 = vst [vmem:[#allocation4 + $0xb0] sm:$0xff] %v846
      %863 = vst [vmem:[#allocation4 + $0xf8] sm:$0xff] %v847
      %864 = vst [vmem:[#allocation4 + $0x140] sm:$0xff] %v848
      %865 = vst [vmem:[#allocation4 + $0x188] sm:$0xff] %v849
      %866 = vst [vmem:[#allocation4 + $0x1d0] sm:$0xff] %v850
      %867 = vst [vmem:[#allocation4 + $0x218] sm:$0xff] %v851
      %868 = vst [vmem:[#allocation4 + $0x260] sm:$0xff] %v852
      %869 = vst [vmem:[#allocation4 + $0x2a8] sm:$0xff] %v853
      %870 = vst [vmem:[#allocation4 + $0x2f0] sm:$0xff] %v854
      %871 = vst [vmem:[#allocation4 + $0x338] sm:$0xff] %v855
      %872 = vst [vmem:[#allocation4 + $0x380] sm:$0xff] %v856
      %873 = vst [vmem:[#allocation4 + $0x3c8] sm:$0xff] %v857
      %874 = vst [vmem:[#allocation4 + $0x410] sm:$0xff] %v858
      %875 = vst [vmem:[#allocation4 + $0x458] sm:$0xff] %v859
      %v876 = vld [vmem:[%s522 + $0x9] sm:$0xff]
      %v877 = vld [vmem:[%s522 + $0x11] sm:$0xff]
      %v878 = vld [vmem:[%s522 + $0x29] sm:$0xff]
      %v879 = vld [vmem:[%s522 + $0x31] sm:$0xff]
      %v880 = vld [vmem:[%s522 + $0x49] sm:$0xff]
      %v881 = vld [vmem:[%s522 + $0x51] sm:$0xff]
      %v882 = vld [vmem:[%s522 + $0x69] sm:$0xff]
      %v883 = vld [vmem:[%s522 + $0x71] sm:$0xff]
      %v884 = vld [vmem:[%s522 + $0x89] sm:$0xff]
      %v885 = vld [vmem:[%s522 + $0x91] sm:$0xff]
      %v886 = vld [vmem:[%s522 + $0xa9] sm:$0xff]
      %v887 = vld [vmem:[%s522 + $0xb1] sm:$0xff]
      %v888 = vld [vmem:[%s522 + $0xc9] sm:$0xff]
      %v889 = vld [vmem:[%s522 + $0xd1] sm:$0xff]
      %v890 = vld [vmem:[%s522 + $0xe9] sm:$0xff]
      %v891 = vld [vmem:[%s522 + $0xf1] sm:$0xff]
      %v892 = vld [vmem:[%s522 + $0x109] sm:$0xff]
      %v893 = vld [vmem:[%s522 + $0x111] sm:$0xff]
      %v894 = vld [vmem:[%s522 + $0x129] sm:$0xff]
      %v895 = vld [vmem:[%s522 + $0x131] sm:$0xff]
      %v896 = vld [vmem:[%s522 + $0x149] sm:$0xff]
      %v897 = vld [vmem:[%s522 + $0x151] sm:$0xff]
      %v898 = vld [vmem:[%s522 + $0x169] sm:$0xff]
      %v899 = vld [vmem:[%s522 + $0x171] sm:$0xff]
      %v900 = vld [vmem:[%s522 + $0x189] sm:$0xff]
      %v901 = vld [vmem:[%s522 + $0x191] sm:$0xff]
      %v902 = vld [vmem:[%s522 + $0x1a9] sm:$0xff]
      %v903 = vld [vmem:[%s522 + $0x1b1] sm:$0xff]
      %v904 = vld [vmem:[%s522 + $0x1c9] sm:$0xff]
      %v905 = vld [vmem:[%s522 + $0x1d1] sm:$0xff]
      %v906 = vld [vmem:[%s522 + $0x1e9] sm:$0xff]
      %v907 = vld [vmem:[%s522 + $0x1f1] sm:$0xff]
      %v908 = vpack.c.bf16 %v877, %v876
      %v909 = vpack.c.bf16 %v879, %v878
      %v910 = vpack.c.bf16 %v881, %v880
      %v911 = vpack.c.bf16 %v883, %v882
      %v912 = vpack.c.bf16 %v885, %v884
      %v913 = vpack.c.bf16 %v887, %v886
      %v914 = vpack.c.bf16 %v889, %v888
      %v915 = vpack.c.bf16 %v891, %v890
      %v916 = vpack.c.bf16 %v893, %v892
      %v917 = vpack.c.bf16 %v895, %v894
      %v918 = vpack.c.bf16 %v897, %v896
      %v919 = vpack.c.bf16 %v899, %v898
      %v920 = vpack.c.bf16 %v901, %v900
      %v921 = vpack.c.bf16 %v903, %v902
      %v922 = vpack.c.bf16 %v905, %v904
      %v923 = vpack.c.bf16 %v907, %v906
      %924 = vst [vmem:[#allocation4 + $0x28] sm:$0xff] %v908
      %925 = vst [vmem:[#allocation4 + $0x70] sm:$0xff] %v909
      %926 = vst [vmem:[#allocation4 + $0xb8] sm:$0xff] %v910
      %927 = vst [vmem:[#allocation4 + $0x100] sm:$0xff] %v911
      %928 = vst [vmem:[#allocation4 + $0x148] sm:$0xff] %v912
      %929 = vst [vmem:[#allocation4 + $0x190] sm:$0xff] %v913
      %930 = vst [vmem:[#allocation4 + $0x1d8] sm:$0xff] %v914
      %931 = vst [vmem:[#allocation4 + $0x220] sm:$0xff] %v915
      %932 = vst [vmem:[#allocation4 + $0x268] sm:$0xff] %v916
      %933 = vst [vmem:[#allocation4 + $0x2b0] sm:$0xff] %v917
      %934 = vst [vmem:[#allocation4 + $0x2f8] sm:$0xff] %v918
      %935 = vst [vmem:[#allocation4 + $0x340] sm:$0xff] %v919
      %936 = vst [vmem:[#allocation4 + $0x388] sm:$0xff] %v920
      %937 = vst [vmem:[#allocation4 + $0x3d0] sm:$0xff] %v921
      %938 = vst [vmem:[#allocation4 + $0x418] sm:$0xff] %v922
      %939 = vst [vmem:[#allocation4 + $0x460] sm:$0xff] %v923
      %s940 = scalar_lea.vmem [#allocation2], 64
      %v941 = vld [vmem:[%s940 + $0x7] sm:$0xff]
      %v942 = vld [vmem:[%s940 + $0xf] sm:$0xff]
      %v943 = vld [vmem:[%s940 + $0x27] sm:$0xff]
      %v944 = vld [vmem:[%s940 + $0x2f] sm:$0xff]
      %v945 = vld [vmem:[%s940 + $0x47] sm:$0xff]
      %v946 = vld [vmem:[%s940 + $0x4f] sm:$0xff]
      %v947 = vld [vmem:[%s940 + $0x67] sm:$0xff]
      %v948 = vld [vmem:[%s940 + $0x6f] sm:$0xff]
      %v949 = vld [vmem:[%s940 + $0x87] sm:$0xff]
      %v950 = vld [vmem:[%s940 + $0x8f] sm:$0xff]
      %v951 = vld [vmem:[%s940 + $0xa7] sm:$0xff]
      %v952 = vld [vmem:[%s940 + $0xaf] sm:$0xff]
      %v953 = vld [vmem:[%s940 + $0xc7] sm:$0xff]
      %v954 = vld [vmem:[%s940 + $0xcf] sm:$0xff]
      %v955 = vld [vmem:[%s940 + $0xe7] sm:$0xff]
      %v956 = vld [vmem:[%s940 + $0xef] sm:$0xff]
      %v957 = vld [vmem:[%s940 + $0x107] sm:$0xff]
      %v958 = vld [vmem:[%s940 + $0x10f] sm:$0xff]
      %v959 = vld [vmem:[%s940 + $0x127] sm:$0xff]
      %v960 = vld [vmem:[%s940 + $0x12f] sm:$0xff]
      %v961 = vld [vmem:[%s940 + $0x147] sm:$0xff]
      %v962 = vld [vmem:[%s940 + $0x14f] sm:$0xff]
      %v963 = vld [vmem:[%s940 + $0x167] sm:$0xff]
      %v964 = vld [vmem:[%s940 + $0x16f] sm:$0xff]
      %v965 = vld [vmem:[%s940 + $0x187] sm:$0xff]
      %v966 = vld [vmem:[%s940 + $0x18f] sm:$0xff]
      %v967 = vld [vmem:[%s940 + $0x1a7] sm:$0xff]
      %v968 = vld [vmem:[%s940 + $0x1af] sm:$0xff]
      %v969 = vld [vmem:[%s940 + $0x1c7] sm:$0xff]
      %v970 = vld [vmem:[%s940 + $0x1cf] sm:$0xff]
      %v971 = vld [vmem:[%s940 + $0x1e7] sm:$0xff]
      %v972 = vld [vmem:[%s940 + $0x1ef] sm:$0xff]
      %v973 = vpack.c.bf16 %v942, %v941
      %v974 = vpack.c.bf16 %v944, %v943
      %v975 = vpack.c.bf16 %v946, %v945
      %v976 = vpack.c.bf16 %v948, %v947
      %v977 = vpack.c.bf16 %v950, %v949
      %v978 = vpack.c.bf16 %v952, %v951
      %v979 = vpack.c.bf16 %v954, %v953
      %v980 = vpack.c.bf16 %v956, %v955
      %v981 = vpack.c.bf16 %v958, %v957
      %v982 = vpack.c.bf16 %v960, %v959
      %v983 = vpack.c.bf16 %v962, %v961
      %v984 = vpack.c.bf16 %v964, %v963
      %v985 = vpack.c.bf16 %v966, %v965
      %v986 = vpack.c.bf16 %v968, %v967
      %v987 = vpack.c.bf16 %v970, %v969
      %v988 = vpack.c.bf16 %v972, %v971
      %989 = vst [vmem:[#allocation4 + $0x30] sm:$0xff] %v973
      %990 = vst [vmem:[#allocation4 + $0x78] sm:$0xff] %v974
      %991 = vst [vmem:[#allocation4 + $0xc0] sm:$0xff] %v975
      %992 = vst [vmem:[#allocation4 + $0x108] sm:$0xff] %v976
      %993 = vst [vmem:[#allocation4 + $0x150] sm:$0xff] %v977
      %994 = vst [vmem:[#allocation4 + $0x198] sm:$0xff] %v978
      %995 = vst [vmem:[#allocation4 + $0x1e0] sm:$0xff] %v979
      %996 = vst [vmem:[#allocation4 + $0x228] sm:$0xff] %v980
      %997 = vst [vmem:[#allocation4 + $0x270] sm:$0xff] %v981
      %998 = vst [vmem:[#allocation4 + $0x2b8] sm:$0xff] %v982
      %999 = vst [vmem:[#allocation4 + $0x300] sm:$0xff] %v983
      %1000 = vst [vmem:[#allocation4 + $0x348] sm:$0xff] %v984
      %1001 = vst [vmem:[#allocation4 + $0x390] sm:$0xff] %v985
      %1002 = vst [vmem:[#allocation4 + $0x3d8] sm:$0xff] %v986
      %1003 = vst [vmem:[#allocation4 + $0x420] sm:$0xff] %v987
      %1004 = vst [vmem:[#allocation4 + $0x468] sm:$0xff] %v988
      %v1005 = vld [vmem:[%s940 + $0x8] sm:$0xff]
      %v1006 = vld [vmem:[%s940 + $0x10] sm:$0xff]
      %v1007 = vld [vmem:[%s940 + $0x28] sm:$0xff]
      %v1008 = vld [vmem:[%s940 + $0x30] sm:$0xff]
      %v1009 = vld [vmem:[%s940 + $0x48] sm:$0xff]
      %v1010 = vld [vmem:[%s940 + $0x50] sm:$0xff]
      %v1011 = vld [vmem:[%s940 + $0x68] sm:$0xff]
      %v1012 = vld [vmem:[%s940 + $0x70] sm:$0xff]
      %v1013 = vld [vmem:[%s940 + $0x88] sm:$0xff]
      %v1014 = vld [vmem:[%s940 + $0x90] sm:$0xff]
      %v1015 = vld [vmem:[%s940 + $0xa8] sm:$0xff]
      %v1016 = vld [vmem:[%s940 + $0xb0] sm:$0xff]
      %v1017 = vld [vmem:[%s940 + $0xc8] sm:$0xff]
      %v1018 = vld [vmem:[%s940 + $0xd0] sm:$0xff]
      %v1019 = vld [vmem:[%s940 + $0xe8] sm:$0xff]
      %v1020 = vld [vmem:[%s940 + $0xf0] sm:$0xff]
      %v1021 = vld [vmem:[%s940 + $0x108] sm:$0xff]
      %v1022 = vld [vmem:[%s940 + $0x110] sm:$0xff]
      %v1023 = vld [vmem:[%s940 + $0x128] sm:$0xff]
      %v1024 = vld [vmem:[%s940 + $0x130] sm:$0xff]
      %v1025 = vld [vmem:[%s940 + $0x148] sm:$0xff]
      %v1026 = vld [vmem:[%s940 + $0x150] sm:$0xff]
      %v1027 = vld [vmem:[%s940 + $0x168] sm:$0xff]
      %v1028 = vld [vmem:[%s940 + $0x170] sm:$0xff]
      %v1029 = vld [vmem:[%s940 + $0x188] sm:$0xff]
      %v1030 = vld [vmem:[%s940 + $0x190] sm:$0xff]
      %v1031 = vld [vmem:[%s940 + $0x1a8] sm:$0xff]
      %v1032 = vld [vmem:[%s940 + $0x1b0] sm:$0xff]
      %v1033 = vld [vmem:[%s940 + $0x1c8] sm:$0xff]
      %v1034 = vld [vmem:[%s940 + $0x1d0] sm:$0xff]
      %v1035 = vld [vmem:[%s940 + $0x1e8] sm:$0xff]
      %v1036 = vld [vmem:[%s940 + $0x1f0] sm:$0xff]
      %v1037 = vpack.c.bf16 %v1006, %v1005
      %v1038 = vpack.c.bf16 %v1008, %v1007
      %v1039 = vpack.c.bf16 %v1010, %v1009
      %v1040 = vpack.c.bf16 %v1012, %v1011
      %v1041 = vpack.c.bf16 %v1014, %v1013
      %v1042 = vpack.c.bf16 %v1016, %v1015
      %v1043 = vpack.c.bf16 %v1018, %v1017
      %v1044 = vpack.c.bf16 %v1020, %v1019
      %v1045 = vpack.c.bf16 %v1022, %v1021
      %v1046 = vpack.c.bf16 %v1024, %v1023
      %v1047 = vpack.c.bf16 %v1026, %v1025
      %v1048 = vpack.c.bf16 %v1028, %v1027
      %v1049 = vpack.c.bf16 %v1030, %v1029
      %v1050 = vpack.c.bf16 %v1032, %v1031
      %v1051 = vpack.c.bf16 %v1034, %v1033
      %v1052 = vpack.c.bf16 %v1036, %v1035
      %1053 = vst [vmem:[#allocation4 + $0x38] sm:$0xff] %v1037
      %1054 = vst [vmem:[#allocation4 + $0x80] sm:$0xff] %v1038
      %1055 = vst [vmem:[#allocation4 + $0xc8] sm:$0xff] %v1039
      %1056 = vst [vmem:[#allocation4 + $0x110] sm:$0xff] %v1040
      %1057 = vst [vmem:[#allocation4 + $0x158] sm:$0xff] %v1041
      %1058 = vst [vmem:[#allocation4 + $0x1a0] sm:$0xff] %v1042
      %1059 = vst [vmem:[#allocation4 + $0x1e8] sm:$0xff] %v1043
      %1060 = vst [vmem:[#allocation4 + $0x230] sm:$0xff] %v1044
      %1061 = vst [vmem:[#allocation4 + $0x278] sm:$0xff] %v1045
      %1062 = vst [vmem:[#allocation4 + $0x2c0] sm:$0xff] %v1046
      %1063 = vst [vmem:[#allocation4 + $0x308] sm:$0xff] %v1047
      %1064 = vst [vmem:[#allocation4 + $0x350] sm:$0xff] %v1048
      %1065 = vst [vmem:[#allocation4 + $0x398] sm:$0xff] %v1049
      %1066 = vst [vmem:[#allocation4 + $0x3e0] sm:$0xff] %v1050
      %1067 = vst [vmem:[#allocation4 + $0x428] sm:$0xff] %v1051
      %1068 = vst [vmem:[#allocation4 + $0x470] sm:$0xff] %v1052
      %v1069 = vld [vmem:[%s940 + $0x9] sm:$0xff]
      %v1070 = vld [vmem:[%s940 + $0x11] sm:$0xff]
      %v1071 = vld [vmem:[%s940 + $0x29] sm:$0xff]
      %v1072 = vld [vmem:[%s940 + $0x31] sm:$0xff]
      %v1073 = vld [vmem:[%s940 + $0x49] sm:$0xff]
      %v1074 = vld [vmem:[%s940 + $0x51] sm:$0xff]
      %v1075 = vld [vmem:[%s940 + $0x69] sm:$0xff]
      %v1076 = vld [vmem:[%s940 + $0x71] sm:$0xff]
      %v1077 = vld [vmem:[%s940 + $0x89] sm:$0xff]
      %v1078 = vld [vmem:[%s940 + $0x91] sm:$0xff]
      %v1079 = vld [vmem:[%s940 + $0xa9] sm:$0xff]
      %v1080 = vld [vmem:[%s940 + $0xb1] sm:$0xff]
      %v1081 = vld [vmem:[%s940 + $0xc9] sm:$0xff]
      %v1082 = vld [vmem:[%s940 + $0xd1] sm:$0xff]
      %v1083 = vld [vmem:[%s940 + $0xe9] sm:$0xff]
      %v1084 = vld [vmem:[%s940 + $0xf1] sm:$0xff]
      %v1085 = vld [vmem:[%s940 + $0x109] sm:$0xff]
      %v1086 = vld [vmem:[%s940 + $0x111] sm:$0xff]
      %v1087 = vld [vmem:[%s940 + $0x129] sm:$0xff]
      %v1088 = vld [vmem:[%s940 + $0x131] sm:$0xff]
      %v1089 = vld [vmem:[%s940 + $0x149] sm:$0xff]
      %v1090 = vld [vmem:[%s940 + $0x151] sm:$0xff]
      %v1091 = vld [vmem:[%s940 + $0x169] sm:$0xff]
      %v1092 = vld [vmem:[%s940 + $0x171] sm:$0xff]
      %v1093 = vld [vmem:[%s940 + $0x189] sm:$0xff]
      %v1094 = vld [vmem:[%s940 + $0x191] sm:$0xff]
      %v1095 = vld [vmem:[%s940 + $0x1a9] sm:$0xff]
      %v1096 = vld [vmem:[%s940 + $0x1b1] sm:$0xff]
      %v1097 = vld [vmem:[%s940 + $0x1c9] sm:$0xff]
      %v1098 = vld [vmem:[%s940 + $0x1d1] sm:$0xff]
      %v1099 = vld [vmem:[%s940 + $0x1e9] sm:$0xff]
      %v1100 = vld [vmem:[%s940 + $0x1f1] sm:$0xff]
      %v1101 = vpack.c.bf16 %v1070, %v1069
      %v1102 = vpack.c.bf16 %v1072, %v1071
      %v1103 = vpack.c.bf16 %v1074, %v1073
      %v1104 = vpack.c.bf16 %v1076, %v1075
      %v1105 = vpack.c.bf16 %v1078, %v1077
      %v1106 = vpack.c.bf16 %v1080, %v1079
      %v1107 = vpack.c.bf16 %v1082, %v1081
      %v1108 = vpack.c.bf16 %v1084, %v1083
      %v1109 = vpack.c.bf16 %v1086, %v1085
      %v1110 = vpack.c.bf16 %v1088, %v1087
      %v1111 = vpack.c.bf16 %v1090, %v1089
      %v1112 = vpack.c.bf16 %v1092, %v1091
      %v1113 = vpack.c.bf16 %v1094, %v1093
      %v1114 = vpack.c.bf16 %v1096, %v1095
      %v1115 = vpack.c.bf16 %v1098, %v1097
      %v1116 = vpack.c.bf16 %v1100, %v1099
      %1117 = vst [vmem:[#allocation4 + $0x40] sm:$0xff] %v1101
      %1118 = vst [vmem:[#allocation4 + $0x88] sm:$0xff] %v1102
      %1119 = vst [vmem:[#allocation4 + $0xd0] sm:$0xff] %v1103
      %1120 = vst [vmem:[#allocation4 + $0x118] sm:$0xff] %v1104
      %1121 = vst [vmem:[#allocation4 + $0x160] sm:$0xff] %v1105
      %1122 = vst [vmem:[#allocation4 + $0x1a8] sm:$0xff] %v1106
      %1123 = vst [vmem:[#allocation4 + $0x1f0] sm:$0xff] %v1107
      %1124 = vst [vmem:[#allocation4 + $0x238] sm:$0xff] %v1108
      %1125 = vst [vmem:[#allocation4 + $0x280] sm:$0xff] %v1109
      %1126 = vst [vmem:[#allocation4 + $0x2c8] sm:$0xff] %v1110
      %1127 = vst [vmem:[#allocation4 + $0x310] sm:$0xff] %v1111
      %1128 = vst [vmem:[#allocation4 + $0x358] sm:$0xff] %v1112
      %1129 = vst [vmem:[#allocation4 + $0x3a0] sm:$0xff] %v1113
      %1130 = vst [vmem:[#allocation4 + $0x3e8] sm:$0xff] %v1114
      %1131 = vst [vmem:[#allocation4 + $0x430] sm:$0xff] %v1115
      %1132 = vst [vmem:[#allocation4 + $0x478] sm:$0xff] %v1116
      %v1133 = vld [vmem:[#allocation4] sm:$0xff]
      %v1134 = vld [vmem:[#allocation4 + $0x8] sm:$0xff]
      %v1135 = vld [vmem:[#allocation4 + $0x10] sm:$0xff]
      %v1136 = vld [vmem:[#allocation4 + $0x18] sm:$0xff]
      %v1137 = vld [vmem:[#allocation4 + $0x20] sm:$0xff]
      %v1138 = vld [vmem:[#allocation4 + $0x28] sm:$0xff]
      %v1139 = vld [vmem:[#allocation4 + $0x30] sm:$0xff]
      %v1140 = vld [vmem:[#allocation4 + $0x38] sm:$0xff]
      %v1141 = vld [vmem:[#allocation4 + $0x40] sm:$0xff]
      %v1142 = vld [vmem:[#allocation4 + $0x48] sm:$0xff]
      %v1143 = vld [vmem:[#allocation4 + $0x50] sm:$0xff]
      %v1144 = vld [vmem:[#allocation4 + $0x58] sm:$0xff]
      %v1145 = vld [vmem:[#allocation4 + $0x60] sm:$0xff]
      %v1146 = vld [vmem:[#allocation4 + $0x68] sm:$0xff]
      %v1147 = vld [vmem:[#allocation4 + $0x70] sm:$0xff]
      %v1148 = vld [vmem:[#allocation4 + $0x78] sm:$0xff]
      %v1149 = vld [vmem:[#allocation4 + $0x80] sm:$0xff]
      %v1150 = vld [vmem:[#allocation4 + $0x88] sm:$0xff]
      %v1151 = vld [vmem:[#allocation4 + $0x90] sm:$0xff]
      %v1152 = vld [vmem:[#allocation4 + $0x98] sm:$0xff]
      %v1153 = vld [vmem:[#allocation4 + $0xa0] sm:$0xff]
      %v1154 = vld [vmem:[#allocation4 + $0xa8] sm:$0xff]
      %v1155 = vld [vmem:[#allocation4 + $0xb0] sm:$0xff]
      %v1156 = vld [vmem:[#allocation4 + $0xb8] sm:$0xff]
      %v1157 = vld [vmem:[#allocation4 + $0xc0] sm:$0xff]
      %v1158 = vld [vmem:[#allocation4 + $0xc8] sm:$0xff]
      %v1159 = vld [vmem:[#allocation4 + $0xd0] sm:$0xff]
      %v1160 = vld [vmem:[#allocation4 + $0xd8] sm:$0xff]
      %v1161 = vld [vmem:[#allocation4 + $0xe0] sm:$0xff]
      %v1162 = vld [vmem:[#allocation4 + $0xe8] sm:$0xff]
      %v1163 = vld [vmem:[#allocation4 + $0xf0] sm:$0xff]
      %v1164 = vld [vmem:[#allocation4 + $0xf8] sm:$0xff]
      %v1165 = vld [vmem:[#allocation4 + $0x100] sm:$0xff]
      %v1166 = vld [vmem:[#allocation4 + $0x108] sm:$0xff]
      %v1167 = vld [vmem:[#allocation4 + $0x110] sm:$0xff]
      %v1168 = vld [vmem:[#allocation4 + $0x118] sm:$0xff]
      %v1169 = vld [vmem:[#allocation4 + $0x120] sm:$0xff]
      %v1170 = vld [vmem:[#allocation4 + $0x128] sm:$0xff]
      %v1171 = vld [vmem:[#allocation4 + $0x130] sm:$0xff]
      %v1172 = vld [vmem:[#allocation4 + $0x138] sm:$0xff]
      %v1173 = vld [vmem:[#allocation4 + $0x140] sm:$0xff]
      %v1174 = vld [vmem:[#allocation4 + $0x148] sm:$0xff]
      %v1175 = vld [vmem:[#allocation4 + $0x150] sm:$0xff]
      %v1176 = vld [vmem:[#allocation4 + $0x158] sm:$0xff]
      %v1177 = vld [vmem:[#allocation4 + $0x160] sm:$0xff]
      %v1178 = vld [vmem:[#allocation4 + $0x168] sm:$0xff]
      %v1179 = vld [vmem:[#allocation4 + $0x170] sm:$0xff]
      %v1180 = vld [vmem:[#allocation4 + $0x178] sm:$0xff]
      %v1181 = vld [vmem:[#allocation4 + $0x180] sm:$0xff]
      %v1182 = vld [vmem:[#allocation4 + $0x188] sm:$0xff]
      %v1183 = vld [vmem:[#allocation4 + $0x190] sm:$0xff]
      %v1184 = vld [vmem:[#allocation4 + $0x198] sm:$0xff]
      %v1185 = vld [vmem:[#allocation4 + $0x1a0] sm:$0xff]
      %v1186 = vld [vmem:[#allocation4 + $0x1a8] sm:$0xff]
      %v1187 = vld [vmem:[#allocation4 + $0x1b0] sm:$0xff]
      %v1188 = vld [vmem:[#allocation4 + $0x1b8] sm:$0xff]
      %v1189 = vld [vmem:[#allocation4 + $0x1c0] sm:$0xff]
      %v1190 = vld [vmem:[#allocation4 + $0x1c8] sm:$0xff]
      %v1191 = vld [vmem:[#allocation4 + $0x1d0] sm:$0xff]
      %v1192 = vld [vmem:[#allocation4 + $0x1d8] sm:$0xff]
      %v1193 = vld [vmem:[#allocation4 + $0x1e0] sm:$0xff]
      %v1194 = vld [vmem:[#allocation4 + $0x1e8] sm:$0xff]
      %v1195 = vld [vmem:[#allocation4 + $0x1f0] sm:$0xff]
      %v1196 = vld [vmem:[#allocation4 + $0x1f8] sm:$0xff]
      %v1197 = vld [vmem:[#allocation4 + $0x200] sm:$0xff]
      %v1198 = vld [vmem:[#allocation4 + $0x208] sm:$0xff]
      %v1199 = vld [vmem:[#allocation4 + $0x210] sm:$0xff]
      %v1200 = vld [vmem:[#allocation4 + $0x218] sm:$0xff]
      %v1201 = vld [vmem:[#allocation4 + $0x220] sm:$0xff]
      %v1202 = vld [vmem:[#allocation4 + $0x228] sm:$0xff]
      %v1203 = vld [vmem:[#allocation4 + $0x230] sm:$0xff]
      %v1204 = vld [vmem:[#allocation4 + $0x238] sm:$0xff]
      %v1205 = vld [vmem:[#allocation4 + $0x240] sm:$0xff]
      %v1206 = vld [vmem:[#allocation4 + $0x248] sm:$0xff]
      %v1207 = vld [vmem:[#allocation4 + $0x250] sm:$0xff]
      %v1208 = vld [vmem:[#allocation4 + $0x258] sm:$0xff]
      %v1209 = vld [vmem:[#allocation4 + $0x260] sm:$0xff]
      %v1210 = vld [vmem:[#allocation4 + $0x268] sm:$0xff]
      %v1211 = vld [vmem:[#allocation4 + $0x270] sm:$0xff]
      %v1212 = vld [vmem:[#allocation4 + $0x278] sm:$0xff]
      %v1213 = vld [vmem:[#allocation4 + $0x280] sm:$0xff]
      %v1214 = vld [vmem:[#allocation4 + $0x288] sm:$0xff]
      %v1215 = vld [vmem:[#allocation4 + $0x290] sm:$0xff]
      %v1216 = vld [vmem:[#allocation4 + $0x298] sm:$0xff]
      %v1217 = vld [vmem:[#allocation4 + $0x2a0] sm:$0xff]
      %v1218 = vld [vmem:[#allocation4 + $0x2a8] sm:$0xff]
      %v1219 = vld [vmem:[#allocation4 + $0x2b0] sm:$0xff]
      %v1220 = vld [vmem:[#allocation4 + $0x2b8] sm:$0xff]
      %v1221 = vld [vmem:[#allocation4 + $0x2c0] sm:$0xff]
      %v1222 = vld [vmem:[#allocation4 + $0x2c8] sm:$0xff]
      %v1223 = vld [vmem:[#allocation4 + $0x2d0] sm:$0xff]
      %v1224 = vld [vmem:[#allocation4 + $0x2d8] sm:$0xff]
      %v1225 = vld [vmem:[#allocation4 + $0x2e0] sm:$0xff]
      %v1226 = vld [vmem:[#allocation4 + $0x2e8] sm:$0xff]
      %v1227 = vld [vmem:[#allocation4 + $0x2f0] sm:$0xff]
      %v1228 = vld [vmem:[#allocation4 + $0x2f8] sm:$0xff]
      %v1229 = vld [vmem:[#allocation4 + $0x300] sm:$0xff]
      %v1230 = vld [vmem:[#allocation4 + $0x308] sm:$0xff]
      %v1231 = vld [vmem:[#allocation4 + $0x310] sm:$0xff]
      %v1232 = vld [vmem:[#allocation4 + $0x318] sm:$0xff]
      %v1233 = vld [vmem:[#allocation4 + $0x320] sm:$0xff]
      %v1234 = vld [vmem:[#allocation4 + $0x328] sm:$0xff]
      %v1235 = vld [vmem:[#allocation4 + $0x330] sm:$0xff]
      %v1236 = vld [vmem:[#allocation4 + $0x338] sm:$0xff]
      %v1237 = vld [vmem:[#allocation4 + $0x340] sm:$0xff]
      %v1238 = vld [vmem:[#allocation4 + $0x348] sm:$0xff]
      %v1239 = vld [vmem:[#allocation4 + $0x350] sm:$0xff]
      %v1240 = vld [vmem:[#allocation4 + $0x358] sm:$0xff]
      %v1241 = vld [vmem:[#allocation4 + $0x360] sm:$0xff]
      %v1242 = vld [vmem:[#allocation4 + $0x368] sm:$0xff]
      %v1243 = vld [vmem:[#allocation4 + $0x370] sm:$0xff]
      %v1244 = vld [vmem:[#allocation4 + $0x378] sm:$0xff]
      %v1245 = vld [vmem:[#allocation4 + $0x380] sm:$0xff]
      %v1246 = vld [vmem:[#allocation4 + $0x388] sm:$0xff]
      %v1247 = vld [vmem:[#allocation4 + $0x390] sm:$0xff]
      %v1248 = vld [vmem:[#allocation4 + $0x398] sm:$0xff]
      %v1249 = vld [vmem:[#allocation4 + $0x3a0] sm:$0xff]
      %v1250 = vld [vmem:[#allocation4 + $0x3a8] sm:$0xff]
      %v1251 = vld [vmem:[#allocation4 + $0x3b0] sm:$0xff]
      %v1252 = vld [vmem:[#allocation4 + $0x3b8] sm:$0xff]
      %v1253 = vld [vmem:[#allocation4 + $0x3c0] sm:$0xff]
      %v1254 = vld [vmem:[#allocation4 + $0x3c8] sm:$0xff]
      %v1255 = vld [vmem:[#allocation4 + $0x3d0] sm:$0xff]
      %v1256 = vld [vmem:[#allocation4 + $0x3d8] sm:$0xff]
      %v1257 = vld [vmem:[#allocation4 + $0x3e0] sm:$0xff]
      %v1258 = vld [vmem:[#allocation4 + $0x3e8] sm:$0xff]
      %v1259 = vld [vmem:[#allocation4 + $0x3f0] sm:$0xff]
      %v1260 = vld [vmem:[#allocation4 + $0x3f8] sm:$0xff]
      %v1261 = vld [vmem:[#allocation4 + $0x400] sm:$0xff]
      %v1262 = vld [vmem:[#allocation4 + $0x408] sm:$0xff]
      %v1263 = vld [vmem:[#allocation4 + $0x410] sm:$0xff]
      %v1264 = vld [vmem:[#allocation4 + $0x418] sm:$0xff]
      %v1265 = vld [vmem:[#allocation4 + $0x420] sm:$0xff]
      %v1266 = vld [vmem:[#allocation4 + $0x428] sm:$0xff]
      %v1267 = vld [vmem:[#allocation4 + $0x430] sm:$0xff]
      %v1268 = vld [vmem:[#allocation4 + $0x438] sm:$0xff]
      %v1269 = vld [vmem:[#allocation4 + $0x440] sm:$0xff]
      %v1270 = vld [vmem:[#allocation4 + $0x448] sm:$0xff]
      %v1271 = vld [vmem:[#allocation4 + $0x450] sm:$0xff]
      %v1272 = vld [vmem:[#allocation4 + $0x458] sm:$0xff]
      %v1273 = vld [vmem:[#allocation4 + $0x460] sm:$0xff]
      %v1274 = vld [vmem:[#allocation4 + $0x468] sm:$0xff]
      %v1275 = vld [vmem:[#allocation4 + $0x470] sm:$0xff]
      %v1276 = vld [vmem:[#allocation4 + $0x478] sm:$0xff]
      %v1277 = vld [vmem:[%s1] sm:$0xf]
      %v1278 = vld [vmem:[%s1 + $0x4] sm:$0xf]
      %v1279 = vld [vmem:[%s1 + $0x8] sm:$0xf]
      %v1280 = vld [vmem:[%s1 + $0xc] sm:$0xf]
      %v1281 = vld [vmem:[%s1 + $0x10] sm:$0xf]
      %v1282 = vld [vmem:[%s1 + $0x14] sm:$0xf]
      %v1283 = vld [vmem:[%s1 + $0x18] sm:$0xf]
      %v1284 = vld [vmem:[%s1 + $0x1c] sm:$0xf]
      %v1285 = vld [vmem:[%s1 + $0x20] sm:$0xf]
      %v1286 = vld [vmem:[%s1 + $0x24] sm:$0xf]
      %v1287 = vld [vmem:[%s1 + $0x28] sm:$0xf]
      %v1288 = vld [vmem:[%s1 + $0x2c] sm:$0xf]
      %v1289 = vld [vmem:[%s1 + $0x30] sm:$0xf]
      %v1290 = vld [vmem:[%s1 + $0x34] sm:$0xf]
      %v1291 = vld [vmem:[%s1 + $0x38] sm:$0xf]
      %v1292 = vld [vmem:[%s1 + $0x3c] sm:$0xf]
      %v1293 = vld [vmem:[%s1 + $0x40] sm:$0xf]
      %v1294 = vld [vmem:[%s1 + $0x44] sm:$0xf]
      %v1295 = vld [vmem:[%s1 + $0x48] sm:$0xf]
      %v1296 = vld [vmem:[%s1 + $0x4c] sm:$0xf]
      %v1297 = vld [vmem:[%s1 + $0x50] sm:$0xf]
      %v1298 = vld [vmem:[%s1 + $0x54] sm:$0xf]
      %v1299 = vld [vmem:[%s1 + $0x58] sm:$0xf]
      %v1300 = vld [vmem:[%s1 + $0x5c] sm:$0xf]
      %v1301 = vld [vmem:[%s1 + $0x60] sm:$0xf]
      %v1302 = vld [vmem:[%s1 + $0x64] sm:$0xf]
      %v1303 = vld [vmem:[%s1 + $0x68] sm:$0xf]
      %v1304 = vld [vmem:[%s1 + $0x6c] sm:$0xf]
      %v1305 = vld [vmem:[%s1 + $0x70] sm:$0xf]
      %v1306 = vld [vmem:[%s1 + $0x74] sm:$0xf]
      %v1307 = vld [vmem:[%s1 + $0x78] sm:$0xf]
      %v1308 = vld [vmem:[%s1 + $0x7c] sm:$0xf]
      %v1309 = vld [vmem:[%s1 + $0x80] sm:$0xf]
      %v1310 = vld [vmem:[%s1 + $0x84] sm:$0xf]
      %v1311 = vld [vmem:[%s1 + $0x88] sm:$0xf]
      %v1312 = vld [vmem:[%s1 + $0x8c] sm:$0xf]
      %v1313 = vld [vmem:[%s1 + $0x90] sm:$0xf]
      %v1314 = vld [vmem:[%s1 + $0x94] sm:$0xf]
      %v1315 = vld [vmem:[%s1 + $0x98] sm:$0xf]
      %v1316 = vld [vmem:[%s1 + $0x9c] sm:$0xf]
      %v1317 = vld [vmem:[%s1 + $0xa0] sm:$0xf]
      %v1318 = vld [vmem:[%s1 + $0xa4] sm:$0xf]
      %v1319 = vld [vmem:[%s1 + $0xa8] sm:$0xf]
      %v1320 = vld [vmem:[%s1 + $0xac] sm:$0xf]
      %v1321 = vld [vmem:[%s1 + $0xb0] sm:$0xf]
      %v1322 = vld [vmem:[%s1 + $0xb4] sm:$0xf]
      %v1323 = vld [vmem:[%s1 + $0xb8] sm:$0xf]
      %v1324 = vld [vmem:[%s1 + $0xbc] sm:$0xf]
      %v1325 = vld [vmem:[%s1 + $0xc0] sm:$0xf]
      %v1326 = vld [vmem:[%s1 + $0xc4] sm:$0xf]
      %v1327 = vld [vmem:[%s1 + $0xc8] sm:$0xf]
      %v1328 = vld [vmem:[%s1 + $0xcc] sm:$0xf]
      %v1329 = vld [vmem:[%s1 + $0xd0] sm:$0xf]
      %v1330 = vld [vmem:[%s1 + $0xd4] sm:$0xf]
      %v1331 = vld [vmem:[%s1 + $0xd8] sm:$0xf]
      %v1332 = vld [vmem:[%s1 + $0xdc] sm:$0xf]
      %v1333 = vld [vmem:[%s1 + $0xe0] sm:$0xf]
      %v1334 = vld [vmem:[%s1 + $0xe4] sm:$0xf]
      %v1335 = vld [vmem:[%s1 + $0xe8] sm:$0xf]
      %v1336 = vld [vmem:[%s1 + $0xec] sm:$0xf]
      %v1337 = vld [vmem:[%s1 + $0xf0] sm:$0xf]
      %v1338 = vld [vmem:[%s1 + $0xf4] sm:$0xf]
      %v1339 = vld [vmem:[%s1 + $0xf8] sm:$0xf]
      %v1340 = vld [vmem:[%s1 + $0xfc] sm:$0xf]
      %v1341 = vld [vmem:[%s1 + $0x100] sm:$0xf]
      %v1342 = vld [vmem:[%s1 + $0x104] sm:$0xf]
      %v1343 = vld [vmem:[%s1 + $0x108] sm:$0xf]
      %v1344 = vld [vmem:[%s1 + $0x10c] sm:$0xf]
      %v1345 = vld [vmem:[%s1 + $0x110] sm:$0xf]
      %v1346 = vld [vmem:[%s1 + $0x114] sm:$0xf]
      %v1347 = vld [vmem:[%s1 + $0x118] sm:$0xf]
      %v1348 = vld [vmem:[%s1 + $0x11c] sm:$0xf]
      %v1349 = vld [vmem:[%s1 + $0x120] sm:$0xf]
      %v1350 = vld [vmem:[%s1 + $0x124] sm:$0xf]
      %v1351 = vld [vmem:[%s1 + $0x128] sm:$0xf]
      %v1352 = vld [vmem:[%s1 + $0x12c] sm:$0xf]
      %v1353 = vld [vmem:[%s1 + $0x130] sm:$0xf]
      %v1354 = vld [vmem:[%s1 + $0x134] sm:$0xf]
      %v1355 = vld [vmem:[%s1 + $0x138] sm:$0xf]
      %v1356 = vld [vmem:[%s1 + $0x13c] sm:$0xf]
      %v1357 = vld [vmem:[%s1 + $0x140] sm:$0xf]
      %v1358 = vld [vmem:[%s1 + $0x144] sm:$0xf]
      %v1359 = vld [vmem:[%s1 + $0x148] sm:$0xf]
      %v1360 = vld [vmem:[%s1 + $0x14c] sm:$0xf]
      %v1361 = vld [vmem:[%s1 + $0x150] sm:$0xf]
      %v1362 = vld [vmem:[%s1 + $0x154] sm:$0xf]
      %v1363 = vld [vmem:[%s1 + $0x158] sm:$0xf]
      %v1364 = vld [vmem:[%s1 + $0x15c] sm:$0xf]
      %v1365 = vld [vmem:[%s1 + $0x160] sm:$0xf]
      %v1366 = vld [vmem:[%s1 + $0x164] sm:$0xf]
      %v1367 = vld [vmem:[%s1 + $0x168] sm:$0xf]
      %v1368 = vld [vmem:[%s1 + $0x16c] sm:$0xf]
      %v1369 = vld [vmem:[%s1 + $0x170] sm:$0xf]
      %v1370 = vld [vmem:[%s1 + $0x174] sm:$0xf]
      %v1371 = vld [vmem:[%s1 + $0x178] sm:$0xf]
      %v1372 = vld [vmem:[%s1 + $0x17c] sm:$0xf]
      %v1373 = vld [vmem:[%s1 + $0x180] sm:$0xf]
      %v1374 = vld [vmem:[%s1 + $0x184] sm:$0xf]
      %v1375 = vld [vmem:[%s1 + $0x188] sm:$0xf]
      %v1376 = vld [vmem:[%s1 + $0x18c] sm:$0xf]
      %v1377 = vld [vmem:[%s1 + $0x190] sm:$0xf]
      %v1378 = vld [vmem:[%s1 + $0x194] sm:$0xf]
      %v1379 = vld [vmem:[%s1 + $0x198] sm:$0xf]
      %v1380 = vld [vmem:[%s1 + $0x19c] sm:$0xf]
      %v1381 = vld [vmem:[%s1 + $0x1a0] sm:$0xf]
      %v1382 = vld [vmem:[%s1 + $0x1a4] sm:$0xf]
      %v1383 = vld [vmem:[%s1 + $0x1a8] sm:$0xf]
      %v1384 = vld [vmem:[%s1 + $0x1ac] sm:$0xf]
      %v1385 = vld [vmem:[%s1 + $0x1b0] sm:$0xf]
      %v1386 = vld [vmem:[%s1 + $0x1b4] sm:$0xf]
      %v1387 = vld [vmem:[%s1 + $0x1b8] sm:$0xf]
      %v1388 = vld [vmem:[%s1 + $0x1bc] sm:$0xf]
      %v1389 = vld [vmem:[%s1 + $0x1c0] sm:$0xf]
      %v1390 = vld [vmem:[%s1 + $0x1c4] sm:$0xf]
      %v1391 = vld [vmem:[%s1 + $0x1c8] sm:$0xf]
      %v1392 = vld [vmem:[%s1 + $0x1cc] sm:$0xf]
      %v1393 = vld [vmem:[%s1 + $0x1d0] sm:$0xf]
      %v1394 = vld [vmem:[%s1 + $0x1d4] sm:$0xf]
      %v1395 = vld [vmem:[%s1 + $0x1d8] sm:$0xf]
      %v1396 = vld [vmem:[%s1 + $0x1dc] sm:$0xf]
      %v1397 = vld [vmem:[%s1 + $0x1e0] sm:$0xf]
      %v1398 = vld [vmem:[%s1 + $0x1e4] sm:$0xf]
      %v1399 = vld [vmem:[%s1 + $0x1e8] sm:$0xf]
      %v1400 = vld [vmem:[%s1 + $0x1ec] sm:$0xf]
      %v1401 = vld [vmem:[%s1 + $0x1f0] sm:$0xf]
      %v1402 = vld [vmem:[%s1 + $0x1f4] sm:$0xf]
      %v1403 = vld [vmem:[%s1 + $0x1f8] sm:$0xf]
      %v1404 = vld [vmem:[%s1 + $0x1fc] sm:$0xf]
      %v1405 = vld [vmem:[%s1 + $0x200] sm:$0xf]
      %v1406 = vld [vmem:[%s1 + $0x204] sm:$0xf]
      %v1407 = vld [vmem:[%s1 + $0x208] sm:$0xf]
      %v1408 = vld [vmem:[%s1 + $0x20c] sm:$0xf]
      %v1409 = vld [vmem:[%s1 + $0x210] sm:$0xf]
      %v1410 = vld [vmem:[%s1 + $0x214] sm:$0xf]
      %v1411 = vld [vmem:[%s1 + $0x218] sm:$0xf]
      %v1412 = vld [vmem:[%s1 + $0x21c] sm:$0xf]
      %v1413 = vld [vmem:[%s1 + $0x220] sm:$0xf]
      %v1414 = vld [vmem:[%s1 + $0x224] sm:$0xf]
      %v1415 = vld [vmem:[%s1 + $0x228] sm:$0xf]
      %v1416 = vld [vmem:[%s1 + $0x22c] sm:$0xf]
      %v1417 = vld [vmem:[%s1 + $0x230] sm:$0xf]
      %v1418 = vld [vmem:[%s1 + $0x234] sm:$0xf]
      %v1419 = vld [vmem:[%s1 + $0x238] sm:$0xf]
      %v1420 = vld [vmem:[%s1 + $0x23c] sm:$0xf]
      %v1421 = vld [vmem:[%s2] sm:$0x1]
      %v1423 = vlaneseq
      %v1424 = vshrl.u32 %v1423, 7
      %v1425 = vsub.s32 0, %v1424
      %v1426 = vrot.slane %v1421, %v1425
      %v1572 = vunpack.c.l.b16 %v1277
      %v1573 = vunpack.c.l.b16 %v1278
      %v1574 = vunpack.c.l.b16 %v1279
      %v1575 = vunpack.c.l.b16 %v1280
      %v1576 = vunpack.c.l.b16 %v1281
      %v1577 = vunpack.c.l.b16 %v1282
      %v1578 = vunpack.c.l.b16 %v1283
      %v1579 = vunpack.c.l.b16 %v1284
      %v1580 = vunpack.c.l.b16 %v1285
      %v1581 = vunpack.c.l.b16 %v1286
      %v1582 = vunpack.c.l.b16 %v1287
      %v1583 = vunpack.c.l.b16 %v1288
      %v1584 = vunpack.c.l.b16 %v1289
      %v1585 = vunpack.c.l.b16 %v1290
      %v1586 = vunpack.c.l.b16 %v1291
      %v1587 = vunpack.c.l.b16 %v1292
      %v1588 = vunpack.c.l.b16 %v1293
      %v1589 = vunpack.c.l.b16 %v1294
      %v1590 = vunpack.c.l.b16 %v1295
      %v1591 = vunpack.c.l.b16 %v1296
      %v1592 = vunpack.c.l.b16 %v1297
      %v1593 = vunpack.c.l.b16 %v1298
      %v1594 = vunpack.c.l.b16 %v1299
      %v1595 = vunpack.c.l.b16 %v1300
      %v1596 = vunpack.c.l.b16 %v1301
      %v1597 = vunpack.c.l.b16 %v1302
      %v1598 = vunpack.c.l.b16 %v1303
      %v1599 = vunpack.c.l.b16 %v1304
      %v1600 = vunpack.c.l.b16 %v1305
      %v1601 = vunpack.c.l.b16 %v1306
      %v1602 = vunpack.c.l.b16 %v1307
      %v1603 = vunpack.c.l.b16 %v1308
      %v1604 = vunpack.c.l.b16 %v1309
      %v1605 = vunpack.c.l.b16 %v1310
      %v1606 = vunpack.c.l.b16 %v1311
      %v1607 = vunpack.c.l.b16 %v1312
      %v1608 = vunpack.c.l.b16 %v1313
      %v1609 = vunpack.c.l.b16 %v1314
      %v1610 = vunpack.c.l.b16 %v1315
      %v1611 = vunpack.c.l.b16 %v1316
      %v1612 = vunpack.c.l.b16 %v1317
      %v1613 = vunpack.c.l.b16 %v1318
      %v1614 = vunpack.c.l.b16 %v1319
      %v1615 = vunpack.c.l.b16 %v1320
      %v1616 = vunpack.c.l.b16 %v1321
      %v1617 = vunpack.c.l.b16 %v1322
      %v1618 = vunpack.c.l.b16 %v1323
      %v1619 = vunpack.c.l.b16 %v1324
      %v1620 = vunpack.c.l.b16 %v1325
      %v1621 = vunpack.c.l.b16 %v1326
      %v1622 = vunpack.c.l.b16 %v1327
      %v1623 = vunpack.c.l.b16 %v1328
      %v1624 = vunpack.c.l.b16 %v1329
      %v1625 = vunpack.c.l.b16 %v1330
      %v1626 = vunpack.c.l.b16 %v1331
      %v1627 = vunpack.c.l.b16 %v1332
      %v1628 = vunpack.c.l.b16 %v1333
      %v1629 = vunpack.c.l.b16 %v1334
      %v1630 = vunpack.c.l.b16 %v1335
      %v1631 = vunpack.c.l.b16 %v1336
      %v1632 = vunpack.c.l.b16 %v1337
      %v1633 = vunpack.c.l.b16 %v1338
      %v1634 = vunpack.c.l.b16 %v1339
      %v1635 = vunpack.c.l.b16 %v1340
      %v1636 = vunpack.c.l.b16 %v1341
      %v1637 = vunpack.c.l.b16 %v1342
      %v1638 = vunpack.c.l.b16 %v1343
      %v1639 = vunpack.c.l.b16 %v1344
      %v1640 = vunpack.c.l.b16 %v1345
      %v1641 = vunpack.c.l.b16 %v1346
      %v1642 = vunpack.c.l.b16 %v1347
      %v1643 = vunpack.c.l.b16 %v1348
      %v1644 = vunpack.c.l.b16 %v1349
      %v1645 = vunpack.c.l.b16 %v1350
      %v1646 = vunpack.c.l.b16 %v1351
      %v1647 = vunpack.c.l.b16 %v1352
      %v1648 = vunpack.c.l.b16 %v1353
      %v1649 = vunpack.c.l.b16 %v1354
      %v1650 = vunpack.c.l.b16 %v1355
      %v1651 = vunpack.c.l.b16 %v1356
      %v1652 = vunpack.c.l.b16 %v1357
      %v1653 = vunpack.c.l.b16 %v1358
      %v1654 = vunpack.c.l.b16 %v1359
      %v1655 = vunpack.c.l.b16 %v1360
      %v1656 = vunpack.c.l.b16 %v1361
      %v1657 = vunpack.c.l.b16 %v1362
      %v1658 = vunpack.c.l.b16 %v1363
      %v1659 = vunpack.c.l.b16 %v1364
      %v1660 = vunpack.c.l.b16 %v1365
      %v1661 = vunpack.c.l.b16 %v1366
      %v1662 = vunpack.c.l.b16 %v1367
      %v1663 = vunpack.c.l.b16 %v1368
      %v1664 = vunpack.c.l.b16 %v1369
      %v1665 = vunpack.c.l.b16 %v1370
      %v1666 = vunpack.c.l.b16 %v1371
      %v1667 = vunpack.c.l.b16 %v1372
      %v1668 = vunpack.c.l.b16 %v1373
      %v1669 = vunpack.c.l.b16 %v1374
      %v1670 = vunpack.c.l.b16 %v1375
      %v1671 = vunpack.c.l.b16 %v1376
      %v1672 = vunpack.c.l.b16 %v1377
      %v1673 = vunpack.c.l.b16 %v1378
      %v1674 = vunpack.c.l.b16 %v1379
      %v1675 = vunpack.c.l.b16 %v1380
      %v1676 = vunpack.c.l.b16 %v1381
      %v1677 = vunpack.c.l.b16 %v1382
      %v1678 = vunpack.c.l.b16 %v1383
      %v1679 = vunpack.c.l.b16 %v1384
      %v1680 = vunpack.c.l.b16 %v1385
      %v1681 = vunpack.c.l.b16 %v1386
      %v1682 = vunpack.c.l.b16 %v1387
      %v1683 = vunpack.c.l.b16 %v1388
      %v1684 = vunpack.c.l.b16 %v1389
      %v1685 = vunpack.c.l.b16 %v1390
      %v1686 = vunpack.c.l.b16 %v1391
      %v1687 = vunpack.c.l.b16 %v1392
      %v1688 = vunpack.c.l.b16 %v1393
      %v1689 = vunpack.c.l.b16 %v1394
      %v1690 = vunpack.c.l.b16 %v1395
      %v1691 = vunpack.c.l.b16 %v1396
      %v1692 = vunpack.c.l.b16 %v1397
      %v1693 = vunpack.c.l.b16 %v1398
      %v1694 = vunpack.c.l.b16 %v1399
      %v1695 = vunpack.c.l.b16 %v1400
      %v1696 = vunpack.c.l.b16 %v1401
      %v1697 = vunpack.c.l.b16 %v1402
      %v1698 = vunpack.c.l.b16 %v1403
      %v1699 = vunpack.c.l.b16 %v1404
      %v1700 = vunpack.c.l.b16 %v1405
      %v1701 = vunpack.c.l.b16 %v1406
      %v1702 = vunpack.c.l.b16 %v1407
      %v1703 = vunpack.c.l.b16 %v1408
      %v1704 = vunpack.c.l.b16 %v1409
      %v1705 = vunpack.c.l.b16 %v1410
      %v1706 = vunpack.c.l.b16 %v1411
      %v1707 = vunpack.c.l.b16 %v1412
      %v1708 = vunpack.c.l.b16 %v1413
      %v1709 = vunpack.c.l.b16 %v1414
      %v1710 = vunpack.c.l.b16 %v1415
      %v1711 = vunpack.c.l.b16 %v1416
      %v1712 = vunpack.c.l.b16 %v1417
      %v1713 = vunpack.c.l.b16 %v1418
      %v1714 = vunpack.c.l.b16 %v1419
      %v1715 = vunpack.c.l.b16 %v1420
      %v1716 = vpack.c.b16 %v1573, %v1572
      %v1717 = vpack.c.b16 %v1575, %v1574
      %v1718 = vpack.c.b16 %v1577, %v1576
      %v1719 = vpack.c.b16 %v1579, %v1578
      %v1720 = vpack.c.b16 %v1581, %v1580
      %v1721 = vpack.c.b16 %v1583, %v1582
      %v1722 = vpack.c.b16 %v1585, %v1584
      %v1723 = vpack.c.b16 %v1587, %v1586
      %v1724 = vpack.c.b16 %v1589, %v1588
      %v1725 = vpack.c.b16 %v1591, %v1590
      %v1726 = vpack.c.b16 %v1593, %v1592
      %v1727 = vpack.c.b16 %v1595, %v1594
      %v1728 = vpack.c.b16 %v1597, %v1596
      %v1729 = vpack.c.b16 %v1599, %v1598
      %v1730 = vpack.c.b16 %v1601, %v1600
      %v1731 = vpack.c.b16 %v1603, %v1602
      %v1732 = vpack.c.b16 %v1605, %v1604
      %v1733 = vpack.c.b16 %v1607, %v1606
      %v1734 = vpack.c.b16 %v1609, %v1608
      %v1735 = vpack.c.b16 %v1611, %v1610
      %v1736 = vpack.c.b16 %v1613, %v1612
      %v1737 = vpack.c.b16 %v1615, %v1614
      %v1738 = vpack.c.b16 %v1617, %v1616
      %v1739 = vpack.c.b16 %v1619, %v1618
      %v1740 = vpack.c.b16 %v1621, %v1620
      %v1741 = vpack.c.b16 %v1623, %v1622
      %v1742 = vpack.c.b16 %v1625, %v1624
      %v1743 = vpack.c.b16 %v1627, %v1626
      %v1744 = vpack.c.b16 %v1629, %v1628
      %v1745 = vpack.c.b16 %v1631, %v1630
      %v1746 = vpack.c.b16 %v1633, %v1632
      %v1747 = vpack.c.b16 %v1635, %v1634
      %v1748 = vpack.c.b16 %v1637, %v1636
      %v1749 = vpack.c.b16 %v1639, %v1638
      %v1750 = vpack.c.b16 %v1641, %v1640
      %v1751 = vpack.c.b16 %v1643, %v1642
      %v1752 = vpack.c.b16 %v1645, %v1644
      %v1753 = vpack.c.b16 %v1647, %v1646
      %v1754 = vpack.c.b16 %v1649, %v1648
      %v1755 = vpack.c.b16 %v1651, %v1650
      %v1756 = vpack.c.b16 %v1653, %v1652
      %v1757 = vpack.c.b16 %v1655, %v1654
      %v1758 = vpack.c.b16 %v1657, %v1656
      %v1759 = vpack.c.b16 %v1659, %v1658
      %v1760 = vpack.c.b16 %v1661, %v1660
      %v1761 = vpack.c.b16 %v1663, %v1662
      %v1762 = vpack.c.b16 %v1665, %v1664
      %v1763 = vpack.c.b16 %v1667, %v1666
      %v1764 = vpack.c.b16 %v1669, %v1668
      %v1765 = vpack.c.b16 %v1671, %v1670
      %v1766 = vpack.c.b16 %v1673, %v1672
      %v1767 = vpack.c.b16 %v1675, %v1674
      %v1768 = vpack.c.b16 %v1677, %v1676
      %v1769 = vpack.c.b16 %v1679, %v1678
      %v1770 = vpack.c.b16 %v1681, %v1680
      %v1771 = vpack.c.b16 %v1683, %v1682
      %v1772 = vpack.c.b16 %v1685, %v1684
      %v1773 = vpack.c.b16 %v1687, %v1686
      %v1774 = vpack.c.b16 %v1689, %v1688
      %v1775 = vpack.c.b16 %v1691, %v1690
      %v1776 = vpack.c.b16 %v1693, %v1692
      %v1777 = vpack.c.b16 %v1695, %v1694
      %v1778 = vpack.c.b16 %v1697, %v1696
      %v1779 = vpack.c.b16 %v1699, %v1698
      %v1780 = vpack.c.b16 %v1701, %v1700
      %v1781 = vpack.c.b16 %v1703, %v1702
      %v1782 = vpack.c.b16 %v1705, %v1704
      %v1783 = vpack.c.b16 %v1707, %v1706
      %v1784 = vpack.c.b16 %v1709, %v1708
      %v1785 = vpack.c.b16 %v1711, %v1710
      %v1786 = vpack.c.b16 %v1713, %v1712
      %v1787 = vpack.c.b16 %v1715, %v1714
      %1860 = vmatprep.subr.bf16.mxu0 0
      %1861 = vmatpush1.bf16.msra.mxu0 %v1716
      %1862 = vmatprep.subr.bf16.mxu0 0
      %1863 = vmatpush1.bf16.msra.mxu0 %v1717
      %1864 = vmatprep.subr.bf16.mxu0 0
      %1865 = vmatpush1.bf16.msra.mxu0 %v1718
      %1866 = vmatprep.subr.bf16.mxu0 0
      %1867 = vmatpush1.bf16.msra.mxu0 %v1719
      %1868 = vmatprep.subr.bf16.mxu0 0
      %1869 = vmatpush1.bf16.msra.mxu0 %v1720
      %1870 = vmatprep.subr.bf16.mxu0 0
      %1871 = vmatpush1.bf16.msra.mxu0 %v1721
      %1872 = vmatprep.subr.bf16.mxu0 0
      %1873 = vmatpush1.bf16.msra.mxu0 %v1722
      %1874 = vmatprep.subr.bf16.mxu0 0
      %1875 = vmatpush1.bf16.msra.mxu0 %v1723
      %1876 = vmatprep.subr.bf16.mxu0 0
      %1877 = vmatpush1.bf16.msra.mxu0 %v1724
      %1878 = vmatprep.subr.bf16.mxu0 0
      %1879 = vmatpush1.bf16.msra.mxu0 %v1725
      %1880 = vmatprep.subr.bf16.mxu0 0
      %1881 = vmatpush1.bf16.msra.mxu0 %v1726
      %1882 = vmatprep.subr.bf16.mxu0 0
      %1883 = vmatpush1.bf16.msra.mxu0 %v1727
      %1884 = vmatprep.subr.bf16.mxu0 0
      %1885 = vmatpush1.bf16.msra.mxu0 %v1728
      %1886 = vmatprep.subr.bf16.mxu0 0
      %1887 = vmatpush1.bf16.msra.mxu0 %v1729
      %1888 = vmatprep.subr.bf16.mxu0 0
      %1889 = vmatpush1.bf16.msra.mxu0 %v1730
      %1890 = vmatprep.subr.bf16.mxu0 0
      %1891 = vmatpush1.bf16.msra.mxu0 %v1731
      %1892 = vmatprep.mubr.bf16.mxu0 %v1134
      %1893 = vmatmul.mubr.bf16.gmra.mrb[0].mxu0 %v1133
      %v1894 = vpop.f32.mrb[0].mxu0
      %v1895 = vadd.f32 %v1426, %v1894
      %v1896 = vpop.f32.mrb[0].mxu0
      %v1897 = vpop.f32.mrb[0].mxu0
      %v1898 = vadd.f32 %v1426, %v1897
      %v1899 = vpop.f32.mrb[0].mxu0
      %1900 = vmatprep.mubr.bf16.mxu0 %v1143
      %1901 = vmatmul.mubr.bf16.gmra.mrb[0].mxu0 %v1142
      %v1902 = vpop.f32.mrb[0].mxu0
      %v1903 = vadd.f32 %v1426, %v1902
      %v1904 = vpop.f32.mrb[0].mxu0
      %v1905 = vpop.f32.mrb[0].mxu0
      %v1906 = vadd.f32 %v1426, %v1905
      %v1907 = vpop.f32.mrb[0].mxu0
      %1908 = vmatprep.mubr.bf16.mxu0 %v1152
      %1909 = vmatmul.mubr.bf16.gmra.mrb[0].mxu0 %v1151
      %v1910 = vpop.f32.mrb[0].mxu0
      %v1911 = vadd.f32 %v1426, %v1910
      %v1912 = vpop.f32.mrb[0].mxu0
      %v1913 = vpop.f32.mrb[0].mxu0
      %v1914 = vadd.f32 %v1426, %v1913
      %v1915 = vpop.f32.mrb[0].mxu0
      %1916 = vmatprep.mubr.bf16.mxu0 %v1161
      %1917 = vmatmul.mubr.bf16.gmra.mrb[0].mxu0 %v1160
      %v1918 = vpop.f32.mrb[0].mxu0
      %v1919 = vadd.f32 %v1426, %v1918
      %v1920 = vpop.f32.mrb[0].mxu0
      %v1921 = vpop.f32.mrb[0].mxu0
      %v1922 = vadd.f32 %v1426, %v1921
      %v1923 = vpop.f32.mrb[0].mxu0
      %1924 = vmatprep.mubr.bf16.mxu0 %v1170
      %1925 = vmatmul.mubr.bf16.gmra.mrb[0].mxu0 %v1169
      %v1926 = vpop.f32.mrb[0].mxu0
      %v1927 = vadd.f32 %v1426, %v1926
      %v1928 = vpop.f32.mrb[0].mxu0
      %v1929 = vpop.f32.mrb[0].mxu0
      %v1930 = vadd.f32 %v1426, %v1929
      %v1931 = vpop.f32.mrb[0].mxu0
      %1932 = vmatprep.mubr.bf16.mxu0 %v1179
      %1933 = vmatmul.mubr.bf16.gmra.mrb[0].mxu0 %v1178
      %v1934 = vpop.f32.mrb[0].mxu0
      %v1935 = vadd.f32 %v1426, %v1934
      %v1936 = vpop.f32.mrb[0].mxu0
      %v1937 = vpop.f32.mrb[0].mxu0
      %v1938 = vadd.f32 %v1426, %v1937
      %v1939 = vpop.f32.mrb[0].mxu0
      %1940 = vmatprep.mubr.bf16.mxu0 %v1188
      %1941 = vmatmul.mubr.bf16.gmra.mrb[0].mxu0 %v1187
      %v1942 = vpop.f32.mrb[0].mxu0
      %v1943 = vadd.f32 %v1426, %v1942
      %v1944 = vpop.f32.mrb[0].mxu0
      %v1945 = vpop.f32.mrb[0].mxu0
      %v1946 = vadd.f32 %v1426, %v1945
      %v1947 = vpop.f32.mrb[0].mxu0
      %1948 = vmatprep.mubr.bf16.mxu0 %v1197
      %1949 = vmatmul.mubr.bf16.gmra.mrb[0].mxu0 %v1196
      %v1950 = vpop.f32.mrb[0].mxu0
      %v1951 = vadd.f32 %v1426, %v1950
      %v1952 = vpop.f32.mrb[0].mxu0
      %v1953 = vpop.f32.mrb[0].mxu0
      %v1954 = vadd.f32 %v1426, %v1953
      %v1955 = vpop.f32.mrb[0].mxu0
      %1956 = vmatprep.mubr.bf16.mxu0 %v1206
      %1957 = vmatmul.mubr.bf16.gmra.mrb[0].mxu0 %v1205
      %v1958 = vpop.f32.mrb[0].mxu0
      %v1959 = vadd.f32 %v1426, %v1958
      %v1960 = vpop.f32.mrb[0].mxu0
      %v1961 = vpop.f32.mrb[0].mxu0
      %v1962 = vadd.f32 %v1426, %v1961
      %v1963 = vpop.f32.mrb[0].mxu0
      %1964 = vmatprep.mubr.bf16.mxu0 %v1215
      %1965 = vmatmul.mubr.bf16.gmra.mrb[0].mxu0 %v1214
      %v1966 = vpop.f32.mrb[0].mxu0
      %v1967 = vadd.f32 %v1426, %v1966
      %v1968 = vpop.f32.mrb[0].mxu0
      %v1969 = vpop.f32.mrb[0].mxu0
      %v1970 = vadd.f32 %v1426, %v1969
      %v1971 = vpop.f32.mrb[0].mxu0
      %1972 = vmatprep.mubr.bf16.mxu0 %v1224
      %1973 = vmatmul.mubr.bf16.gmra.mrb[0].mxu0 %v1223
      %v1974 = vpop.f32.mrb[0].mxu0
      %v1975 = vadd.f32 %v1426, %v1974
      %v1976 = vpop.f32.mrb[0].mxu0
      %v1977 = vpop.f32.mrb[0].mxu0
      %v1978 = vadd.f32 %v1426, %v1977
      %v1979 = vpop.f32.mrb[0].mxu0
      %1980 = vmatprep.mubr.bf16.mxu0 %v1233
      %1981 = vmatmul.mubr.bf16.gmra.mrb[0].mxu0 %v1232
      %v1982 = vpop.f32.mrb[0].mxu0
      %v1983 = vadd.f32 %v1426, %v1982
      %v1984 = vpop.f32.mrb[0].mxu0
      %v1985 = vpop.f32.mrb[0].mxu0
      %v1986 = vadd.f32 %v1426, %v1985
      %v1987 = vpop.f32.mrb[0].mxu0
      %1988 = vmatprep.mubr.bf16.mxu0 %v1242
      %1989 = vmatmul.mubr.bf16.gmra.mrb[0].mxu0 %v1241
      %v1990 = vpop.f32.mrb[0].mxu0
      %v1991 = vadd.f32 %v1426, %v1990
      %v1992 = vpop.f32.mrb[0].mxu0
      %v1993 = vpop.f32.mrb[0].mxu0
      %v1994 = vadd.f32 %v1426, %v1993
      %v1995 = vpop.f32.mrb[0].mxu0
      %1996 = vmatprep.mubr.bf16.mxu0 %v1251
      %1997 = vmatmul.mubr.bf16.gmra.mrb[0].mxu0 %v1250
      %v1998 = vpop.f32.mrb[0].mxu0
      %v1999 = vadd.f32 %v1426, %v1998
      %v2000 = vpop.f32.mrb[0].mxu0
      %v2001 = vpop.f32.mrb[0].mxu0
      %v2002 = vadd.f32 %v1426, %v2001
      %v2003 = vpop.f32.mrb[0].mxu0
      %2004 = vmatprep.mubr.bf16.mxu0 %v1260
      %2005 = vmatmul.mubr.bf16.gmra.mrb[0].mxu0 %v1259
      %v2006 = vpop.f32.mrb[0].mxu0
      %v2007 = vadd.f32 %v1426, %v2006
      %v2008 = vpop.f32.mrb[0].mxu0
      %v2009 = vpop.f32.mrb[0].mxu0
      %v2010 = vadd.f32 %v1426, %v2009
      %v2011 = vpop.f32.mrb[0].mxu0
      %2012 = vmatprep.mubr.bf16.mxu0 %v1269
      %2013 = vmatmul.mubr.bf16.gmra.mrb[0].mxu0 %v1268
      %v2014 = vpop.f32.mrb[0].mxu0
      %v2015 = vadd.f32 %v1426, %v2014
      %v2016 = vpop.f32.mrb[0].mxu0
      %v2017 = vpop.f32.mrb[0].mxu0
      %v2018 = vadd.f32 %v1426, %v2017
      %v2019 = vpop.f32.mrb[0].mxu0
      %2020 = vdwg.mxu0
      %2021 = vmatprep.subr.bf16.mxu0 0
      %2022 = vmatpush1.bf16.msra.mxu0 %v1732
      %2023 = vmatprep.subr.bf16.mxu0 0
      %2024 = vmatpush1.bf16.msra.mxu0 %v1733
      %2025 = vmatprep.subr.bf16.mxu0 0
      %2026 = vmatpush1.bf16.msra.mxu0 %v1734
      %2027 = vmatprep.subr.bf16.mxu0 0
      %2028 = vmatpush1.bf16.msra.mxu0 %v1735
      %2029 = vmatprep.subr.bf16.mxu0 0
      %2030 = vmatpush1.bf16.msra.mxu0 %v1736
      %2031 = vmatprep.subr.bf16.mxu0 0
      %2032 = vmatpush1.bf16.msra.mxu0 %v1737
      %2033 = vmatprep.subr.bf16.mxu0 0
      %2034 = vmatpush1.bf16.msra.mxu0 %v1738
      %2035 = vmatprep.subr.bf16.mxu0 0
      %2036 = vmatpush1.bf16.msra.mxu0 %v1739
      %2037 = vmatprep.subr.bf16.mxu0 0
      %2038 = vmatpush1.bf16.msra.mxu0 %v1740
      %2039 = vmatprep.subr.bf16.mxu0 0
      %2040 = vmatpush1.bf16.msra.mxu0 %v1741
      %2041 = vmatprep.subr.bf16.mxu0 0
      %2042 = vmatpush1.bf16.msra.mxu0 %v1742
      %2043 = vmatprep.subr.bf16.mxu0 0
      %2044 = vmatpush1.bf16.msra.mxu0 %v1743
      %2045 = vmatprep.subr.bf16.mxu0 0
      %2046 = vmatpush1.bf16.msra.mxu0 %v1744
      %2047 = vmatprep.subr.bf16.mxu0 0
      %2048 = vmatpush1.bf16.msra.mxu0 %v1745
      %2049 = vmatprep.subr.bf16.mxu0 0
      %2050 = vmatpush1.bf16.msra.mxu0 %v1746
      %2051 = vmatprep.subr.bf16.mxu0 0
      %2052 = vmatpush1.bf16.msra.mxu0 %v1747
      %2053 = vmatprep.mubr.bf16.mxu0 %v1136
      %2054 = vmatmul.mubr.bf16.gmra.mrb[0].mxu0 %v1135
      %v2055 = vpop.f32.mrb[0].mxu0
      %v2056 = vadd.f32 %v1895, %v2055
      %v2057 = vpop.f32.mrb[0].mxu0
      %v2058 = vpop.f32.mrb[0].mxu0
      %v2059 = vadd.f32 %v1898, %v2058
      %v2060 = vpop.f32.mrb[0].mxu0
      %2061 = vmatprep.mubr.bf16.mxu0 %v1145
      %2062 = vmatmul.mubr.bf16.gmra.mrb[0].mxu0 %v1144
      %v2063 = vpop.f32.mrb[0].mxu0
      %v2064 = vadd.f32 %v1903, %v2063
      %v2065 = vpop.f32.mrb[0].mxu0
      %v2066 = vpop.f32.mrb[0].mxu0
      %v2067 = vadd.f32 %v1906, %v2066
      %v2068 = vpop.f32.mrb[0].mxu0
      %2069 = vmatprep.mubr.bf16.mxu0 %v1154
      %2070 = vmatmul.mubr.bf16.gmra.mrb[0].mxu0 %v1153
      %v2071 = vpop.f32.mrb[0].mxu0
      %v2072 = vadd.f32 %v1911, %v2071
      %v2073 = vpop.f32.mrb[0].mxu0
      %v2074 = vpop.f32.mrb[0].mxu0
      %v2075 = vadd.f32 %v1914, %v2074
      %v2076 = vpop.f32.mrb[0].mxu0
      %2077 = vmatprep.mubr.bf16.mxu0 %v1163
      %2078 = vmatmul.mubr.bf16.gmra.mrb[0].mxu0 %v1162
      %v2079 = vpop.f32.mrb[0].mxu0
      %v2080 = vadd.f32 %v1919, %v2079
      %v2081 = vpop.f32.mrb[0].mxu0
      %v2082 = vpop.f32.mrb[0].mxu0
      %v2083 = vadd.f32 %v1922, %v2082
      %v2084 = vpop.f32.mrb[0].mxu0
      %2085 = vmatprep.mubr.bf16.mxu0 %v1172
      %2086 = vmatmul.mubr.bf16.gmra.mrb[0].mxu0 %v1171
      %v2087 = vpop.f32.mrb[0].mxu0
      %v2088 = vadd.f32 %v1927, %v2087
      %v2089 = vpop.f32.mrb[0].mxu0
      %v2090 = vpop.f32.mrb[0].mxu0
      %v2091 = vadd.f32 %v1930, %v2090
      %v2092 = vpop.f32.mrb[0].mxu0
      %2093 = vmatprep.mubr.bf16.mxu0 %v1181
      %2094 = vmatmul.mubr.bf16.gmra.mrb[0].mxu0 %v1180
      %v2095 = vpop.f32.mrb[0].mxu0
      %v2096 = vadd.f32 %v1935, %v2095
      %v2097 = vpop.f32.mrb[0].mxu0
      %v2098 = vpop.f32.mrb[0].mxu0
      %v2099 = vadd.f32 %v1938, %v2098
      %v2100 = vpop.f32.mrb[0].mxu0
      %2101 = vmatprep.mubr.bf16.mxu0 %v1190
      %2102 = vmatmul.mubr.bf16.gmra.mrb[0].mxu0 %v1189
      %v2103 = vpop.f32.mrb[0].mxu0
      %v2104 = vadd.f32 %v1943, %v2103
      %v2105 = vpop.f32.mrb[0].mxu0
      %v2106 = vpop.f32.mrb[0].mxu0
      %v2107 = vadd.f32 %v1946, %v2106
      %v2108 = vpop.f32.mrb[0].mxu0
      %2109 = vmatprep.mubr.bf16.mxu0 %v1199
      %2110 = vmatmul.mubr.bf16.gmra.mrb[0].mxu0 %v1198
      %v2111 = vpop.f32.mrb[0].mxu0
      %v2112 = vadd.f32 %v1951, %v2111
      %v2113 = vpop.f32.mrb[0].mxu0
      %v2114 = vpop.f32.mrb[0].mxu0
      %v2115 = vadd.f32 %v1954, %v2114
      %v2116 = vpop.f32.mrb[0].mxu0
      %2117 = vmatprep.mubr.bf16.mxu0 %v1208
      %2118 = vmatmul.mubr.bf16.gmra.mrb[0].mxu0 %v1207
      %v2119 = vpop.f32.mrb[0].mxu0
      %v2120 = vadd.f32 %v1959, %v2119
      %v2121 = vpop.f32.mrb[0].mxu0
      %v2122 = vpop.f32.mrb[0].mxu0
      %v2123 = vadd.f32 %v1962, %v2122
      %v2124 = vpop.f32.mrb[0].mxu0
      %2125 = vmatprep.mubr.bf16.mxu0 %v1217
      %2126 = vmatmul.mubr.bf16.gmra.mrb[0].mxu0 %v1216
      %v2127 = vpop.f32.mrb[0].mxu0
      %v2128 = vadd.f32 %v1967, %v2127
      %v2129 = vpop.f32.mrb[0].mxu0
      %v2130 = vpop.f32.mrb[0].mxu0
      %v2131 = vadd.f32 %v1970, %v2130
      %v2132 = vpop.f32.mrb[0].mxu0
      %2133 = vmatprep.mubr.bf16.mxu0 %v1226
      %2134 = vmatmul.mubr.bf16.gmra.mrb[0].mxu0 %v1225
      %v2135 = vpop.f32.mrb[0].mxu0
      %v2136 = vadd.f32 %v1975, %v2135
      %v2137 = vpop.f32.mrb[0].mxu0
      %v2138 = vpop.f32.mrb[0].mxu0
      %v2139 = vadd.f32 %v1978, %v2138
      %v2140 = vpop.f32.mrb[0].mxu0
      %2141 = vmatprep.mubr.bf16.mxu0 %v1235
      %2142 = vmatmul.mubr.bf16.gmra.mrb[0].mxu0 %v1234
      %v2143 = vpop.f32.mrb[0].mxu0
      %v2144 = vadd.f32 %v1983, %v2143
      %v2145 = vpop.f32.mrb[0].mxu0
      %v2146 = vpop.f32.mrb[0].mxu0
      %v2147 = vadd.f32 %v1986, %v2146
      %v2148 = vpop.f32.mrb[0].mxu0
      %2149 = vmatprep.mubr.bf16.mxu0 %v1244
      %2150 = vmatmul.mubr.bf16.gmra.mrb[0].mxu0 %v1243
      %v2151 = vpop.f32.mrb[0].mxu0
      %v2152 = vadd.f32 %v1991, %v2151
      %v2153 = vpop.f32.mrb[0].mxu0
      %v2154 = vpop.f32.mrb[0].mxu0
      %v2155 = vadd.f32 %v1994, %v2154
      %v2156 = vpop.f32.mrb[0].mxu0
      %2157 = vmatprep.mubr.bf16.mxu0 %v1253
      %2158 = vmatmul.mubr.bf16.gmra.mrb[0].mxu0 %v1252
      %v2159 = vpop.f32.mrb[0].mxu0
      %v2160 = vadd.f32 %v1999, %v2159
      %v2161 = vpop.f32.mrb[0].mxu0
      %v2162 = vpop.f32.mrb[0].mxu0
      %v2163 = vadd.f32 %v2002, %v2162
      %v2164 = vpop.f32.mrb[0].mxu0
      %2165 = vmatprep.mubr.bf16.mxu0 %v1262
      %2166 = vmatmul.mubr.bf16.gmra.mrb[0].mxu0 %v1261
      %v2167 = vpop.f32.mrb[0].mxu0
      %v2168 = vadd.f32 %v2007, %v2167
      %v2169 = vpop.f32.mrb[0].mxu0
      %v2170 = vpop.f32.mrb[0].mxu0
      %v2171 = vadd.f32 %v2010, %v2170
      %v2172 = vpop.f32.mrb[0].mxu0
      %2173 = vmatprep.mubr.bf16.mxu0 %v1271
      %2174 = vmatmul.mubr.bf16.gmra.mrb[0].mxu0 %v1270
      %v2175 = vpop.f32.mrb[0].mxu0
      %v2176 = vadd.f32 %v2015, %v2175
      %v2177 = vpop.f32.mrb[0].mxu0
      %v2178 = vpop.f32.mrb[0].mxu0
      %v2179 = vadd.f32 %v2018, %v2178
      %v2180 = vpop.f32.mrb[0].mxu0
      %2181 = vdwg.mxu0
      %2182 = vmatprep.subr.bf16.mxu0 0
      %2183 = vmatpush1.bf16.msra.mxu0 %v1748
      %2184 = vmatprep.subr.bf16.mxu0 0
      %2185 = vmatpush1.bf16.msra.mxu0 %v1749
      %2186 = vmatprep.subr.bf16.mxu0 0
      %2187 = vmatpush1.bf16.msra.mxu0 %v1750
      %2188 = vmatprep.subr.bf16.mxu0 0
      %2189 = vmatpush1.bf16.msra.mxu0 %v1751
      %2190 = vmatprep.subr.bf16.mxu0 0
      %2191 = vmatpush1.bf16.msra.mxu0 %v1752
      %2192 = vmatprep.subr.bf16.mxu0 0
      %2193 = vmatpush1.bf16.msra.mxu0 %v1753
      %2194 = vmatprep.subr.bf16.mxu0 0
      %2195 = vmatpush1.bf16.msra.mxu0 %v1754
      %2196 = vmatprep.subr.bf16.mxu0 0
      %2197 = vmatpush1.bf16.msra.mxu0 %v1755
      %2198 = vmatprep.subr.bf16.mxu0 0
      %2199 = vmatpush1.bf16.msra.mxu0 %v1756
      %2200 = vmatprep.subr.bf16.mxu0 0
      %2201 = vmatpush1.bf16.msra.mxu0 %v1757
      %2202 = vmatprep.subr.bf16.mxu0 0
      %2203 = vmatpush1.bf16.msra.mxu0 %v1758
      %2204 = vmatprep.subr.bf16.mxu0 0
      %2205 = vmatpush1.bf16.msra.mxu0 %v1759
      %2206 = vmatprep.subr.bf16.mxu0 0
      %2207 = vmatpush1.bf16.msra.mxu0 %v1760
      %2208 = vmatprep.subr.bf16.mxu0 0
      %2209 = vmatpush1.bf16.msra.mxu0 %v1761
      %2210 = vmatprep.subr.bf16.mxu0 0
      %2211 = vmatpush1.bf16.msra.mxu0 %v1762
      %2212 = vmatprep.subr.bf16.mxu0 0
      %2213 = vmatpush1.bf16.msra.mxu0 %v1763
      %2214 = vmatprep.mubr.bf16.mxu0 %v1138
      %2215 = vmatmul.mubr.bf16.gmra.mrb[0].mxu0 %v1137
      %v2216 = vpop.f32.mrb[0].mxu0
      %v2217 = vadd.f32 %v2056, %v2216
      %v2218 = vpop.f32.mrb[0].mxu0
      %v2219 = vpop.f32.mrb[0].mxu0
      %v2220 = vadd.f32 %v2059, %v2219
      %v2221 = vpop.f32.mrb[0].mxu0
      %2222 = vmatprep.mubr.bf16.mxu0 %v1147
      %2223 = vmatmul.mubr.bf16.gmra.mrb[0].mxu0 %v1146
      %v2224 = vpop.f32.mrb[0].mxu0
      %v2225 = vadd.f32 %v2064, %v2224
      %v2226 = vpop.f32.mrb[0].mxu0
      %v2227 = vpop.f32.mrb[0].mxu0
      %v2228 = vadd.f32 %v2067, %v2227
      %v2229 = vpop.f32.mrb[0].mxu0
      %2230 = vmatprep.mubr.bf16.mxu0 %v1156
      %2231 = vmatmul.mubr.bf16.gmra.mrb[0].mxu0 %v1155
      %v2232 = vpop.f32.mrb[0].mxu0
      %v2233 = vadd.f32 %v2072, %v2232
      %v2234 = vpop.f32.mrb[0].mxu0
      %v2235 = vpop.f32.mrb[0].mxu0
      %v2236 = vadd.f32 %v2075, %v2235
      %v2237 = vpop.f32.mrb[0].mxu0
      %2238 = vmatprep.mubr.bf16.mxu0 %v1165
      %2239 = vmatmul.mubr.bf16.gmra.mrb[0].mxu0 %v1164
      %v2240 = vpop.f32.mrb[0].mxu0
      %v2241 = vadd.f32 %v2080, %v2240
      %v2242 = vpop.f32.mrb[0].mxu0
      %v2243 = vpop.f32.mrb[0].mxu0
      %v2244 = vadd.f32 %v2083, %v2243
      %v2245 = vpop.f32.mrb[0].mxu0
      %2246 = vmatprep.mubr.bf16.mxu0 %v1174
      %2247 = vmatmul.mubr.bf16.gmra.mrb[0].mxu0 %v1173
      %v2248 = vpop.f32.mrb[0].mxu0
      %v2249 = vadd.f32 %v2088, %v2248
      %v2250 = vpop.f32.mrb[0].mxu0
      %v2251 = vpop.f32.mrb[0].mxu0
      %v2252 = vadd.f32 %v2091, %v2251
      %v2253 = vpop.f32.mrb[0].mxu0
      %2254 = vmatprep.mubr.bf16.mxu0 %v1183
      %2255 = vmatmul.mubr.bf16.gmra.mrb[0].mxu0 %v1182
      %v2256 = vpop.f32.mrb[0].mxu0
      %v2257 = vadd.f32 %v2096, %v2256
      %v2258 = vpop.f32.mrb[0].mxu0
      %v2259 = vpop.f32.mrb[0].mxu0
      %v2260 = vadd.f32 %v2099, %v2259
      %v2261 = vpop.f32.mrb[0].mxu0
      %2262 = vmatprep.mubr.bf16.mxu0 %v1192
      %2263 = vmatmul.mubr.bf16.gmra.mrb[0].mxu0 %v1191
      %v2264 = vpop.f32.mrb[0].mxu0
      %v2265 = vadd.f32 %v2104, %v2264
      %v2266 = vpop.f32.mrb[0].mxu0
      %v2267 = vpop.f32.mrb[0].mxu0
      %v2268 = vadd.f32 %v2107, %v2267
      %v2269 = vpop.f32.mrb[0].mxu0
      %2270 = vmatprep.mubr.bf16.mxu0 %v1201
      %2271 = vmatmul.mubr.bf16.gmra.mrb[0].mxu0 %v1200
      %v2272 = vpop.f32.mrb[0].mxu0
      %v2273 = vadd.f32 %v2112, %v2272
      %v2274 = vpop.f32.mrb[0].mxu0
      %v2275 = vpop.f32.mrb[0].mxu0
      %v2276 = vadd.f32 %v2115, %v2275
      %v2277 = vpop.f32.mrb[0].mxu0
      %2278 = vmatprep.mubr.bf16.mxu0 %v1210
      %2279 = vmatmul.mubr.bf16.gmra.mrb[0].mxu0 %v1209
      %v2280 = vpop.f32.mrb[0].mxu0
      %v2281 = vadd.f32 %v2120, %v2280
      %v2282 = vpop.f32.mrb[0].mxu0
      %v2283 = vpop.f32.mrb[0].mxu0
      %v2284 = vadd.f32 %v2123, %v2283
      %v2285 = vpop.f32.mrb[0].mxu0
      %2286 = vmatprep.mubr.bf16.mxu0 %v1219
      %2287 = vmatmul.mubr.bf16.gmra.mrb[0].mxu0 %v1218
      %v2288 = vpop.f32.mrb[0].mxu0
      %v2289 = vadd.f32 %v2128, %v2288
      %v2290 = vpop.f32.mrb[0].mxu0
      %v2291 = vpop.f32.mrb[0].mxu0
      %v2292 = vadd.f32 %v2131, %v2291
      %v2293 = vpop.f32.mrb[0].mxu0
      %2294 = vmatprep.mubr.bf16.mxu0 %v1228
      %2295 = vmatmul.mubr.bf16.gmra.mrb[0].mxu0 %v1227
      %v2296 = vpop.f32.mrb[0].mxu0
      %v2297 = vadd.f32 %v2136, %v2296
      %v2298 = vpop.f32.mrb[0].mxu0
      %v2299 = vpop.f32.mrb[0].mxu0
      %v2300 = vadd.f32 %v2139, %v2299
      %v2301 = vpop.f32.mrb[0].mxu0
      %2302 = vmatprep.mubr.bf16.mxu0 %v1237
      %2303 = vmatmul.mubr.bf16.gmra.mrb[0].mxu0 %v1236
      %v2304 = vpop.f32.mrb[0].mxu0
      %v2305 = vadd.f32 %v2144, %v2304
      %v2306 = vpop.f32.mrb[0].mxu0
      %v2307 = vpop.f32.mrb[0].mxu0
      %v2308 = vadd.f32 %v2147, %v2307
      %v2309 = vpop.f32.mrb[0].mxu0
      %2310 = vmatprep.mubr.bf16.mxu0 %v1246
      %2311 = vmatmul.mubr.bf16.gmra.mrb[0].mxu0 %v1245
      %v2312 = vpop.f32.mrb[0].mxu0
      %v2313 = vadd.f32 %v2152, %v2312
      %v2314 = vpop.f32.mrb[0].mxu0
      %v2315 = vpop.f32.mrb[0].mxu0
      %v2316 = vadd.f32 %v2155, %v2315
      %v2317 = vpop.f32.mrb[0].mxu0
      %2318 = vmatprep.mubr.bf16.mxu0 %v1255
      %2319 = vmatmul.mubr.bf16.gmra.mrb[0].mxu0 %v1254
      %v2320 = vpop.f32.mrb[0].mxu0
      %v2321 = vadd.f32 %v2160, %v2320
      %v2322 = vpop.f32.mrb[0].mxu0
      %v2323 = vpop.f32.mrb[0].mxu0
      %v2324 = vadd.f32 %v2163, %v2323
      %v2325 = vpop.f32.mrb[0].mxu0
      %2326 = vmatprep.mubr.bf16.mxu0 %v1264
      %2327 = vmatmul.mubr.bf16.gmra.mrb[0].mxu0 %v1263
      %v2328 = vpop.f32.mrb[0].mxu0
      %v2329 = vadd.f32 %v2168, %v2328
      %v2330 = vpop.f32.mrb[0].mxu0
      %v2331 = vpop.f32.mrb[0].mxu0
      %v2332 = vadd.f32 %v2171, %v2331
      %v2333 = vpop.f32.mrb[0].mxu0
      %2334 = vmatprep.mubr.bf16.mxu0 %v1273
      %2335 = vmatmul.mubr.bf16.gmra.mrb[0].mxu0 %v1272
      %v2336 = vpop.f32.mrb[0].mxu0
      %v2337 = vadd.f32 %v2176, %v2336
      %v2338 = vpop.f32.mrb[0].mxu0
      %v2339 = vpop.f32.mrb[0].mxu0
      %v2340 = vadd.f32 %v2179, %v2339
      %v2341 = vpop.f32.mrb[0].mxu0
      %2342 = vdwg.mxu0
      %2343 = vmatprep.subr.bf16.mxu0 0
      %2344 = vmatpush1.bf16.msra.mxu0 %v1764
      %2345 = vmatprep.subr.bf16.mxu0 0
      %2346 = vmatpush1.bf16.msra.mxu0 %v1765
      %2347 = vmatprep.subr.bf16.mxu0 0
      %2348 = vmatpush1.bf16.msra.mxu0 %v1766
      %2349 = vmatprep.subr.bf16.mxu0 0
      %2350 = vmatpush1.bf16.msra.mxu0 %v1767
      %2351 = vmatprep.subr.bf16.mxu0 0
      %2352 = vmatpush1.bf16.msra.mxu0 %v1768
      %2353 = vmatprep.subr.bf16.mxu0 0
      %2354 = vmatpush1.bf16.msra.mxu0 %v1769
      %2355 = vmatprep.subr.bf16.mxu0 0
      %2356 = vmatpush1.bf16.msra.mxu0 %v1770
      %2357 = vmatprep.subr.bf16.mxu0 0
      %2358 = vmatpush1.bf16.msra.mxu0 %v1771
      %2359 = vmatprep.subr.bf16.mxu0 0
      %2360 = vmatpush1.bf16.msra.mxu0 %v1772
      %2361 = vmatprep.subr.bf16.mxu0 0
      %2362 = vmatpush1.bf16.msra.mxu0 %v1773
      %2363 = vmatprep.subr.bf16.mxu0 0
      %2364 = vmatpush1.bf16.msra.mxu0 %v1774
      %2365 = vmatprep.subr.bf16.mxu0 0
      %2366 = vmatpush1.bf16.msra.mxu0 %v1775
      %2367 = vmatprep.subr.bf16.mxu0 0
      %2368 = vmatpush1.bf16.msra.mxu0 %v1776
      %2369 = vmatprep.subr.bf16.mxu0 0
      %2370 = vmatpush1.bf16.msra.mxu0 %v1777
      %2371 = vmatprep.subr.bf16.mxu0 0
      %2372 = vmatpush1.bf16.msra.mxu0 %v1778
      %2373 = vmatprep.subr.bf16.mxu0 0
      %2374 = vmatpush1.bf16.msra.mxu0 %v1779
      %2375 = vmatprep.mubr.bf16.mxu0 %v1140
      %2376 = vmatmul.mubr.bf16.gmra.mrb[0].mxu0 %v1139
      %v2377 = vpop.f32.mrb[0].mxu0
      %v2378 = vadd.f32 %v2217, %v2377
      %v2379 = vpop.f32.mrb[0].mxu0
      %v2380 = vpop.f32.mrb[0].mxu0
      %v2381 = vadd.f32 %v2220, %v2380
      %v2382 = vpop.f32.mrb[0].mxu0
      %2383 = vmatprep.mubr.bf16.mxu0 %v1149
      %2384 = vmatmul.mubr.bf16.gmra.mrb[0].mxu0 %v1148
      %v2385 = vpop.f32.mrb[0].mxu0
      %v2386 = vadd.f32 %v2225, %v2385
      %v2387 = vpop.f32.mrb[0].mxu0
      %v2388 = vpop.f32.mrb[0].mxu0
      %v2389 = vadd.f32 %v2228, %v2388
      %v2390 = vpop.f32.mrb[0].mxu0
      %2391 = vmatprep.mubr.bf16.mxu0 %v1158
      %2392 = vmatmul.mubr.bf16.gmra.mrb[0].mxu0 %v1157
      %v2393 = vpop.f32.mrb[0].mxu0
      %v2394 = vadd.f32 %v2233, %v2393
      %v2395 = vpop.f32.mrb[0].mxu0
      %v2396 = vpop.f32.mrb[0].mxu0
      %v2397 = vadd.f32 %v2236, %v2396
      %v2398 = vpop.f32.mrb[0].mxu0
      %2399 = vmatprep.mubr.bf16.mxu0 %v1167
      %2400 = vmatmul.mubr.bf16.gmra.mrb[0].mxu0 %v1166
      %v2401 = vpop.f32.mrb[0].mxu0
      %v2402 = vadd.f32 %v2241, %v2401
      %v2403 = vpop.f32.mrb[0].mxu0
      %v2404 = vpop.f32.mrb[0].mxu0
      %v2405 = vadd.f32 %v2244, %v2404
      %v2406 = vpop.f32.mrb[0].mxu0
      %2407 = vmatprep.mubr.bf16.mxu0 %v1176
      %2408 = vmatmul.mubr.bf16.gmra.mrb[0].mxu0 %v1175
      %v2409 = vpop.f32.mrb[0].mxu0
      %v2410 = vadd.f32 %v2249, %v2409
      %v2411 = vpop.f32.mrb[0].mxu0
      %v2412 = vpop.f32.mrb[0].mxu0
      %v2413 = vadd.f32 %v2252, %v2412
      %v2414 = vpop.f32.mrb[0].mxu0
      %2415 = vmatprep.mubr.bf16.mxu0 %v1185
      %2416 = vmatmul.mubr.bf16.gmra.mrb[0].mxu0 %v1184
      %v2417 = vpop.f32.mrb[0].mxu0
      %v2418 = vadd.f32 %v2257, %v2417
      %v2419 = vpop.f32.mrb[0].mxu0
      %v2420 = vpop.f32.mrb[0].mxu0
      %v2421 = vadd.f32 %v2260, %v2420
      %v2422 = vpop.f32.mrb[0].mxu0
      %2423 = vmatprep.mubr.bf16.mxu0 %v1194
      %2424 = vmatmul.mubr.bf16.gmra.mrb[0].mxu0 %v1193
      %v2425 = vpop.f32.mrb[0].mxu0
      %v2426 = vadd.f32 %v2265, %v2425
      %v2427 = vpop.f32.mrb[0].mxu0
      %v2428 = vpop.f32.mrb[0].mxu0
      %v2429 = vadd.f32 %v2268, %v2428
      %v2430 = vpop.f32.mrb[0].mxu0
      %2431 = vmatprep.mubr.bf16.mxu0 %v1203
      %2432 = vmatmul.mubr.bf16.gmra.mrb[0].mxu0 %v1202
      %v2433 = vpop.f32.mrb[0].mxu0
      %v2434 = vadd.f32 %v2273, %v2433
      %v2435 = vpop.f32.mrb[0].mxu0
      %v2436 = vpop.f32.mrb[0].mxu0
      %v2437 = vadd.f32 %v2276, %v2436
      %v2438 = vpop.f32.mrb[0].mxu0
      %2439 = vmatprep.mubr.bf16.mxu0 %v1212
      %2440 = vmatmul.mubr.bf16.gmra.mrb[0].mxu0 %v1211
      %v2441 = vpop.f32.mrb[0].mxu0
      %v2442 = vadd.f32 %v2281, %v2441
      %v2443 = vpop.f32.mrb[0].mxu0
      %v2444 = vpop.f32.mrb[0].mxu0
      %v2445 = vadd.f32 %v2284, %v2444
      %v2446 = vpop.f32.mrb[0].mxu0
      %2447 = vmatprep.mubr.bf16.mxu0 %v1221
      %2448 = vmatmul.mubr.bf16.gmra.mrb[0].mxu0 %v1220
      %v2449 = vpop.f32.mrb[0].mxu0
      %v2450 = vadd.f32 %v2289, %v2449
      %v2451 = vpop.f32.mrb[0].mxu0
      %v2452 = vpop.f32.mrb[0].mxu0
      %v2453 = vadd.f32 %v2292, %v2452
      %v2454 = vpop.f32.mrb[0].mxu0
      %2455 = vmatprep.mubr.bf16.mxu0 %v1230
      %2456 = vmatmul.mubr.bf16.gmra.mrb[0].mxu0 %v1229
      %v2457 = vpop.f32.mrb[0].mxu0
      %v2458 = vadd.f32 %v2297, %v2457
      %v2459 = vpop.f32.mrb[0].mxu0
      %v2460 = vpop.f32.mrb[0].mxu0
      %v2461 = vadd.f32 %v2300, %v2460
      %v2462 = vpop.f32.mrb[0].mxu0
      %2463 = vmatprep.mubr.bf16.mxu0 %v1239
      %2464 = vmatmul.mubr.bf16.gmra.mrb[0].mxu0 %v1238
      %v2465 = vpop.f32.mrb[0].mxu0
      %v2466 = vadd.f32 %v2305, %v2465
      %v2467 = vpop.f32.mrb[0].mxu0
      %v2468 = vpop.f32.mrb[0].mxu0
      %v2469 = vadd.f32 %v2308, %v2468
      %v2470 = vpop.f32.mrb[0].mxu0
      %2471 = vmatprep.mubr.bf16.mxu0 %v1248
      %2472 = vmatmul.mubr.bf16.gmra.mrb[0].mxu0 %v1247
      %v2473 = vpop.f32.mrb[0].mxu0
      %v2474 = vadd.f32 %v2313, %v2473
      %v2475 = vpop.f32.mrb[0].mxu0
      %v2476 = vpop.f32.mrb[0].mxu0
      %v2477 = vadd.f32 %v2316, %v2476
      %v2478 = vpop.f32.mrb[0].mxu0
      %2479 = vmatprep.mubr.bf16.mxu0 %v1257
      %2480 = vmatmul.mubr.bf16.gmra.mrb[0].mxu0 %v1256
      %v2481 = vpop.f32.mrb[0].mxu0
      %v2482 = vadd.f32 %v2321, %v2481
      %v2483 = vpop.f32.mrb[0].mxu0
      %v2484 = vpop.f32.mrb[0].mxu0
      %v2485 = vadd.f32 %v2324, %v2484
      %v2486 = vpop.f32.mrb[0].mxu0
      %2487 = vmatprep.mubr.bf16.mxu0 %v1266
      %2488 = vmatmul.mubr.bf16.gmra.mrb[0].mxu0 %v1265
      %v2489 = vpop.f32.mrb[0].mxu0
      %v2490 = vadd.f32 %v2329, %v2489
      %v2491 = vpop.f32.mrb[0].mxu0
      %v2492 = vpop.f32.mrb[0].mxu0
      %v2493 = vadd.f32 %v2332, %v2492
      %v2494 = vpop.f32.mrb[0].mxu0
      %2495 = vmatprep.mubr.bf16.mxu0 %v1275
      %2496 = vmatmul.mubr.bf16.gmra.mrb[0].mxu0 %v1274
      %v2497 = vpop.f32.mrb[0].mxu0
      %v2498 = vadd.f32 %v2337, %v2497
      %v2499 = vpop.f32.mrb[0].mxu0
      %v2500 = vpop.f32.mrb[0].mxu0
      %v2501 = vadd.f32 %v2340, %v2500
      %v2502 = vpop.f32.mrb[0].mxu0
      %2503 = vdwg.mxu0
      %2504 = vmatprep.subr.bf16.mxu0 0
      %2505 = vmatpush1.bf16.msra.mxu0 %v1780
      %2506 = vmatprep.subr.bf16.mxu0 0
      %2507 = vmatpush1.bf16.msra.mxu0 %v1781
      %2508 = vmatprep.subr.bf16.mxu0 0
      %2509 = vmatpush1.bf16.msra.mxu0 %v1782
      %2510 = vmatprep.subr.bf16.mxu0 0
      %2511 = vmatpush1.bf16.msra.mxu0 %v1783
      %2512 = vmatprep.subr.bf16.mxu0 0
      %2513 = vmatpush1.bf16.msra.mxu0 %v1784
      %2514 = vmatprep.subr.bf16.mxu0 0
      %2515 = vmatpush1.bf16.msra.mxu0 %v1785
      %2516 = vmatprep.subr.bf16.mxu0 0
      %2517 = vmatpush1.bf16.msra.mxu0 %v1786
      %2518 = vmatprep.subr.bf16.mxu0 0
      %2519 = vmatpush1.bf16.msra.mxu0 %v1787
      %2520 = vmatprep.subr.bf16.mxu0 0
      %2521 = vmatpush1.bf16.msra.mxu0 0
      %2522 = vmatprep.subr.bf16.mxu0 0
      %2523 = vmatpush1.bf16.msra.mxu0 0
      %2524 = vmatprep.subr.bf16.mxu0 0
      %2525 = vmatpush1.bf16.msra.mxu0 0
      %2526 = vmatprep.subr.bf16.mxu0 0
      %2527 = vmatpush1.bf16.msra.mxu0 0
      %2528 = vmatprep.subr.bf16.mxu0 0
      %2529 = vmatpush1.bf16.msra.mxu0 0
      %2530 = vmatprep.subr.bf16.mxu0 0
      %2531 = vmatpush1.bf16.msra.mxu0 0
      %2532 = vmatprep.subr.bf16.mxu0 0
      %2533 = vmatpush1.bf16.msra.mxu0 0
      %2534 = vmatprep.subr.bf16.mxu0 0
      %2535 = vmatpush1.bf16.msra.mxu0 0
      %2536 = vmatprep.mubr.bf16.mxu0 0
      %2537 = vmatmul.mubr.bf16.gmra.mrb[0].mxu0 %v1141
      %v2538 = vpop.f32.mrb[0].mxu0
      %v2539 = vadd.f32 %v2378, %v2538
      %v2540 = vpop.f32.mrb[0].mxu0
      %v2541 = vpop.f32.mrb[0].mxu0
      %v2542 = vadd.f32 %v2381, %v2541
      %v2543 = vpop.f32.mrb[0].mxu0
      %2544 = vmatprep.mubr.bf16.mxu0 0
      %2545 = vmatmul.mubr.bf16.gmra.mrb[0].mxu0 %v1150
      %v2546 = vpop.f32.mrb[0].mxu0
      %v2547 = vadd.f32 %v2386, %v2546
      %v2548 = vpop.f32.mrb[0].mxu0
      %v2549 = vpop.f32.mrb[0].mxu0
      %v2550 = vadd.f32 %v2389, %v2549
      %v2551 = vpop.f32.mrb[0].mxu0
      %2552 = vmatprep.mubr.bf16.mxu0 0
      %2553 = vmatmul.mubr.bf16.gmra.mrb[0].mxu0 %v1159
      %v2554 = vpop.f32.mrb[0].mxu0
      %v2555 = vadd.f32 %v2394, %v2554
      %v2556 = vpop.f32.mrb[0].mxu0
      %v2557 = vpop.f32.mrb[0].mxu0
      %v2558 = vadd.f32 %v2397, %v2557
      %v2559 = vpop.f32.mrb[0].mxu0
      %2560 = vmatprep.mubr.bf16.mxu0 0
      %2561 = vmatmul.mubr.bf16.gmra.mrb[0].mxu0 %v1168
      %v2562 = vpop.f32.mrb[0].mxu0
      %v2563 = vadd.f32 %v2402, %v2562
      %v2564 = vpop.f32.mrb[0].mxu0
      %v2565 = vpop.f32.mrb[0].mxu0
      %v2566 = vadd.f32 %v2405, %v2565
      %v2567 = vpop.f32.mrb[0].mxu0
      %2568 = vmatprep.mubr.bf16.mxu0 0
      %2569 = vmatmul.mubr.bf16.gmra.mrb[0].mxu0 %v1177
      %v2570 = vpop.f32.mrb[0].mxu0
      %v2571 = vadd.f32 %v2410, %v2570
      %v2572 = vpop.f32.mrb[0].mxu0
      %v2573 = vpop.f32.mrb[0].mxu0
      %v2574 = vadd.f32 %v2413, %v2573
      %v2575 = vpop.f32.mrb[0].mxu0
      %2576 = vmatprep.mubr.bf16.mxu0 0
      %2577 = vmatmul.mubr.bf16.gmra.mrb[0].mxu0 %v1186
      %v2578 = vpop.f32.mrb[0].mxu0
      %v2579 = vadd.f32 %v2418, %v2578
      %v2580 = vpop.f32.mrb[0].mxu0
      %v2581 = vpop.f32.mrb[0].mxu0
      %v2582 = vadd.f32 %v2421, %v2581
      %v2583 = vpop.f32.mrb[0].mxu0
      %2584 = vmatprep.mubr.bf16.mxu0 0
      %2585 = vmatmul.mubr.bf16.gmra.mrb[0].mxu0 %v1195
      %v2586 = vpop.f32.mrb[0].mxu0
      %v2587 = vadd.f32 %v2426, %v2586
      %v2588 = vpop.f32.mrb[0].mxu0
      %v2589 = vpop.f32.mrb[0].mxu0
      %v2590 = vadd.f32 %v2429, %v2589
      %v2591 = vpop.f32.mrb[0].mxu0
      %2592 = vmatprep.mubr.bf16.mxu0 0
      %2593 = vmatmul.mubr.bf16.gmra.mrb[0].mxu0 %v1204
      %v2594 = vpop.f32.mrb[0].mxu0
      %v2595 = vadd.f32 %v2434, %v2594
      %v2596 = vpop.f32.mrb[0].mxu0
      %v2597 = vpop.f32.mrb[0].mxu0
      %v2598 = vadd.f32 %v2437, %v2597
      %v2599 = vpop.f32.mrb[0].mxu0
      %2600 = vmatprep.mubr.bf16.mxu0 0
      %2601 = vmatmul.mubr.bf16.gmra.mrb[0].mxu0 %v1213
      %v2602 = vpop.f32.mrb[0].mxu0
      %v2603 = vadd.f32 %v2442, %v2602
      %v2604 = vpop.f32.mrb[0].mxu0
      %v2605 = vpop.f32.mrb[0].mxu0
      %v2606 = vadd.f32 %v2445, %v2605
      %v2607 = vpop.f32.mrb[0].mxu0
      %2608 = vmatprep.mubr.bf16.mxu0 0
      %2609 = vmatmul.mubr.bf16.gmra.mrb[0].mxu0 %v1222
      %v2610 = vpop.f32.mrb[0].mxu0
      %v2611 = vadd.f32 %v2450, %v2610
      %v2612 = vpop.f32.mrb[0].mxu0
      %v2613 = vpop.f32.mrb[0].mxu0
      %v2614 = vadd.f32 %v2453, %v2613
      %v2615 = vpop.f32.mrb[0].mxu0
      %2616 = vmatprep.mubr.bf16.mxu0 0
      %2617 = vmatmul.mubr.bf16.gmra.mrb[0].mxu0 %v1231
      %v2618 = vpop.f32.mrb[0].mxu0
      %v2619 = vadd.f32 %v2458, %v2618
      %v2620 = vpop.f32.mrb[0].mxu0
      %v2621 = vpop.f32.mrb[0].mxu0
      %v2622 = vadd.f32 %v2461, %v2621
      %v2623 = vpop.f32.mrb[0].mxu0
      %2624 = vmatprep.mubr.bf16.mxu0 0
      %2625 = vmatmul.mubr.bf16.gmra.mrb[0].mxu0 %v1240
      %v2626 = vpop.f32.mrb[0].mxu0
      %v2627 = vadd.f32 %v2466, %v2626
      %v2628 = vpop.f32.mrb[0].mxu0
      %v2629 = vpop.f32.mrb[0].mxu0
      %v2630 = vadd.f32 %v2469, %v2629
      %v2631 = vpop.f32.mrb[0].mxu0
      %2632 = vmatprep.mubr.bf16.mxu0 0
      %2633 = vmatmul.mubr.bf16.gmra.mrb[0].mxu0 %v1249
      %v2634 = vpop.f32.mrb[0].mxu0
      %v2635 = vadd.f32 %v2474, %v2634
      %v2636 = vpop.f32.mrb[0].mxu0
      %v2637 = vpop.f32.mrb[0].mxu0
      %v2638 = vadd.f32 %v2477, %v2637
      %v2639 = vpop.f32.mrb[0].mxu0
      %2640 = vmatprep.mubr.bf16.mxu0 0
      %2641 = vmatmul.mubr.bf16.gmra.mrb[0].mxu0 %v1258
      %v2642 = vpop.f32.mrb[0].mxu0
      %v2643 = vadd.f32 %v2482, %v2642
      %v2644 = vpop.f32.mrb[0].mxu0
      %v2645 = vpop.f32.mrb[0].mxu0
      %v2646 = vadd.f32 %v2485, %v2645
      %v2647 = vpop.f32.mrb[0].mxu0
      %2648 = vmatprep.mubr.bf16.mxu0 0
      %2649 = vmatmul.mubr.bf16.gmra.mrb[0].mxu0 %v1267
      %v2650 = vpop.f32.mrb[0].mxu0
      %v2651 = vadd.f32 %v2490, %v2650
      %v2652 = vpop.f32.mrb[0].mxu0
      %v2653 = vpop.f32.mrb[0].mxu0
      %v2654 = vadd.f32 %v2493, %v2653
      %v2655 = vpop.f32.mrb[0].mxu0
      %2656 = vmatprep.mubr.bf16.mxu0 0
      %2657 = vmatmul.mubr.bf16.gmra.mrb[0].mxu0 %v1276
      %v2658 = vpop.f32.mrb[0].mxu0
      %v2659 = vadd.f32 %v2498, %v2658
      %v2660 = vpop.f32.mrb[0].mxu0
      %v2661 = vpop.f32.mrb[0].mxu0
      %v2662 = vadd.f32 %v2501, %v2661
      %v2663 = vpop.f32.mrb[0].mxu0
      %2664 = vdwg.mxu0
      %v2665 = vmax.f32 %v2539, 0.0
      %v2666 = vmax.f32 %v2542, 0.0
      %v2667 = vmax.f32 %v2547, 0.0
      %v2668 = vmax.f32 %v2550, 0.0
      %v2669 = vmax.f32 %v2555, 0.0
      %v2670 = vmax.f32 %v2558, 0.0
      %v2671 = vmax.f32 %v2563, 0.0
      %v2672 = vmax.f32 %v2566, 0.0
      %v2673 = vmax.f32 %v2571, 0.0
      %v2674 = vmax.f32 %v2574, 0.0
      %v2675 = vmax.f32 %v2579, 0.0
      %v2676 = vmax.f32 %v2582, 0.0
      %v2677 = vmax.f32 %v2587, 0.0
      %v2678 = vmax.f32 %v2590, 0.0
      %v2679 = vmax.f32 %v2595, 0.0
      %v2680 = vmax.f32 %v2598, 0.0
      %v2681 = vmax.f32 %v2603, 0.0
      %v2682 = vmax.f32 %v2606, 0.0
      %v2683 = vmax.f32 %v2611, 0.0
      %v2684 = vmax.f32 %v2614, 0.0
      %v2685 = vmax.f32 %v2619, 0.0
      %v2686 = vmax.f32 %v2622, 0.0
      %v2687 = vmax.f32 %v2627, 0.0
      %v2688 = vmax.f32 %v2630, 0.0
      %v2689 = vmax.f32 %v2635, 0.0
      %v2690 = vmax.f32 %v2638, 0.0
      %v2691 = vmax.f32 %v2643, 0.0
      %v2692 = vmax.f32 %v2646, 0.0
      %v2693 = vmax.f32 %v2651, 0.0
      %v2694 = vmax.f32 %v2654, 0.0
      %v2695 = vmax.f32 %v2659, 0.0
      %v2696 = vmax.f32 %v2662, 0.0
      %2697 = vst [vmem:[%s522 + $0x8] sm:$0xff] %v2665
      %2698 = vst [vmem:[%s522 + $0x10] sm:$0xff] %v2666
      %2699 = vst [vmem:[%s522 + $0x28] sm:$0xff] %v2667
      %2700 = vst [vmem:[%s522 + $0x30] sm:$0xff] %v2668
      %2701 = vst [vmem:[%s522 + $0x48] sm:$0xff] %v2669
      %2702 = vst [vmem:[%s522 + $0x50] sm:$0xff] %v2670
      %2703 = vst [vmem:[%s522 + $0x68] sm:$0xff] %v2671
      %2704 = vst [vmem:[%s522 + $0x70] sm:$0xff] %v2672
      %2705 = vst [vmem:[%s522 + $0x88] sm:$0xff] %v2673
      %2706 = vst [vmem:[%s522 + $0x90] sm:$0xff] %v2674
      %2707 = vst [vmem:[%s522 + $0xa8] sm:$0xff] %v2675
      %2708 = vst [vmem:[%s522 + $0xb0] sm:$0xff] %v2676
      %2709 = vst [vmem:[%s522 + $0xc8] sm:$0xff] %v2677
      %2710 = vst [vmem:[%s522 + $0xd0] sm:$0xff] %v2678
      %2711 = vst [vmem:[%s522 + $0xe8] sm:$0xff] %v2679
      %2712 = vst [vmem:[%s522 + $0xf0] sm:$0xff] %v2680
      %2713 = vst [vmem:[%s522 + $0x108] sm:$0xff] %v2681
      %2714 = vst [vmem:[%s522 + $0x110] sm:$0xff] %v2682
      %2715 = vst [vmem:[%s522 + $0x128] sm:$0xff] %v2683
      %2716 = vst [vmem:[%s522 + $0x130] sm:$0xff] %v2684
      %2717 = vst [vmem:[%s522 + $0x148] sm:$0xff] %v2685
      %2718 = vst [vmem:[%s522 + $0x150] sm:$0xff] %v2686
      %2719 = vst [vmem:[%s522 + $0x168] sm:$0xff] %v2687
      %2720 = vst [vmem:[%s522 + $0x170] sm:$0xff] %v2688
      %2721 = vst [vmem:[%s522 + $0x188] sm:$0xff] %v2689
      %2722 = vst [vmem:[%s522 + $0x190] sm:$0xff] %v2690
      %2723 = vst [vmem:[%s522 + $0x1a8] sm:$0xff] %v2691
      %2724 = vst [vmem:[%s522 + $0x1b0] sm:$0xff] %v2692
      %2725 = vst [vmem:[%s522 + $0x1c8] sm:$0xff] %v2693
      %2726 = vst [vmem:[%s522 + $0x1d0] sm:$0xff] %v2694
      %2727 = vst [vmem:[%s522 + $0x1e8] sm:$0xff] %v2695
      %2728 = vst [vmem:[%s522 + $0x1f0] sm:$0xff] %v2696
      %v2729 = vld [vmem:[#allocation2 + $0x7] sm:$0xff]
      %v2730 = vld [vmem:[#allocation2 + $0xf] sm:$0xff]
      %v2731 = vld [vmem:[#allocation2 + $0x27] sm:$0xff]
      %v2732 = vld [vmem:[#allocation2 + $0x2f] sm:$0xff]
      %v2733 = vld [vmem:[#allocation2 + $0x47] sm:$0xff]
      %v2734 = vld [vmem:[#allocation2 + $0x4f] sm:$0xff]
      %v2735 = vld [vmem:[#allocation2 + $0x67] sm:$0xff]
      %v2736 = vld [vmem:[#allocation2 + $0x6f] sm:$0xff]
      %v2737 = vld [vmem:[#allocation2 + $0x87] sm:$0xff]
      %v2738 = vld [vmem:[#allocation2 + $0x8f] sm:$0xff]
      %v2739 = vld [vmem:[#allocation2 + $0xa7] sm:$0xff]
      %v2740 = vld [vmem:[#allocation2 + $0xaf] sm:$0xff]
      %v2741 = vld [vmem:[#allocation2 + $0xc7] sm:$0xff]
      %v2742 = vld [vmem:[#allocation2 + $0xcf] sm:$0xff]
      %v2743 = vld [vmem:[#allocation2 + $0xe7] sm:$0xff]
      %v2744 = vld [vmem:[#allocation2 + $0xef] sm:$0xff]
      %v2745 = vld [vmem:[#allocation2 + $0x107] sm:$0xff]
      %v2746 = vld [vmem:[#allocation2 + $0x10f] sm:$0xff]
      %v2747 = vld [vmem:[#allocation2 + $0x127] sm:$0xff]
      %v2748 = vld [vmem:[#allocation2 + $0x12f] sm:$0xff]
      %v2749 = vld [vmem:[#allocation2 + $0x147] sm:$0xff]
      %v2750 = vld [vmem:[#allocation2 + $0x14f] sm:$0xff]
      %v2751 = vld [vmem:[#allocation2 + $0x167] sm:$0xff]
      %v2752 = vld [vmem:[#allocation2 + $0x16f] sm:$0xff]
      %v2753 = vld [vmem:[#allocation2 + $0x187] sm:$0xff]
      %v2754 = vld [vmem:[#allocation2 + $0x18f] sm:$0xff]
      %v2755 = vld [vmem:[#allocation2 + $0x1a7] sm:$0xff]
      %v2756 = vld [vmem:[#allocation2 + $0x1af] sm:$0xff]
      %v2757 = vld [vmem:[#allocation2 + $0x1c7] sm:$0xff]
      %v2758 = vld [vmem:[#allocation2 + $0x1cf] sm:$0xff]
      %v2759 = vld [vmem:[#allocation2 + $0x1e7] sm:$0xff]
      %v2760 = vld [vmem:[#allocation2 + $0x1ef] sm:$0xff]
      %v2761 = vpack.c.bf16 %v2730, %v2729
      %v2762 = vpack.c.bf16 %v2732, %v2731
      %v2763 = vpack.c.bf16 %v2734, %v2733
      %v2764 = vpack.c.bf16 %v2736, %v2735
      %v2765 = vpack.c.bf16 %v2738, %v2737
      %v2766 = vpack.c.bf16 %v2740, %v2739
      %v2767 = vpack.c.bf16 %v2742, %v2741
      %v2768 = vpack.c.bf16 %v2744, %v2743
      %v2769 = vpack.c.bf16 %v2746, %v2745
      %v2770 = vpack.c.bf16 %v2748, %v2747
      %v2771 = vpack.c.bf16 %v2750, %v2749
      %v2772 = vpack.c.bf16 %v2752, %v2751
      %v2773 = vpack.c.bf16 %v2754, %v2753
      %v2774 = vpack.c.bf16 %v2756, %v2755
      %v2775 = vpack.c.bf16 %v2758, %v2757
      %v2776 = vpack.c.bf16 %v2760, %v2759
      %2777 = vst [vmem:[#allocation4] sm:$0xff] %v2761
      %2778 = vst [vmem:[#allocation4 + $0x48] sm:$0xff] %v2762
      %2779 = vst [vmem:[#allocation4 + $0x90] sm:$0xff] %v2763
      %2780 = vst [vmem:[#allocation4 + $0xd8] sm:$0xff] %v2764
      %2781 = vst [vmem:[#allocation4 + $0x120] sm:$0xff] %v2765
      %2782 = vst [vmem:[#allocation4 + $0x168] sm:$0xff] %v2766
      %2783 = vst [vmem:[#allocation4 + $0x1b0] sm:$0xff] %v2767
      %2784 = vst [vmem:[#allocation4 + $0x1f8] sm:$0xff] %v2768
      %2785 = vst [vmem:[#allocation4 + $0x240] sm:$0xff] %v2769
      %2786 = vst [vmem:[#allocation4 + $0x288] sm:$0xff] %v2770
      %2787 = vst [vmem:[#allocation4 + $0x2d0] sm:$0xff] %v2771
      %2788 = vst [vmem:[#allocation4 + $0x318] sm:$0xff] %v2772
      %2789 = vst [vmem:[#allocation4 + $0x360] sm:$0xff] %v2773
      %2790 = vst [vmem:[#allocation4 + $0x3a8] sm:$0xff] %v2774
      %2791 = vst [vmem:[#allocation4 + $0x3f0] sm:$0xff] %v2775
      %2792 = vst [vmem:[#allocation4 + $0x438] sm:$0xff] %v2776
      %v2793 = vld [vmem:[#allocation2 + $0x8] sm:$0xff]
      %v2794 = vld [vmem:[#allocation2 + $0x10] sm:$0xff]
      %v2795 = vld [vmem:[#allocation2 + $0x28] sm:$0xff]
      %v2796 = vld [vmem:[#allocation2 + $0x30] sm:$0xff]
      %v2797 = vld [vmem:[#allocation2 + $0x48] sm:$0xff]
      %v2798 = vld [vmem:[#allocation2 + $0x50] sm:$0xff]
      %v2799 = vld [vmem:[#allocation2 + $0x68] sm:$0xff]
      %v2800 = vld [vmem:[#allocation2 + $0x70] sm:$0xff]
      %v2801 = vld [vmem:[#allocation2 + $0x88] sm:$0xff]
      %v2802 = vld [vmem:[#allocation2 + $0x90] sm:$0xff]
      %v2803 = vld [vmem:[#allocation2 + $0xa8] sm:$0xff]
      %v2804 = vld [vmem:[#allocation2 + $0xb0] sm:$0xff]
      %v2805 = vld [vmem:[#allocation2 + $0xc8] sm:$0xff]
      %v2806 = vld [vmem:[#allocation2 + $0xd0] sm:$0xff]
      %v2807 = vld [vmem:[#allocation2 + $0xe8] sm:$0xff]
      %v2808 = vld [vmem:[#allocation2 + $0xf0] sm:$0xff]
      %v2809 = vld [vmem:[#allocation2 + $0x108] sm:$0xff]
      %v2810 = vld [vmem:[#allocation2 + $0x110] sm:$0xff]
      %v2811 = vld [vmem:[#allocation2 + $0x128] sm:$0xff]
      %v2812 = vld [vmem:[#allocation2 + $0x130] sm:$0xff]
      %v2813 = vld [vmem:[#allocation2 + $0x148] sm:$0xff]
      %v2814 = vld [vmem:[#allocation2 + $0x150] sm:$0xff]
      %v2815 = vld [vmem:[#allocation2 + $0x168] sm:$0xff]
      %v2816 = vld [vmem:[#allocation2 + $0x170] sm:$0xff]
      %v2817 = vld [vmem:[#allocation2 + $0x188] sm:$0xff]
      %v2818 = vld [vmem:[#allocation2 + $0x190] sm:$0xff]
      %v2819 = vld [vmem:[#allocation2 + $0x1a8] sm:$0xff]
      %v2820 = vld [vmem:[#allocation2 + $0x1b0] sm:$0xff]
      %v2821 = vld [vmem:[#allocation2 + $0x1c8] sm:$0xff]
      %v2822 = vld [vmem:[#allocation2 + $0x1d0] sm:$0xff]
      %v2823 = vld [vmem:[#allocation2 + $0x1e8] sm:$0xff]
      %v2824 = vld [vmem:[#allocation2 + $0x1f0] sm:$0xff]
      %v2825 = vpack.c.bf16 %v2794, %v2793
      %v2826 = vpack.c.bf16 %v2796, %v2795
      %v2827 = vpack.c.bf16 %v2798, %v2797
      %v2828 = vpack.c.bf16 %v2800, %v2799
      %v2829 = vpack.c.bf16 %v2802, %v2801
      %v2830 = vpack.c.bf16 %v2804, %v2803
      %v2831 = vpack.c.bf16 %v2806, %v2805
      %v2832 = vpack.c.bf16 %v2808, %v2807
      %v2833 = vpack.c.bf16 %v2810, %v2809
      %v2834 = vpack.c.bf16 %v2812, %v2811
      %v2835 = vpack.c.bf16 %v2814, %v2813
      %v2836 = vpack.c.bf16 %v2816, %v2815
      %v2837 = vpack.c.bf16 %v2818, %v2817
      %v2838 = vpack.c.bf16 %v2820, %v2819
      %v2839 = vpack.c.bf16 %v2822, %v2821
      %v2840 = vpack.c.bf16 %v2824, %v2823
      %2841 = vst [vmem:[#allocation4 + $0x8] sm:$0xff] %v2825
      %2842 = vst [vmem:[#allocation4 + $0x50] sm:$0xff] %v2826
      %2843 = vst [vmem:[#allocation4 + $0x98] sm:$0xff] %v2827
      %2844 = vst [vmem:[#allocation4 + $0xe0] sm:$0xff] %v2828
      %2845 = vst [vmem:[#allocation4 + $0x128] sm:$0xff] %v2829
      %2846 = vst [vmem:[#allocation4 + $0x170] sm:$0xff] %v2830
      %2847 = vst [vmem:[#allocation4 + $0x1b8] sm:$0xff] %v2831
      %2848 = vst [vmem:[#allocation4 + $0x200] sm:$0xff] %v2832
      %2849 = vst [vmem:[#allocation4 + $0x248] sm:$0xff] %v2833
      %2850 = vst [vmem:[#allocation4 + $0x290] sm:$0xff] %v2834
      %2851 = vst [vmem:[#allocation4 + $0x2d8] sm:$0xff] %v2835
      %2852 = vst [vmem:[#allocation4 + $0x320] sm:$0xff] %v2836
      %2853 = vst [vmem:[#allocation4 + $0x368] sm:$0xff] %v2837
      %2854 = vst [vmem:[#allocation4 + $0x3b0] sm:$0xff] %v2838
      %2855 = vst [vmem:[#allocation4 + $0x3f8] sm:$0xff] %v2839
      %2856 = vst [vmem:[#allocation4 + $0x440] sm:$0xff] %v2840
      %v2857 = vld [vmem:[#allocation2 + $0x9] sm:$0xff]
      %v2858 = vld [vmem:[#allocation2 + $0x11] sm:$0xff]
      %v2859 = vld [vmem:[#allocation2 + $0x29] sm:$0xff]
      %v2860 = vld [vmem:[#allocation2 + $0x31] sm:$0xff]
      %v2861 = vld [vmem:[#allocation2 + $0x49] sm:$0xff]
      %v2862 = vld [vmem:[#allocation2 + $0x51] sm:$0xff]
      %v2863 = vld [vmem:[#allocation2 + $0x69] sm:$0xff]
      %v2864 = vld [vmem:[#allocation2 + $0x71] sm:$0xff]
      %v2865 = vld [vmem:[#allocation2 + $0x89] sm:$0xff]
      %v2866 = vld [vmem:[#allocation2 + $0x91] sm:$0xff]
      %v2867 = vld [vmem:[#allocation2 + $0xa9] sm:$0xff]
      %v2868 = vld [vmem:[#allocation2 + $0xb1] sm:$0xff]
      %v2869 = vld [vmem:[#allocation2 + $0xc9] sm:$0xff]
      %v2870 = vld [vmem:[#allocation2 + $0xd1] sm:$0xff]
      %v2871 = vld [vmem:[#allocation2 + $0xe9] sm:$0xff]
      %v2872 = vld [vmem:[#allocation2 + $0xf1] sm:$0xff]
      %v2873 = vld [vmem:[#allocation2 + $0x109] sm:$0xff]
      %v2874 = vld [vmem:[#allocation2 + $0x111] sm:$0xff]
      %v2875 = vld [vmem:[#allocation2 + $0x129] sm:$0xff]
      %v2876 = vld [vmem:[#allocation2 + $0x131] sm:$0xff]
      %v2877 = vld [vmem:[#allocation2 + $0x149] sm:$0xff]
      %v2878 = vld [vmem:[#allocation2 + $0x151] sm:$0xff]
      %v2879 = vld [vmem:[#allocation2 + $0x169] sm:$0xff]
      %v2880 = vld [vmem:[#allocation2 + $0x171] sm:$0xff]
      %v2881 = vld [vmem:[#allocation2 + $0x189] sm:$0xff]
      %v2882 = vld [vmem:[#allocation2 + $0x191] sm:$0xff]
      %v2883 = vld [vmem:[#allocation2 + $0x1a9] sm:$0xff]
      %v2884 = vld [vmem:[#allocation2 + $0x1b1] sm:$0xff]
      %v2885 = vld [vmem:[#allocation2 + $0x1c9] sm:$0xff]
      %v2886 = vld [vmem:[#allocation2 + $0x1d1] sm:$0xff]
      %v2887 = vld [vmem:[#allocation2 + $0x1e9] sm:$0xff]
      %v2888 = vld [vmem:[#allocation2 + $0x1f1] sm:$0xff]
      %v2889 = vpack.c.bf16 %v2858, %v2857
      %v2890 = vpack.c.bf16 %v2860, %v2859
      %v2891 = vpack.c.bf16 %v2862, %v2861
      %v2892 = vpack.c.bf16 %v2864, %v2863
      %v2893 = vpack.c.bf16 %v2866, %v2865
      %v2894 = vpack.c.bf16 %v2868, %v2867
      %v2895 = vpack.c.bf16 %v2870, %v2869
      %v2896 = vpack.c.bf16 %v2872, %v2871
      %v2897 = vpack.c.bf16 %v2874, %v2873
      %v2898 = vpack.c.bf16 %v2876, %v2875
      %v2899 = vpack.c.bf16 %v2878, %v2877
      %v2900 = vpack.c.bf16 %v2880, %v2879
      %v2901 = vpack.c.bf16 %v2882, %v2881
      %v2902 = vpack.c.bf16 %v2884, %v2883
      %v2903 = vpack.c.bf16 %v2886, %v2885
      %v2904 = vpack.c.bf16 %v2888, %v2887
      %2905 = vst [vmem:[#allocation4 + $0x10] sm:$0xff] %v2889
      %2906 = vst [vmem:[#allocation4 + $0x58] sm:$0xff] %v2890
      %2907 = vst [vmem:[#allocation4 + $0xa0] sm:$0xff] %v2891
      %2908 = vst [vmem:[#allocation4 + $0xe8] sm:$0xff] %v2892
      %2909 = vst [vmem:[#allocation4 + $0x130] sm:$0xff] %v2893
      %2910 = vst [vmem:[#allocation4 + $0x178] sm:$0xff] %v2894
      %2911 = vst [vmem:[#allocation4 + $0x1c0] sm:$0xff] %v2895
      %2912 = vst [vmem:[#allocation4 + $0x208] sm:$0xff] %v2896
      %2913 = vst [vmem:[#allocation4 + $0x250] sm:$0xff] %v2897
      %2914 = vst [vmem:[#allocation4 + $0x298] sm:$0xff] %v2898
      %2915 = vst [vmem:[#allocation4 + $0x2e0] sm:$0xff] %v2899
      %2916 = vst [vmem:[#allocation4 + $0x328] sm:$0xff] %v2900
      %2917 = vst [vmem:[#allocation4 + $0x370] sm:$0xff] %v2901
      %2918 = vst [vmem:[#allocation4 + $0x3b8] sm:$0xff] %v2902
      %2919 = vst [vmem:[#allocation4 + $0x400] sm:$0xff] %v2903
      %2920 = vst [vmem:[#allocation4 + $0x448] sm:$0xff] %v2904
      %v2921 = vld [vmem:[%s522 + $0x7] sm:$0xff]
      %v2922 = vld [vmem:[%s522 + $0xf] sm:$0xff]
      %v2923 = vld [vmem:[%s522 + $0x27] sm:$0xff]
      %v2924 = vld [vmem:[%s522 + $0x2f] sm:$0xff]
      %v2925 = vld [vmem:[%s522 + $0x47] sm:$0xff]
      %v2926 = vld [vmem:[%s522 + $0x4f] sm:$0xff]
      %v2927 = vld [vmem:[%s522 + $0x67] sm:$0xff]
      %v2928 = vld [vmem:[%s522 + $0x6f] sm:$0xff]
      %v2929 = vld [vmem:[%s522 + $0x87] sm:$0xff]
      %v2930 = vld [vmem:[%s522 + $0x8f] sm:$0xff]
      %v2931 = vld [vmem:[%s522 + $0xa7] sm:$0xff]
      %v2932 = vld [vmem:[%s522 + $0xaf] sm:$0xff]
      %v2933 = vld [vmem:[%s522 + $0xc7] sm:$0xff]
      %v2934 = vld [vmem:[%s522 + $0xcf] sm:$0xff]
      %v2935 = vld [vmem:[%s522 + $0xe7] sm:$0xff]
      %v2936 = vld [vmem:[%s522 + $0xef] sm:$0xff]
      %v2937 = vld [vmem:[%s522 + $0x107] sm:$0xff]
      %v2938 = vld [vmem:[%s522 + $0x10f] sm:$0xff]
      %v2939 = vld [vmem:[%s522 + $0x127] sm:$0xff]
      %v2940 = vld [vmem:[%s522 + $0x12f] sm:$0xff]
      %v2941 = vld [vmem:[%s522 + $0x147] sm:$0xff]
      %v2942 = vld [vmem:[%s522 + $0x14f] sm:$0xff]
      %v2943 = vld [vmem:[%s522 + $0x167] sm:$0xff]
      %v2944 = vld [vmem:[%s522 + $0x16f] sm:$0xff]
      %v2945 = vld [vmem:[%s522 + $0x187] sm:$0xff]
      %v2946 = vld [vmem:[%s522 + $0x18f] sm:$0xff]
      %v2947 = vld [vmem:[%s522 + $0x1a7] sm:$0xff]
      %v2948 = vld [vmem:[%s522 + $0x1af] sm:$0xff]
      %v2949 = vld [vmem:[%s522 + $0x1c7] sm:$0xff]
      %v2950 = vld [vmem:[%s522 + $0x1cf] sm:$0xff]
      %v2951 = vld [vmem:[%s522 + $0x1e7] sm:$0xff]
      %v2952 = vld [vmem:[%s522 + $0x1ef] sm:$0xff]
      %v2953 = vpack.c.bf16 %v2922, %v2921
      %v2954 = vpack.c.bf16 %v2924, %v2923
      %v2955 = vpack.c.bf16 %v2926, %v2925
      %v2956 = vpack.c.bf16 %v2928, %v2927
      %v2957 = vpack.c.bf16 %v2930, %v2929
      %v2958 = vpack.c.bf16 %v2932, %v2931
      %v2959 = vpack.c.bf16 %v2934, %v2933
      %v2960 = vpack.c.bf16 %v2936, %v2935
      %v2961 = vpack.c.bf16 %v2938, %v2937
      %v2962 = vpack.c.bf16 %v2940, %v2939
      %v2963 = vpack.c.bf16 %v2942, %v2941
      %v2964 = vpack.c.bf16 %v2944, %v2943
      %v2965 = vpack.c.bf16 %v2946, %v2945
      %v2966 = vpack.c.bf16 %v2948, %v2947
      %v2967 = vpack.c.bf16 %v2950, %v2949
      %v2968 = vpack.c.bf16 %v2952, %v2951
      %2969 = vst [vmem:[#allocation4 + $0x18] sm:$0xff] %v2953
      %2970 = vst [vmem:[#allocation4 + $0x60] sm:$0xff] %v2954
      %2971 = vst [vmem:[#allocation4 + $0xa8] sm:$0xff] %v2955
      %2972 = vst [vmem:[#allocation4 + $0xf0] sm:$0xff] %v2956
      %2973 = vst [vmem:[#allocation4 + $0x138] sm:$0xff] %v2957
      %2974 = vst [vmem:[#allocation4 + $0x180] sm:$0xff] %v2958
      %2975 = vst [vmem:[#allocation4 + $0x1c8] sm:$0xff] %v2959
      %2976 = vst [vmem:[#allocation4 + $0x210] sm:$0xff] %v2960
      %2977 = vst [vmem:[#allocation4 + $0x258] sm:$0xff] %v2961
      %2978 = vst [vmem:[#allocation4 + $0x2a0] sm:$0xff] %v2962
      %2979 = vst [vmem:[#allocation4 + $0x2e8] sm:$0xff] %v2963
      %2980 = vst [vmem:[#allocation4 + $0x330] sm:$0xff] %v2964
      %2981 = vst [vmem:[#allocation4 + $0x378] sm:$0xff] %v2965
      %2982 = vst [vmem:[#allocation4 + $0x3c0] sm:$0xff] %v2966
      %2983 = vst [vmem:[#allocation4 + $0x408] sm:$0xff] %v2967
      %2984 = vst [vmem:[#allocation4 + $0x450] sm:$0xff] %v2968
      %v2985 = vld [vmem:[%s522 + $0x8] sm:$0xff]
      %v2986 = vld [vmem:[%s522 + $0x10] sm:$0xff]
      %v2987 = vld [vmem:[%s522 + $0x28] sm:$0xff]
      %v2988 = vld [vmem:[%s522 + $0x30] sm:$0xff]
      %v2989 = vld [vmem:[%s522 + $0x48] sm:$0xff]
      %v2990 = vld [vmem:[%s522 + $0x50] sm:$0xff]
      %v2991 = vld [vmem:[%s522 + $0x68] sm:$0xff]
      %v2992 = vld [vmem:[%s522 + $0x70] sm:$0xff]
      %v2993 = vld [vmem:[%s522 + $0x88] sm:$0xff]
      %v2994 = vld [vmem:[%s522 + $0x90] sm:$0xff]
      %v2995 = vld [vmem:[%s522 + $0xa8] sm:$0xff]
      %v2996 = vld [vmem:[%s522 + $0xb0] sm:$0xff]
      %v2997 = vld [vmem:[%s522 + $0xc8] sm:$0xff]
      %v2998 = vld [vmem:[%s522 + $0xd0] sm:$0xff]
      %v2999 = vld [vmem:[%s522 + $0xe8] sm:$0xff]
      %v3000 = vld [vmem:[%s522 + $0xf0] sm:$0xff]
      %v3001 = vld [vmem:[%s522 + $0x108] sm:$0xff]
      %v3002 = vld [vmem:[%s522 + $0x110] sm:$0xff]
      %v3003 = vld [vmem:[%s522 + $0x128] sm:$0xff]
      %v3004 = vld [vmem:[%s522 + $0x130] sm:$0xff]
      %v3005 = vld [vmem:[%s522 + $0x148] sm:$0xff]
      %v3006 = vld [vmem:[%s522 + $0x150] sm:$0xff]
      %v3007 = vld [vmem:[%s522 + $0x168] sm:$0xff]
      %v3008 = vld [vmem:[%s522 + $0x170] sm:$0xff]
      %v3009 = vld [vmem:[%s522 + $0x188] sm:$0xff]
      %v3010 = vld [vmem:[%s522 + $0x190] sm:$0xff]
      %v3011 = vld [vmem:[%s522 + $0x1a8] sm:$0xff]
      %v3012 = vld [vmem:[%s522 + $0x1b0] sm:$0xff]
      %v3013 = vld [vmem:[%s522 + $0x1c8] sm:$0xff]
      %v3014 = vld [vmem:[%s522 + $0x1d0] sm:$0xff]
      %v3015 = vld [vmem:[%s522 + $0x1e8] sm:$0xff]
      %v3016 = vld [vmem:[%s522 + $0x1f0] sm:$0xff]
      %v3017 = vpack.c.bf16 %v2986, %v2985
      %v3018 = vpack.c.bf16 %v2988, %v2987
      %v3019 = vpack.c.bf16 %v2990, %v2989
      %v3020 = vpack.c.bf16 %v2992, %v2991
      %v3021 = vpack.c.bf16 %v2994, %v2993
      %v3022 = vpack.c.bf16 %v2996, %v2995
      %v3023 = vpack.c.bf16 %v2998, %v2997
      %v3024 = vpack.c.bf16 %v3000, %v2999
      %v3025 = vpack.c.bf16 %v3002, %v3001
      %v3026 = vpack.c.bf16 %v3004, %v3003
      %v3027 = vpack.c.bf16 %v3006, %v3005
      %v3028 = vpack.c.bf16 %v3008, %v3007
      %v3029 = vpack.c.bf16 %v3010, %v3009
      %v3030 = vpack.c.bf16 %v3012, %v3011
      %v3031 = vpack.c.bf16 %v3014, %v3013
      %v3032 = vpack.c.bf16 %v3016, %v3015
      %3033 = vst [vmem:[#allocation4 + $0x20] sm:$0xff] %v3017
      %3034 = vst [vmem:[#allocation4 + $0x68] sm:$0xff] %v3018
      %3035 = vst [vmem:[#allocation4 + $0xb0] sm:$0xff] %v3019
      %3036 = vst [vmem:[#allocation4 + $0xf8] sm:$0xff] %v3020
      %3037 = vst [vmem:[#allocation4 + $0x140] sm:$0xff] %v3021
      %3038 = vst [vmem:[#allocation4 + $0x188] sm:$0xff] %v3022
      %3039 = vst [vmem:[#allocation4 + $0x1d0] sm:$0xff] %v3023
      %3040 = vst [vmem:[#allocation4 + $0x218] sm:$0xff] %v3024
      %3041 = vst [vmem:[#allocation4 + $0x260] sm:$0xff] %v3025
      %3042 = vst [vmem:[#allocation4 + $0x2a8] sm:$0xff] %v3026
      %3043 = vst [vmem:[#allocation4 + $0x2f0] sm:$0xff] %v3027
      %3044 = vst [vmem:[#allocation4 + $0x338] sm:$0xff] %v3028
      %3045 = vst [vmem:[#allocation4 + $0x380] sm:$0xff] %v3029
      %3046 = vst [vmem:[#allocation4 + $0x3c8] sm:$0xff] %v3030
      %3047 = vst [vmem:[#allocation4 + $0x410] sm:$0xff] %v3031
      %3048 = vst [vmem:[#allocation4 + $0x458] sm:$0xff] %v3032
      %v3049 = vld [vmem:[%s522 + $0x9] sm:$0xff]
      %v3050 = vld [vmem:[%s522 + $0x11] sm:$0xff]
      %v3051 = vld [vmem:[%s522 + $0x29] sm:$0xff]
      %v3052 = vld [vmem:[%s522 + $0x31] sm:$0xff]
      %v3053 = vld [vmem:[%s522 + $0x49] sm:$0xff]
      %v3054 = vld [vmem:[%s522 + $0x51] sm:$0xff]
      %v3055 = vld [vmem:[%s522 + $0x69] sm:$0xff]
      %v3056 = vld [vmem:[%s522 + $0x71] sm:$0xff]
      %v3057 = vld [vmem:[%s522 + $0x89] sm:$0xff]
      %v3058 = vld [vmem:[%s522 + $0x91] sm:$0xff]
      %v3059 = vld [vmem:[%s522 + $0xa9] sm:$0xff]
      %v3060 = vld [vmem:[%s522 + $0xb1] sm:$0xff]
      %v3061 = vld [vmem:[%s522 + $0xc9] sm:$0xff]
      %v3062 = vld [vmem:[%s522 + $0xd1] sm:$0xff]
      %v3063 = vld [vmem:[%s522 + $0xe9] sm:$0xff]
      %v3064 = vld [vmem:[%s522 + $0xf1] sm:$0xff]
      %v3065 = vld [vmem:[%s522 + $0x109] sm:$0xff]
      %v3066 = vld [vmem:[%s522 + $0x111] sm:$0xff]
      %v3067 = vld [vmem:[%s522 + $0x129] sm:$0xff]
      %v3068 = vld [vmem:[%s522 + $0x131] sm:$0xff]
      %v3069 = vld [vmem:[%s522 + $0x149] sm:$0xff]
      %v3070 = vld [vmem:[%s522 + $0x151] sm:$0xff]
      %v3071 = vld [vmem:[%s522 + $0x169] sm:$0xff]
      %v3072 = vld [vmem:[%s522 + $0x171] sm:$0xff]
      %v3073 = vld [vmem:[%s522 + $0x189] sm:$0xff]
      %v3074 = vld [vmem:[%s522 + $0x191] sm:$0xff]
      %v3075 = vld [vmem:[%s522 + $0x1a9] sm:$0xff]
      %v3076 = vld [vmem:[%s522 + $0x1b1] sm:$0xff]
      %v3077 = vld [vmem:[%s522 + $0x1c9] sm:$0xff]
      %v3078 = vld [vmem:[%s522 + $0x1d1] sm:$0xff]
      %v3079 = vld [vmem:[%s522 + $0x1e9] sm:$0xff]
      %v3080 = vld [vmem:[%s522 + $0x1f1] sm:$0xff]
      %v3081 = vpack.c.bf16 %v3050, %v3049
      %v3082 = vpack.c.bf16 %v3052, %v3051
      %v3083 = vpack.c.bf16 %v3054, %v3053
      %v3084 = vpack.c.bf16 %v3056, %v3055
      %v3085 = vpack.c.bf16 %v3058, %v3057
      %v3086 = vpack.c.bf16 %v3060, %v3059
      %v3087 = vpack.c.bf16 %v3062, %v3061
      %v3088 = vpack.c.bf16 %v3064, %v3063
      %v3089 = vpack.c.bf16 %v3066, %v3065
      %v3090 = vpack.c.bf16 %v3068, %v3067
      %v3091 = vpack.c.bf16 %v3070, %v3069
      %v3092 = vpack.c.bf16 %v3072, %v3071
      %v3093 = vpack.c.bf16 %v3074, %v3073
      %v3094 = vpack.c.bf16 %v3076, %v3075
      %v3095 = vpack.c.bf16 %v3078, %v3077
      %v3096 = vpack.c.bf16 %v3080, %v3079
      %3097 = vst [vmem:[#allocation4 + $0x28] sm:$0xff] %v3081
      %3098 = vst [vmem:[#allocation4 + $0x70] sm:$0xff] %v3082
      %3099 = vst [vmem:[#allocation4 + $0xb8] sm:$0xff] %v3083
      %3100 = vst [vmem:[#allocation4 + $0x100] sm:$0xff] %v3084
      %3101 = vst [vmem:[#allocation4 + $0x148] sm:$0xff] %v3085
      %3102 = vst [vmem:[#allocation4 + $0x190] sm:$0xff] %v3086
      %3103 = vst [vmem:[#allocation4 + $0x1d8] sm:$0xff] %v3087
      %3104 = vst [vmem:[#allocation4 + $0x220] sm:$0xff] %v3088
      %3105 = vst [vmem:[#allocation4 + $0x268] sm:$0xff] %v3089
      %3106 = vst [vmem:[#allocation4 + $0x2b0] sm:$0xff] %v3090
      %3107 = vst [vmem:[#allocation4 + $0x2f8] sm:$0xff] %v3091
      %3108 = vst [vmem:[#allocation4 + $0x340] sm:$0xff] %v3092
      %3109 = vst [vmem:[#allocation4 + $0x388] sm:$0xff] %v3093
      %3110 = vst [vmem:[#allocation4 + $0x3d0] sm:$0xff] %v3094
      %3111 = vst [vmem:[#allocation4 + $0x418] sm:$0xff] %v3095
      %3112 = vst [vmem:[#allocation4 + $0x460] sm:$0xff] %v3096
      %v3113 = vld [vmem:[%s940 + $0x7] sm:$0xff]
      %v3114 = vld [vmem:[%s940 + $0xf] sm:$0xff]
      %v3115 = vld [vmem:[%s940 + $0x27] sm:$0xff]
      %v3116 = vld [vmem:[%s940 + $0x2f] sm:$0xff]
      %v3117 = vld [vmem:[%s940 + $0x47] sm:$0xff]
      %v3118 = vld [vmem:[%s940 + $0x4f] sm:$0xff]
      %v3119 = vld [vmem:[%s940 + $0x67] sm:$0xff]
      %v3120 = vld [vmem:[%s940 + $0x6f] sm:$0xff]
      %v3121 = vld [vmem:[%s940 + $0x87] sm:$0xff]
      %v3122 = vld [vmem:[%s940 + $0x8f] sm:$0xff]
      %v3123 = vld [vmem:[%s940 + $0xa7] sm:$0xff]
      %v3124 = vld [vmem:[%s940 + $0xaf] sm:$0xff]
      %v3125 = vld [vmem:[%s940 + $0xc7] sm:$0xff]
      %v3126 = vld [vmem:[%s940 + $0xcf] sm:$0xff]
      %v3127 = vld [vmem:[%s940 + $0xe7] sm:$0xff]
      %v3128 = vld [vmem:[%s940 + $0xef] sm:$0xff]
      %v3129 = vld [vmem:[%s940 + $0x107] sm:$0xff]
      %v3130 = vld [vmem:[%s940 + $0x10f] sm:$0xff]
      %v3131 = vld [vmem:[%s940 + $0x127] sm:$0xff]
      %v3132 = vld [vmem:[%s940 + $0x12f] sm:$0xff]
      %v3133 = vld [vmem:[%s940 + $0x147] sm:$0xff]
      %v3134 = vld [vmem:[%s940 + $0x14f] sm:$0xff]
      %v3135 = vld [vmem:[%s940 + $0x167] sm:$0xff]
      %v3136 = vld [vmem:[%s940 + $0x16f] sm:$0xff]
      %v3137 = vld [vmem:[%s940 + $0x187] sm:$0xff]
      %v3138 = vld [vmem:[%s940 + $0x18f] sm:$0xff]
      %v3139 = vld [vmem:[%s940 + $0x1a7] sm:$0xff]
      %v3140 = vld [vmem:[%s940 + $0x1af] sm:$0xff]
      %v3141 = vld [vmem:[%s940 + $0x1c7] sm:$0xff]
      %v3142 = vld [vmem:[%s940 + $0x1cf] sm:$0xff]
      %v3143 = vld [vmem:[%s940 + $0x1e7] sm:$0xff]
      %v3144 = vld [vmem:[%s940 + $0x1ef] sm:$0xff]
      %v3145 = vpack.c.bf16 %v3114, %v3113
      %v3146 = vpack.c.bf16 %v3116, %v3115
      %v3147 = vpack.c.bf16 %v3118, %v3117
      %v3148 = vpack.c.bf16 %v3120, %v3119
      %v3149 = vpack.c.bf16 %v3122, %v3121
      %v3150 = vpack.c.bf16 %v3124, %v3123
      %v3151 = vpack.c.bf16 %v3126, %v3125
      %v3152 = vpack.c.bf16 %v3128, %v3127
      %v3153 = vpack.c.bf16 %v3130, %v3129
      %v3154 = vpack.c.bf16 %v3132, %v3131
      %v3155 = vpack.c.bf16 %v3134, %v3133
      %v3156 = vpack.c.bf16 %v3136, %v3135
      %v3157 = vpack.c.bf16 %v3138, %v3137
      %v3158 = vpack.c.bf16 %v3140, %v3139
      %v3159 = vpack.c.bf16 %v3142, %v3141
      %v3160 = vpack.c.bf16 %v3144, %v3143
      %3161 = vst [vmem:[#allocation4 + $0x30] sm:$0xff] %v3145
      %3162 = vst [vmem:[#allocation4 + $0x78] sm:$0xff] %v3146
      %3163 = vst [vmem:[#allocation4 + $0xc0] sm:$0xff] %v3147
      %3164 = vst [vmem:[#allocation4 + $0x108] sm:$0xff] %v3148
      %3165 = vst [vmem:[#allocation4 + $0x150] sm:$0xff] %v3149
      %3166 = vst [vmem:[#allocation4 + $0x198] sm:$0xff] %v3150
      %3167 = vst [vmem:[#allocation4 + $0x1e0] sm:$0xff] %v3151
      %3168 = vst [vmem:[#allocation4 + $0x228] sm:$0xff] %v3152
      %3169 = vst [vmem:[#allocation4 + $0x270] sm:$0xff] %v3153
      %3170 = vst [vmem:[#allocation4 + $0x2b8] sm:$0xff] %v3154
      %3171 = vst [vmem:[#allocation4 + $0x300] sm:$0xff] %v3155
      %3172 = vst [vmem:[#allocation4 + $0x348] sm:$0xff] %v3156
      %3173 = vst [vmem:[#allocation4 + $0x390] sm:$0xff] %v3157
      %3174 = vst [vmem:[#allocation4 + $0x3d8] sm:$0xff] %v3158
      %3175 = vst [vmem:[#allocation4 + $0x420] sm:$0xff] %v3159
      %3176 = vst [vmem:[#allocation4 + $0x468] sm:$0xff] %v3160
      %v3177 = vld [vmem:[%s940 + $0x8] sm:$0xff]
      %v3178 = vld [vmem:[%s940 + $0x10] sm:$0xff]
      %v3179 = vld [vmem:[%s940 + $0x28] sm:$0xff]
      %v3180 = vld [vmem:[%s940 + $0x30] sm:$0xff]
      %v3181 = vld [vmem:[%s940 + $0x48] sm:$0xff]
      %v3182 = vld [vmem:[%s940 + $0x50] sm:$0xff]
      %v3183 = vld [vmem:[%s940 + $0x68] sm:$0xff]
      %v3184 = vld [vmem:[%s940 + $0x70] sm:$0xff]
      %v3185 = vld [vmem:[%s940 + $0x88] sm:$0xff]
      %v3186 = vld [vmem:[%s940 + $0x90] sm:$0xff]
      %v3187 = vld [vmem:[%s940 + $0xa8] sm:$0xff]
      %v3188 = vld [vmem:[%s940 + $0xb0] sm:$0xff]
      %v3189 = vld [vmem:[%s940 + $0xc8] sm:$0xff]
      %v3190 = vld [vmem:[%s940 + $0xd0] sm:$0xff]
      %v3191 = vld [vmem:[%s940 + $0xe8] sm:$0xff]
      %v3192 = vld [vmem:[%s940 + $0xf0] sm:$0xff]
      %v3193 = vld [vmem:[%s940 + $0x108] sm:$0xff]
      %v3194 = vld [vmem:[%s940 + $0x110] sm:$0xff]
      %v3195 = vld [vmem:[%s940 + $0x128] sm:$0xff]
      %v3196 = vld [vmem:[%s940 + $0x130] sm:$0xff]
      %v3197 = vld [vmem:[%s940 + $0x148] sm:$0xff]
      %v3198 = vld [vmem:[%s940 + $0x150] sm:$0xff]
      %v3199 = vld [vmem:[%s940 + $0x168] sm:$0xff]
      %v3200 = vld [vmem:[%s940 + $0x170] sm:$0xff]
      %v3201 = vld [vmem:[%s940 + $0x188] sm:$0xff]
      %v3202 = vld [vmem:[%s940 + $0x190] sm:$0xff]
      %v3203 = vld [vmem:[%s940 + $0x1a8] sm:$0xff]
      %v3204 = vld [vmem:[%s940 + $0x1b0] sm:$0xff]
      %v3205 = vld [vmem:[%s940 + $0x1c8] sm:$0xff]
      %v3206 = vld [vmem:[%s940 + $0x1d0] sm:$0xff]
      %v3207 = vld [vmem:[%s940 + $0x1e8] sm:$0xff]
      %v3208 = vld [vmem:[%s940 + $0x1f0] sm:$0xff]
      %v3209 = vpack.c.bf16 %v3178, %v3177
      %v3210 = vpack.c.bf16 %v3180, %v3179
      %v3211 = vpack.c.bf16 %v3182, %v3181
      %v3212 = vpack.c.bf16 %v3184, %v3183
      %v3213 = vpack.c.bf16 %v3186, %v3185
      %v3214 = vpack.c.bf16 %v3188, %v3187
      %v3215 = vpack.c.bf16 %v3190, %v3189
      %v3216 = vpack.c.bf16 %v3192, %v3191
      %v3217 = vpack.c.bf16 %v3194, %v3193
      %v3218 = vpack.c.bf16 %v3196, %v3195
      %v3219 = vpack.c.bf16 %v3198, %v3197
      %v3220 = vpack.c.bf16 %v3200, %v3199
      %v3221 = vpack.c.bf16 %v3202, %v3201
      %v3222 = vpack.c.bf16 %v3204, %v3203
      %v3223 = vpack.c.bf16 %v3206, %v3205
      %v3224 = vpack.c.bf16 %v3208, %v3207
      %3225 = vst [vmem:[#allocation4 + $0x38] sm:$0xff] %v3209
      %3226 = vst [vmem:[#allocation4 + $0x80] sm:$0xff] %v3210
      %3227 = vst [vmem:[#allocation4 + $0xc8] sm:$0xff] %v3211
      %3228 = vst [vmem:[#allocation4 + $0x110] sm:$0xff] %v3212
      %3229 = vst [vmem:[#allocation4 + $0x158] sm:$0xff] %v3213
      %3230 = vst [vmem:[#allocation4 + $0x1a0] sm:$0xff] %v3214
      %3231 = vst [vmem:[#allocation4 + $0x1e8] sm:$0xff] %v3215
      %3232 = vst [vmem:[#allocation4 + $0x230] sm:$0xff] %v3216
      %3233 = vst [vmem:[#allocation4 + $0x278] sm:$0xff] %v3217
      %3234 = vst [vmem:[#allocation4 + $0x2c0] sm:$0xff] %v3218
      %3235 = vst [vmem:[#allocation4 + $0x308] sm:$0xff] %v3219
      %3236 = vst [vmem:[#allocation4 + $0x350] sm:$0xff] %v3220
      %3237 = vst [vmem:[#allocation4 + $0x398] sm:$0xff] %v3221
      %3238 = vst [vmem:[#allocation4 + $0x3e0] sm:$0xff] %v3222
      %3239 = vst [vmem:[#allocation4 + $0x428] sm:$0xff] %v3223
      %3240 = vst [vmem:[#allocation4 + $0x470] sm:$0xff] %v3224
      %v3241 = vld [vmem:[%s940 + $0x9] sm:$0xff]
      %v3242 = vld [vmem:[%s940 + $0x11] sm:$0xff]
      %v3243 = vld [vmem:[%s940 + $0x29] sm:$0xff]
      %v3244 = vld [vmem:[%s940 + $0x31] sm:$0xff]
      %v3245 = vld [vmem:[%s940 + $0x49] sm:$0xff]
      %v3246 = vld [vmem:[%s940 + $0x51] sm:$0xff]
      %v3247 = vld [vmem:[%s940 + $0x69] sm:$0xff]
      %v3248 = vld [vmem:[%s940 + $0x71] sm:$0xff]
      %v3249 = vld [vmem:[%s940 + $0x89] sm:$0xff]
      %v3250 = vld [vmem:[%s940 + $0x91] sm:$0xff]
      %v3251 = vld [vmem:[%s940 + $0xa9] sm:$0xff]
      %v3252 = vld [vmem:[%s940 + $0xb1] sm:$0xff]
      %v3253 = vld [vmem:[%s940 + $0xc9] sm:$0xff]
      %v3254 = vld [vmem:[%s940 + $0xd1] sm:$0xff]
      %v3255 = vld [vmem:[%s940 + $0xe9] sm:$0xff]
      %v3256 = vld [vmem:[%s940 + $0xf1] sm:$0xff]
      %v3257 = vld [vmem:[%s940 + $0x109] sm:$0xff]
      %v3258 = vld [vmem:[%s940 + $0x111] sm:$0xff]
      %v3259 = vld [vmem:[%s940 + $0x129] sm:$0xff]
      %v3260 = vld [vmem:[%s940 + $0x131] sm:$0xff]
      %v3261 = vld [vmem:[%s940 + $0x149] sm:$0xff]
      %v3262 = vld [vmem:[%s940 + $0x151] sm:$0xff]
      %v3263 = vld [vmem:[%s940 + $0x169] sm:$0xff]
      %v3264 = vld [vmem:[%s940 + $0x171] sm:$0xff]
      %v3265 = vld [vmem:[%s940 + $0x189] sm:$0xff]
      %v3266 = vld [vmem:[%s940 + $0x191] sm:$0xff]
      %v3267 = vld [vmem:[%s940 + $0x1a9] sm:$0xff]
      %v3268 = vld [vmem:[%s940 + $0x1b1] sm:$0xff]
      %v3269 = vld [vmem:[%s940 + $0x1c9] sm:$0xff]
      %v3270 = vld [vmem:[%s940 + $0x1d1] sm:$0xff]
      %v3271 = vld [vmem:[%s940 + $0x1e9] sm:$0xff]
      %v3272 = vld [vmem:[%s940 + $0x1f1] sm:$0xff]
      %v3273 = vpack.c.bf16 %v3242, %v3241
      %v3274 = vpack.c.bf16 %v3244, %v3243
      %v3275 = vpack.c.bf16 %v3246, %v3245
      %v3276 = vpack.c.bf16 %v3248, %v3247
      %v3277 = vpack.c.bf16 %v3250, %v3249
      %v3278 = vpack.c.bf16 %v3252, %v3251
      %v3279 = vpack.c.bf16 %v3254, %v3253
      %v3280 = vpack.c.bf16 %v3256, %v3255
      %v3281 = vpack.c.bf16 %v3258, %v3257
      %v3282 = vpack.c.bf16 %v3260, %v3259
      %v3283 = vpack.c.bf16 %v3262, %v3261
      %v3284 = vpack.c.bf16 %v3264, %v3263
      %v3285 = vpack.c.bf16 %v3266, %v3265
      %v3286 = vpack.c.bf16 %v3268, %v3267
      %v3287 = vpack.c.bf16 %v3270, %v3269
      %v3288 = vpack.c.bf16 %v3272, %v3271
      %3289 = vst [vmem:[#allocation4 + $0x40] sm:$0xff] %v3273
      %3290 = vst [vmem:[#allocation4 + $0x88] sm:$0xff] %v3274
      %3291 = vst [vmem:[#allocation4 + $0xd0] sm:$0xff] %v3275
      %3292 = vst [vmem:[#allocation4 + $0x118] sm:$0xff] %v3276
      %3293 = vst [vmem:[#allocation4 + $0x160] sm:$0xff] %v3277
      %3294 = vst [vmem:[#allocation4 + $0x1a8] sm:$0xff] %v3278
      %3295 = vst [vmem:[#allocation4 + $0x1f0] sm:$0xff] %v3279
      %3296 = vst [vmem:[#allocation4 + $0x238] sm:$0xff] %v3280
      %3297 = vst [vmem:[#allocation4 + $0x280] sm:$0xff] %v3281
      %3298 = vst [vmem:[#allocation4 + $0x2c8] sm:$0xff] %v3282
      %3299 = vst [vmem:[#allocation4 + $0x310] sm:$0xff] %v3283
      %3300 = vst [vmem:[#allocation4 + $0x358] sm:$0xff] %v3284
      %3301 = vst [vmem:[#allocation4 + $0x3a0] sm:$0xff] %v3285
      %3302 = vst [vmem:[#allocation4 + $0x3e8] sm:$0xff] %v3286
      %3303 = vst [vmem:[#allocation4 + $0x430] sm:$0xff] %v3287
      %3304 = vst [vmem:[#allocation4 + $0x478] sm:$0xff] %v3288
      %v3305 = vld [vmem:[#allocation4] sm:$0xff]
      %v3306 = vld [vmem:[#allocation4 + $0x8] sm:$0xff]
      %v3307 = vld [vmem:[#allocation4 + $0x10] sm:$0xff]
      %v3308 = vld [vmem:[#allocation4 + $0x18] sm:$0xff]
      %v3309 = vld [vmem:[#allocation4 + $0x20] sm:$0xff]
      %v3310 = vld [vmem:[#allocation4 + $0x28] sm:$0xff]
      %v3311 = vld [vmem:[#allocation4 + $0x30] sm:$0xff]
      %v3312 = vld [vmem:[#allocation4 + $0x38] sm:$0xff]
      %v3313 = vld [vmem:[#allocation4 + $0x40] sm:$0xff]
      %v3314 = vld [vmem:[#allocation4 + $0x48] sm:$0xff]
      %v3315 = vld [vmem:[#allocation4 + $0x50] sm:$0xff]
      %v3316 = vld [vmem:[#allocation4 + $0x58] sm:$0xff]
      %v3317 = vld [vmem:[#allocation4 + $0x60] sm:$0xff]
      %v3318 = vld [vmem:[#allocation4 + $0x68] sm:$0xff]
      %v3319 = vld [vmem:[#allocation4 + $0x70] sm:$0xff]
      %v3320 = vld [vmem:[#allocation4 + $0x78] sm:$0xff]
      %v3321 = vld [vmem:[#allocation4 + $0x80] sm:$0xff]
      %v3322 = vld [vmem:[#allocation4 + $0x88] sm:$0xff]
      %v3323 = vld [vmem:[#allocation4 + $0x90] sm:$0xff]
      %v3324 = vld [vmem:[#allocation4 + $0x98] sm:$0xff]
      %v3325 = vld [vmem:[#allocation4 + $0xa0] sm:$0xff]
      %v3326 = vld [vmem:[#allocation4 + $0xa8] sm:$0xff]
      %v3327 = vld [vmem:[#allocation4 + $0xb0] sm:$0xff]
      %v3328 = vld [vmem:[#allocation4 + $0xb8] sm:$0xff]
      %v3329 = vld [vmem:[#allocation4 + $0xc0] sm:$0xff]
      %v3330 = vld [vmem:[#allocation4 + $0xc8] sm:$0xff]
      %v3331 = vld [vmem:[#allocation4 + $0xd0] sm:$0xff]
      %v3332 = vld [vmem:[#allocation4 + $0xd8] sm:$0xff]
      %v3333 = vld [vmem:[#allocation4 + $0xe0] sm:$0xff]
      %v3334 = vld [vmem:[#allocation4 + $0xe8] sm:$0xff]
      %v3335 = vld [vmem:[#allocation4 + $0xf0] sm:$0xff]
      %v3336 = vld [vmem:[#allocation4 + $0xf8] sm:$0xff]
      %v3337 = vld [vmem:[#allocation4 + $0x100] sm:$0xff]
      %v3338 = vld [vmem:[#allocation4 + $0x108] sm:$0xff]
      %v3339 = vld [vmem:[#allocation4 + $0x110] sm:$0xff]
      %v3340 = vld [vmem:[#allocation4 + $0x118] sm:$0xff]
      %v3341 = vld [vmem:[#allocation4 + $0x120] sm:$0xff]
      %v3342 = vld [vmem:[#allocation4 + $0x128] sm:$0xff]
      %v3343 = vld [vmem:[#allocation4 + $0x130] sm:$0xff]
      %v3344 = vld [vmem:[#allocation4 + $0x138] sm:$0xff]
      %v3345 = vld [vmem:[#allocation4 + $0x140] sm:$0xff]
      %v3346 = vld [vmem:[#allocation4 + $0x148] sm:$0xff]
      %v3347 = vld [vmem:[#allocation4 + $0x150] sm:$0xff]
      %v3348 = vld [vmem:[#allocation4 + $0x158] sm:$0xff]
      %v3349 = vld [vmem:[#allocation4 + $0x160] sm:$0xff]
      %v3350 = vld [vmem:[#allocation4 + $0x168] sm:$0xff]
      %v3351 = vld [vmem:[#allocation4 + $0x170] sm:$0xff]
      %v3352 = vld [vmem:[#allocation4 + $0x178] sm:$0xff]
      %v3353 = vld [vmem:[#allocation4 + $0x180] sm:$0xff]
      %v3354 = vld [vmem:[#allocation4 + $0x188] sm:$0xff]
      %v3355 = vld [vmem:[#allocation4 + $0x190] sm:$0xff]
      %v3356 = vld [vmem:[#allocation4 + $0x198] sm:$0xff]
      %v3357 = vld [vmem:[#allocation4 + $0x1a0] sm:$0xff]
      %v3358 = vld [vmem:[#allocation4 + $0x1a8] sm:$0xff]
      %v3359 = vld [vmem:[#allocation4 + $0x1b0] sm:$0xff]
      %v3360 = vld [vmem:[#allocation4 + $0x1b8] sm:$0xff]
      %v3361 = vld [vmem:[#allocation4 + $0x1c0] sm:$0xff]
      %v3362 = vld [vmem:[#allocation4 + $0x1c8] sm:$0xff]
      %v3363 = vld [vmem:[#allocation4 + $0x1d0] sm:$0xff]
      %v3364 = vld [vmem:[#allocation4 + $0x1d8] sm:$0xff]
      %v3365 = vld [vmem:[#allocation4 + $0x1e0] sm:$0xff]
      %v3366 = vld [vmem:[#allocation4 + $0x1e8] sm:$0xff]
      %v3367 = vld [vmem:[#allocation4 + $0x1f0] sm:$0xff]
      %v3368 = vld [vmem:[#allocation4 + $0x1f8] sm:$0xff]
      %v3369 = vld [vmem:[#allocation4 + $0x200] sm:$0xff]
      %v3370 = vld [vmem:[#allocation4 + $0x208] sm:$0xff]
      %v3371 = vld [vmem:[#allocation4 + $0x210] sm:$0xff]
      %v3372 = vld [vmem:[#allocation4 + $0x218] sm:$0xff]
      %v3373 = vld [vmem:[#allocation4 + $0x220] sm:$0xff]
      %v3374 = vld [vmem:[#allocation4 + $0x228] sm:$0xff]
      %v3375 = vld [vmem:[#allocation4 + $0x230] sm:$0xff]
      %v3376 = vld [vmem:[#allocation4 + $0x238] sm:$0xff]
      %v3377 = vld [vmem:[#allocation4 + $0x240] sm:$0xff]
      %v3378 = vld [vmem:[#allocation4 + $0x248] sm:$0xff]
      %v3379 = vld [vmem:[#allocation4 + $0x250] sm:$0xff]
      %v3380 = vld [vmem:[#allocation4 + $0x258] sm:$0xff]
      %v3381 = vld [vmem:[#allocation4 + $0x260] sm:$0xff]
      %v3382 = vld [vmem:[#allocation4 + $0x268] sm:$0xff]
      %v3383 = vld [vmem:[#allocation4 + $0x270] sm:$0xff]
      %v3384 = vld [vmem:[#allocation4 + $0x278] sm:$0xff]
      %v3385 = vld [vmem:[#allocation4 + $0x280] sm:$0xff]
      %v3386 = vld [vmem:[#allocation4 + $0x288] sm:$0xff]
      %v3387 = vld [vmem:[#allocation4 + $0x290] sm:$0xff]
      %v3388 = vld [vmem:[#allocation4 + $0x298] sm:$0xff]
      %v3389 = vld [vmem:[#allocation4 + $0x2a0] sm:$0xff]
      %v3390 = vld [vmem:[#allocation4 + $0x2a8] sm:$0xff]
      %v3391 = vld [vmem:[#allocation4 + $0x2b0] sm:$0xff]
      %v3392 = vld [vmem:[#allocation4 + $0x2b8] sm:$0xff]
      %v3393 = vld [vmem:[#allocation4 + $0x2c0] sm:$0xff]
      %v3394 = vld [vmem:[#allocation4 + $0x2c8] sm:$0xff]
      %v3395 = vld [vmem:[#allocation4 + $0x2d0] sm:$0xff]
      %v3396 = vld [vmem:[#allocation4 + $0x2d8] sm:$0xff]
      %v3397 = vld [vmem:[#allocation4 + $0x2e0] sm:$0xff]
      %v3398 = vld [vmem:[#allocation4 + $0x2e8] sm:$0xff]
      %v3399 = vld [vmem:[#allocation4 + $0x2f0] sm:$0xff]
      %v3400 = vld [vmem:[#allocation4 + $0x2f8] sm:$0xff]
      %v3401 = vld [vmem:[#allocation4 + $0x300] sm:$0xff]
      %v3402 = vld [vmem:[#allocation4 + $0x308] sm:$0xff]
      %v3403 = vld [vmem:[#allocation4 + $0x310] sm:$0xff]
      %v3404 = vld [vmem:[#allocation4 + $0x318] sm:$0xff]
      %v3405 = vld [vmem:[#allocation4 + $0x320] sm:$0xff]
      %v3406 = vld [vmem:[#allocation4 + $0x328] sm:$0xff]
      %v3407 = vld [vmem:[#allocation4 + $0x330] sm:$0xff]
      %v3408 = vld [vmem:[#allocation4 + $0x338] sm:$0xff]
      %v3409 = vld [vmem:[#allocation4 + $0x340] sm:$0xff]
      %v3410 = vld [vmem:[#allocation4 + $0x348] sm:$0xff]
      %v3411 = vld [vmem:[#allocation4 + $0x350] sm:$0xff]
      %v3412 = vld [vmem:[#allocation4 + $0x358] sm:$0xff]
      %v3413 = vld [vmem:[#allocation4 + $0x360] sm:$0xff]
      %v3414 = vld [vmem:[#allocation4 + $0x368] sm:$0xff]
      %v3415 = vld [vmem:[#allocation4 + $0x370] sm:$0xff]
      %v3416 = vld [vmem:[#allocation4 + $0x378] sm:$0xff]
      %v3417 = vld [vmem:[#allocation4 + $0x380] sm:$0xff]
      %v3418 = vld [vmem:[#allocation4 + $0x388] sm:$0xff]
      %v3419 = vld [vmem:[#allocation4 + $0x390] sm:$0xff]
      %v3420 = vld [vmem:[#allocation4 + $0x398] sm:$0xff]
      %v3421 = vld [vmem:[#allocation4 + $0x3a0] sm:$0xff]
      %v3422 = vld [vmem:[#allocation4 + $0x3a8] sm:$0xff]
      %v3423 = vld [vmem:[#allocation4 + $0x3b0] sm:$0xff]
      %v3424 = vld [vmem:[#allocation4 + $0x3b8] sm:$0xff]
      %v3425 = vld [vmem:[#allocation4 + $0x3c0] sm:$0xff]
      %v3426 = vld [vmem:[#allocation4 + $0x3c8] sm:$0xff]
      %v3427 = vld [vmem:[#allocation4 + $0x3d0] sm:$0xff]
      %v3428 = vld [vmem:[#allocation4 + $0x3d8] sm:$0xff]
      %v3429 = vld [vmem:[#allocation4 + $0x3e0] sm:$0xff]
      %v3430 = vld [vmem:[#allocation4 + $0x3e8] sm:$0xff]
      %v3431 = vld [vmem:[#allocation4 + $0x3f0] sm:$0xff]
      %v3432 = vld [vmem:[#allocation4 + $0x3f8] sm:$0xff]
      %v3433 = vld [vmem:[#allocation4 + $0x400] sm:$0xff]
      %v3434 = vld [vmem:[#allocation4 + $0x408] sm:$0xff]
      %v3435 = vld [vmem:[#allocation4 + $0x410] sm:$0xff]
      %v3436 = vld [vmem:[#allocation4 + $0x418] sm:$0xff]
      %v3437 = vld [vmem:[#allocation4 + $0x420] sm:$0xff]
      %v3438 = vld [vmem:[#allocation4 + $0x428] sm:$0xff]
      %v3439 = vld [vmem:[#allocation4 + $0x430] sm:$0xff]
      %v3440 = vld [vmem:[#allocation4 + $0x438] sm:$0xff]
      %v3441 = vld [vmem:[#allocation4 + $0x440] sm:$0xff]
      %v3442 = vld [vmem:[#allocation4 + $0x448] sm:$0xff]
      %v3443 = vld [vmem:[#allocation4 + $0x450] sm:$0xff]
      %v3444 = vld [vmem:[#allocation4 + $0x458] sm:$0xff]
      %v3445 = vld [vmem:[#allocation4 + $0x460] sm:$0xff]
      %v3446 = vld [vmem:[#allocation4 + $0x468] sm:$0xff]
      %v3447 = vld [vmem:[#allocation4 + $0x470] sm:$0xff]
      %v3448 = vld [vmem:[#allocation4 + $0x478] sm:$0xff]
      %v3449 = vld [vmem:[%s3] sm:$0xf]
      %v3450 = vld [vmem:[%s3 + $0x4] sm:$0xf]
      %v3451 = vld [vmem:[%s3 + $0x8] sm:$0xf]
      %v3452 = vld [vmem:[%s3 + $0xc] sm:$0xf]
      %v3453 = vld [vmem:[%s3 + $0x10] sm:$0xf]
      %v3454 = vld [vmem:[%s3 + $0x14] sm:$0xf]
      %v3455 = vld [vmem:[%s3 + $0x18] sm:$0xf]
      %v3456 = vld [vmem:[%s3 + $0x1c] sm:$0xf]
      %v3457 = vld [vmem:[%s3 + $0x20] sm:$0xf]
      %v3458 = vld [vmem:[%s3 + $0x24] sm:$0xf]
      %v3459 = vld [vmem:[%s3 + $0x28] sm:$0xf]
      %v3460 = vld [vmem:[%s3 + $0x2c] sm:$0xf]
      %v3461 = vld [vmem:[%s3 + $0x30] sm:$0xf]
      %v3462 = vld [vmem:[%s3 + $0x34] sm:$0xf]
      %v3463 = vld [vmem:[%s3 + $0x38] sm:$0xf]
      %v3464 = vld [vmem:[%s3 + $0x3c] sm:$0xf]
      %v3465 = vld [vmem:[%s3 + $0x40] sm:$0xf]
      %v3466 = vld [vmem:[%s3 + $0x44] sm:$0xf]
      %v3467 = vld [vmem:[%s3 + $0x48] sm:$0xf]
      %v3468 = vld [vmem:[%s3 + $0x4c] sm:$0xf]
      %v3469 = vld [vmem:[%s3 + $0x50] sm:$0xf]
      %v3470 = vld [vmem:[%s3 + $0x54] sm:$0xf]
      %v3471 = vld [vmem:[%s3 + $0x58] sm:$0xf]
      %v3472 = vld [vmem:[%s3 + $0x5c] sm:$0xf]
      %v3473 = vld [vmem:[%s3 + $0x60] sm:$0xf]
      %v3474 = vld [vmem:[%s3 + $0x64] sm:$0xf]
      %v3475 = vld [vmem:[%s3 + $0x68] sm:$0xf]
      %v3476 = vld [vmem:[%s3 + $0x6c] sm:$0xf]
      %v3477 = vld [vmem:[%s3 + $0x70] sm:$0xf]
      %v3478 = vld [vmem:[%s3 + $0x74] sm:$0xf]
      %v3479 = vld [vmem:[%s3 + $0x78] sm:$0xf]
      %v3480 = vld [vmem:[%s3 + $0x7c] sm:$0xf]
      %v3481 = vld [vmem:[%s3 + $0x80] sm:$0xf]
      %v3482 = vld [vmem:[%s3 + $0x84] sm:$0xf]
      %v3483 = vld [vmem:[%s3 + $0x88] sm:$0xf]
      %v3484 = vld [vmem:[%s3 + $0x8c] sm:$0xf]
      %v3485 = vld [vmem:[%s3 + $0x90] sm:$0xf]
      %v3486 = vld [vmem:[%s3 + $0x94] sm:$0xf]
      %v3487 = vld [vmem:[%s3 + $0x98] sm:$0xf]
      %v3488 = vld [vmem:[%s3 + $0x9c] sm:$0xf]
      %v3489 = vld [vmem:[%s3 + $0xa0] sm:$0xf]
      %v3490 = vld [vmem:[%s3 + $0xa4] sm:$0xf]
      %v3491 = vld [vmem:[%s3 + $0xa8] sm:$0xf]
      %v3492 = vld [vmem:[%s3 + $0xac] sm:$0xf]
      %v3493 = vld [vmem:[%s3 + $0xb0] sm:$0xf]
      %v3494 = vld [vmem:[%s3 + $0xb4] sm:$0xf]
      %v3495 = vld [vmem:[%s3 + $0xb8] sm:$0xf]
      %v3496 = vld [vmem:[%s3 + $0xbc] sm:$0xf]
      %v3497 = vld [vmem:[%s3 + $0xc0] sm:$0xf]
      %v3498 = vld [vmem:[%s3 + $0xc4] sm:$0xf]
      %v3499 = vld [vmem:[%s3 + $0xc8] sm:$0xf]
      %v3500 = vld [vmem:[%s3 + $0xcc] sm:$0xf]
      %v3501 = vld [vmem:[%s3 + $0xd0] sm:$0xf]
      %v3502 = vld [vmem:[%s3 + $0xd4] sm:$0xf]
      %v3503 = vld [vmem:[%s3 + $0xd8] sm:$0xf]
      %v3504 = vld [vmem:[%s3 + $0xdc] sm:$0xf]
      %v3505 = vld [vmem:[%s3 + $0xe0] sm:$0xf]
      %v3506 = vld [vmem:[%s3 + $0xe4] sm:$0xf]
      %v3507 = vld [vmem:[%s3 + $0xe8] sm:$0xf]
      %v3508 = vld [vmem:[%s3 + $0xec] sm:$0xf]
      %v3509 = vld [vmem:[%s3 + $0xf0] sm:$0xf]
      %v3510 = vld [vmem:[%s3 + $0xf4] sm:$0xf]
      %v3511 = vld [vmem:[%s3 + $0xf8] sm:$0xf]
      %v3512 = vld [vmem:[%s3 + $0xfc] sm:$0xf]
      %v3513 = vld [vmem:[%s3 + $0x100] sm:$0xf]
      %v3514 = vld [vmem:[%s3 + $0x104] sm:$0xf]
      %v3515 = vld [vmem:[%s3 + $0x108] sm:$0xf]
      %v3516 = vld [vmem:[%s3 + $0x10c] sm:$0xf]
      %v3517 = vld [vmem:[%s3 + $0x110] sm:$0xf]
      %v3518 = vld [vmem:[%s3 + $0x114] sm:$0xf]
      %v3519 = vld [vmem:[%s3 + $0x118] sm:$0xf]
      %v3520 = vld [vmem:[%s3 + $0x11c] sm:$0xf]
      %v3521 = vld [vmem:[%s3 + $0x120] sm:$0xf]
      %v3522 = vld [vmem:[%s3 + $0x124] sm:$0xf]
      %v3523 = vld [vmem:[%s3 + $0x128] sm:$0xf]
      %v3524 = vld [vmem:[%s3 + $0x12c] sm:$0xf]
      %v3525 = vld [vmem:[%s3 + $0x130] sm:$0xf]
      %v3526 = vld [vmem:[%s3 + $0x134] sm:$0xf]
      %v3527 = vld [vmem:[%s3 + $0x138] sm:$0xf]
      %v3528 = vld [vmem:[%s3 + $0x13c] sm:$0xf]
      %v3529 = vld [vmem:[%s3 + $0x140] sm:$0xf]
      %v3530 = vld [vmem:[%s3 + $0x144] sm:$0xf]
      %v3531 = vld [vmem:[%s3 + $0x148] sm:$0xf]
      %v3532 = vld [vmem:[%s3 + $0x14c] sm:$0xf]
      %v3533 = vld [vmem:[%s3 + $0x150] sm:$0xf]
      %v3534 = vld [vmem:[%s3 + $0x154] sm:$0xf]
      %v3535 = vld [vmem:[%s3 + $0x158] sm:$0xf]
      %v3536 = vld [vmem:[%s3 + $0x15c] sm:$0xf]
      %v3537 = vld [vmem:[%s3 + $0x160] sm:$0xf]
      %v3538 = vld [vmem:[%s3 + $0x164] sm:$0xf]
      %v3539 = vld [vmem:[%s3 + $0x168] sm:$0xf]
      %v3540 = vld [vmem:[%s3 + $0x16c] sm:$0xf]
      %v3541 = vld [vmem:[%s3 + $0x170] sm:$0xf]
      %v3542 = vld [vmem:[%s3 + $0x174] sm:$0xf]
      %v3543 = vld [vmem:[%s3 + $0x178] sm:$0xf]
      %v3544 = vld [vmem:[%s3 + $0x17c] sm:$0xf]
      %v3545 = vld [vmem:[%s3 + $0x180] sm:$0xf]
      %v3546 = vld [vmem:[%s3 + $0x184] sm:$0xf]
      %v3547 = vld [vmem:[%s3 + $0x188] sm:$0xf]
      %v3548 = vld [vmem:[%s3 + $0x18c] sm:$0xf]
      %v3549 = vld [vmem:[%s3 + $0x190] sm:$0xf]
      %v3550 = vld [vmem:[%s3 + $0x194] sm:$0xf]
      %v3551 = vld [vmem:[%s3 + $0x198] sm:$0xf]
      %v3552 = vld [vmem:[%s3 + $0x19c] sm:$0xf]
      %v3553 = vld [vmem:[%s3 + $0x1a0] sm:$0xf]
      %v3554 = vld [vmem:[%s3 + $0x1a4] sm:$0xf]
      %v3555 = vld [vmem:[%s3 + $0x1a8] sm:$0xf]
      %v3556 = vld [vmem:[%s3 + $0x1ac] sm:$0xf]
      %v3557 = vld [vmem:[%s3 + $0x1b0] sm:$0xf]
      %v3558 = vld [vmem:[%s3 + $0x1b4] sm:$0xf]
      %v3559 = vld [vmem:[%s3 + $0x1b8] sm:$0xf]
      %v3560 = vld [vmem:[%s3 + $0x1bc] sm:$0xf]
      %v3561 = vld [vmem:[%s3 + $0x1c0] sm:$0xf]
      %v3562 = vld [vmem:[%s3 + $0x1c4] sm:$0xf]
      %v3563 = vld [vmem:[%s3 + $0x1c8] sm:$0xf]
      %v3564 = vld [vmem:[%s3 + $0x1cc] sm:$0xf]
      %v3565 = vld [vmem:[%s3 + $0x1d0] sm:$0xf]
      %v3566 = vld [vmem:[%s3 + $0x1d4] sm:$0xf]
      %v3567 = vld [vmem:[%s3 + $0x1d8] sm:$0xf]
      %v3568 = vld [vmem:[%s3 + $0x1dc] sm:$0xf]
      %v3569 = vld [vmem:[%s3 + $0x1e0] sm:$0xf]
      %v3570 = vld [vmem:[%s3 + $0x1e4] sm:$0xf]
      %v3571 = vld [vmem:[%s3 + $0x1e8] sm:$0xf]
      %v3572 = vld [vmem:[%s3 + $0x1ec] sm:$0xf]
      %v3573 = vld [vmem:[%s3 + $0x1f0] sm:$0xf]
      %v3574 = vld [vmem:[%s3 + $0x1f4] sm:$0xf]
      %v3575 = vld [vmem:[%s3 + $0x1f8] sm:$0xf]
      %v3576 = vld [vmem:[%s3 + $0x1fc] sm:$0xf]
      %v3577 = vld [vmem:[%s3 + $0x200] sm:$0xf]
      %v3578 = vld [vmem:[%s3 + $0x204] sm:$0xf]
      %v3579 = vld [vmem:[%s3 + $0x208] sm:$0xf]
      %v3580 = vld [vmem:[%s3 + $0x20c] sm:$0xf]
      %v3581 = vld [vmem:[%s3 + $0x210] sm:$0xf]
      %v3582 = vld [vmem:[%s3 + $0x214] sm:$0xf]
      %v3583 = vld [vmem:[%s3 + $0x218] sm:$0xf]
      %v3584 = vld [vmem:[%s3 + $0x21c] sm:$0xf]
      %v3585 = vld [vmem:[%s3 + $0x220] sm:$0xf]
      %v3586 = vld [vmem:[%s3 + $0x224] sm:$0xf]
      %v3587 = vld [vmem:[%s3 + $0x228] sm:$0xf]
      %v3588 = vld [vmem:[%s3 + $0x22c] sm:$0xf]
      %v3589 = vld [vmem:[%s3 + $0x230] sm:$0xf]
      %v3590 = vld [vmem:[%s3 + $0x234] sm:$0xf]
      %v3591 = vld [vmem:[%s3 + $0x238] sm:$0xf]
      %v3592 = vld [vmem:[%s3 + $0x23c] sm:$0xf]
      %v3593 = vld [vmem:[%s4] sm:$0x1]
      %v3595 = vlaneseq
      %v3596 = vshrl.u32 %v3595, 7
      %v3597 = vsub.s32 0, %v3596
      %v3598 = vrot.slane %v3593, %v3597
      %v3744 = vunpack.c.l.b16 %v3449
      %v3745 = vunpack.c.l.b16 %v3450
      %v3746 = vunpack.c.l.b16 %v3451
      %v3747 = vunpack.c.l.b16 %v3452
      %v3748 = vunpack.c.l.b16 %v3453
      %v3749 = vunpack.c.l.b16 %v3454
      %v3750 = vunpack.c.l.b16 %v3455
      %v3751 = vunpack.c.l.b16 %v3456
      %v3752 = vunpack.c.l.b16 %v3457
      %v3753 = vunpack.c.l.b16 %v3458
      %v3754 = vunpack.c.l.b16 %v3459
      %v3755 = vunpack.c.l.b16 %v3460
      %v3756 = vunpack.c.l.b16 %v3461
      %v3757 = vunpack.c.l.b16 %v3462
      %v3758 = vunpack.c.l.b16 %v3463
      %v3759 = vunpack.c.l.b16 %v3464
      %v3760 = vunpack.c.l.b16 %v3465
      %v3761 = vunpack.c.l.b16 %v3466
      %v3762 = vunpack.c.l.b16 %v3467
      %v3763 = vunpack.c.l.b16 %v3468
      %v3764 = vunpack.c.l.b16 %v3469
      %v3765 = vunpack.c.l.b16 %v3470
      %v3766 = vunpack.c.l.b16 %v3471
      %v3767 = vunpack.c.l.b16 %v3472
      %v3768 = vunpack.c.l.b16 %v3473
      %v3769 = vunpack.c.l.b16 %v3474
      %v3770 = vunpack.c.l.b16 %v3475
      %v3771 = vunpack.c.l.b16 %v3476
      %v3772 = vunpack.c.l.b16 %v3477
      %v3773 = vunpack.c.l.b16 %v3478
      %v3774 = vunpack.c.l.b16 %v3479
      %v3775 = vunpack.c.l.b16 %v3480
      %v3776 = vunpack.c.l.b16 %v3481
      %v3777 = vunpack.c.l.b16 %v3482
      %v3778 = vunpack.c.l.b16 %v3483
      %v3779 = vunpack.c.l.b16 %v3484
      %v3780 = vunpack.c.l.b16 %v3485
      %v3781 = vunpack.c.l.b16 %v3486
      %v3782 = vunpack.c.l.b16 %v3487
      %v3783 = vunpack.c.l.b16 %v3488
      %v3784 = vunpack.c.l.b16 %v3489
      %v3785 = vunpack.c.l.b16 %v3490
      %v3786 = vunpack.c.l.b16 %v3491
      %v3787 = vunpack.c.l.b16 %v3492
      %v3788 = vunpack.c.l.b16 %v3493
      %v3789 = vunpack.c.l.b16 %v3494
      %v3790 = vunpack.c.l.b16 %v3495
      %v3791 = vunpack.c.l.b16 %v3496
      %v3792 = vunpack.c.l.b16 %v3497
      %v3793 = vunpack.c.l.b16 %v3498
      %v3794 = vunpack.c.l.b16 %v3499
      %v3795 = vunpack.c.l.b16 %v3500
      %v3796 = vunpack.c.l.b16 %v3501
      %v3797 = vunpack.c.l.b16 %v3502
      %v3798 = vunpack.c.l.b16 %v3503
      %v3799 = vunpack.c.l.b16 %v3504
      %v3800 = vunpack.c.l.b16 %v3505
      %v3801 = vunpack.c.l.b16 %v3506
      %v3802 = vunpack.c.l.b16 %v3507
      %v3803 = vunpack.c.l.b16 %v3508
      %v3804 = vunpack.c.l.b16 %v3509
      %v3805 = vunpack.c.l.b16 %v3510
      %v3806 = vunpack.c.l.b16 %v3511
      %v3807 = vunpack.c.l.b16 %v3512
      %v3808 = vunpack.c.l.b16 %v3513
      %v3809 = vunpack.c.l.b16 %v3514
      %v3810 = vunpack.c.l.b16 %v3515
      %v3811 = vunpack.c.l.b16 %v3516
      %v3812 = vunpack.c.l.b16 %v3517
      %v3813 = vunpack.c.l.b16 %v3518
      %v3814 = vunpack.c.l.b16 %v3519
      %v3815 = vunpack.c.l.b16 %v3520
      %v3816 = vunpack.c.l.b16 %v3521
      %v3817 = vunpack.c.l.b16 %v3522
      %v3818 = vunpack.c.l.b16 %v3523
      %v3819 = vunpack.c.l.b16 %v3524
      %v3820 = vunpack.c.l.b16 %v3525
      %v3821 = vunpack.c.l.b16 %v3526
      %v3822 = vunpack.c.l.b16 %v3527
      %v3823 = vunpack.c.l.b16 %v3528
      %v3824 = vunpack.c.l.b16 %v3529
      %v3825 = vunpack.c.l.b16 %v3530
      %v3826 = vunpack.c.l.b16 %v3531
      %v3827 = vunpack.c.l.b16 %v3532
      %v3828 = vunpack.c.l.b16 %v3533
      %v3829 = vunpack.c.l.b16 %v3534
      %v3830 = vunpack.c.l.b16 %v3535
      %v3831 = vunpack.c.l.b16 %v3536
      %v3832 = vunpack.c.l.b16 %v3537
      %v3833 = vunpack.c.l.b16 %v3538
      %v3834 = vunpack.c.l.b16 %v3539
      %v3835 = vunpack.c.l.b16 %v3540
      %v3836 = vunpack.c.l.b16 %v3541
      %v3837 = vunpack.c.l.b16 %v3542
      %v3838 = vunpack.c.l.b16 %v3543
      %v3839 = vunpack.c.l.b16 %v3544
      %v3840 = vunpack.c.l.b16 %v3545
      %v3841 = vunpack.c.l.b16 %v3546
      %v3842 = vunpack.c.l.b16 %v3547
      %v3843 = vunpack.c.l.b16 %v3548
      %v3844 = vunpack.c.l.b16 %v3549
      %v3845 = vunpack.c.l.b16 %v3550
      %v3846 = vunpack.c.l.b16 %v3551
      %v3847 = vunpack.c.l.b16 %v3552
      %v3848 = vunpack.c.l.b16 %v3553
      %v3849 = vunpack.c.l.b16 %v3554
      %v3850 = vunpack.c.l.b16 %v3555
      %v3851 = vunpack.c.l.b16 %v3556
      %v3852 = vunpack.c.l.b16 %v3557
      %v3853 = vunpack.c.l.b16 %v3558
      %v3854 = vunpack.c.l.b16 %v3559
      %v3855 = vunpack.c.l.b16 %v3560
      %v3856 = vunpack.c.l.b16 %v3561
      %v3857 = vunpack.c.l.b16 %v3562
      %v3858 = vunpack.c.l.b16 %v3563
      %v3859 = vunpack.c.l.b16 %v3564
      %v3860 = vunpack.c.l.b16 %v3565
      %v3861 = vunpack.c.l.b16 %v3566
      %v3862 = vunpack.c.l.b16 %v3567
      %v3863 = vunpack.c.l.b16 %v3568
      %v3864 = vunpack.c.l.b16 %v3569
      %v3865 = vunpack.c.l.b16 %v3570
      %v3866 = vunpack.c.l.b16 %v3571
      %v3867 = vunpack.c.l.b16 %v3572
      %v3868 = vunpack.c.l.b16 %v3573
      %v3869 = vunpack.c.l.b16 %v3574
      %v3870 = vunpack.c.l.b16 %v3575
      %v3871 = vunpack.c.l.b16 %v3576
      %v3872 = vunpack.c.l.b16 %v3577
      %v3873 = vunpack.c.l.b16 %v3578
      %v3874 = vunpack.c.l.b16 %v3579
      %v3875 = vunpack.c.l.b16 %v3580
      %v3876 = vunpack.c.l.b16 %v3581
      %v3877 = vunpack.c.l.b16 %v3582
      %v3878 = vunpack.c.l.b16 %v3583
      %v3879 = vunpack.c.l.b16 %v3584
      %v3880 = vunpack.c.l.b16 %v3585
      %v3881 = vunpack.c.l.b16 %v3586
      %v3882 = vunpack.c.l.b16 %v3587
      %v3883 = vunpack.c.l.b16 %v3588
      %v3884 = vunpack.c.l.b16 %v3589
      %v3885 = vunpack.c.l.b16 %v3590
      %v3886 = vunpack.c.l.b16 %v3591
      %v3887 = vunpack.c.l.b16 %v3592
      %v3888 = vpack.c.b16 %v3745, %v3744
      %v3889 = vpack.c.b16 %v3747, %v3746
      %v3890 = vpack.c.b16 %v3749, %v3748
      %v3891 = vpack.c.b16 %v3751, %v3750
      %v3892 = vpack.c.b16 %v3753, %v3752
      %v3893 = vpack.c.b16 %v3755, %v3754
      %v3894 = vpack.c.b16 %v3757, %v3756
      %v3895 = vpack.c.b16 %v3759, %v3758
      %v3896 = vpack.c.b16 %v3761, %v3760
      %v3897 = vpack.c.b16 %v3763, %v3762
      %v3898 = vpack.c.b16 %v3765, %v3764
      %v3899 = vpack.c.b16 %v3767, %v3766
      %v3900 = vpack.c.b16 %v3769, %v3768
      %v3901 = vpack.c.b16 %v3771, %v3770
      %v3902 = vpack.c.b16 %v3773, %v3772
      %v3903 = vpack.c.b16 %v3775, %v3774
      %v3904 = vpack.c.b16 %v3777, %v3776
      %v3905 = vpack.c.b16 %v3779, %v3778
      %v3906 = vpack.c.b16 %v3781, %v3780
      %v3907 = vpack.c.b16 %v3783, %v3782
      %v3908 = vpack.c.b16 %v3785, %v3784
      %v3909 = vpack.c.b16 %v3787, %v3786
      %v3910 = vpack.c.b16 %v3789, %v3788
      %v3911 = vpack.c.b16 %v3791, %v3790
      %v3912 = vpack.c.b16 %v3793, %v3792
      %v3913 = vpack.c.b16 %v3795, %v3794
      %v3914 = vpack.c.b16 %v3797, %v3796
      %v3915 = vpack.c.b16 %v3799, %v3798
      %v3916 = vpack.c.b16 %v3801, %v3800
      %v3917 = vpack.c.b16 %v3803, %v3802
      %v3918 = vpack.c.b16 %v3805, %v3804
      %v3919 = vpack.c.b16 %v3807, %v3806
      %v3920 = vpack.c.b16 %v3809, %v3808
      %v3921 = vpack.c.b16 %v3811, %v3810
      %v3922 = vpack.c.b16 %v3813, %v3812
      %v3923 = vpack.c.b16 %v3815, %v3814
      %v3924 = vpack.c.b16 %v3817, %v3816
      %v3925 = vpack.c.b16 %v3819, %v3818
      %v3926 = vpack.c.b16 %v3821, %v3820
      %v3927 = vpack.c.b16 %v3823, %v3822
      %v3928 = vpack.c.b16 %v3825, %v3824
      %v3929 = vpack.c.b16 %v3827, %v3826
      %v3930 = vpack.c.b16 %v3829, %v3828
      %v3931 = vpack.c.b16 %v3831, %v3830
      %v3932 = vpack.c.b16 %v3833, %v3832
      %v3933 = vpack.c.b16 %v3835, %v3834
      %v3934 = vpack.c.b16 %v3837, %v3836
      %v3935 = vpack.c.b16 %v3839, %v3838
      %v3936 = vpack.c.b16 %v3841, %v3840
      %v3937 = vpack.c.b16 %v3843, %v3842
      %v3938 = vpack.c.b16 %v3845, %v3844
      %v3939 = vpack.c.b16 %v3847, %v3846
      %v3940 = vpack.c.b16 %v3849, %v3848
      %v3941 = vpack.c.b16 %v3851, %v3850
      %v3942 = vpack.c.b16 %v3853, %v3852
      %v3943 = vpack.c.b16 %v3855, %v3854
      %v3944 = vpack.c.b16 %v3857, %v3856
      %v3945 = vpack.c.b16 %v3859, %v3858
      %v3946 = vpack.c.b16 %v3861, %v3860
      %v3947 = vpack.c.b16 %v3863, %v3862
      %v3948 = vpack.c.b16 %v3865, %v3864
      %v3949 = vpack.c.b16 %v3867, %v3866
      %v3950 = vpack.c.b16 %v3869, %v3868
      %v3951 = vpack.c.b16 %v3871, %v3870
      %v3952 = vpack.c.b16 %v3873, %v3872
      %v3953 = vpack.c.b16 %v3875, %v3874
      %v3954 = vpack.c.b16 %v3877, %v3876
      %v3955 = vpack.c.b16 %v3879, %v3878
      %v3956 = vpack.c.b16 %v3881, %v3880
      %v3957 = vpack.c.b16 %v3883, %v3882
      %v3958 = vpack.c.b16 %v3885, %v3884
      %v3959 = vpack.c.b16 %v3887, %v3886
      %4032 = vmatprep.subr.bf16.mxu0 0
      %4033 = vmatpush1.bf16.msra.mxu0 %v3888
      %4034 = vmatprep.subr.bf16.mxu0 0
      %4035 = vmatpush1.bf16.msra.mxu0 %v3889
      %4036 = vmatprep.subr.bf16.mxu0 0
      %4037 = vmatpush1.bf16.msra.mxu0 %v3890
      %4038 = vmatprep.subr.bf16.mxu0 0
      %4039 = vmatpush1.bf16.msra.mxu0 %v3891
      %4040 = vmatprep.subr.bf16.mxu0 0
      %4041 = vmatpush1.bf16.msra.mxu0 %v3892
      %4042 = vmatprep.subr.bf16.mxu0 0
      %4043 = vmatpush1.bf16.msra.mxu0 %v3893
      %4044 = vmatprep.subr.bf16.mxu0 0
      %4045 = vmatpush1.bf16.msra.mxu0 %v3894
      %4046 = vmatprep.subr.bf16.mxu0 0
      %4047 = vmatpush1.bf16.msra.mxu0 %v3895
      %4048 = vmatprep.subr.bf16.mxu0 0
      %4049 = vmatpush1.bf16.msra.mxu0 %v3896
      %4050 = vmatprep.subr.bf16.mxu0 0
      %4051 = vmatpush1.bf16.msra.mxu0 %v3897
      %4052 = vmatprep.subr.bf16.mxu0 0
      %4053 = vmatpush1.bf16.msra.mxu0 %v3898
      %4054 = vmatprep.subr.bf16.mxu0 0
      %4055 = vmatpush1.bf16.msra.mxu0 %v3899
      %4056 = vmatprep.subr.bf16.mxu0 0
      %4057 = vmatpush1.bf16.msra.mxu0 %v3900
      %4058 = vmatprep.subr.bf16.mxu0 0
      %4059 = vmatpush1.bf16.msra.mxu0 %v3901
      %4060 = vmatprep.subr.bf16.mxu0 0
      %4061 = vmatpush1.bf16.msra.mxu0 %v3902
      %4062 = vmatprep.subr.bf16.mxu0 0
      %4063 = vmatpush1.bf16.msra.mxu0 %v3903
      %4064 = vmatprep.mubr.bf16.mxu0 %v3306
      %4065 = vmatmul.mubr.bf16.gmra.mrb[0].mxu0 %v3305
      %v4066 = vpop.f32.mrb[0].mxu0
      %v4067 = vadd.f32 %v3598, %v4066
      %v4068 = vpop.f32.mrb[0].mxu0
      %v4069 = vpop.f32.mrb[0].mxu0
      %v4070 = vadd.f32 %v3598, %v4069
      %v4071 = vpop.f32.mrb[0].mxu0
      %4072 = vmatprep.mubr.bf16.mxu0 %v3315
      %4073 = vmatmul.mubr.bf16.gmra.mrb[0].mxu0 %v3314
      %v4074 = vpop.f32.mrb[0].mxu0
      %v4075 = vadd.f32 %v3598, %v4074
      %v4076 = vpop.f32.mrb[0].mxu0
      %v4077 = vpop.f32.mrb[0].mxu0
      %v4078 = vadd.f32 %v3598, %v4077
      %v4079 = vpop.f32.mrb[0].mxu0
      %4080 = vmatprep.mubr.bf16.mxu0 %v3324
      %4081 = vmatmul.mubr.bf16.gmra.mrb[0].mxu0 %v3323
      %v4082 = vpop.f32.mrb[0].mxu0
      %v4083 = vadd.f32 %v3598, %v4082
      %v4084 = vpop.f32.mrb[0].mxu0
      %v4085 = vpop.f32.mrb[0].mxu0
      %v4086 = vadd.f32 %v3598, %v4085
      %v4087 = vpop.f32.mrb[0].mxu0
      %4088 = vmatprep.mubr.bf16.mxu0 %v3333
      %4089 = vmatmul.mubr.bf16.gmra.mrb[0].mxu0 %v3332
      %v4090 = vpop.f32.mrb[0].mxu0
      %v4091 = vadd.f32 %v3598, %v4090
      %v4092 = vpop.f32.mrb[0].mxu0
      %v4093 = vpop.f32.mrb[0].mxu0
      %v4094 = vadd.f32 %v3598, %v4093
      %v4095 = vpop.f32.mrb[0].mxu0
      %4096 = vmatprep.mubr.bf16.mxu0 %v3342
      %4097 = vmatmul.mubr.bf16.gmra.mrb[0].mxu0 %v3341
      %v4098 = vpop.f32.mrb[0].mxu0
      %v4099 = vadd.f32 %v3598, %v4098
      %v4100 = vpop.f32.mrb[0].mxu0
      %v4101 = vpop.f32.mrb[0].mxu0
      %v4102 = vadd.f32 %v3598, %v4101
      %v4103 = vpop.f32.mrb[0].mxu0
      %4104 = vmatprep.mubr.bf16.mxu0 %v3351
      %4105 = vmatmul.mubr.bf16.gmra.mrb[0].mxu0 %v3350
      %v4106 = vpop.f32.mrb[0].mxu0
      %v4107 = vadd.f32 %v3598, %v4106
      %v4108 = vpop.f32.mrb[0].mxu0
      %v4109 = vpop.f32.mrb[0].mxu0
      %v4110 = vadd.f32 %v3598, %v4109
      %v4111 = vpop.f32.mrb[0].mxu0
      %4112 = vmatprep.mubr.bf16.mxu0 %v3360
      %4113 = vmatmul.mubr.bf16.gmra.mrb[0].mxu0 %v3359
      %v4114 = vpop.f32.mrb[0].mxu0
      %v4115 = vadd.f32 %v3598, %v4114
      %v4116 = vpop.f32.mrb[0].mxu0
      %v4117 = vpop.f32.mrb[0].mxu0
      %v4118 = vadd.f32 %v3598, %v4117
      %v4119 = vpop.f32.mrb[0].mxu0
      %4120 = vmatprep.mubr.bf16.mxu0 %v3369
      %4121 = vmatmul.mubr.bf16.gmra.mrb[0].mxu0 %v3368
      %v4122 = vpop.f32.mrb[0].mxu0
      %v4123 = vadd.f32 %v3598, %v4122
      %v4124 = vpop.f32.mrb[0].mxu0
      %v4125 = vpop.f32.mrb[0].mxu0
      %v4126 = vadd.f32 %v3598, %v4125
      %v4127 = vpop.f32.mrb[0].mxu0
      %4128 = vmatprep.mubr.bf16.mxu0 %v3378
      %4129 = vmatmul.mubr.bf16.gmra.mrb[0].mxu0 %v3377
      %v4130 = vpop.f32.mrb[0].mxu0
      %v4131 = vadd.f32 %v3598, %v4130
      %v4132 = vpop.f32.mrb[0].mxu0
      %v4133 = vpop.f32.mrb[0].mxu0
      %v4134 = vadd.f32 %v3598, %v4133
      %v4135 = vpop.f32.mrb[0].mxu0
      %4136 = vmatprep.mubr.bf16.mxu0 %v3387
      %4137 = vmatmul.mubr.bf16.gmra.mrb[0].mxu0 %v3386
      %v4138 = vpop.f32.mrb[0].mxu0
      %v4139 = vadd.f32 %v3598, %v4138
      %v4140 = vpop.f32.mrb[0].mxu0
      %v4141 = vpop.f32.mrb[0].mxu0
      %v4142 = vadd.f32 %v3598, %v4141
      %v4143 = vpop.f32.mrb[0].mxu0
      %4144 = vmatprep.mubr.bf16.mxu0 %v3396
      %4145 = vmatmul.mubr.bf16.gmra.mrb[0].mxu0 %v3395
      %v4146 = vpop.f32.mrb[0].mxu0
      %v4147 = vadd.f32 %v3598, %v4146
      %v4148 = vpop.f32.mrb[0].mxu0
      %v4149 = vpop.f32.mrb[0].mxu0
      %v4150 = vadd.f32 %v3598, %v4149
      %v4151 = vpop.f32.mrb[0].mxu0
      %4152 = vmatprep.mubr.bf16.mxu0 %v3405
      %4153 = vmatmul.mubr.bf16.gmra.mrb[0].mxu0 %v3404
      %v4154 = vpop.f32.mrb[0].mxu0
      %v4155 = vadd.f32 %v3598, %v4154
      %v4156 = vpop.f32.mrb[0].mxu0
      %v4157 = vpop.f32.mrb[0].mxu0
      %v4158 = vadd.f32 %v3598, %v4157
      %v4159 = vpop.f32.mrb[0].mxu0
      %4160 = vmatprep.mubr.bf16.mxu0 %v3414
      %4161 = vmatmul.mubr.bf16.gmra.mrb[0].mxu0 %v3413
      %v4162 = vpop.f32.mrb[0].mxu0
      %v4163 = vadd.f32 %v3598, %v4162
      %v4164 = vpop.f32.mrb[0].mxu0
      %v4165 = vpop.f32.mrb[0].mxu0
      %v4166 = vadd.f32 %v3598, %v4165
      %v4167 = vpop.f32.mrb[0].mxu0
      %4168 = vmatprep.mubr.bf16.mxu0 %v3423
      %4169 = vmatmul.mubr.bf16.gmra.mrb[0].mxu0 %v3422
      %v4170 = vpop.f32.mrb[0].mxu0
      %v4171 = vadd.f32 %v3598, %v4170
      %v4172 = vpop.f32.mrb[0].mxu0
      %v4173 = vpop.f32.mrb[0].mxu0
      %v4174 = vadd.f32 %v3598, %v4173
      %v4175 = vpop.f32.mrb[0].mxu0
      %4176 = vmatprep.mubr.bf16.mxu0 %v3432
      %4177 = vmatmul.mubr.bf16.gmra.mrb[0].mxu0 %v3431
      %v4178 = vpop.f32.mrb[0].mxu0
      %v4179 = vadd.f32 %v3598, %v4178
      %v4180 = vpop.f32.mrb[0].mxu0
      %v4181 = vpop.f32.mrb[0].mxu0
      %v4182 = vadd.f32 %v3598, %v4181
      %v4183 = vpop.f32.mrb[0].mxu0
      %4184 = vmatprep.mubr.bf16.mxu0 %v3441
      %4185 = vmatmul.mubr.bf16.gmra.mrb[0].mxu0 %v3440
      %v4186 = vpop.f32.mrb[0].mxu0
      %v4187 = vadd.f32 %v3598, %v4186
      %v4188 = vpop.f32.mrb[0].mxu0
      %v4189 = vpop.f32.mrb[0].mxu0
      %v4190 = vadd.f32 %v3598, %v4189
      %v4191 = vpop.f32.mrb[0].mxu0
      %4192 = vdwg.mxu0
      %4193 = vmatprep.subr.bf16.mxu0 0
      %4194 = vmatpush1.bf16.msra.mxu0 %v3904
      %4195 = vmatprep.subr.bf16.mxu0 0
      %4196 = vmatpush1.bf16.msra.mxu0 %v3905
      %4197 = vmatprep.subr.bf16.mxu0 0
      %4198 = vmatpush1.bf16.msra.mxu0 %v3906
      %4199 = vmatprep.subr.bf16.mxu0 0
      %4200 = vmatpush1.bf16.msra.mxu0 %v3907
      %4201 = vmatprep.subr.bf16.mxu0 0
      %4202 = vmatpush1.bf16.msra.mxu0 %v3908
      %4203 = vmatprep.subr.bf16.mxu0 0
      %4204 = vmatpush1.bf16.msra.mxu0 %v3909
      %4205 = vmatprep.subr.bf16.mxu0 0
      %4206 = vmatpush1.bf16.msra.mxu0 %v3910
      %4207 = vmatprep.subr.bf16.mxu0 0
      %4208 = vmatpush1.bf16.msra.mxu0 %v3911
      %4209 = vmatprep.subr.bf16.mxu0 0
      %4210 = vmatpush1.bf16.msra.mxu0 %v3912
      %4211 = vmatprep.subr.bf16.mxu0 0
      %4212 = vmatpush1.bf16.msra.mxu0 %v3913
      %4213 = vmatprep.subr.bf16.mxu0 0
      %4214 = vmatpush1.bf16.msra.mxu0 %v3914
      %4215 = vmatprep.subr.bf16.mxu0 0
      %4216 = vmatpush1.bf16.msra.mxu0 %v3915
      %4217 = vmatprep.subr.bf16.mxu0 0
      %4218 = vmatpush1.bf16.msra.mxu0 %v3916
      %4219 = vmatprep.subr.bf16.mxu0 0
      %4220 = vmatpush1.bf16.msra.mxu0 %v3917
      %4221 = vmatprep.subr.bf16.mxu0 0
      %4222 = vmatpush1.bf16.msra.mxu0 %v3918
      %4223 = vmatprep.subr.bf16.mxu0 0
      %4224 = vmatpush1.bf16.msra.mxu0 %v3919
      %4225 = vmatprep.mubr.bf16.mxu0 %v3308
      %4226 = vmatmul.mubr.bf16.gmra.mrb[0].mxu0 %v3307
      %v4227 = vpop.f32.mrb[0].mxu0
      %v4228 = vadd.f32 %v4067, %v4227
      %v4229 = vpop.f32.mrb[0].mxu0
      %v4230 = vpop.f32.mrb[0].mxu0
      %v4231 = vadd.f32 %v4070, %v4230
      %v4232 = vpop.f32.mrb[0].mxu0
      %4233 = vmatprep.mubr.bf16.mxu0 %v3317
      %4234 = vmatmul.mubr.bf16.gmra.mrb[0].mxu0 %v3316
      %v4235 = vpop.f32.mrb[0].mxu0
      %v4236 = vadd.f32 %v4075, %v4235
      %v4237 = vpop.f32.mrb[0].mxu0
      %v4238 = vpop.f32.mrb[0].mxu0
      %v4239 = vadd.f32 %v4078, %v4238
      %v4240 = vpop.f32.mrb[0].mxu0
      %4241 = vmatprep.mubr.bf16.mxu0 %v3326
      %4242 = vmatmul.mubr.bf16.gmra.mrb[0].mxu0 %v3325
      %v4243 = vpop.f32.mrb[0].mxu0
      %v4244 = vadd.f32 %v4083, %v4243
      %v4245 = vpop.f32.mrb[0].mxu0
      %v4246 = vpop.f32.mrb[0].mxu0
      %v4247 = vadd.f32 %v4086, %v4246
      %v4248 = vpop.f32.mrb[0].mxu0
      %4249 = vmatprep.mubr.bf16.mxu0 %v3335
      %4250 = vmatmul.mubr.bf16.gmra.mrb[0].mxu0 %v3334
      %v4251 = vpop.f32.mrb[0].mxu0
      %v4252 = vadd.f32 %v4091, %v4251
      %v4253 = vpop.f32.mrb[0].mxu0
      %v4254 = vpop.f32.mrb[0].mxu0
      %v4255 = vadd.f32 %v4094, %v4254
      %v4256 = vpop.f32.mrb[0].mxu0
      %4257 = vmatprep.mubr.bf16.mxu0 %v3344
      %4258 = vmatmul.mubr.bf16.gmra.mrb[0].mxu0 %v3343
      %v4259 = vpop.f32.mrb[0].mxu0
      %v4260 = vadd.f32 %v4099, %v4259
      %v4261 = vpop.f32.mrb[0].mxu0
      %v4262 = vpop.f32.mrb[0].mxu0
      %v4263 = vadd.f32 %v4102, %v4262
      %v4264 = vpop.f32.mrb[0].mxu0
      %4265 = vmatprep.mubr.bf16.mxu0 %v3353
      %4266 = vmatmul.mubr.bf16.gmra.mrb[0].mxu0 %v3352
      %v4267 = vpop.f32.mrb[0].mxu0
      %v4268 = vadd.f32 %v4107, %v4267
      %v4269 = vpop.f32.mrb[0].mxu0
      %v4270 = vpop.f32.mrb[0].mxu0
      %v4271 = vadd.f32 %v4110, %v4270
      %v4272 = vpop.f32.mrb[0].mxu0
      %4273 = vmatprep.mubr.bf16.mxu0 %v3362
      %4274 = vmatmul.mubr.bf16.gmra.mrb[0].mxu0 %v3361
      %v4275 = vpop.f32.mrb[0].mxu0
      %v4276 = vadd.f32 %v4115, %v4275
      %v4277 = vpop.f32.mrb[0].mxu0
      %v4278 = vpop.f32.mrb[0].mxu0
      %v4279 = vadd.f32 %v4118, %v4278
      %v4280 = vpop.f32.mrb[0].mxu0
      %4281 = vmatprep.mubr.bf16.mxu0 %v3371
      %4282 = vmatmul.mubr.bf16.gmra.mrb[0].mxu0 %v3370
      %v4283 = vpop.f32.mrb[0].mxu0
      %v4284 = vadd.f32 %v4123, %v4283
      %v4285 = vpop.f32.mrb[0].mxu0
      %v4286 = vpop.f32.mrb[0].mxu0
      %v4287 = vadd.f32 %v4126, %v4286
      %v4288 = vpop.f32.mrb[0].mxu0
      %4289 = vmatprep.mubr.bf16.mxu0 %v3380
      %4290 = vmatmul.mubr.bf16.gmra.mrb[0].mxu0 %v3379
      %v4291 = vpop.f32.mrb[0].mxu0
      %v4292 = vadd.f32 %v4131, %v4291
      %v4293 = vpop.f32.mrb[0].mxu0
      %v4294 = vpop.f32.mrb[0].mxu0
      %v4295 = vadd.f32 %v4134, %v4294
      %v4296 = vpop.f32.mrb[0].mxu0
      %4297 = vmatprep.mubr.bf16.mxu0 %v3389
      %4298 = vmatmul.mubr.bf16.gmra.mrb[0].mxu0 %v3388
      %v4299 = vpop.f32.mrb[0].mxu0
      %v4300 = vadd.f32 %v4139, %v4299
      %v4301 = vpop.f32.mrb[0].mxu0
      %v4302 = vpop.f32.mrb[0].mxu0
      %v4303 = vadd.f32 %v4142, %v4302
      %v4304 = vpop.f32.mrb[0].mxu0
      %4305 = vmatprep.mubr.bf16.mxu0 %v3398
      %4306 = vmatmul.mubr.bf16.gmra.mrb[0].mxu0 %v3397
      %v4307 = vpop.f32.mrb[0].mxu0
      %v4308 = vadd.f32 %v4147, %v4307
      %v4309 = vpop.f32.mrb[0].mxu0
      %v4310 = vpop.f32.mrb[0].mxu0
      %v4311 = vadd.f32 %v4150, %v4310
      %v4312 = vpop.f32.mrb[0].mxu0
      %4313 = vmatprep.mubr.bf16.mxu0 %v3407
      %4314 = vmatmul.mubr.bf16.gmra.mrb[0].mxu0 %v3406
      %v4315 = vpop.f32.mrb[0].mxu0
      %v4316 = vadd.f32 %v4155, %v4315
      %v4317 = vpop.f32.mrb[0].mxu0
      %v4318 = vpop.f32.mrb[0].mxu0
      %v4319 = vadd.f32 %v4158, %v4318
      %v4320 = vpop.f32.mrb[0].mxu0
      %4321 = vmatprep.mubr.bf16.mxu0 %v3416
      %4322 = vmatmul.mubr.bf16.gmra.mrb[0].mxu0 %v3415
      %v4323 = vpop.f32.mrb[0].mxu0
      %v4324 = vadd.f32 %v4163, %v4323
      %v4325 = vpop.f32.mrb[0].mxu0
      %v4326 = vpop.f32.mrb[0].mxu0
      %v4327 = vadd.f32 %v4166, %v4326
      %v4328 = vpop.f32.mrb[0].mxu0
      %4329 = vmatprep.mubr.bf16.mxu0 %v3425
      %4330 = vmatmul.mubr.bf16.gmra.mrb[0].mxu0 %v3424
      %v4331 = vpop.f32.mrb[0].mxu0
      %v4332 = vadd.f32 %v4171, %v4331
      %v4333 = vpop.f32.mrb[0].mxu0
      %v4334 = vpop.f32.mrb[0].mxu0
      %v4335 = vadd.f32 %v4174, %v4334
      %v4336 = vpop.f32.mrb[0].mxu0
      %4337 = vmatprep.mubr.bf16.mxu0 %v3434
      %4338 = vmatmul.mubr.bf16.gmra.mrb[0].mxu0 %v3433
      %v4339 = vpop.f32.mrb[0].mxu0
      %v4340 = vadd.f32 %v4179, %v4339
      %v4341 = vpop.f32.mrb[0].mxu0
      %v4342 = vpop.f32.mrb[0].mxu0
      %v4343 = vadd.f32 %v4182, %v4342
      %v4344 = vpop.f32.mrb[0].mxu0
      %4345 = vmatprep.mubr.bf16.mxu0 %v3443
      %4346 = vmatmul.mubr.bf16.gmra.mrb[0].mxu0 %v3442
      %v4347 = vpop.f32.mrb[0].mxu0
      %v4348 = vadd.f32 %v4187, %v4347
      %v4349 = vpop.f32.mrb[0].mxu0
      %v4350 = vpop.f32.mrb[0].mxu0
      %v4351 = vadd.f32 %v4190, %v4350
      %v4352 = vpop.f32.mrb[0].mxu0
      %4353 = vdwg.mxu0
      %4354 = vmatprep.subr.bf16.mxu0 0
      %4355 = vmatpush1.bf16.msra.mxu0 %v3920
      %4356 = vmatprep.subr.bf16.mxu0 0
      %4357 = vmatpush1.bf16.msra.mxu0 %v3921
      %4358 = vmatprep.subr.bf16.mxu0 0
      %4359 = vmatpush1.bf16.msra.mxu0 %v3922
      %4360 = vmatprep.subr.bf16.mxu0 0
      %4361 = vmatpush1.bf16.msra.mxu0 %v3923
      %4362 = vmatprep.subr.bf16.mxu0 0
      %4363 = vmatpush1.bf16.msra.mxu0 %v3924
      %4364 = vmatprep.subr.bf16.mxu0 0
      %4365 = vmatpush1.bf16.msra.mxu0 %v3925
      %4366 = vmatprep.subr.bf16.mxu0 0
      %4367 = vmatpush1.bf16.msra.mxu0 %v3926
      %4368 = vmatprep.subr.bf16.mxu0 0
      %4369 = vmatpush1.bf16.msra.mxu0 %v3927
      %4370 = vmatprep.subr.bf16.mxu0 0
      %4371 = vmatpush1.bf16.msra.mxu0 %v3928
      %4372 = vmatprep.subr.bf16.mxu0 0
      %4373 = vmatpush1.bf16.msra.mxu0 %v3929
      %4374 = vmatprep.subr.bf16.mxu0 0
      %4375 = vmatpush1.bf16.msra.mxu0 %v3930
      %4376 = vmatprep.subr.bf16.mxu0 0
      %4377 = vmatpush1.bf16.msra.mxu0 %v3931
      %4378 = vmatprep.subr.bf16.mxu0 0
      %4379 = vmatpush1.bf16.msra.mxu0 %v3932
      %4380 = vmatprep.subr.bf16.mxu0 0
      %4381 = vmatpush1.bf16.msra.mxu0 %v3933
      %4382 = vmatprep.subr.bf16.mxu0 0
      %4383 = vmatpush1.bf16.msra.mxu0 %v3934
      %4384 = vmatprep.subr.bf16.mxu0 0
      %4385 = vmatpush1.bf16.msra.mxu0 %v3935
      %4386 = vmatprep.mubr.bf16.mxu0 %v3310
      %4387 = vmatmul.mubr.bf16.gmra.mrb[0].mxu0 %v3309
      %v4388 = vpop.f32.mrb[0].mxu0
      %v4389 = vadd.f32 %v4228, %v4388
      %v4390 = vpop.f32.mrb[0].mxu0
      %v4391 = vpop.f32.mrb[0].mxu0
      %v4392 = vadd.f32 %v4231, %v4391
      %v4393 = vpop.f32.mrb[0].mxu0
      %4394 = vmatprep.mubr.bf16.mxu0 %v3319
      %4395 = vmatmul.mubr.bf16.gmra.mrb[0].mxu0 %v3318
      %v4396 = vpop.f32.mrb[0].mxu0
      %v4397 = vadd.f32 %v4236, %v4396
      %v4398 = vpop.f32.mrb[0].mxu0
      %v4399 = vpop.f32.mrb[0].mxu0
      %v4400 = vadd.f32 %v4239, %v4399
      %v4401 = vpop.f32.mrb[0].mxu0
      %4402 = vmatprep.mubr.bf16.mxu0 %v3328
      %4403 = vmatmul.mubr.bf16.gmra.mrb[0].mxu0 %v3327
      %v4404 = vpop.f32.mrb[0].mxu0
      %v4405 = vadd.f32 %v4244, %v4404
      %v4406 = vpop.f32.mrb[0].mxu0
      %v4407 = vpop.f32.mrb[0].mxu0
      %v4408 = vadd.f32 %v4247, %v4407
      %v4409 = vpop.f32.mrb[0].mxu0
      %4410 = vmatprep.mubr.bf16.mxu0 %v3337
      %4411 = vmatmul.mubr.bf16.gmra.mrb[0].mxu0 %v3336
      %v4412 = vpop.f32.mrb[0].mxu0
      %v4413 = vadd.f32 %v4252, %v4412
      %v4414 = vpop.f32.mrb[0].mxu0
      %v4415 = vpop.f32.mrb[0].mxu0
      %v4416 = vadd.f32 %v4255, %v4415
      %v4417 = vpop.f32.mrb[0].mxu0
      %4418 = vmatprep.mubr.bf16.mxu0 %v3346
      %4419 = vmatmul.mubr.bf16.gmra.mrb[0].mxu0 %v3345
      %v4420 = vpop.f32.mrb[0].mxu0
      %v4421 = vadd.f32 %v4260, %v4420
      %v4422 = vpop.f32.mrb[0].mxu0
      %v4423 = vpop.f32.mrb[0].mxu0
      %v4424 = vadd.f32 %v4263, %v4423
      %v4425 = vpop.f32.mrb[0].mxu0
      %4426 = vmatprep.mubr.bf16.mxu0 %v3355
      %4427 = vmatmul.mubr.bf16.gmra.mrb[0].mxu0 %v3354
      %v4428 = vpop.f32.mrb[0].mxu0
      %v4429 = vadd.f32 %v4268, %v4428
      %v4430 = vpop.f32.mrb[0].mxu0
      %v4431 = vpop.f32.mrb[0].mxu0
      %v4432 = vadd.f32 %v4271, %v4431
      %v4433 = vpop.f32.mrb[0].mxu0
      %4434 = vmatprep.mubr.bf16.mxu0 %v3364
      %4435 = vmatmul.mubr.bf16.gmra.mrb[0].mxu0 %v3363
      %v4436 = vpop.f32.mrb[0].mxu0
      %v4437 = vadd.f32 %v4276, %v4436
      %v4438 = vpop.f32.mrb[0].mxu0
      %v4439 = vpop.f32.mrb[0].mxu0
      %v4440 = vadd.f32 %v4279, %v4439
      %v4441 = vpop.f32.mrb[0].mxu0
      %4442 = vmatprep.mubr.bf16.mxu0 %v3373
      %4443 = vmatmul.mubr.bf16.gmra.mrb[0].mxu0 %v3372
      %v4444 = vpop.f32.mrb[0].mxu0
      %v4445 = vadd.f32 %v4284, %v4444
      %v4446 = vpop.f32.mrb[0].mxu0
      %v4447 = vpop.f32.mrb[0].mxu0
      %v4448 = vadd.f32 %v4287, %v4447
      %v4449 = vpop.f32.mrb[0].mxu0
      %4450 = vmatprep.mubr.bf16.mxu0 %v3382
      %4451 = vmatmul.mubr.bf16.gmra.mrb[0].mxu0 %v3381
      %v4452 = vpop.f32.mrb[0].mxu0
      %v4453 = vadd.f32 %v4292, %v4452
      %v4454 = vpop.f32.mrb[0].mxu0
      %v4455 = vpop.f32.mrb[0].mxu0
      %v4456 = vadd.f32 %v4295, %v4455
      %v4457 = vpop.f32.mrb[0].mxu0
      %4458 = vmatprep.mubr.bf16.mxu0 %v3391
      %4459 = vmatmul.mubr.bf16.gmra.mrb[0].mxu0 %v3390
      %v4460 = vpop.f32.mrb[0].mxu0
      %v4461 = vadd.f32 %v4300, %v4460
      %v4462 = vpop.f32.mrb[0].mxu0
      %v4463 = vpop.f32.mrb[0].mxu0
      %v4464 = vadd.f32 %v4303, %v4463
      %v4465 = vpop.f32.mrb[0].mxu0
      %4466 = vmatprep.mubr.bf16.mxu0 %v3400
      %4467 = vmatmul.mubr.bf16.gmra.mrb[0].mxu0 %v3399
      %v4468 = vpop.f32.mrb[0].mxu0
      %v4469 = vadd.f32 %v4308, %v4468
      %v4470 = vpop.f32.mrb[0].mxu0
      %v4471 = vpop.f32.mrb[0].mxu0
      %v4472 = vadd.f32 %v4311, %v4471
      %v4473 = vpop.f32.mrb[0].mxu0
      %4474 = vmatprep.mubr.bf16.mxu0 %v3409
      %4475 = vmatmul.mubr.bf16.gmra.mrb[0].mxu0 %v3408
      %v4476 = vpop.f32.mrb[0].mxu0
      %v4477 = vadd.f32 %v4316, %v4476
      %v4478 = vpop.f32.mrb[0].mxu0
      %v4479 = vpop.f32.mrb[0].mxu0
      %v4480 = vadd.f32 %v4319, %v4479
      %v4481 = vpop.f32.mrb[0].mxu0
      %4482 = vmatprep.mubr.bf16.mxu0 %v3418
      %4483 = vmatmul.mubr.bf16.gmra.mrb[0].mxu0 %v3417
      %v4484 = vpop.f32.mrb[0].mxu0
      %v4485 = vadd.f32 %v4324, %v4484
      %v4486 = vpop.f32.mrb[0].mxu0
      %v4487 = vpop.f32.mrb[0].mxu0
      %v4488 = vadd.f32 %v4327, %v4487
      %v4489 = vpop.f32.mrb[0].mxu0
      %4490 = vmatprep.mubr.bf16.mxu0 %v3427
      %4491 = vmatmul.mubr.bf16.gmra.mrb[0].mxu0 %v3426
      %v4492 = vpop.f32.mrb[0].mxu0
      %v4493 = vadd.f32 %v4332, %v4492
      %v4494 = vpop.f32.mrb[0].mxu0
      %v4495 = vpop.f32.mrb[0].mxu0
      %v4496 = vadd.f32 %v4335, %v4495
      %v4497 = vpop.f32.mrb[0].mxu0
      %4498 = vmatprep.mubr.bf16.mxu0 %v3436
      %4499 = vmatmul.mubr.bf16.gmra.mrb[0].mxu0 %v3435
      %v4500 = vpop.f32.mrb[0].mxu0
      %v4501 = vadd.f32 %v4340, %v4500
      %v4502 = vpop.f32.mrb[0].mxu0
      %v4503 = vpop.f32.mrb[0].mxu0
      %v4504 = vadd.f32 %v4343, %v4503
      %v4505 = vpop.f32.mrb[0].mxu0
      %4506 = vmatprep.mubr.bf16.mxu0 %v3445
      %4507 = vmatmul.mubr.bf16.gmra.mrb[0].mxu0 %v3444
      %v4508 = vpop.f32.mrb[0].mxu0
      %v4509 = vadd.f32 %v4348, %v4508
      %v4510 = vpop.f32.mrb[0].mxu0
      %v4511 = vpop.f32.mrb[0].mxu0
      %v4512 = vadd.f32 %v4351, %v4511
      %v4513 = vpop.f32.mrb[0].mxu0
      %4514 = vdwg.mxu0
      %4515 = vmatprep.subr.bf16.mxu0 0
      %4516 = vmatpush1.bf16.msra.mxu0 %v3936
      %4517 = vmatprep.subr.bf16.mxu0 0
      %4518 = vmatpush1.bf16.msra.mxu0 %v3937
      %4519 = vmatprep.subr.bf16.mxu0 0
      %4520 = vmatpush1.bf16.msra.mxu0 %v3938
      %4521 = vmatprep.subr.bf16.mxu0 0
      %4522 = vmatpush1.bf16.msra.mxu0 %v3939
      %4523 = vmatprep.subr.bf16.mxu0 0
      %4524 = vmatpush1.bf16.msra.mxu0 %v3940
      %4525 = vmatprep.subr.bf16.mxu0 0
      %4526 = vmatpush1.bf16.msra.mxu0 %v3941
      %4527 = vmatprep.subr.bf16.mxu0 0
      %4528 = vmatpush1.bf16.msra.mxu0 %v3942
      %4529 = vmatprep.subr.bf16.mxu0 0
      %4530 = vmatpush1.bf16.msra.mxu0 %v3943
      %4531 = vmatprep.subr.bf16.mxu0 0
      %4532 = vmatpush1.bf16.msra.mxu0 %v3944
      %4533 = vmatprep.subr.bf16.mxu0 0
      %4534 = vmatpush1.bf16.msra.mxu0 %v3945
      %4535 = vmatprep.subr.bf16.mxu0 0
      %4536 = vmatpush1.bf16.msra.mxu0 %v3946
      %4537 = vmatprep.subr.bf16.mxu0 0
      %4538 = vmatpush1.bf16.msra.mxu0 %v3947
      %4539 = vmatprep.subr.bf16.mxu0 0
      %4540 = vmatpush1.bf16.msra.mxu0 %v3948
      %4541 = vmatprep.subr.bf16.mxu0 0
      %4542 = vmatpush1.bf16.msra.mxu0 %v3949
      %4543 = vmatprep.subr.bf16.mxu0 0
      %4544 = vmatpush1.bf16.msra.mxu0 %v3950
      %4545 = vmatprep.subr.bf16.mxu0 0
      %4546 = vmatpush1.bf16.msra.mxu0 %v3951
      %4547 = vmatprep.mubr.bf16.mxu0 %v3312
      %4548 = vmatmul.mubr.bf16.gmra.mrb[0].mxu0 %v3311
      %v4549 = vpop.f32.mrb[0].mxu0
      %v4550 = vadd.f32 %v4389, %v4549
      %v4551 = vpop.f32.mrb[0].mxu0
      %v4552 = vpop.f32.mrb[0].mxu0
      %v4553 = vadd.f32 %v4392, %v4552
      %v4554 = vpop.f32.mrb[0].mxu0
      %4555 = vmatprep.mubr.bf16.mxu0 %v3321
      %4556 = vmatmul.mubr.bf16.gmra.mrb[0].mxu0 %v3320
      %v4557 = vpop.f32.mrb[0].mxu0
      %v4558 = vadd.f32 %v4397, %v4557
      %v4559 = vpop.f32.mrb[0].mxu0
      %v4560 = vpop.f32.mrb[0].mxu0
      %v4561 = vadd.f32 %v4400, %v4560
      %v4562 = vpop.f32.mrb[0].mxu0
      %4563 = vmatprep.mubr.bf16.mxu0 %v3330
      %4564 = vmatmul.mubr.bf16.gmra.mrb[0].mxu0 %v3329
      %v4565 = vpop.f32.mrb[0].mxu0
      %v4566 = vadd.f32 %v4405, %v4565
      %v4567 = vpop.f32.mrb[0].mxu0
      %v4568 = vpop.f32.mrb[0].mxu0
      %v4569 = vadd.f32 %v4408, %v4568
      %v4570 = vpop.f32.mrb[0].mxu0
      %4571 = vmatprep.mubr.bf16.mxu0 %v3339
      %4572 = vmatmul.mubr.bf16.gmra.mrb[0].mxu0 %v3338
      %v4573 = vpop.f32.mrb[0].mxu0
      %v4574 = vadd.f32 %v4413, %v4573
      %v4575 = vpop.f32.mrb[0].mxu0
      %v4576 = vpop.f32.mrb[0].mxu0
      %v4577 = vadd.f32 %v4416, %v4576
      %v4578 = vpop.f32.mrb[0].mxu0
      %4579 = vmatprep.mubr.bf16.mxu0 %v3348
      %4580 = vmatmul.mubr.bf16.gmra.mrb[0].mxu0 %v3347
      %v4581 = vpop.f32.mrb[0].mxu0
      %v4582 = vadd.f32 %v4421, %v4581
      %v4583 = vpop.f32.mrb[0].mxu0
      %v4584 = vpop.f32.mrb[0].mxu0
      %v4585 = vadd.f32 %v4424, %v4584
      %v4586 = vpop.f32.mrb[0].mxu0
      %4587 = vmatprep.mubr.bf16.mxu0 %v3357
      %4588 = vmatmul.mubr.bf16.gmra.mrb[0].mxu0 %v3356
      %v4589 = vpop.f32.mrb[0].mxu0
      %v4590 = vadd.f32 %v4429, %v4589
      %v4591 = vpop.f32.mrb[0].mxu0
      %v4592 = vpop.f32.mrb[0].mxu0
      %v4593 = vadd.f32 %v4432, %v4592
      %v4594 = vpop.f32.mrb[0].mxu0
      %4595 = vmatprep.mubr.bf16.mxu0 %v3366
      %4596 = vmatmul.mubr.bf16.gmra.mrb[0].mxu0 %v3365
      %v4597 = vpop.f32.mrb[0].mxu0
      %v4598 = vadd.f32 %v4437, %v4597
      %v4599 = vpop.f32.mrb[0].mxu0
      %v4600 = vpop.f32.mrb[0].mxu0
      %v4601 = vadd.f32 %v4440, %v4600
      %v4602 = vpop.f32.mrb[0].mxu0
      %4603 = vmatprep.mubr.bf16.mxu0 %v3375
      %4604 = vmatmul.mubr.bf16.gmra.mrb[0].mxu0 %v3374
      %v4605 = vpop.f32.mrb[0].mxu0
      %v4606 = vadd.f32 %v4445, %v4605
      %v4607 = vpop.f32.mrb[0].mxu0
      %v4608 = vpop.f32.mrb[0].mxu0
      %v4609 = vadd.f32 %v4448, %v4608
      %v4610 = vpop.f32.mrb[0].mxu0
      %4611 = vmatprep.mubr.bf16.mxu0 %v3384
      %4612 = vmatmul.mubr.bf16.gmra.mrb[0].mxu0 %v3383
      %v4613 = vpop.f32.mrb[0].mxu0
      %v4614 = vadd.f32 %v4453, %v4613
      %v4615 = vpop.f32.mrb[0].mxu0
      %v4616 = vpop.f32.mrb[0].mxu0
      %v4617 = vadd.f32 %v4456, %v4616
      %v4618 = vpop.f32.mrb[0].mxu0
      %4619 = vmatprep.mubr.bf16.mxu0 %v3393
      %4620 = vmatmul.mubr.bf16.gmra.mrb[0].mxu0 %v3392
      %v4621 = vpop.f32.mrb[0].mxu0
      %v4622 = vadd.f32 %v4461, %v4621
      %v4623 = vpop.f32.mrb[0].mxu0
      %v4624 = vpop.f32.mrb[0].mxu0
      %v4625 = vadd.f32 %v4464, %v4624
      %v4626 = vpop.f32.mrb[0].mxu0
      %4627 = vmatprep.mubr.bf16.mxu0 %v3402
      %4628 = vmatmul.mubr.bf16.gmra.mrb[0].mxu0 %v3401
      %v4629 = vpop.f32.mrb[0].mxu0
      %v4630 = vadd.f32 %v4469, %v4629
      %v4631 = vpop.f32.mrb[0].mxu0
      %v4632 = vpop.f32.mrb[0].mxu0
      %v4633 = vadd.f32 %v4472, %v4632
      %v4634 = vpop.f32.mrb[0].mxu0
      %4635 = vmatprep.mubr.bf16.mxu0 %v3411
      %4636 = vmatmul.mubr.bf16.gmra.mrb[0].mxu0 %v3410
      %v4637 = vpop.f32.mrb[0].mxu0
      %v4638 = vadd.f32 %v4477, %v4637
      %v4639 = vpop.f32.mrb[0].mxu0
      %v4640 = vpop.f32.mrb[0].mxu0
      %v4641 = vadd.f32 %v4480, %v4640
      %v4642 = vpop.f32.mrb[0].mxu0
      %4643 = vmatprep.mubr.bf16.mxu0 %v3420
      %4644 = vmatmul.mubr.bf16.gmra.mrb[0].mxu0 %v3419
      %v4645 = vpop.f32.mrb[0].mxu0
      %v4646 = vadd.f32 %v4485, %v4645
      %v4647 = vpop.f32.mrb[0].mxu0
      %v4648 = vpop.f32.mrb[0].mxu0
      %v4649 = vadd.f32 %v4488, %v4648
      %v4650 = vpop.f32.mrb[0].mxu0
      %4651 = vmatprep.mubr.bf16.mxu0 %v3429
      %4652 = vmatmul.mubr.bf16.gmra.mrb[0].mxu0 %v3428
      %v4653 = vpop.f32.mrb[0].mxu0
      %v4654 = vadd.f32 %v4493, %v4653
      %v4655 = vpop.f32.mrb[0].mxu0
      %v4656 = vpop.f32.mrb[0].mxu0
      %v4657 = vadd.f32 %v4496, %v4656
      %v4658 = vpop.f32.mrb[0].mxu0
      %4659 = vmatprep.mubr.bf16.mxu0 %v3438
      %4660 = vmatmul.mubr.bf16.gmra.mrb[0].mxu0 %v3437
      %v4661 = vpop.f32.mrb[0].mxu0
      %v4662 = vadd.f32 %v4501, %v4661
      %v4663 = vpop.f32.mrb[0].mxu0
      %v4664 = vpop.f32.mrb[0].mxu0
      %v4665 = vadd.f32 %v4504, %v4664
      %v4666 = vpop.f32.mrb[0].mxu0
      %4667 = vmatprep.mubr.bf16.mxu0 %v3447
      %4668 = vmatmul.mubr.bf16.gmra.mrb[0].mxu0 %v3446
      %v4669 = vpop.f32.mrb[0].mxu0
      %v4670 = vadd.f32 %v4509, %v4669
      %v4671 = vpop.f32.mrb[0].mxu0
      %v4672 = vpop.f32.mrb[0].mxu0
      %v4673 = vadd.f32 %v4512, %v4672
      %v4674 = vpop.f32.mrb[0].mxu0
      %4675 = vdwg.mxu0
      %4676 = vmatprep.subr.bf16.mxu0 0
      %4677 = vmatpush1.bf16.msra.mxu0 %v3952
      %4678 = vmatprep.subr.bf16.mxu0 0
      %4679 = vmatpush1.bf16.msra.mxu0 %v3953
      %4680 = vmatprep.subr.bf16.mxu0 0
      %4681 = vmatpush1.bf16.msra.mxu0 %v3954
      %4682 = vmatprep.subr.bf16.mxu0 0
      %4683 = vmatpush1.bf16.msra.mxu0 %v3955
      %4684 = vmatprep.subr.bf16.mxu0 0
      %4685 = vmatpush1.bf16.msra.mxu0 %v3956
      %4686 = vmatprep.subr.bf16.mxu0 0
      %4687 = vmatpush1.bf16.msra.mxu0 %v3957
      %4688 = vmatprep.subr.bf16.mxu0 0
      %4689 = vmatpush1.bf16.msra.mxu0 %v3958
      %4690 = vmatprep.subr.bf16.mxu0 0
      %4691 = vmatpush1.bf16.msra.mxu0 %v3959
      %4692 = vmatprep.subr.bf16.mxu0 0
      %4693 = vmatpush1.bf16.msra.mxu0 0
      %4694 = vmatprep.subr.bf16.mxu0 0
      %4695 = vmatpush1.bf16.msra.mxu0 0
      %4696 = vmatprep.subr.bf16.mxu0 0
      %4697 = vmatpush1.bf16.msra.mxu0 0
      %4698 = vmatprep.subr.bf16.mxu0 0
      %4699 = vmatpush1.bf16.msra.mxu0 0
      %4700 = vmatprep.subr.bf16.mxu0 0
      %4701 = vmatpush1.bf16.msra.mxu0 0
      %4702 = vmatprep.subr.bf16.mxu0 0
      %4703 = vmatpush1.bf16.msra.mxu0 0
      %4704 = vmatprep.subr.bf16.mxu0 0
      %4705 = vmatpush1.bf16.msra.mxu0 0
      %4706 = vmatprep.subr.bf16.mxu0 0
      %4707 = vmatpush1.bf16.msra.mxu0 0
      %4708 = vmatprep.mubr.bf16.mxu0 0
      %4709 = vmatmul.mubr.bf16.gmra.mrb[0].mxu0 %v3313
      %v4710 = vpop.f32.mrb[0].mxu0
      %v4711 = vadd.f32 %v4550, %v4710
      %v4712 = vpop.f32.mrb[0].mxu0
      %v4713 = vpop.f32.mrb[0].mxu0
      %v4714 = vadd.f32 %v4553, %v4713
      %v4715 = vpop.f32.mrb[0].mxu0
      %4716 = vmatprep.mubr.bf16.mxu0 0
      %4717 = vmatmul.mubr.bf16.gmra.mrb[0].mxu0 %v3322
      %v4718 = vpop.f32.mrb[0].mxu0
      %v4719 = vadd.f32 %v4558, %v4718
      %v4720 = vpop.f32.mrb[0].mxu0
      %v4721 = vpop.f32.mrb[0].mxu0
      %v4722 = vadd.f32 %v4561, %v4721
      %v4723 = vpop.f32.mrb[0].mxu0
      %4724 = vmatprep.mubr.bf16.mxu0 0
      %4725 = vmatmul.mubr.bf16.gmra.mrb[0].mxu0 %v3331
      %v4726 = vpop.f32.mrb[0].mxu0
      %v4727 = vadd.f32 %v4566, %v4726
      %v4728 = vpop.f32.mrb[0].mxu0
      %v4729 = vpop.f32.mrb[0].mxu0
      %v4730 = vadd.f32 %v4569, %v4729
      %v4731 = vpop.f32.mrb[0].mxu0
      %4732 = vmatprep.mubr.bf16.mxu0 0
      %4733 = vmatmul.mubr.bf16.gmra.mrb[0].mxu0 %v3340
      %v4734 = vpop.f32.mrb[0].mxu0
      %v4735 = vadd.f32 %v4574, %v4734
      %v4736 = vpop.f32.mrb[0].mxu0
      %v4737 = vpop.f32.mrb[0].mxu0
      %v4738 = vadd.f32 %v4577, %v4737
      %v4739 = vpop.f32.mrb[0].mxu0
      %4740 = vmatprep.mubr.bf16.mxu0 0
      %4741 = vmatmul.mubr.bf16.gmra.mrb[0].mxu0 %v3349
      %v4742 = vpop.f32.mrb[0].mxu0
      %v4743 = vadd.f32 %v4582, %v4742
      %v4744 = vpop.f32.mrb[0].mxu0
      %v4745 = vpop.f32.mrb[0].mxu0
      %v4746 = vadd.f32 %v4585, %v4745
      %v4747 = vpop.f32.mrb[0].mxu0
      %4748 = vmatprep.mubr.bf16.mxu0 0
      %4749 = vmatmul.mubr.bf16.gmra.mrb[0].mxu0 %v3358
      %v4750 = vpop.f32.mrb[0].mxu0
      %v4751 = vadd.f32 %v4590, %v4750
      %v4752 = vpop.f32.mrb[0].mxu0
      %v4753 = vpop.f32.mrb[0].mxu0
      %v4754 = vadd.f32 %v4593, %v4753
      %v4755 = vpop.f32.mrb[0].mxu0
      %4756 = vmatprep.mubr.bf16.mxu0 0
      %4757 = vmatmul.mubr.bf16.gmra.mrb[0].mxu0 %v3367
      %v4758 = vpop.f32.mrb[0].mxu0
      %v4759 = vadd.f32 %v4598, %v4758
      %v4760 = vpop.f32.mrb[0].mxu0
      %v4761 = vpop.f32.mrb[0].mxu0
      %v4762 = vadd.f32 %v4601, %v4761
      %v4763 = vpop.f32.mrb[0].mxu0
      %4764 = vmatprep.mubr.bf16.mxu0 0
      %4765 = vmatmul.mubr.bf16.gmra.mrb[0].mxu0 %v3376
      %v4766 = vpop.f32.mrb[0].mxu0
      %v4767 = vadd.f32 %v4606, %v4766
      %v4768 = vpop.f32.mrb[0].mxu0
      %v4769 = vpop.f32.mrb[0].mxu0
      %v4770 = vadd.f32 %v4609, %v4769
      %v4771 = vpop.f32.mrb[0].mxu0
      %4772 = vmatprep.mubr.bf16.mxu0 0
      %4773 = vmatmul.mubr.bf16.gmra.mrb[0].mxu0 %v3385
      %v4774 = vpop.f32.mrb[0].mxu0
      %v4775 = vadd.f32 %v4614, %v4774
      %v4776 = vpop.f32.mrb[0].mxu0
      %v4777 = vpop.f32.mrb[0].mxu0
      %v4778 = vadd.f32 %v4617, %v4777
      %v4779 = vpop.f32.mrb[0].mxu0
      %4780 = vmatprep.mubr.bf16.mxu0 0
      %4781 = vmatmul.mubr.bf16.gmra.mrb[0].mxu0 %v3394
      %v4782 = vpop.f32.mrb[0].mxu0
      %v4783 = vadd.f32 %v4622, %v4782
      %v4784 = vpop.f32.mrb[0].mxu0
      %v4785 = vpop.f32.mrb[0].mxu0
      %v4786 = vadd.f32 %v4625, %v4785
      %v4787 = vpop.f32.mrb[0].mxu0
      %4788 = vmatprep.mubr.bf16.mxu0 0
      %4789 = vmatmul.mubr.bf16.gmra.mrb[0].mxu0 %v3403
      %v4790 = vpop.f32.mrb[0].mxu0
      %v4791 = vadd.f32 %v4630, %v4790
      %v4792 = vpop.f32.mrb[0].mxu0
      %v4793 = vpop.f32.mrb[0].mxu0
      %v4794 = vadd.f32 %v4633, %v4793
      %v4795 = vpop.f32.mrb[0].mxu0
      %4796 = vmatprep.mubr.bf16.mxu0 0
      %4797 = vmatmul.mubr.bf16.gmra.mrb[0].mxu0 %v3412
      %v4798 = vpop.f32.mrb[0].mxu0
      %v4799 = vadd.f32 %v4638, %v4798
      %v4800 = vpop.f32.mrb[0].mxu0
      %v4801 = vpop.f32.mrb[0].mxu0
      %v4802 = vadd.f32 %v4641, %v4801
      %v4803 = vpop.f32.mrb[0].mxu0
      %4804 = vmatprep.mubr.bf16.mxu0 0
      %4805 = vmatmul.mubr.bf16.gmra.mrb[0].mxu0 %v3421
      %v4806 = vpop.f32.mrb[0].mxu0
      %v4807 = vadd.f32 %v4646, %v4806
      %v4808 = vpop.f32.mrb[0].mxu0
      %v4809 = vpop.f32.mrb[0].mxu0
      %v4810 = vadd.f32 %v4649, %v4809
      %v4811 = vpop.f32.mrb[0].mxu0
      %4812 = vmatprep.mubr.bf16.mxu0 0
      %4813 = vmatmul.mubr.bf16.gmra.mrb[0].mxu0 %v3430
      %v4814 = vpop.f32.mrb[0].mxu0
      %v4815 = vadd.f32 %v4654, %v4814
      %v4816 = vpop.f32.mrb[0].mxu0
      %v4817 = vpop.f32.mrb[0].mxu0
      %v4818 = vadd.f32 %v4657, %v4817
      %v4819 = vpop.f32.mrb[0].mxu0
      %4820 = vmatprep.mubr.bf16.mxu0 0
      %4821 = vmatmul.mubr.bf16.gmra.mrb[0].mxu0 %v3439
      %v4822 = vpop.f32.mrb[0].mxu0
      %v4823 = vadd.f32 %v4662, %v4822
      %v4824 = vpop.f32.mrb[0].mxu0
      %v4825 = vpop.f32.mrb[0].mxu0
      %v4826 = vadd.f32 %v4665, %v4825
      %v4827 = vpop.f32.mrb[0].mxu0
      %4828 = vmatprep.mubr.bf16.mxu0 0
      %4829 = vmatmul.mubr.bf16.gmra.mrb[0].mxu0 %v3448
      %v4830 = vpop.f32.mrb[0].mxu0
      %v4831 = vadd.f32 %v4670, %v4830
      %v4832 = vpop.f32.mrb[0].mxu0
      %v4833 = vpop.f32.mrb[0].mxu0
      %v4834 = vadd.f32 %v4673, %v4833
      %v4835 = vpop.f32.mrb[0].mxu0
      %4836 = vdwg.mxu0
      %v4837 = vmax.f32 %v4711, 0.0
      %v4838 = vmax.f32 %v4714, 0.0
      %v4839 = vmax.f32 %v4719, 0.0
      %v4840 = vmax.f32 %v4722, 0.0
      %v4841 = vmax.f32 %v4727, 0.0
      %v4842 = vmax.f32 %v4730, 0.0
      %v4843 = vmax.f32 %v4735, 0.0
      %v4844 = vmax.f32 %v4738, 0.0
      %v4845 = vmax.f32 %v4743, 0.0
      %v4846 = vmax.f32 %v4746, 0.0
      %v4847 = vmax.f32 %v4751, 0.0
      %v4848 = vmax.f32 %v4754, 0.0
      %v4849 = vmax.f32 %v4759, 0.0
      %v4850 = vmax.f32 %v4762, 0.0
      %v4851 = vmax.f32 %v4767, 0.0
      %v4852 = vmax.f32 %v4770, 0.0
      %v4853 = vmax.f32 %v4775, 0.0
      %v4854 = vmax.f32 %v4778, 0.0
      %v4855 = vmax.f32 %v4783, 0.0
      %v4856 = vmax.f32 %v4786, 0.0
      %v4857 = vmax.f32 %v4791, 0.0
      %v4858 = vmax.f32 %v4794, 0.0
      %v4859 = vmax.f32 %v4799, 0.0
      %v4860 = vmax.f32 %v4802, 0.0
      %v4861 = vmax.f32 %v4807, 0.0
      %v4862 = vmax.f32 %v4810, 0.0
      %v4863 = vmax.f32 %v4815, 0.0
      %v4864 = vmax.f32 %v4818, 0.0
      %v4865 = vmax.f32 %v4823, 0.0
      %v4866 = vmax.f32 %v4826, 0.0
      %v4867 = vmax.f32 %v4831, 0.0
      %v4868 = vmax.f32 %v4834, 0.0
      %v4869 = vld [vmem:[%s9] sm:$0xff]
      %v4870 = vld [vmem:[%s9 + $0x8] sm:$0xff]
      %v4871 = vld [vmem:[%s9 + $0x10] sm:$0xff]
      %v4872 = vld [vmem:[%s9 + $0x18] sm:$0xff]
      %v4873 = vld [vmem:[%s9 + $0x20] sm:$0xff]
      %v4874 = vld [vmem:[%s9 + $0x28] sm:$0xff]
      %v4875 = vld [vmem:[%s9 + $0x30] sm:$0xff]
      %v4876 = vld [vmem:[%s9 + $0x38] sm:$0xff]
      %v4877 = vld [vmem:[%s9 + $0x40] sm:$0xff]
      %v4878 = vld [vmem:[%s9 + $0x48] sm:$0xff]
      %v4879 = vld [vmem:[%s9 + $0x50] sm:$0xff]
      %v4880 = vld [vmem:[%s9 + $0x58] sm:$0xff]
      %v4881 = vld [vmem:[%s9 + $0x60] sm:$0xff]
      %v4882 = vld [vmem:[%s9 + $0x68] sm:$0xff]
      %v4883 = vld [vmem:[%s9 + $0x70] sm:$0xff]
      %v4884 = vld [vmem:[%s9 + $0x78] sm:$0xff]
      %v4885 = vld [vmem:[%s9 + $0x80] sm:$0xff]
      %v4886 = vld [vmem:[%s9 + $0x88] sm:$0xff]
      %v4887 = vld [vmem:[%s9 + $0x90] sm:$0xff]
      %v4888 = vld [vmem:[%s9 + $0x98] sm:$0xff]
      %v4889 = vld [vmem:[%s9 + $0xa0] sm:$0xff]
      %v4890 = vld [vmem:[%s9 + $0xa8] sm:$0xff]
      %v4891 = vld [vmem:[%s9 + $0xb0] sm:$0xff]
      %v4892 = vld [vmem:[%s9 + $0xb8] sm:$0xff]
      %v4893 = vld [vmem:[%s9 + $0xc0] sm:$0xff]
      %v4894 = vld [vmem:[%s9 + $0xc8] sm:$0xff]
      %v4895 = vld [vmem:[%s9 + $0xd0] sm:$0xff]
      %v4896 = vld [vmem:[%s9 + $0xd8] sm:$0xff]
      %v4897 = vld [vmem:[%s9 + $0xe0] sm:$0xff]
      %v4898 = vld [vmem:[%s9 + $0xe8] sm:$0xff]
      %v4899 = vld [vmem:[%s9 + $0xf0] sm:$0xff]
      %v4900 = vld [vmem:[%s9 + $0xf8] sm:$0xff]
      %v4901 = vpack.c.bf16 %v4838, %v4837
      %v4902 = vpack.c.bf16 %v4840, %v4839
      %v4903 = vpack.c.bf16 %v4842, %v4841
      %v4904 = vpack.c.bf16 %v4844, %v4843
      %v4905 = vpack.c.bf16 %v4846, %v4845
      %v4906 = vpack.c.bf16 %v4848, %v4847
      %v4907 = vpack.c.bf16 %v4850, %v4849
      %v4908 = vpack.c.bf16 %v4852, %v4851
      %v4909 = vpack.c.bf16 %v4854, %v4853
      %v4910 = vpack.c.bf16 %v4856, %v4855
      %v4911 = vpack.c.bf16 %v4858, %v4857
      %v4912 = vpack.c.bf16 %v4860, %v4859
      %v4913 = vpack.c.bf16 %v4862, %v4861
      %v4914 = vpack.c.bf16 %v4864, %v4863
      %v4915 = vpack.c.bf16 %v4866, %v4865
      %v4916 = vpack.c.bf16 %v4868, %v4867
      %v4949 = vunpack.c.l.b16 %v4869
      %v4950 = vunpack.c.h.b16 %v4869
      %v4951 = vunpack.c.l.b16 %v4870
      %v4952 = vunpack.c.h.b16 %v4870
      %v4953 = vunpack.c.l.b16 %v4871
      %v4954 = vunpack.c.h.b16 %v4871
      %v4955 = vunpack.c.l.b16 %v4872
      %v4956 = vunpack.c.h.b16 %v4872
      %v4957 = vunpack.c.l.b16 %v4873
      %v4958 = vunpack.c.h.b16 %v4873
      %v4959 = vunpack.c.l.b16 %v4874
      %v4960 = vunpack.c.h.b16 %v4874
      %v4961 = vunpack.c.l.b16 %v4875
      %v4962 = vunpack.c.h.b16 %v4875
      %v4963 = vunpack.c.l.b16 %v4876
      %v4964 = vunpack.c.h.b16 %v4876
      %v4965 = vunpack.c.l.b16 %v4877
      %v4966 = vunpack.c.h.b16 %v4877
      %v4967 = vunpack.c.l.b16 %v4878
      %v4968 = vunpack.c.h.b16 %v4878
      %v4969 = vunpack.c.l.b16 %v4879
      %v4970 = vunpack.c.h.b16 %v4879
      %v4971 = vunpack.c.l.b16 %v4880
      %v4972 = vunpack.c.h.b16 %v4880
      %v4973 = vunpack.c.l.b16 %v4881
      %v4974 = vunpack.c.h.b16 %v4881
      %v4975 = vunpack.c.l.b16 %v4882
      %v4976 = vunpack.c.h.b16 %v4882
      %v4977 = vunpack.c.l.b16 %v4883
      %v4978 = vunpack.c.h.b16 %v4883
      %v4979 = vunpack.c.l.b16 %v4884
      %v4980 = vunpack.c.h.b16 %v4884
      %v4981 = vunpack.c.l.b16 %v4885
      %v4982 = vunpack.c.h.b16 %v4885
      %v4983 = vunpack.c.l.b16 %v4886
      %v4984 = vunpack.c.h.b16 %v4886
      %v4985 = vunpack.c.l.b16 %v4887
      %v4986 = vunpack.c.h.b16 %v4887
      %v4987 = vunpack.c.l.b16 %v4888
      %v4988 = vunpack.c.h.b16 %v4888
      %v4989 = vunpack.c.l.b16 %v4889
      %v4990 = vunpack.c.h.b16 %v4889
      %v4991 = vunpack.c.l.b16 %v4890
      %v4992 = vunpack.c.h.b16 %v4890
      %v4993 = vunpack.c.l.b16 %v4891
      %v4994 = vunpack.c.h.b16 %v4891
      %v4995 = vunpack.c.l.b16 %v4892
      %v4996 = vunpack.c.h.b16 %v4892
      %v4997 = vunpack.c.l.b16 %v4893
      %v4998 = vunpack.c.h.b16 %v4893
      %v4999 = vunpack.c.l.b16 %v4894
      %v5000 = vunpack.c.h.b16 %v4894
      %v5001 = vunpack.c.l.b16 %v4895
      %v5002 = vunpack.c.h.b16 %v4895
      %v5003 = vunpack.c.l.b16 %v4896
      %v5004 = vunpack.c.h.b16 %v4896
      %v5005 = vunpack.c.l.b16 %v4897
      %v5006 = vunpack.c.h.b16 %v4897
      %v5007 = vunpack.c.l.b16 %v4898
      %v5008 = vunpack.c.h.b16 %v4898
      %v5009 = vunpack.c.l.b16 %v4899
      %v5010 = vunpack.c.h.b16 %v4899
      %v5011 = vunpack.c.l.b16 %v4900
      %v5012 = vunpack.c.h.b16 %v4900
      %v5013 = vpack.c.b16 %v4951, %v4949
      %v5014 = vpack.c.b16 %v4952, %v4950
      %v5015 = vpack.c.b16 %v4955, %v4953
      %v5016 = vpack.c.b16 %v4956, %v4954
      %v5017 = vpack.c.b16 %v4959, %v4957
      %v5018 = vpack.c.b16 %v4960, %v4958
      %v5019 = vpack.c.b16 %v4963, %v4961
      %v5020 = vpack.c.b16 %v4964, %v4962
      %v5021 = vpack.c.b16 %v4967, %v4965
      %v5022 = vpack.c.b16 %v4968, %v4966
      %v5023 = vpack.c.b16 %v4971, %v4969
      %v5024 = vpack.c.b16 %v4972, %v4970
      %v5025 = vpack.c.b16 %v4975, %v4973
      %v5026 = vpack.c.b16 %v4976, %v4974
      %v5027 = vpack.c.b16 %v4979, %v4977
      %v5028 = vpack.c.b16 %v4980, %v4978
      %v5029 = vpack.c.b16 %v4983, %v4981
      %v5030 = vpack.c.b16 %v4984, %v4982
      %v5031 = vpack.c.b16 %v4987, %v4985
      %v5032 = vpack.c.b16 %v4988, %v4986
      %v5033 = vpack.c.b16 %v4991, %v4989
      %v5034 = vpack.c.b16 %v4992, %v4990
      %v5035 = vpack.c.b16 %v4995, %v4993
      %v5036 = vpack.c.b16 %v4996, %v4994
      %v5037 = vpack.c.b16 %v4999, %v4997
      %v5038 = vpack.c.b16 %v5000, %v4998
      %v5039 = vpack.c.b16 %v5003, %v5001
      %v5040 = vpack.c.b16 %v5004, %v5002
      %v5041 = vpack.c.b16 %v5007, %v5005
      %v5042 = vpack.c.b16 %v5008, %v5006
      %v5043 = vpack.c.b16 %v5011, %v5009
      %v5044 = vpack.c.b16 %v5012, %v5010
      %5077 = vmatprep.subr.bf16.mxu0 0
      %5078 = vmatpush1.bf16.msra.mxu0 %v4901
      %5079 = vmatprep.subr.bf16.mxu0 0
      %5080 = vmatpush1.bf16.msra.mxu0 %v4902
      %5081 = vmatprep.subr.bf16.mxu0 0
      %5082 = vmatpush1.bf16.msra.mxu0 %v4903
      %5083 = vmatprep.subr.bf16.mxu0 0
      %5084 = vmatpush1.bf16.msra.mxu0 %v4904
      %5085 = vmatprep.subr.bf16.mxu0 0
      %5086 = vmatpush1.bf16.msra.mxu0 %v4905
      %5087 = vmatprep.subr.bf16.mxu0 0
      %5088 = vmatpush1.bf16.msra.mxu0 %v4906
      %5089 = vmatprep.subr.bf16.mxu0 0
      %5090 = vmatpush1.bf16.msra.mxu0 %v4907
      %5091 = vmatprep.subr.bf16.mxu0 0
      %5092 = vmatpush1.bf16.msra.mxu0 %v4908
      %5093 = vmatprep.subr.bf16.mxu0 0
      %5094 = vmatpush1.bf16.msra.mxu0 %v4909
      %5095 = vmatprep.subr.bf16.mxu0 0
      %5096 = vmatpush1.bf16.msra.mxu0 %v4910
      %5097 = vmatprep.subr.bf16.mxu0 0
      %5098 = vmatpush1.bf16.msra.mxu0 %v4911
      %5099 = vmatprep.subr.bf16.mxu0 0
      %5100 = vmatpush1.bf16.msra.mxu0 %v4912
      %5101 = vmatprep.subr.bf16.mxu0 0
      %5102 = vmatpush1.bf16.msra.mxu0 %v4913
      %5103 = vmatprep.subr.bf16.mxu0 0
      %5104 = vmatpush1.bf16.msra.mxu0 %v4914
      %5105 = vmatprep.subr.bf16.mxu0 0
      %5106 = vmatpush1.bf16.msra.mxu0 %v4915
      %5107 = vmatprep.subr.bf16.mxu0 0
      %5108 = vmatpush1.bf16.msra.mxu0 %v4916
      %5109 = vmatprep.mubr.bf16.mxu0 %v5014
      %5110 = vmatmul.mubr.bf16.gmra.mrb[0].mxu0 %v5013
      %v5111 = vpop.f32.mrb[0].mxu0
      %v5112 = vadd.f32 0.0, %v5111
      %v5113 = vpop.f32.mrb[0].mxu0
      %v5114 = vpop.f32.mrb[0].mxu0
      %v5115 = vadd.f32 0.0, %v5114
      %v5116 = vpop.f32.mrb[0].mxu0
      %5117 = vmatprep.mubr.bf16.mxu0 %v5016
      %5118 = vmatmul.mubr.bf16.gmra.mrb[0].mxu0 %v5015
      %v5119 = vpop.f32.mrb[0].mxu0
      %v5120 = vadd.f32 0.0, %v5119
      %v5121 = vpop.f32.mrb[0].mxu0
      %v5122 = vpop.f32.mrb[0].mxu0
      %v5123 = vadd.f32 0.0, %v5122
      %v5124 = vpop.f32.mrb[0].mxu0
      %5125 = vmatprep.mubr.bf16.mxu0 %v5018
      %5126 = vmatmul.mubr.bf16.gmra.mrb[0].mxu0 %v5017
      %v5127 = vpop.f32.mrb[0].mxu0
      %v5128 = vadd.f32 0.0, %v5127
      %v5129 = vpop.f32.mrb[0].mxu0
      %v5130 = vpop.f32.mrb[0].mxu0
      %v5131 = vadd.f32 0.0, %v5130
      %v5132 = vpop.f32.mrb[0].mxu0
      %5133 = vmatprep.mubr.bf16.mxu0 %v5020
      %5134 = vmatmul.mubr.bf16.gmra.mrb[0].mxu0 %v5019
      %v5135 = vpop.f32.mrb[0].mxu0
      %v5136 = vadd.f32 0.0, %v5135
      %v5137 = vpop.f32.mrb[0].mxu0
      %v5138 = vpop.f32.mrb[0].mxu0
      %v5139 = vadd.f32 0.0, %v5138
      %v5140 = vpop.f32.mrb[0].mxu0
      %5141 = vmatprep.mubr.bf16.mxu0 %v5022
      %5142 = vmatmul.mubr.bf16.gmra.mrb[0].mxu0 %v5021
      %v5143 = vpop.f32.mrb[0].mxu0
      %v5144 = vadd.f32 0.0, %v5143
      %v5145 = vpop.f32.mrb[0].mxu0
      %v5146 = vpop.f32.mrb[0].mxu0
      %v5147 = vadd.f32 0.0, %v5146
      %v5148 = vpop.f32.mrb[0].mxu0
      %5149 = vmatprep.mubr.bf16.mxu0 %v5024
      %5150 = vmatmul.mubr.bf16.gmra.mrb[0].mxu0 %v5023
      %v5151 = vpop.f32.mrb[0].mxu0
      %v5152 = vadd.f32 0.0, %v5151
      %v5153 = vpop.f32.mrb[0].mxu0
      %v5154 = vpop.f32.mrb[0].mxu0
      %v5155 = vadd.f32 0.0, %v5154
      %v5156 = vpop.f32.mrb[0].mxu0
      %5157 = vmatprep.mubr.bf16.mxu0 %v5026
      %5158 = vmatmul.mubr.bf16.gmra.mrb[0].mxu0 %v5025
      %v5159 = vpop.f32.mrb[0].mxu0
      %v5160 = vadd.f32 0.0, %v5159
      %v5161 = vpop.f32.mrb[0].mxu0
      %v5162 = vpop.f32.mrb[0].mxu0
      %v5163 = vadd.f32 0.0, %v5162
      %v5164 = vpop.f32.mrb[0].mxu0
      %5165 = vmatprep.mubr.bf16.mxu0 %v5028
      %5166 = vmatmul.mubr.bf16.gmra.mrb[0].mxu0 %v5027
      %v5167 = vpop.f32.mrb[0].mxu0
      %v5168 = vadd.f32 0.0, %v5167
      %v5169 = vpop.f32.mrb[0].mxu0
      %v5170 = vpop.f32.mrb[0].mxu0
      %v5171 = vadd.f32 0.0, %v5170
      %v5172 = vpop.f32.mrb[0].mxu0
      %5173 = vmatprep.mubr.bf16.mxu0 %v5030
      %5174 = vmatmul.mubr.bf16.gmra.mrb[0].mxu0 %v5029
      %v5175 = vpop.f32.mrb[0].mxu0
      %v5176 = vadd.f32 0.0, %v5175
      %v5177 = vpop.f32.mrb[0].mxu0
      %v5178 = vpop.f32.mrb[0].mxu0
      %v5179 = vadd.f32 0.0, %v5178
      %v5180 = vpop.f32.mrb[0].mxu0
      %5181 = vmatprep.mubr.bf16.mxu0 %v5032
      %5182 = vmatmul.mubr.bf16.gmra.mrb[0].mxu0 %v5031
      %v5183 = vpop.f32.mrb[0].mxu0
      %v5184 = vadd.f32 0.0, %v5183
      %v5185 = vpop.f32.mrb[0].mxu0
      %v5186 = vpop.f32.mrb[0].mxu0
      %v5187 = vadd.f32 0.0, %v5186
      %v5188 = vpop.f32.mrb[0].mxu0
      %5189 = vmatprep.mubr.bf16.mxu0 %v5034
      %5190 = vmatmul.mubr.bf16.gmra.mrb[0].mxu0 %v5033
      %v5191 = vpop.f32.mrb[0].mxu0
      %v5192 = vadd.f32 0.0, %v5191
      %v5193 = vpop.f32.mrb[0].mxu0
      %v5194 = vpop.f32.mrb[0].mxu0
      %v5195 = vadd.f32 0.0, %v5194
      %v5196 = vpop.f32.mrb[0].mxu0
      %5197 = vmatprep.mubr.bf16.mxu0 %v5036
      %5198 = vmatmul.mubr.bf16.gmra.mrb[0].mxu0 %v5035
      %v5199 = vpop.f32.mrb[0].mxu0
      %v5200 = vadd.f32 0.0, %v5199
      %v5201 = vpop.f32.mrb[0].mxu0
      %v5202 = vpop.f32.mrb[0].mxu0
      %v5203 = vadd.f32 0.0, %v5202
      %v5204 = vpop.f32.mrb[0].mxu0
      %5205 = vmatprep.mubr.bf16.mxu0 %v5038
      %5206 = vmatmul.mubr.bf16.gmra.mrb[0].mxu0 %v5037
      %v5207 = vpop.f32.mrb[0].mxu0
      %v5208 = vadd.f32 0.0, %v5207
      %v5209 = vpop.f32.mrb[0].mxu0
      %v5210 = vpop.f32.mrb[0].mxu0
      %v5211 = vadd.f32 0.0, %v5210
      %v5212 = vpop.f32.mrb[0].mxu0
      %5213 = vmatprep.mubr.bf16.mxu0 %v5040
      %5214 = vmatmul.mubr.bf16.gmra.mrb[0].mxu0 %v5039
      %v5215 = vpop.f32.mrb[0].mxu0
      %v5216 = vadd.f32 0.0, %v5215
      %v5217 = vpop.f32.mrb[0].mxu0
      %v5218 = vpop.f32.mrb[0].mxu0
      %v5219 = vadd.f32 0.0, %v5218
      %v5220 = vpop.f32.mrb[0].mxu0
      %5221 = vmatprep.mubr.bf16.mxu0 %v5042
      %5222 = vmatmul.mubr.bf16.gmra.mrb[0].mxu0 %v5041
      %v5223 = vpop.f32.mrb[0].mxu0
      %v5224 = vadd.f32 0.0, %v5223
      %v5225 = vpop.f32.mrb[0].mxu0
      %v5226 = vpop.f32.mrb[0].mxu0
      %v5227 = vadd.f32 0.0, %v5226
      %v5228 = vpop.f32.mrb[0].mxu0
      %5229 = vmatprep.mubr.bf16.mxu0 %v5044
      %5230 = vmatmul.mubr.bf16.gmra.mrb[0].mxu0 %v5043
      %v5231 = vpop.f32.mrb[0].mxu0
      %v5232 = vadd.f32 0.0, %v5231
      %v5233 = vpop.f32.mrb[0].mxu0
      %v5234 = vpop.f32.mrb[0].mxu0
      %v5235 = vadd.f32 0.0, %v5234
      %v5236 = vpop.f32.mrb[0].mxu0
      %5237 = vdwg.mxu0
      %v5238 = vmax.f32 %v5112, %v5144
      %v5239 = vmax.f32 %v5238, %v5176
      %v5240 = vmax.f32 %v5239, %v5208
      %v5241 = vmax.f32 %v5115, %v5147
      %v5242 = vmax.f32 %v5241, %v5179
      %v5243 = vmax.f32 %v5242, %v5211
      %v5244 = vmax.f32 %v5120, %v5152
      %v5245 = vmax.f32 %v5244, %v5184
      %v5246 = vmax.f32 %v5245, %v5216
      %v5247 = vmax.f32 %v5123, %v5155
      %v5248 = vmax.f32 %v5247, %v5187
      %v5249 = vmax.f32 %v5248, %v5219
      %v5250 = vmax.f32 %v5128, %v5160
      %v5251 = vmax.f32 %v5250, %v5192
      %v5252 = vmax.f32 %v5251, %v5224
      %v5253 = vmax.f32 %v5131, %v5163
      %v5254 = vmax.f32 %v5253, %v5195
      %v5255 = vmax.f32 %v5254, %v5227
      %v5256 = vmax.f32 %v5136, %v5168
      %v5257 = vmax.f32 %v5256, %v5200
      %v5258 = vmax.f32 %v5257, %v5232
      %v5259 = vmax.f32 %v5139, %v5171
      %v5260 = vmax.f32 %v5259, %v5203
      %v5261 = vmax.f32 %v5260, %v5235
      %s5262 = scalar_lea.vmem [#allocation3], 24
      %5263 = vst [vmem:[%s5262 + $0x8] sm:$0xff] %v5240
      %5264 = vst [vmem:[%s5262 + $0x20] sm:$0xff] %v5243
      %5265 = vst [vmem:[%s5262 + $0x38] sm:$0xff] %v5246
      %5266 = vst [vmem:[%s5262 + $0x50] sm:$0xff] %v5249
      %5267 = vst [vmem:[%s5262 + $0x68] sm:$0xff] %v5252
      %5268 = vst [vmem:[%s5262 + $0x80] sm:$0xff] %v5255
      %5269 = vst [vmem:[%s5262 + $0x98] sm:$0xff] %v5258
      %5270 = vst [vmem:[%s5262 + $0xb0] sm:$0xff] %v5261
      %v5271 = vld [vmem:[#allocation3 + $0x7] sm:$0xff]
      %v5272 = vld [vmem:[#allocation3 + $0x1f] sm:$0xff]
      %v5273 = vld [vmem:[#allocation3 + $0x37] sm:$0xff]
      %v5274 = vld [vmem:[#allocation3 + $0x4f] sm:$0xff]
      %v5275 = vld [vmem:[#allocation3 + $0x67] sm:$0xff]
      %v5276 = vld [vmem:[#allocation3 + $0x7f] sm:$0xff]
      %v5277 = vld [vmem:[#allocation3 + $0x97] sm:$0xff]
      %v5278 = vld [vmem:[#allocation3 + $0xaf] sm:$0xff]
      %v5279 = vpack.c.bf16 %v5272, %v5271
      %v5280 = vpack.c.bf16 %v5274, %v5273
      %v5281 = vpack.c.bf16 %v5276, %v5275
      %v5282 = vpack.c.bf16 %v5278, %v5277
      %5283 = vst [vmem:[#allocation4] sm:$0xff] %v5279
      %5284 = vst [vmem:[#allocation4 + $0x48] sm:$0xff] %v5280
      %5285 = vst [vmem:[#allocation4 + $0x90] sm:$0xff] %v5281
      %5286 = vst [vmem:[#allocation4 + $0xd8] sm:$0xff] %v5282
      %v5287 = vld [vmem:[#allocation3 + $0x8] sm:$0xff]
      %v5288 = vld [vmem:[#allocation3 + $0x20] sm:$0xff]
      %v5289 = vld [vmem:[#allocation3 + $0x38] sm:$0xff]
      %v5290 = vld [vmem:[#allocation3 + $0x50] sm:$0xff]
      %v5291 = vld [vmem:[#allocation3 + $0x68] sm:$0xff]
      %v5292 = vld [vmem:[#allocation3 + $0x80] sm:$0xff]
      %v5293 = vld [vmem:[#allocation3 + $0x98] sm:$0xff]
      %v5294 = vld [vmem:[#allocation3 + $0xb0] sm:$0xff]
      %v5295 = vpack.c.bf16 %v5288, %v5287
      %v5296 = vpack.c.bf16 %v5290, %v5289
      %v5297 = vpack.c.bf16 %v5292, %v5291
      %v5298 = vpack.c.bf16 %v5294, %v5293
      %5299 = vst [vmem:[#allocation4 + $0x8] sm:$0xff] %v5295
      %5300 = vst [vmem:[#allocation4 + $0x50] sm:$0xff] %v5296
      %5301 = vst [vmem:[#allocation4 + $0x98] sm:$0xff] %v5297
      %5302 = vst [vmem:[#allocation4 + $0xe0] sm:$0xff] %v5298
      %v5303 = vld [vmem:[#allocation3 + $0x9] sm:$0xff]
      %v5304 = vld [vmem:[#allocation3 + $0x21] sm:$0xff]
      %v5305 = vld [vmem:[#allocation3 + $0x39] sm:$0xff]
      %v5306 = vld [vmem:[#allocation3 + $0x51] sm:$0xff]
      %v5307 = vld [vmem:[#allocation3 + $0x69] sm:$0xff]
      %v5308 = vld [vmem:[#allocation3 + $0x81] sm:$0xff]
      %v5309 = vld [vmem:[#allocation3 + $0x99] sm:$0xff]
      %v5310 = vld [vmem:[#allocation3 + $0xb1] sm:$0xff]
      %v5311 = vpack.c.bf16 %v5304, %v5303
      %v5312 = vpack.c.bf16 %v5306, %v5305
      %v5313 = vpack.c.bf16 %v5308, %v5307
      %v5314 = vpack.c.bf16 %v5310, %v5309
      %5315 = vst [vmem:[#allocation4 + $0x10] sm:$0xff] %v5311
      %5316 = vst [vmem:[#allocation4 + $0x58] sm:$0xff] %v5312
      %5317 = vst [vmem:[#allocation4 + $0xa0] sm:$0xff] %v5313
      %5318 = vst [vmem:[#allocation4 + $0xe8] sm:$0xff] %v5314
      %v5319 = vld [vmem:[%s5262 + $0x7] sm:$0xff]
      %v5320 = vld [vmem:[%s5262 + $0x1f] sm:$0xff]
      %v5321 = vld [vmem:[%s5262 + $0x37] sm:$0xff]
      %v5322 = vld [vmem:[%s5262 + $0x4f] sm:$0xff]
      %v5323 = vld [vmem:[%s5262 + $0x67] sm:$0xff]
      %v5324 = vld [vmem:[%s5262 + $0x7f] sm:$0xff]
      %v5325 = vld [vmem:[%s5262 + $0x97] sm:$0xff]
      %v5326 = vld [vmem:[%s5262 + $0xaf] sm:$0xff]
      %v5327 = vpack.c.bf16 %v5320, %v5319
      %v5328 = vpack.c.bf16 %v5322, %v5321
      %v5329 = vpack.c.bf16 %v5324, %v5323
      %v5330 = vpack.c.bf16 %v5326, %v5325
      %5331 = vst [vmem:[#allocation4 + $0x18] sm:$0xff] %v5327
      %5332 = vst [vmem:[#allocation4 + $0x60] sm:$0xff] %v5328
      %5333 = vst [vmem:[#allocation4 + $0xa8] sm:$0xff] %v5329
      %5334 = vst [vmem:[#allocation4 + $0xf0] sm:$0xff] %v5330
      %v5335 = vld [vmem:[%s5262 + $0x8] sm:$0xff]
      %v5336 = vld [vmem:[%s5262 + $0x20] sm:$0xff]
      %v5337 = vld [vmem:[%s5262 + $0x38] sm:$0xff]
      %v5338 = vld [vmem:[%s5262 + $0x50] sm:$0xff]
      %v5339 = vld [vmem:[%s5262 + $0x68] sm:$0xff]
      %v5340 = vld [vmem:[%s5262 + $0x80] sm:$0xff]
      %v5341 = vld [vmem:[%s5262 + $0x98] sm:$0xff]
      %v5342 = vld [vmem:[%s5262 + $0xb0] sm:$0xff]
      %v5343 = vpack.c.bf16 %v5336, %v5335
      %v5344 = vpack.c.bf16 %v5338, %v5337
      %v5345 = vpack.c.bf16 %v5340, %v5339
      %v5346 = vpack.c.bf16 %v5342, %v5341
      %5347 = vst [vmem:[#allocation4 + $0x20] sm:$0xff] %v5343
      %5348 = vst [vmem:[#allocation4 + $0x68] sm:$0xff] %v5344
      %5349 = vst [vmem:[#allocation4 + $0xb0] sm:$0xff] %v5345
      %5350 = vst [vmem:[#allocation4 + $0xf8] sm:$0xff] %v5346
      %v5351 = vld [vmem:[%s5262 + $0x9] sm:$0xff]
      %v5352 = vld [vmem:[%s5262 + $0x21] sm:$0xff]
      %v5353 = vld [vmem:[%s5262 + $0x39] sm:$0xff]
      %v5354 = vld [vmem:[%s5262 + $0x51] sm:$0xff]
      %v5355 = vld [vmem:[%s5262 + $0x69] sm:$0xff]
      %v5356 = vld [vmem:[%s5262 + $0x81] sm:$0xff]
      %v5357 = vld [vmem:[%s5262 + $0x99] sm:$0xff]
      %v5358 = vld [vmem:[%s5262 + $0xb1] sm:$0xff]
      %v5359 = vpack.c.bf16 %v5352, %v5351
      %v5360 = vpack.c.bf16 %v5354, %v5353
      %v5361 = vpack.c.bf16 %v5356, %v5355
      %v5362 = vpack.c.bf16 %v5358, %v5357
      %5363 = vst [vmem:[#allocation4 + $0x28] sm:$0xff] %v5359
      %5364 = vst [vmem:[#allocation4 + $0x70] sm:$0xff] %v5360
      %5365 = vst [vmem:[#allocation4 + $0xb8] sm:$0xff] %v5361
      %5366 = vst [vmem:[#allocation4 + $0x100] sm:$0xff] %v5362
      %s5367 = scalar_lea.vmem [#allocation3], 48
      %v5368 = vld [vmem:[%s5367 + $0x7] sm:$0xff]
      %v5369 = vld [vmem:[%s5367 + $0x1f] sm:$0xff]
      %v5370 = vld [vmem:[%s5367 + $0x37] sm:$0xff]
      %v5371 = vld [vmem:[%s5367 + $0x4f] sm:$0xff]
      %v5372 = vld [vmem:[%s5367 + $0x67] sm:$0xff]
      %v5373 = vld [vmem:[%s5367 + $0x7f] sm:$0xff]
      %v5374 = vld [vmem:[%s5367 + $0x97] sm:$0xff]
      %v5375 = vld [vmem:[%s5367 + $0xaf] sm:$0xff]
      %v5376 = vpack.c.bf16 %v5369, %v5368
      %v5377 = vpack.c.bf16 %v5371, %v5370
      %v5378 = vpack.c.bf16 %v5373, %v5372
      %v5379 = vpack.c.bf16 %v5375, %v5374
      %5380 = vst [vmem:[#allocation4 + $0x30] sm:$0xff] %v5376
      %5381 = vst [vmem:[#allocation4 + $0x78] sm:$0xff] %v5377
      %5382 = vst [vmem:[#allocation4 + $0xc0] sm:$0xff] %v5378
      %5383 = vst [vmem:[#allocation4 + $0x108] sm:$0xff] %v5379
      %v5384 = vld [vmem:[%s5367 + $0x8] sm:$0xff]
      %v5385 = vld [vmem:[%s5367 + $0x20] sm:$0xff]
      %v5386 = vld [vmem:[%s5367 + $0x38] sm:$0xff]
      %v5387 = vld [vmem:[%s5367 + $0x50] sm:$0xff]
      %v5388 = vld [vmem:[%s5367 + $0x68] sm:$0xff]
      %v5389 = vld [vmem:[%s5367 + $0x80] sm:$0xff]
      %v5390 = vld [vmem:[%s5367 + $0x98] sm:$0xff]
      %v5391 = vld [vmem:[%s5367 + $0xb0] sm:$0xff]
      %v5392 = vpack.c.bf16 %v5385, %v5384
      %v5393 = vpack.c.bf16 %v5387, %v5386
      %v5394 = vpack.c.bf16 %v5389, %v5388
      %v5395 = vpack.c.bf16 %v5391, %v5390
      %5396 = vst [vmem:[#allocation4 + $0x38] sm:$0xff] %v5392
      %5397 = vst [vmem:[#allocation4 + $0x80] sm:$0xff] %v5393
      %5398 = vst [vmem:[#allocation4 + $0xc8] sm:$0xff] %v5394
      %5399 = vst [vmem:[#allocation4 + $0x110] sm:$0xff] %v5395
      %v5400 = vld [vmem:[%s5367 + $0x9] sm:$0xff]
      %v5401 = vld [vmem:[%s5367 + $0x21] sm:$0xff]
      %v5402 = vld [vmem:[%s5367 + $0x39] sm:$0xff]
      %v5403 = vld [vmem:[%s5367 + $0x51] sm:$0xff]
      %v5404 = vld [vmem:[%s5367 + $0x69] sm:$0xff]
      %v5405 = vld [vmem:[%s5367 + $0x81] sm:$0xff]
      %v5406 = vld [vmem:[%s5367 + $0x99] sm:$0xff]
      %v5407 = vld [vmem:[%s5367 + $0xb1] sm:$0xff]
      %v5408 = vpack.c.bf16 %v5401, %v5400
      %v5409 = vpack.c.bf16 %v5403, %v5402
      %v5410 = vpack.c.bf16 %v5405, %v5404
      %v5411 = vpack.c.bf16 %v5407, %v5406
      %5412 = vst [vmem:[#allocation4 + $0x40] sm:$0xff] %v5408
      %5413 = vst [vmem:[#allocation4 + $0x88] sm:$0xff] %v5409
      %5414 = vst [vmem:[#allocation4 + $0xd0] sm:$0xff] %v5410
      %5415 = vst [vmem:[#allocation4 + $0x118] sm:$0xff] %v5411
      %v5416 = vld [vmem:[#allocation4] sm:$0xff]
      %v5417 = vld [vmem:[#allocation4 + $0x8] sm:$0xff]
      %v5418 = vld [vmem:[#allocation4 + $0x10] sm:$0xff]
      %v5419 = vld [vmem:[#allocation4 + $0x18] sm:$0xff]
      %v5420 = vld [vmem:[#allocation4 + $0x20] sm:$0xff]
      %v5421 = vld [vmem:[#allocation4 + $0x28] sm:$0xff]
      %v5422 = vld [vmem:[#allocation4 + $0x30] sm:$0xff]
      %v5423 = vld [vmem:[#allocation4 + $0x38] sm:$0xff]
      %v5424 = vld [vmem:[#allocation4 + $0x40] sm:$0xff]
      %v5425 = vld [vmem:[#allocation4 + $0x48] sm:$0xff]
      %v5426 = vld [vmem:[#allocation4 + $0x50] sm:$0xff]
      %v5427 = vld [vmem:[#allocation4 + $0x58] sm:$0xff]
      %v5428 = vld [vmem:[#allocation4 + $0x60] sm:$0xff]
      %v5429 = vld [vmem:[#allocation4 + $0x68] sm:$0xff]
      %v5430 = vld [vmem:[#allocation4 + $0x70] sm:$0xff]
      %v5431 = vld [vmem:[#allocation4 + $0x78] sm:$0xff]
      %v5432 = vld [vmem:[#allocation4 + $0x80] sm:$0xff]
      %v5433 = vld [vmem:[#allocation4 + $0x88] sm:$0xff]
      %v5434 = vld [vmem:[#allocation4 + $0x90] sm:$0xff]
      %v5435 = vld [vmem:[#allocation4 + $0x98] sm:$0xff]
      %v5436 = vld [vmem:[#allocation4 + $0xa0] sm:$0xff]
      %v5437 = vld [vmem:[#allocation4 + $0xa8] sm:$0xff]
      %v5438 = vld [vmem:[#allocation4 + $0xb0] sm:$0xff]
      %v5439 = vld [vmem:[#allocation4 + $0xb8] sm:$0xff]
      %v5440 = vld [vmem:[#allocation4 + $0xc0] sm:$0xff]
      %v5441 = vld [vmem:[#allocation4 + $0xc8] sm:$0xff]
      %v5442 = vld [vmem:[#allocation4 + $0xd0] sm:$0xff]
      %v5443 = vld [vmem:[#allocation4 + $0xd8] sm:$0xff]
      %v5444 = vld [vmem:[#allocation4 + $0xe0] sm:$0xff]
      %v5445 = vld [vmem:[#allocation4 + $0xe8] sm:$0xff]
      %v5446 = vld [vmem:[#allocation4 + $0xf0] sm:$0xff]
      %v5447 = vld [vmem:[#allocation4 + $0xf8] sm:$0xff]
      %v5448 = vld [vmem:[#allocation4 + $0x100] sm:$0xff]
      %v5449 = vld [vmem:[#allocation4 + $0x108] sm:$0xff]
      %v5450 = vld [vmem:[#allocation4 + $0x110] sm:$0xff]
      %v5451 = vld [vmem:[#allocation4 + $0x118] sm:$0xff]
      %v5452 = vld [vmem:[%s5] sm:$0xf]
      %v5453 = vld [vmem:[%s5 + $0x4] sm:$0xf]
      %v5454 = vld [vmem:[%s5 + $0x8] sm:$0xf]
      %v5455 = vld [vmem:[%s5 + $0xc] sm:$0xf]
      %v5456 = vld [vmem:[%s5 + $0x10] sm:$0xf]
      %v5457 = vld [vmem:[%s5 + $0x14] sm:$0xf]
      %v5458 = vld [vmem:[%s5 + $0x18] sm:$0xf]
      %v5459 = vld [vmem:[%s5 + $0x1c] sm:$0xf]
      %v5460 = vld [vmem:[%s5 + $0x20] sm:$0xf]
      %v5461 = vld [vmem:[%s5 + $0x24] sm:$0xf]
      %v5462 = vld [vmem:[%s5 + $0x28] sm:$0xf]
      %v5463 = vld [vmem:[%s5 + $0x2c] sm:$0xf]
      %v5464 = vld [vmem:[%s5 + $0x30] sm:$0xf]
      %v5465 = vld [vmem:[%s5 + $0x34] sm:$0xf]
      %v5466 = vld [vmem:[%s5 + $0x38] sm:$0xf]
      %v5467 = vld [vmem:[%s5 + $0x3c] sm:$0xf]
      %v5468 = vld [vmem:[%s5 + $0x40] sm:$0xf]
      %v5469 = vld [vmem:[%s5 + $0x44] sm:$0xf]
      %v5470 = vld [vmem:[%s5 + $0x48] sm:$0xf]
      %v5471 = vld [vmem:[%s5 + $0x4c] sm:$0xf]
      %v5472 = vld [vmem:[%s5 + $0x50] sm:$0xf]
      %v5473 = vld [vmem:[%s5 + $0x54] sm:$0xf]
      %v5474 = vld [vmem:[%s5 + $0x58] sm:$0xf]
      %v5475 = vld [vmem:[%s5 + $0x5c] sm:$0xf]
      %v5476 = vld [vmem:[%s5 + $0x60] sm:$0xf]
      %v5477 = vld [vmem:[%s5 + $0x64] sm:$0xf]
      %v5478 = vld [vmem:[%s5 + $0x68] sm:$0xf]
      %v5479 = vld [vmem:[%s5 + $0x6c] sm:$0xf]
      %v5480 = vld [vmem:[%s5 + $0x70] sm:$0xf]
      %v5481 = vld [vmem:[%s5 + $0x74] sm:$0xf]
      %v5482 = vld [vmem:[%s5 + $0x78] sm:$0xf]
      %v5483 = vld [vmem:[%s5 + $0x7c] sm:$0xf]
      %v5484 = vld [vmem:[%s5 + $0x80] sm:$0xf]
      %v5485 = vld [vmem:[%s5 + $0x84] sm:$0xf]
      %v5486 = vld [vmem:[%s5 + $0x88] sm:$0xf]
      %v5487 = vld [vmem:[%s5 + $0x8c] sm:$0xf]
      %v5488 = vld [vmem:[%s5 + $0x90] sm:$0xf]
      %v5489 = vld [vmem:[%s5 + $0x94] sm:$0xf]
      %v5490 = vld [vmem:[%s5 + $0x98] sm:$0xf]
      %v5491 = vld [vmem:[%s5 + $0x9c] sm:$0xf]
      %v5492 = vld [vmem:[%s5 + $0xa0] sm:$0xf]
      %v5493 = vld [vmem:[%s5 + $0xa4] sm:$0xf]
      %v5494 = vld [vmem:[%s5 + $0xa8] sm:$0xf]
      %v5495 = vld [vmem:[%s5 + $0xac] sm:$0xf]
      %v5496 = vld [vmem:[%s5 + $0xb0] sm:$0xf]
      %v5497 = vld [vmem:[%s5 + $0xb4] sm:$0xf]
      %v5498 = vld [vmem:[%s5 + $0xb8] sm:$0xf]
      %v5499 = vld [vmem:[%s5 + $0xbc] sm:$0xf]
      %v5500 = vld [vmem:[%s5 + $0xc0] sm:$0xf]
      %v5501 = vld [vmem:[%s5 + $0xc4] sm:$0xf]
      %v5502 = vld [vmem:[%s5 + $0xc8] sm:$0xf]
      %v5503 = vld [vmem:[%s5 + $0xcc] sm:$0xf]
      %v5504 = vld [vmem:[%s5 + $0xd0] sm:$0xf]
      %v5505 = vld [vmem:[%s5 + $0xd4] sm:$0xf]
      %v5506 = vld [vmem:[%s5 + $0xd8] sm:$0xf]
      %v5507 = vld [vmem:[%s5 + $0xdc] sm:$0xf]
      %v5508 = vld [vmem:[%s5 + $0xe0] sm:$0xf]
      %v5509 = vld [vmem:[%s5 + $0xe4] sm:$0xf]
      %v5510 = vld [vmem:[%s5 + $0xe8] sm:$0xf]
      %v5511 = vld [vmem:[%s5 + $0xec] sm:$0xf]
      %v5512 = vld [vmem:[%s5 + $0xf0] sm:$0xf]
      %v5513 = vld [vmem:[%s5 + $0xf4] sm:$0xf]
      %v5514 = vld [vmem:[%s5 + $0xf8] sm:$0xf]
      %v5515 = vld [vmem:[%s5 + $0xfc] sm:$0xf]
      %v5516 = vld [vmem:[%s5 + $0x100] sm:$0xf]
      %v5517 = vld [vmem:[%s5 + $0x104] sm:$0xf]
      %v5518 = vld [vmem:[%s5 + $0x108] sm:$0xf]
      %v5519 = vld [vmem:[%s5 + $0x10c] sm:$0xf]
      %v5520 = vld [vmem:[%s5 + $0x110] sm:$0xf]
      %v5521 = vld [vmem:[%s5 + $0x114] sm:$0xf]
      %v5522 = vld [vmem:[%s5 + $0x118] sm:$0xf]
      %v5523 = vld [vmem:[%s5 + $0x11c] sm:$0xf]
      %v5524 = vld [vmem:[%s5 + $0x120] sm:$0xf]
      %v5525 = vld [vmem:[%s5 + $0x124] sm:$0xf]
      %v5526 = vld [vmem:[%s5 + $0x128] sm:$0xf]
      %v5527 = vld [vmem:[%s5 + $0x12c] sm:$0xf]
      %v5528 = vld [vmem:[%s5 + $0x130] sm:$0xf]
      %v5529 = vld [vmem:[%s5 + $0x134] sm:$0xf]
      %v5530 = vld [vmem:[%s5 + $0x138] sm:$0xf]
      %v5531 = vld [vmem:[%s5 + $0x13c] sm:$0xf]
      %v5532 = vld [vmem:[%s5 + $0x140] sm:$0xf]
      %v5533 = vld [vmem:[%s5 + $0x144] sm:$0xf]
      %v5534 = vld [vmem:[%s5 + $0x148] sm:$0xf]
      %v5535 = vld [vmem:[%s5 + $0x14c] sm:$0xf]
      %v5536 = vld [vmem:[%s5 + $0x150] sm:$0xf]
      %v5537 = vld [vmem:[%s5 + $0x154] sm:$0xf]
      %v5538 = vld [vmem:[%s5 + $0x158] sm:$0xf]
      %v5539 = vld [vmem:[%s5 + $0x15c] sm:$0xf]
      %v5540 = vld [vmem:[%s5 + $0x160] sm:$0xf]
      %v5541 = vld [vmem:[%s5 + $0x164] sm:$0xf]
      %v5542 = vld [vmem:[%s5 + $0x168] sm:$0xf]
      %v5543 = vld [vmem:[%s5 + $0x16c] sm:$0xf]
      %v5544 = vld [vmem:[%s5 + $0x170] sm:$0xf]
      %v5545 = vld [vmem:[%s5 + $0x174] sm:$0xf]
      %v5546 = vld [vmem:[%s5 + $0x178] sm:$0xf]
      %v5547 = vld [vmem:[%s5 + $0x17c] sm:$0xf]
      %v5548 = vld [vmem:[%s5 + $0x180] sm:$0xf]
      %v5549 = vld [vmem:[%s5 + $0x184] sm:$0xf]
      %v5550 = vld [vmem:[%s5 + $0x188] sm:$0xf]
      %v5551 = vld [vmem:[%s5 + $0x18c] sm:$0xf]
      %v5552 = vld [vmem:[%s5 + $0x190] sm:$0xf]
      %v5553 = vld [vmem:[%s5 + $0x194] sm:$0xf]
      %v5554 = vld [vmem:[%s5 + $0x198] sm:$0xf]
      %v5555 = vld [vmem:[%s5 + $0x19c] sm:$0xf]
      %v5556 = vld [vmem:[%s5 + $0x1a0] sm:$0xf]
      %v5557 = vld [vmem:[%s5 + $0x1a4] sm:$0xf]
      %v5558 = vld [vmem:[%s5 + $0x1a8] sm:$0xf]
      %v5559 = vld [vmem:[%s5 + $0x1ac] sm:$0xf]
      %v5560 = vld [vmem:[%s5 + $0x1b0] sm:$0xf]
      %v5561 = vld [vmem:[%s5 + $0x1b4] sm:$0xf]
      %v5562 = vld [vmem:[%s5 + $0x1b8] sm:$0xf]
      %v5563 = vld [vmem:[%s5 + $0x1bc] sm:$0xf]
      %v5564 = vld [vmem:[%s5 + $0x1c0] sm:$0xf]
      %v5565 = vld [vmem:[%s5 + $0x1c4] sm:$0xf]
      %v5566 = vld [vmem:[%s5 + $0x1c8] sm:$0xf]
      %v5567 = vld [vmem:[%s5 + $0x1cc] sm:$0xf]
      %v5568 = vld [vmem:[%s5 + $0x1d0] sm:$0xf]
      %v5569 = vld [vmem:[%s5 + $0x1d4] sm:$0xf]
      %v5570 = vld [vmem:[%s5 + $0x1d8] sm:$0xf]
      %v5571 = vld [vmem:[%s5 + $0x1dc] sm:$0xf]
      %v5572 = vld [vmem:[%s5 + $0x1e0] sm:$0xf]
      %v5573 = vld [vmem:[%s5 + $0x1e4] sm:$0xf]
      %v5574 = vld [vmem:[%s5 + $0x1e8] sm:$0xf]
      %v5575 = vld [vmem:[%s5 + $0x1ec] sm:$0xf]
      %v5576 = vld [vmem:[%s5 + $0x1f0] sm:$0xf]
      %v5577 = vld [vmem:[%s5 + $0x1f4] sm:$0xf]
      %v5578 = vld [vmem:[%s5 + $0x1f8] sm:$0xf]
      %v5579 = vld [vmem:[%s5 + $0x1fc] sm:$0xf]
      %v5580 = vld [vmem:[%s5 + $0x200] sm:$0xf]
      %v5581 = vld [vmem:[%s5 + $0x204] sm:$0xf]
      %v5582 = vld [vmem:[%s5 + $0x208] sm:$0xf]
      %v5583 = vld [vmem:[%s5 + $0x20c] sm:$0xf]
      %v5584 = vld [vmem:[%s5 + $0x210] sm:$0xf]
      %v5585 = vld [vmem:[%s5 + $0x214] sm:$0xf]
      %v5586 = vld [vmem:[%s5 + $0x218] sm:$0xf]
      %v5587 = vld [vmem:[%s5 + $0x21c] sm:$0xf]
      %v5588 = vld [vmem:[%s5 + $0x220] sm:$0xf]
      %v5589 = vld [vmem:[%s5 + $0x224] sm:$0xf]
      %v5590 = vld [vmem:[%s5 + $0x228] sm:$0xf]
      %v5591 = vld [vmem:[%s5 + $0x22c] sm:$0xf]
      %v5592 = vld [vmem:[%s5 + $0x230] sm:$0xf]
      %v5593 = vld [vmem:[%s5 + $0x234] sm:$0xf]
      %v5594 = vld [vmem:[%s5 + $0x238] sm:$0xf]
      %v5595 = vld [vmem:[%s5 + $0x23c] sm:$0xf]
      %v5596 = vld [vmem:[%s6] sm:$0x1]
      %v5598 = vlaneseq
      %v5599 = vshrl.u32 %v5598, 7
      %v5600 = vsub.s32 0, %v5599
      %v5601 = vrot.slane %v5596, %v5600
      %v5747 = vunpack.c.l.b16 %v5452
      %v5748 = vunpack.c.l.b16 %v5453
      %v5749 = vunpack.c.l.b16 %v5454
      %v5750 = vunpack.c.l.b16 %v5455
      %v5751 = vunpack.c.l.b16 %v5456
      %v5752 = vunpack.c.l.b16 %v5457
      %v5753 = vunpack.c.l.b16 %v5458
      %v5754 = vunpack.c.l.b16 %v5459
      %v5755 = vunpack.c.l.b16 %v5460
      %v5756 = vunpack.c.l.b16 %v5461
      %v5757 = vunpack.c.l.b16 %v5462
      %v5758 = vunpack.c.l.b16 %v5463
      %v5759 = vunpack.c.l.b16 %v5464
      %v5760 = vunpack.c.l.b16 %v5465
      %v5761 = vunpack.c.l.b16 %v5466
      %v5762 = vunpack.c.l.b16 %v5467
      %v5763 = vunpack.c.l.b16 %v5468
      %v5764 = vunpack.c.l.b16 %v5469
      %v5765 = vunpack.c.l.b16 %v5470
      %v5766 = vunpack.c.l.b16 %v5471
      %v5767 = vunpack.c.l.b16 %v5472
      %v5768 = vunpack.c.l.b16 %v5473
      %v5769 = vunpack.c.l.b16 %v5474
      %v5770 = vunpack.c.l.b16 %v5475
      %v5771 = vunpack.c.l.b16 %v5476
      %v5772 = vunpack.c.l.b16 %v5477
      %v5773 = vunpack.c.l.b16 %v5478
      %v5774 = vunpack.c.l.b16 %v5479
      %v5775 = vunpack.c.l.b16 %v5480
      %v5776 = vunpack.c.l.b16 %v5481
      %v5777 = vunpack.c.l.b16 %v5482
      %v5778 = vunpack.c.l.b16 %v5483
      %v5779 = vunpack.c.l.b16 %v5484
      %v5780 = vunpack.c.l.b16 %v5485
      %v5781 = vunpack.c.l.b16 %v5486
      %v5782 = vunpack.c.l.b16 %v5487
      %v5783 = vunpack.c.l.b16 %v5488
      %v5784 = vunpack.c.l.b16 %v5489
      %v5785 = vunpack.c.l.b16 %v5490
      %v5786 = vunpack.c.l.b16 %v5491
      %v5787 = vunpack.c.l.b16 %v5492
      %v5788 = vunpack.c.l.b16 %v5493
      %v5789 = vunpack.c.l.b16 %v5494
      %v5790 = vunpack.c.l.b16 %v5495
      %v5791 = vunpack.c.l.b16 %v5496
      %v5792 = vunpack.c.l.b16 %v5497
      %v5793 = vunpack.c.l.b16 %v5498
      %v5794 = vunpack.c.l.b16 %v5499
      %v5795 = vunpack.c.l.b16 %v5500
      %v5796 = vunpack.c.l.b16 %v5501
      %v5797 = vunpack.c.l.b16 %v5502
      %v5798 = vunpack.c.l.b16 %v5503
      %v5799 = vunpack.c.l.b16 %v5504
      %v5800 = vunpack.c.l.b16 %v5505
      %v5801 = vunpack.c.l.b16 %v5506
      %v5802 = vunpack.c.l.b16 %v5507
      %v5803 = vunpack.c.l.b16 %v5508
      %v5804 = vunpack.c.l.b16 %v5509
      %v5805 = vunpack.c.l.b16 %v5510
      %v5806 = vunpack.c.l.b16 %v5511
      %v5807 = vunpack.c.l.b16 %v5512
      %v5808 = vunpack.c.l.b16 %v5513
      %v5809 = vunpack.c.l.b16 %v5514
      %v5810 = vunpack.c.l.b16 %v5515
      %v5811 = vunpack.c.l.b16 %v5516
      %v5812 = vunpack.c.l.b16 %v5517
      %v5813 = vunpack.c.l.b16 %v5518
      %v5814 = vunpack.c.l.b16 %v5519
      %v5815 = vunpack.c.l.b16 %v5520
      %v5816 = vunpack.c.l.b16 %v5521
      %v5817 = vunpack.c.l.b16 %v5522
      %v5818 = vunpack.c.l.b16 %v5523
      %v5819 = vunpack.c.l.b16 %v5524
      %v5820 = vunpack.c.l.b16 %v5525
      %v5821 = vunpack.c.l.b16 %v5526
      %v5822 = vunpack.c.l.b16 %v5527
      %v5823 = vunpack.c.l.b16 %v5528
      %v5824 = vunpack.c.l.b16 %v5529
      %v5825 = vunpack.c.l.b16 %v5530
      %v5826 = vunpack.c.l.b16 %v5531
      %v5827 = vunpack.c.l.b16 %v5532
      %v5828 = vunpack.c.l.b16 %v5533
      %v5829 = vunpack.c.l.b16 %v5534
      %v5830 = vunpack.c.l.b16 %v5535
      %v5831 = vunpack.c.l.b16 %v5536
      %v5832 = vunpack.c.l.b16 %v5537
      %v5833 = vunpack.c.l.b16 %v5538
      %v5834 = vunpack.c.l.b16 %v5539
      %v5835 = vunpack.c.l.b16 %v5540
      %v5836 = vunpack.c.l.b16 %v5541
      %v5837 = vunpack.c.l.b16 %v5542
      %v5838 = vunpack.c.l.b16 %v5543
      %v5839 = vunpack.c.l.b16 %v5544
      %v5840 = vunpack.c.l.b16 %v5545
      %v5841 = vunpack.c.l.b16 %v5546
      %v5842 = vunpack.c.l.b16 %v5547
      %v5843 = vunpack.c.l.b16 %v5548
      %v5844 = vunpack.c.l.b16 %v5549
      %v5845 = vunpack.c.l.b16 %v5550
      %v5846 = vunpack.c.l.b16 %v5551
      %v5847 = vunpack.c.l.b16 %v5552
      %v5848 = vunpack.c.l.b16 %v5553
      %v5849 = vunpack.c.l.b16 %v5554
      %v5850 = vunpack.c.l.b16 %v5555
      %v5851 = vunpack.c.l.b16 %v5556
      %v5852 = vunpack.c.l.b16 %v5557
      %v5853 = vunpack.c.l.b16 %v5558
      %v5854 = vunpack.c.l.b16 %v5559
      %v5855 = vunpack.c.l.b16 %v5560
      %v5856 = vunpack.c.l.b16 %v5561
      %v5857 = vunpack.c.l.b16 %v5562
      %v5858 = vunpack.c.l.b16 %v5563
      %v5859 = vunpack.c.l.b16 %v5564
      %v5860 = vunpack.c.l.b16 %v5565
      %v5861 = vunpack.c.l.b16 %v5566
      %v5862 = vunpack.c.l.b16 %v5567
      %v5863 = vunpack.c.l.b16 %v5568
      %v5864 = vunpack.c.l.b16 %v5569
      %v5865 = vunpack.c.l.b16 %v5570
      %v5866 = vunpack.c.l.b16 %v5571
      %v5867 = vunpack.c.l.b16 %v5572
      %v5868 = vunpack.c.l.b16 %v5573
      %v5869 = vunpack.c.l.b16 %v5574
      %v5870 = vunpack.c.l.b16 %v5575
      %v5871 = vunpack.c.l.b16 %v5576
      %v5872 = vunpack.c.l.b16 %v5577
      %v5873 = vunpack.c.l.b16 %v5578
      %v5874 = vunpack.c.l.b16 %v5579
      %v5875 = vunpack.c.l.b16 %v5580
      %v5876 = vunpack.c.l.b16 %v5581
      %v5877 = vunpack.c.l.b16 %v5582
      %v5878 = vunpack.c.l.b16 %v5583
      %v5879 = vunpack.c.l.b16 %v5584
      %v5880 = vunpack.c.l.b16 %v5585
      %v5881 = vunpack.c.l.b16 %v5586
      %v5882 = vunpack.c.l.b16 %v5587
      %v5883 = vunpack.c.l.b16 %v5588
      %v5884 = vunpack.c.l.b16 %v5589
      %v5885 = vunpack.c.l.b16 %v5590
      %v5886 = vunpack.c.l.b16 %v5591
      %v5887 = vunpack.c.l.b16 %v5592
      %v5888 = vunpack.c.l.b16 %v5593
      %v5889 = vunpack.c.l.b16 %v5594
      %v5890 = vunpack.c.l.b16 %v5595
      %v5891 = vpack.c.b16 %v5748, %v5747
      %v5892 = vpack.c.b16 %v5750, %v5749
      %v5893 = vpack.c.b16 %v5752, %v5751
      %v5894 = vpack.c.b16 %v5754, %v5753
      %v5895 = vpack.c.b16 %v5756, %v5755
      %v5896 = vpack.c.b16 %v5758, %v5757
      %v5897 = vpack.c.b16 %v5760, %v5759
      %v5898 = vpack.c.b16 %v5762, %v5761
      %v5899 = vpack.c.b16 %v5764, %v5763
      %v5900 = vpack.c.b16 %v5766, %v5765
      %v5901 = vpack.c.b16 %v5768, %v5767
      %v5902 = vpack.c.b16 %v5770, %v5769
      %v5903 = vpack.c.b16 %v5772, %v5771
      %v5904 = vpack.c.b16 %v5774, %v5773
      %v5905 = vpack.c.b16 %v5776, %v5775
      %v5906 = vpack.c.b16 %v5778, %v5777
      %v5907 = vpack.c.b16 %v5780, %v5779
      %v5908 = vpack.c.b16 %v5782, %v5781
      %v5909 = vpack.c.b16 %v5784, %v5783
      %v5910 = vpack.c.b16 %v5786, %v5785
      %v5911 = vpack.c.b16 %v5788, %v5787
      %v5912 = vpack.c.b16 %v5790, %v5789
      %v5913 = vpack.c.b16 %v5792, %v5791
      %v5914 = vpack.c.b16 %v5794, %v5793
      %v5915 = vpack.c.b16 %v5796, %v5795
      %v5916 = vpack.c.b16 %v5798, %v5797
      %v5917 = vpack.c.b16 %v5800, %v5799
      %v5918 = vpack.c.b16 %v5802, %v5801
      %v5919 = vpack.c.b16 %v5804, %v5803
      %v5920 = vpack.c.b16 %v5806, %v5805
      %v5921 = vpack.c.b16 %v5808, %v5807
      %v5922 = vpack.c.b16 %v5810, %v5809
      %v5923 = vpack.c.b16 %v5812, %v5811
      %v5924 = vpack.c.b16 %v5814, %v5813
      %v5925 = vpack.c.b16 %v5816, %v5815
      %v5926 = vpack.c.b16 %v5818, %v5817
      %v5927 = vpack.c.b16 %v5820, %v5819
      %v5928 = vpack.c.b16 %v5822, %v5821
      %v5929 = vpack.c.b16 %v5824, %v5823
      %v5930 = vpack.c.b16 %v5826, %v5825
      %v5931 = vpack.c.b16 %v5828, %v5827
      %v5932 = vpack.c.b16 %v5830, %v5829
      %v5933 = vpack.c.b16 %v5832, %v5831
      %v5934 = vpack.c.b16 %v5834, %v5833
      %v5935 = vpack.c.b16 %v5836, %v5835
      %v5936 = vpack.c.b16 %v5838, %v5837
      %v5937 = vpack.c.b16 %v5840, %v5839
      %v5938 = vpack.c.b16 %v5842, %v5841
      %v5939 = vpack.c.b16 %v5844, %v5843
      %v5940 = vpack.c.b16 %v5846, %v5845
      %v5941 = vpack.c.b16 %v5848, %v5847
      %v5942 = vpack.c.b16 %v5850, %v5849
      %v5943 = vpack.c.b16 %v5852, %v5851
      %v5944 = vpack.c.b16 %v5854, %v5853
      %v5945 = vpack.c.b16 %v5856, %v5855
      %v5946 = vpack.c.b16 %v5858, %v5857
      %v5947 = vpack.c.b16 %v5860, %v5859
      %v5948 = vpack.c.b16 %v5862, %v5861
      %v5949 = vpack.c.b16 %v5864, %v5863
      %v5950 = vpack.c.b16 %v5866, %v5865
      %v5951 = vpack.c.b16 %v5868, %v5867
      %v5952 = vpack.c.b16 %v5870, %v5869
      %v5953 = vpack.c.b16 %v5872, %v5871
      %v5954 = vpack.c.b16 %v5874, %v5873
      %v5955 = vpack.c.b16 %v5876, %v5875
      %v5956 = vpack.c.b16 %v5878, %v5877
      %v5957 = vpack.c.b16 %v5880, %v5879
      %v5958 = vpack.c.b16 %v5882, %v5881
      %v5959 = vpack.c.b16 %v5884, %v5883
      %v5960 = vpack.c.b16 %v5886, %v5885
      %v5961 = vpack.c.b16 %v5888, %v5887
      %v5962 = vpack.c.b16 %v5890, %v5889
      %6035 = vmatprep.subr.bf16.mxu0 0
      %6036 = vmatpush1.bf16.msra.mxu0 %v5891
      %6037 = vmatprep.subr.bf16.mxu0 0
      %6038 = vmatpush1.bf16.msra.mxu0 %v5892
      %6039 = vmatprep.subr.bf16.mxu0 0
      %6040 = vmatpush1.bf16.msra.mxu0 %v5893
      %6041 = vmatprep.subr.bf16.mxu0 0
      %6042 = vmatpush1.bf16.msra.mxu0 %v5894
      %6043 = vmatprep.subr.bf16.mxu0 0
      %6044 = vmatpush1.bf16.msra.mxu0 %v5895
      %6045 = vmatprep.subr.bf16.mxu0 0
      %6046 = vmatpush1.bf16.msra.mxu0 %v5896
      %6047 = vmatprep.subr.bf16.mxu0 0
      %6048 = vmatpush1.bf16.msra.mxu0 %v5897
      %6049 = vmatprep.subr.bf16.mxu0 0
      %6050 = vmatpush1.bf16.msra.mxu0 %v5898
      %6051 = vmatprep.subr.bf16.mxu0 0
      %6052 = vmatpush1.bf16.msra.mxu0 %v5899
      %6053 = vmatprep.subr.bf16.mxu0 0
      %6054 = vmatpush1.bf16.msra.mxu0 %v5900
      %6055 = vmatprep.subr.bf16.mxu0 0
      %6056 = vmatpush1.bf16.msra.mxu0 %v5901
      %6057 = vmatprep.subr.bf16.mxu0 0
      %6058 = vmatpush1.bf16.msra.mxu0 %v5902
      %6059 = vmatprep.subr.bf16.mxu0 0
      %6060 = vmatpush1.bf16.msra.mxu0 %v5903
      %6061 = vmatprep.subr.bf16.mxu0 0
      %6062 = vmatpush1.bf16.msra.mxu0 %v5904
      %6063 = vmatprep.subr.bf16.mxu0 0
      %6064 = vmatpush1.bf16.msra.mxu0 %v5905
      %6065 = vmatprep.subr.bf16.mxu0 0
      %6066 = vmatpush1.bf16.msra.mxu0 %v5906
      %6067 = vmatprep.mubr.bf16.mxu0 %v5417
      %6068 = vmatmul.mubr.bf16.gmra.mrb[0].mxu0 %v5416
      %v6069 = vpop.f32.mrb[0].mxu0
      %v6070 = vadd.f32 %v5601, %v6069
      %v6071 = vpop.f32.mrb[0].mxu0
      %v6072 = vpop.f32.mrb[0].mxu0
      %v6073 = vadd.f32 %v5601, %v6072
      %v6074 = vpop.f32.mrb[0].mxu0
      %6075 = vmatprep.mubr.bf16.mxu0 %v5426
      %6076 = vmatmul.mubr.bf16.gmra.mrb[0].mxu0 %v5425
      %v6077 = vpop.f32.mrb[0].mxu0
      %v6078 = vadd.f32 %v5601, %v6077
      %v6079 = vpop.f32.mrb[0].mxu0
      %v6080 = vpop.f32.mrb[0].mxu0
      %v6081 = vadd.f32 %v5601, %v6080
      %v6082 = vpop.f32.mrb[0].mxu0
      %6083 = vmatprep.mubr.bf16.mxu0 %v5435
      %6084 = vmatmul.mubr.bf16.gmra.mrb[0].mxu0 %v5434
      %v6085 = vpop.f32.mrb[0].mxu0
      %v6086 = vadd.f32 %v5601, %v6085
      %v6087 = vpop.f32.mrb[0].mxu0
      %v6088 = vpop.f32.mrb[0].mxu0
      %v6089 = vadd.f32 %v5601, %v6088
      %v6090 = vpop.f32.mrb[0].mxu0
      %6091 = vmatprep.mubr.bf16.mxu0 %v5444
      %6092 = vmatmul.mubr.bf16.gmra.mrb[0].mxu0 %v5443
      %v6093 = vpop.f32.mrb[0].mxu0
      %v6094 = vadd.f32 %v5601, %v6093
      %v6095 = vpop.f32.mrb[0].mxu0
      %v6096 = vpop.f32.mrb[0].mxu0
      %v6097 = vadd.f32 %v5601, %v6096
      %v6098 = vpop.f32.mrb[0].mxu0
      %6099 = vdwg.mxu0
      %6100 = vmatprep.subr.bf16.mxu0 0
      %6101 = vmatpush1.bf16.msra.mxu0 %v5907
      %6102 = vmatprep.subr.bf16.mxu0 0
      %6103 = vmatpush1.bf16.msra.mxu0 %v5908
      %6104 = vmatprep.subr.bf16.mxu0 0
      %6105 = vmatpush1.bf16.msra.mxu0 %v5909
      %6106 = vmatprep.subr.bf16.mxu0 0
      %6107 = vmatpush1.bf16.msra.mxu0 %v5910
      %6108 = vmatprep.subr.bf16.mxu0 0
      %6109 = vmatpush1.bf16.msra.mxu0 %v5911
      %6110 = vmatprep.subr.bf16.mxu0 0
      %6111 = vmatpush1.bf16.msra.mxu0 %v5912
      %6112 = vmatprep.subr.bf16.mxu0 0
      %6113 = vmatpush1.bf16.msra.mxu0 %v5913
      %6114 = vmatprep.subr.bf16.mxu0 0
      %6115 = vmatpush1.bf16.msra.mxu0 %v5914
      %6116 = vmatprep.subr.bf16.mxu0 0
      %6117 = vmatpush1.bf16.msra.mxu0 %v5915
      %6118 = vmatprep.subr.bf16.mxu0 0
      %6119 = vmatpush1.bf16.msra.mxu0 %v5916
      %6120 = vmatprep.subr.bf16.mxu0 0
      %6121 = vmatpush1.bf16.msra.mxu0 %v5917
      %6122 = vmatprep.subr.bf16.mxu0 0
      %6123 = vmatpush1.bf16.msra.mxu0 %v5918
      %6124 = vmatprep.subr.bf16.mxu0 0
      %6125 = vmatpush1.bf16.msra.mxu0 %v5919
      %6126 = vmatprep.subr.bf16.mxu0 0
      %6127 = vmatpush1.bf16.msra.mxu0 %v5920
      %6128 = vmatprep.subr.bf16.mxu0 0
      %6129 = vmatpush1.bf16.msra.mxu0 %v5921
      %6130 = vmatprep.subr.bf16.mxu0 0
      %6131 = vmatpush1.bf16.msra.mxu0 %v5922
      %6132 = vmatprep.mubr.bf16.mxu0 %v5419
      %6133 = vmatmul.mubr.bf16.gmra.mrb[0].mxu0 %v5418
      %v6134 = vpop.f32.mrb[0].mxu0
      %v6135 = vadd.f32 %v6070, %v6134
      %v6136 = vpop.f32.mrb[0].mxu0
      %v6137 = vpop.f32.mrb[0].mxu0
      %v6138 = vadd.f32 %v6073, %v6137
      %v6139 = vpop.f32.mrb[0].mxu0
      %6140 = vmatprep.mubr.bf16.mxu0 %v5428
      %6141 = vmatmul.mubr.bf16.gmra.mrb[0].mxu0 %v5427
      %v6142 = vpop.f32.mrb[0].mxu0
      %v6143 = vadd.f32 %v6078, %v6142
      %v6144 = vpop.f32.mrb[0].mxu0
      %v6145 = vpop.f32.mrb[0].mxu0
      %v6146 = vadd.f32 %v6081, %v6145
      %v6147 = vpop.f32.mrb[0].mxu0
      %6148 = vmatprep.mubr.bf16.mxu0 %v5437
      %6149 = vmatmul.mubr.bf16.gmra.mrb[0].mxu0 %v5436
      %v6150 = vpop.f32.mrb[0].mxu0
      %v6151 = vadd.f32 %v6086, %v6150
      %v6152 = vpop.f32.mrb[0].mxu0
      %v6153 = vpop.f32.mrb[0].mxu0
      %v6154 = vadd.f32 %v6089, %v6153
      %v6155 = vpop.f32.mrb[0].mxu0
      %6156 = vmatprep.mubr.bf16.mxu0 %v5446
      %6157 = vmatmul.mubr.bf16.gmra.mrb[0].mxu0 %v5445
      %v6158 = vpop.f32.mrb[0].mxu0
      %v6159 = vadd.f32 %v6094, %v6158
      %v6160 = vpop.f32.mrb[0].mxu0
      %v6161 = vpop.f32.mrb[0].mxu0
      %v6162 = vadd.f32 %v6097, %v6161
      %v6163 = vpop.f32.mrb[0].mxu0
      %6164 = vdwg.mxu0
      %6165 = vmatprep.subr.bf16.mxu0 0
      %6166 = vmatpush1.bf16.msra.mxu0 %v5923
      %6167 = vmatprep.subr.bf16.mxu0 0
      %6168 = vmatpush1.bf16.msra.mxu0 %v5924
      %6169 = vmatprep.subr.bf16.mxu0 0
      %6170 = vmatpush1.bf16.msra.mxu0 %v5925
      %6171 = vmatprep.subr.bf16.mxu0 0
      %6172 = vmatpush1.bf16.msra.mxu0 %v5926
      %6173 = vmatprep.subr.bf16.mxu0 0
      %6174 = vmatpush1.bf16.msra.mxu0 %v5927
      %6175 = vmatprep.subr.bf16.mxu0 0
      %6176 = vmatpush1.bf16.msra.mxu0 %v5928
      %6177 = vmatprep.subr.bf16.mxu0 0
      %6178 = vmatpush1.bf16.msra.mxu0 %v5929
      %6179 = vmatprep.subr.bf16.mxu0 0
      %6180 = vmatpush1.bf16.msra.mxu0 %v5930
      %6181 = vmatprep.subr.bf16.mxu0 0
      %6182 = vmatpush1.bf16.msra.mxu0 %v5931
      %6183 = vmatprep.subr.bf16.mxu0 0
      %6184 = vmatpush1.bf16.msra.mxu0 %v5932
      %6185 = vmatprep.subr.bf16.mxu0 0
      %6186 = vmatpush1.bf16.msra.mxu0 %v5933
      %6187 = vmatprep.subr.bf16.mxu0 0
      %6188 = vmatpush1.bf16.msra.mxu0 %v5934
      %6189 = vmatprep.subr.bf16.mxu0 0
      %6190 = vmatpush1.bf16.msra.mxu0 %v5935
      %6191 = vmatprep.subr.bf16.mxu0 0
      %6192 = vmatpush1.bf16.msra.mxu0 %v5936
      %6193 = vmatprep.subr.bf16.mxu0 0
      %6194 = vmatpush1.bf16.msra.mxu0 %v5937
      %6195 = vmatprep.subr.bf16.mxu0 0
      %6196 = vmatpush1.bf16.msra.mxu0 %v5938
      %6197 = vmatprep.mubr.bf16.mxu0 %v5421
      %6198 = vmatmul.mubr.bf16.gmra.mrb[0].mxu0 %v5420
      %v6199 = vpop.f32.mrb[0].mxu0
      %v6200 = vadd.f32 %v6135, %v6199
      %v6201 = vpop.f32.mrb[0].mxu0
      %v6202 = vpop.f32.mrb[0].mxu0
      %v6203 = vadd.f32 %v6138, %v6202
      %v6204 = vpop.f32.mrb[0].mxu0
      %6205 = vmatprep.mubr.bf16.mxu0 %v5430
      %6206 = vmatmul.mubr.bf16.gmra.mrb[0].mxu0 %v5429
      %v6207 = vpop.f32.mrb[0].mxu0
      %v6208 = vadd.f32 %v6143, %v6207
      %v6209 = vpop.f32.mrb[0].mxu0
      %v6210 = vpop.f32.mrb[0].mxu0
      %v6211 = vadd.f32 %v6146, %v6210
      %v6212 = vpop.f32.mrb[0].mxu0
      %6213 = vmatprep.mubr.bf16.mxu0 %v5439
      %6214 = vmatmul.mubr.bf16.gmra.mrb[0].mxu0 %v5438
      %v6215 = vpop.f32.mrb[0].mxu0
      %v6216 = vadd.f32 %v6151, %v6215
      %v6217 = vpop.f32.mrb[0].mxu0
      %v6218 = vpop.f32.mrb[0].mxu0
      %v6219 = vadd.f32 %v6154, %v6218
      %v6220 = vpop.f32.mrb[0].mxu0
      %6221 = vmatprep.mubr.bf16.mxu0 %v5448
      %6222 = vmatmul.mubr.bf16.gmra.mrb[0].mxu0 %v5447
      %v6223 = vpop.f32.mrb[0].mxu0
      %v6224 = vadd.f32 %v6159, %v6223
      %v6225 = vpop.f32.mrb[0].mxu0
      %v6226 = vpop.f32.mrb[0].mxu0
      %v6227 = vadd.f32 %v6162, %v6226
      %v6228 = vpop.f32.mrb[0].mxu0
      %6229 = vdwg.mxu0
      %6230 = vmatprep.subr.bf16.mxu0 0
      %6231 = vmatpush1.bf16.msra.mxu0 %v5939
      %6232 = vmatprep.subr.bf16.mxu0 0
      %6233 = vmatpush1.bf16.msra.mxu0 %v5940
      %6234 = vmatprep.subr.bf16.mxu0 0
      %6235 = vmatpush1.bf16.msra.mxu0 %v5941
      %6236 = vmatprep.subr.bf16.mxu0 0
      %6237 = vmatpush1.bf16.msra.mxu0 %v5942
      %6238 = vmatprep.subr.bf16.mxu0 0
      %6239 = vmatpush1.bf16.msra.mxu0 %v5943
      %6240 = vmatprep.subr.bf16.mxu0 0
      %6241 = vmatpush1.bf16.msra.mxu0 %v5944
      %6242 = vmatprep.subr.bf16.mxu0 0
      %6243 = vmatpush1.bf16.msra.mxu0 %v5945
      %6244 = vmatprep.subr.bf16.mxu0 0
      %6245 = vmatpush1.bf16.msra.mxu0 %v5946
      %6246 = vmatprep.subr.bf16.mxu0 0
      %6247 = vmatpush1.bf16.msra.mxu0 %v5947
      %6248 = vmatprep.subr.bf16.mxu0 0
      %6249 = vmatpush1.bf16.msra.mxu0 %v5948
      %6250 = vmatprep.subr.bf16.mxu0 0
      %6251 = vmatpush1.bf16.msra.mxu0 %v5949
      %6252 = vmatprep.subr.bf16.mxu0 0
      %6253 = vmatpush1.bf16.msra.mxu0 %v5950
      %6254 = vmatprep.subr.bf16.mxu0 0
      %6255 = vmatpush1.bf16.msra.mxu0 %v5951
      %6256 = vmatprep.subr.bf16.mxu0 0
      %6257 = vmatpush1.bf16.msra.mxu0 %v5952
      %6258 = vmatprep.subr.bf16.mxu0 0
      %6259 = vmatpush1.bf16.msra.mxu0 %v5953
      %6260 = vmatprep.subr.bf16.mxu0 0
      %6261 = vmatpush1.bf16.msra.mxu0 %v5954
      %6262 = vmatprep.mubr.bf16.mxu0 %v5423
      %6263 = vmatmul.mubr.bf16.gmra.mrb[0].mxu0 %v5422
      %v6264 = vpop.f32.mrb[0].mxu0
      %v6265 = vadd.f32 %v6200, %v6264
      %v6266 = vpop.f32.mrb[0].mxu0
      %v6267 = vpop.f32.mrb[0].mxu0
      %v6268 = vadd.f32 %v6203, %v6267
      %v6269 = vpop.f32.mrb[0].mxu0
      %6270 = vmatprep.mubr.bf16.mxu0 %v5432
      %6271 = vmatmul.mubr.bf16.gmra.mrb[0].mxu0 %v5431
      %v6272 = vpop.f32.mrb[0].mxu0
      %v6273 = vadd.f32 %v6208, %v6272
      %v6274 = vpop.f32.mrb[0].mxu0
      %v6275 = vpop.f32.mrb[0].mxu0
      %v6276 = vadd.f32 %v6211, %v6275
      %v6277 = vpop.f32.mrb[0].mxu0
      %6278 = vmatprep.mubr.bf16.mxu0 %v5441
      %6279 = vmatmul.mubr.bf16.gmra.mrb[0].mxu0 %v5440
      %v6280 = vpop.f32.mrb[0].mxu0
      %v6281 = vadd.f32 %v6216, %v6280
      %v6282 = vpop.f32.mrb[0].mxu0
      %v6283 = vpop.f32.mrb[0].mxu0
      %v6284 = vadd.f32 %v6219, %v6283
      %v6285 = vpop.f32.mrb[0].mxu0
      %6286 = vmatprep.mubr.bf16.mxu0 %v5450
      %6287 = vmatmul.mubr.bf16.gmra.mrb[0].mxu0 %v5449
      %v6288 = vpop.f32.mrb[0].mxu0
      %v6289 = vadd.f32 %v6224, %v6288
      %v6290 = vpop.f32.mrb[0].mxu0
      %v6291 = vpop.f32.mrb[0].mxu0
      %v6292 = vadd.f32 %v6227, %v6291
      %v6293 = vpop.f32.mrb[0].mxu0
      %6294 = vdwg.mxu0
      %6295 = vmatprep.subr.bf16.mxu0 0
      %6296 = vmatpush1.bf16.msra.mxu0 %v5955
      %6297 = vmatprep.subr.bf16.mxu0 0
      %6298 = vmatpush1.bf16.msra.mxu0 %v5956
      %6299 = vmatprep.subr.bf16.mxu0 0
      %6300 = vmatpush1.bf16.msra.mxu0 %v5957
      %6301 = vmatprep.subr.bf16.mxu0 0
      %6302 = vmatpush1.bf16.msra.mxu0 %v5958
      %6303 = vmatprep.subr.bf16.mxu0 0
      %6304 = vmatpush1.bf16.msra.mxu0 %v5959
      %6305 = vmatprep.subr.bf16.mxu0 0
      %6306 = vmatpush1.bf16.msra.mxu0 %v5960
      %6307 = vmatprep.subr.bf16.mxu0 0
      %6308 = vmatpush1.bf16.msra.mxu0 %v5961
      %6309 = vmatprep.subr.bf16.mxu0 0
      %6310 = vmatpush1.bf16.msra.mxu0 %v5962
      %6311 = vmatprep.subr.bf16.mxu0 0
      %6312 = vmatpush1.bf16.msra.mxu0 0
      %6313 = vmatprep.subr.bf16.mxu0 0
      %6314 = vmatpush1.bf16.msra.mxu0 0
      %6315 = vmatprep.subr.bf16.mxu0 0
      %6316 = vmatpush1.bf16.msra.mxu0 0
      %6317 = vmatprep.subr.bf16.mxu0 0
      %6318 = vmatpush1.bf16.msra.mxu0 0
      %6319 = vmatprep.subr.bf16.mxu0 0
      %6320 = vmatpush1.bf16.msra.mxu0 0
      %6321 = vmatprep.subr.bf16.mxu0 0
      %6322 = vmatpush1.bf16.msra.mxu0 0
      %6323 = vmatprep.subr.bf16.mxu0 0
      %6324 = vmatpush1.bf16.msra.mxu0 0
      %6325 = vmatprep.subr.bf16.mxu0 0
      %6326 = vmatpush1.bf16.msra.mxu0 0
      %6327 = vmatprep.mubr.bf16.mxu0 0
      %6328 = vmatmul.mubr.bf16.gmra.mrb[0].mxu0 %v5424
      %v6329 = vpop.f32.mrb[0].mxu0
      %v6330 = vadd.f32 %v6265, %v6329
      %v6331 = vpop.f32.mrb[0].mxu0
      %v6332 = vpop.f32.mrb[0].mxu0
      %v6333 = vadd.f32 %v6268, %v6332
      %v6334 = vpop.f32.mrb[0].mxu0
      %6335 = vmatprep.mubr.bf16.mxu0 0
      %6336 = vmatmul.mubr.bf16.gmra.mrb[0].mxu0 %v5433
      %v6337 = vpop.f32.mrb[0].mxu0
      %v6338 = vadd.f32 %v6273, %v6337
      %v6339 = vpop.f32.mrb[0].mxu0
      %v6340 = vpop.f32.mrb[0].mxu0
      %v6341 = vadd.f32 %v6276, %v6340
      %v6342 = vpop.f32.mrb[0].mxu0
      %6343 = vmatprep.mubr.bf16.mxu0 0
      %6344 = vmatmul.mubr.bf16.gmra.mrb[0].mxu0 %v5442
      %v6345 = vpop.f32.mrb[0].mxu0
      %v6346 = vadd.f32 %v6281, %v6345
      %v6347 = vpop.f32.mrb[0].mxu0
      %v6348 = vpop.f32.mrb[0].mxu0
      %v6349 = vadd.f32 %v6284, %v6348
      %v6350 = vpop.f32.mrb[0].mxu0
      %6351 = vmatprep.mubr.bf16.mxu0 0
      %6352 = vmatmul.mubr.bf16.gmra.mrb[0].mxu0 %v5451
      %v6353 = vpop.f32.mrb[0].mxu0
      %v6354 = vadd.f32 %v6289, %v6353
      %v6355 = vpop.f32.mrb[0].mxu0
      %v6356 = vpop.f32.mrb[0].mxu0
      %v6357 = vadd.f32 %v6292, %v6356
      %v6358 = vpop.f32.mrb[0].mxu0
      %6359 = vdwg.mxu0
      %v6360 = vmax.f32 %v6330, 0.0
      %v6361 = vmax.f32 %v6333, 0.0
      %v6362 = vmax.f32 %v6338, 0.0
      %v6363 = vmax.f32 %v6341, 0.0
      %v6364 = vmax.f32 %v6346, 0.0
      %v6365 = vmax.f32 %v6349, 0.0
      %v6366 = vmax.f32 %v6354, 0.0
      %v6367 = vmax.f32 %v6357, 0.0
      %6368 = vst [vmem:[%s5262 + $0x8] sm:$0xff] %v6360
      %6369 = vst [vmem:[%s5262 + $0x20] sm:$0xff] %v6361
      %6370 = vst [vmem:[%s5262 + $0x38] sm:$0xff] %v6362
      %6371 = vst [vmem:[%s5262 + $0x50] sm:$0xff] %v6363
      %6372 = vst [vmem:[%s5262 + $0x68] sm:$0xff] %v6364
      %6373 = vst [vmem:[%s5262 + $0x80] sm:$0xff] %v6365
      %6374 = vst [vmem:[%s5262 + $0x98] sm:$0xff] %v6366
      %6375 = vst [vmem:[%s5262 + $0xb0] sm:$0xff] %v6367
      %v6376 = vld [vmem:[#allocation3 + $0x7] sm:$0xff]
      %v6377 = vld [vmem:[#allocation3 + $0x1f] sm:$0xff]
      %v6378 = vld [vmem:[#allocation3 + $0x37] sm:$0xff]
      %v6379 = vld [vmem:[#allocation3 + $0x4f] sm:$0xff]
      %v6380 = vld [vmem:[#allocation3 + $0x67] sm:$0xff]
      %v6381 = vld [vmem:[#allocation3 + $0x7f] sm:$0xff]
      %v6382 = vld [vmem:[#allocation3 + $0x97] sm:$0xff]
      %v6383 = vld [vmem:[#allocation3 + $0xaf] sm:$0xff]
      %v6384 = vpack.c.bf16 %v6377, %v6376
      %v6385 = vpack.c.bf16 %v6379, %v6378
      %v6386 = vpack.c.bf16 %v6381, %v6380
      %v6387 = vpack.c.bf16 %v6383, %v6382
      %6388 = vst [vmem:[#allocation4] sm:$0xff] %v6384
      %6389 = vst [vmem:[#allocation4 + $0x48] sm:$0xff] %v6385
      %6390 = vst [vmem:[#allocation4 + $0x90] sm:$0xff] %v6386
      %6391 = vst [vmem:[#allocation4 + $0xd8] sm:$0xff] %v6387
      %v6392 = vld [vmem:[#allocation3 + $0x8] sm:$0xff]
      %v6393 = vld [vmem:[#allocation3 + $0x20] sm:$0xff]
      %v6394 = vld [vmem:[#allocation3 + $0x38] sm:$0xff]
      %v6395 = vld [vmem:[#allocation3 + $0x50] sm:$0xff]
      %v6396 = vld [vmem:[#allocation3 + $0x68] sm:$0xff]
      %v6397 = vld [vmem:[#allocation3 + $0x80] sm:$0xff]
      %v6398 = vld [vmem:[#allocation3 + $0x98] sm:$0xff]
      %v6399 = vld [vmem:[#allocation3 + $0xb0] sm:$0xff]
      %v6400 = vpack.c.bf16 %v6393, %v6392
      %v6401 = vpack.c.bf16 %v6395, %v6394
      %v6402 = vpack.c.bf16 %v6397, %v6396
      %v6403 = vpack.c.bf16 %v6399, %v6398
      %6404 = vst [vmem:[#allocation4 + $0x8] sm:$0xff] %v6400
      %6405 = vst [vmem:[#allocation4 + $0x50] sm:$0xff] %v6401
      %6406 = vst [vmem:[#allocation4 + $0x98] sm:$0xff] %v6402
      %6407 = vst [vmem:[#allocation4 + $0xe0] sm:$0xff] %v6403
      %v6408 = vld [vmem:[#allocation3 + $0x9] sm:$0xff]
      %v6409 = vld [vmem:[#allocation3 + $0x21] sm:$0xff]
      %v6410 = vld [vmem:[#allocation3 + $0x39] sm:$0xff]
      %v6411 = vld [vmem:[#allocation3 + $0x51] sm:$0xff]
      %v6412 = vld [vmem:[#allocation3 + $0x69] sm:$0xff]
      %v6413 = vld [vmem:[#allocation3 + $0x81] sm:$0xff]
      %v6414 = vld [vmem:[#allocation3 + $0x99] sm:$0xff]
      %v6415 = vld [vmem:[#allocation3 + $0xb1] sm:$0xff]
      %v6416 = vpack.c.bf16 %v6409, %v6408
      %v6417 = vpack.c.bf16 %v6411, %v6410
      %v6418 = vpack.c.bf16 %v6413, %v6412
      %v6419 = vpack.c.bf16 %v6415, %v6414
      %6420 = vst [vmem:[#allocation4 + $0x10] sm:$0xff] %v6416
      %6421 = vst [vmem:[#allocation4 + $0x58] sm:$0xff] %v6417
      %6422 = vst [vmem:[#allocation4 + $0xa0] sm:$0xff] %v6418
      %6423 = vst [vmem:[#allocation4 + $0xe8] sm:$0xff] %v6419
      %v6424 = vld [vmem:[%s5262 + $0x7] sm:$0xff]
      %v6425 = vld [vmem:[%s5262 + $0x1f] sm:$0xff]
      %v6426 = vld [vmem:[%s5262 + $0x37] sm:$0xff]
      %v6427 = vld [vmem:[%s5262 + $0x4f] sm:$0xff]
      %v6428 = vld [vmem:[%s5262 + $0x67] sm:$0xff]
      %v6429 = vld [vmem:[%s5262 + $0x7f] sm:$0xff]
      %v6430 = vld [vmem:[%s5262 + $0x97] sm:$0xff]
      %v6431 = vld [vmem:[%s5262 + $0xaf] sm:$0xff]
      %v6432 = vpack.c.bf16 %v6425, %v6424
      %v6433 = vpack.c.bf16 %v6427, %v6426
      %v6434 = vpack.c.bf16 %v6429, %v6428
      %v6435 = vpack.c.bf16 %v6431, %v6430
      %6436 = vst [vmem:[#allocation4 + $0x18] sm:$0xff] %v6432
      %6437 = vst [vmem:[#allocation4 + $0x60] sm:$0xff] %v6433
      %6438 = vst [vmem:[#allocation4 + $0xa8] sm:$0xff] %v6434
      %6439 = vst [vmem:[#allocation4 + $0xf0] sm:$0xff] %v6435
      %v6440 = vld [vmem:[%s5262 + $0x8] sm:$0xff]
      %v6441 = vld [vmem:[%s5262 + $0x20] sm:$0xff]
      %v6442 = vld [vmem:[%s5262 + $0x38] sm:$0xff]
      %v6443 = vld [vmem:[%s5262 + $0x50] sm:$0xff]
      %v6444 = vld [vmem:[%s5262 + $0x68] sm:$0xff]
      %v6445 = vld [vmem:[%s5262 + $0x80] sm:$0xff]
      %v6446 = vld [vmem:[%s5262 + $0x98] sm:$0xff]
      %v6447 = vld [vmem:[%s5262 + $0xb0] sm:$0xff]
      %v6448 = vpack.c.bf16 %v6441, %v6440
      %v6449 = vpack.c.bf16 %v6443, %v6442
      %v6450 = vpack.c.bf16 %v6445, %v6444
      %v6451 = vpack.c.bf16 %v6447, %v6446
      %6452 = vst [vmem:[#allocation4 + $0x20] sm:$0xff] %v6448
      %6453 = vst [vmem:[#allocation4 + $0x68] sm:$0xff] %v6449
      %6454 = vst [vmem:[#allocation4 + $0xb0] sm:$0xff] %v6450
      %6455 = vst [vmem:[#allocation4 + $0xf8] sm:$0xff] %v6451
      %v6456 = vld [vmem:[%s5262 + $0x9] sm:$0xff]
      %v6457 = vld [vmem:[%s5262 + $0x21] sm:$0xff]
      %v6458 = vld [vmem:[%s5262 + $0x39] sm:$0xff]
      %v6459 = vld [vmem:[%s5262 + $0x51] sm:$0xff]
      %v6460 = vld [vmem:[%s5262 + $0x69] sm:$0xff]
      %v6461 = vld [vmem:[%s5262 + $0x81] sm:$0xff]
      %v6462 = vld [vmem:[%s5262 + $0x99] sm:$0xff]
      %v6463 = vld [vmem:[%s5262 + $0xb1] sm:$0xff]
      %v6464 = vpack.c.bf16 %v6457, %v6456
      %v6465 = vpack.c.bf16 %v6459, %v6458
      %v6466 = vpack.c.bf16 %v6461, %v6460
      %v6467 = vpack.c.bf16 %v6463, %v6462
      %6468 = vst [vmem:[#allocation4 + $0x28] sm:$0xff] %v6464
      %6469 = vst [vmem:[#allocation4 + $0x70] sm:$0xff] %v6465
      %6470 = vst [vmem:[#allocation4 + $0xb8] sm:$0xff] %v6466
      %6471 = vst [vmem:[#allocation4 + $0x100] sm:$0xff] %v6467
      %v6472 = vld [vmem:[%s5367 + $0x7] sm:$0xff]
      %v6473 = vld [vmem:[%s5367 + $0x1f] sm:$0xff]
      %v6474 = vld [vmem:[%s5367 + $0x37] sm:$0xff]
      %v6475 = vld [vmem:[%s5367 + $0x4f] sm:$0xff]
      %v6476 = vld [vmem:[%s5367 + $0x67] sm:$0xff]
      %v6477 = vld [vmem:[%s5367 + $0x7f] sm:$0xff]
      %v6478 = vld [vmem:[%s5367 + $0x97] sm:$0xff]
      %v6479 = vld [vmem:[%s5367 + $0xaf] sm:$0xff]
      %v6480 = vpack.c.bf16 %v6473, %v6472
      %v6481 = vpack.c.bf16 %v6475, %v6474
      %v6482 = vpack.c.bf16 %v6477, %v6476
      %v6483 = vpack.c.bf16 %v6479, %v6478
      %6484 = vst [vmem:[#allocation4 + $0x30] sm:$0xff] %v6480
      %6485 = vst [vmem:[#allocation4 + $0x78] sm:$0xff] %v6481
      %6486 = vst [vmem:[#allocation4 + $0xc0] sm:$0xff] %v6482
      %6487 = vst [vmem:[#allocation4 + $0x108] sm:$0xff] %v6483
      %v6488 = vld [vmem:[%s5367 + $0x8] sm:$0xff]
      %v6489 = vld [vmem:[%s5367 + $0x20] sm:$0xff]
      %v6490 = vld [vmem:[%s5367 + $0x38] sm:$0xff]
      %v6491 = vld [vmem:[%s5367 + $0x50] sm:$0xff]
      %v6492 = vld [vmem:[%s5367 + $0x68] sm:$0xff]
      %v6493 = vld [vmem:[%s5367 + $0x80] sm:$0xff]
      %v6494 = vld [vmem:[%s5367 + $0x98] sm:$0xff]
      %v6495 = vld [vmem:[%s5367 + $0xb0] sm:$0xff]
      %v6496 = vpack.c.bf16 %v6489, %v6488
      %v6497 = vpack.c.bf16 %v6491, %v6490
      %v6498 = vpack.c.bf16 %v6493, %v6492
      %v6499 = vpack.c.bf16 %v6495, %v6494
      %6500 = vst [vmem:[#allocation4 + $0x38] sm:$0xff] %v6496
      %6501 = vst [vmem:[#allocation4 + $0x80] sm:$0xff] %v6497
      %6502 = vst [vmem:[#allocation4 + $0xc8] sm:$0xff] %v6498
      %6503 = vst [vmem:[#allocation4 + $0x110] sm:$0xff] %v6499
      %v6504 = vld [vmem:[%s5367 + $0x9] sm:$0xff]
      %v6505 = vld [vmem:[%s5367 + $0x21] sm:$0xff]
      %v6506 = vld [vmem:[%s5367 + $0x39] sm:$0xff]
      %v6507 = vld [vmem:[%s5367 + $0x51] sm:$0xff]
      %v6508 = vld [vmem:[%s5367 + $0x69] sm:$0xff]
      %v6509 = vld [vmem:[%s5367 + $0x81] sm:$0xff]
      %v6510 = vld [vmem:[%s5367 + $0x99] sm:$0xff]
      %v6511 = vld [vmem:[%s5367 + $0xb1] sm:$0xff]
      %v6512 = vpack.c.bf16 %v6505, %v6504
      %v6513 = vpack.c.bf16 %v6507, %v6506
      %v6514 = vpack.c.bf16 %v6509, %v6508
      %v6515 = vpack.c.bf16 %v6511, %v6510
      %6516 = vst [vmem:[#allocation4 + $0x40] sm:$0xff] %v6512
      %6517 = vst [vmem:[#allocation4 + $0x88] sm:$0xff] %v6513
      %6518 = vst [vmem:[#allocation4 + $0xd0] sm:$0xff] %v6514
      %6519 = vst [vmem:[#allocation4 + $0x118] sm:$0xff] %v6515
      %v6520 = vld [vmem:[#allocation4] sm:$0xff]
      %v6521 = vld [vmem:[#allocation4 + $0x8] sm:$0xff]
      %v6522 = vld [vmem:[#allocation4 + $0x10] sm:$0xff]
      %v6523 = vld [vmem:[#allocation4 + $0x18] sm:$0xff]
      %v6524 = vld [vmem:[#allocation4 + $0x20] sm:$0xff]
      %v6525 = vld [vmem:[#allocation4 + $0x28] sm:$0xff]
      %v6526 = vld [vmem:[#allocation4 + $0x30] sm:$0xff]
      %v6527 = vld [vmem:[#allocation4 + $0x38] sm:$0xff]
      %v6528 = vld [vmem:[#allocation4 + $0x40] sm:$0xff]
      %v6529 = vld [vmem:[#allocation4 + $0x48] sm:$0xff]
      %v6530 = vld [vmem:[#allocation4 + $0x50] sm:$0xff]
      %v6531 = vld [vmem:[#allocation4 + $0x58] sm:$0xff]
      %v6532 = vld [vmem:[#allocation4 + $0x60] sm:$0xff]
      %v6533 = vld [vmem:[#allocation4 + $0x68] sm:$0xff]
      %v6534 = vld [vmem:[#allocation4 + $0x70] sm:$0xff]
      %v6535 = vld [vmem:[#allocation4 + $0x78] sm:$0xff]
      %v6536 = vld [vmem:[#allocation4 + $0x80] sm:$0xff]
      %v6537 = vld [vmem:[#allocation4 + $0x88] sm:$0xff]
      %v6538 = vld [vmem:[#allocation4 + $0x90] sm:$0xff]
      %v6539 = vld [vmem:[#allocation4 + $0x98] sm:$0xff]
      %v6540 = vld [vmem:[#allocation4 + $0xa0] sm:$0xff]
      %v6541 = vld [vmem:[#allocation4 + $0xa8] sm:$0xff]
      %v6542 = vld [vmem:[#allocation4 + $0xb0] sm:$0xff]
      %v6543 = vld [vmem:[#allocation4 + $0xb8] sm:$0xff]
      %v6544 = vld [vmem:[#allocation4 + $0xc0] sm:$0xff]
      %v6545 = vld [vmem:[#allocation4 + $0xc8] sm:$0xff]
      %v6546 = vld [vmem:[#allocation4 + $0xd0] sm:$0xff]
      %v6547 = vld [vmem:[#allocation4 + $0xd8] sm:$0xff]
      %v6548 = vld [vmem:[#allocation4 + $0xe0] sm:$0xff]
      %v6549 = vld [vmem:[#allocation4 + $0xe8] sm:$0xff]
      %v6550 = vld [vmem:[#allocation4 + $0xf0] sm:$0xff]
      %v6551 = vld [vmem:[#allocation4 + $0xf8] sm:$0xff]
      %v6552 = vld [vmem:[#allocation4 + $0x100] sm:$0xff]
      %v6553 = vld [vmem:[#allocation4 + $0x108] sm:$0xff]
      %v6554 = vld [vmem:[#allocation4 + $0x110] sm:$0xff]
      %v6555 = vld [vmem:[#allocation4 + $0x118] sm:$0xff]
      %v6556 = vld [vmem:[%s7] sm:$0xf]
      %v6557 = vld [vmem:[%s7 + $0x4] sm:$0xf]
      %v6558 = vld [vmem:[%s7 + $0x8] sm:$0xf]
      %v6559 = vld [vmem:[%s7 + $0xc] sm:$0xf]
      %v6560 = vld [vmem:[%s7 + $0x10] sm:$0xf]
      %v6561 = vld [vmem:[%s7 + $0x14] sm:$0xf]
      %v6562 = vld [vmem:[%s7 + $0x18] sm:$0xf]
      %v6563 = vld [vmem:[%s7 + $0x1c] sm:$0xf]
      %v6564 = vld [vmem:[%s7 + $0x20] sm:$0xf]
      %v6565 = vld [vmem:[%s7 + $0x24] sm:$0xf]
      %v6566 = vld [vmem:[%s7 + $0x28] sm:$0xf]
      %v6567 = vld [vmem:[%s7 + $0x2c] sm:$0xf]
      %v6568 = vld [vmem:[%s7 + $0x30] sm:$0xf]
      %v6569 = vld [vmem:[%s7 + $0x34] sm:$0xf]
      %v6570 = vld [vmem:[%s7 + $0x38] sm:$0xf]
      %v6571 = vld [vmem:[%s7 + $0x3c] sm:$0xf]
      %v6572 = vld [vmem:[%s7 + $0x40] sm:$0xf]
      %v6573 = vld [vmem:[%s7 + $0x44] sm:$0xf]
      %v6574 = vld [vmem:[%s7 + $0x48] sm:$0xf]
      %v6575 = vld [vmem:[%s7 + $0x4c] sm:$0xf]
      %v6576 = vld [vmem:[%s7 + $0x50] sm:$0xf]
      %v6577 = vld [vmem:[%s7 + $0x54] sm:$0xf]
      %v6578 = vld [vmem:[%s7 + $0x58] sm:$0xf]
      %v6579 = vld [vmem:[%s7 + $0x5c] sm:$0xf]
      %v6580 = vld [vmem:[%s7 + $0x60] sm:$0xf]
      %v6581 = vld [vmem:[%s7 + $0x64] sm:$0xf]
      %v6582 = vld [vmem:[%s7 + $0x68] sm:$0xf]
      %v6583 = vld [vmem:[%s7 + $0x6c] sm:$0xf]
      %v6584 = vld [vmem:[%s7 + $0x70] sm:$0xf]
      %v6585 = vld [vmem:[%s7 + $0x74] sm:$0xf]
      %v6586 = vld [vmem:[%s7 + $0x78] sm:$0xf]
      %v6587 = vld [vmem:[%s7 + $0x7c] sm:$0xf]
      %v6588 = vld [vmem:[%s7 + $0x80] sm:$0xf]
      %v6589 = vld [vmem:[%s7 + $0x84] sm:$0xf]
      %v6590 = vld [vmem:[%s7 + $0x88] sm:$0xf]
      %v6591 = vld [vmem:[%s7 + $0x8c] sm:$0xf]
      %v6592 = vld [vmem:[%s7 + $0x90] sm:$0xf]
      %v6593 = vld [vmem:[%s7 + $0x94] sm:$0xf]
      %v6594 = vld [vmem:[%s7 + $0x98] sm:$0xf]
      %v6595 = vld [vmem:[%s7 + $0x9c] sm:$0xf]
      %v6596 = vld [vmem:[%s7 + $0xa0] sm:$0xf]
      %v6597 = vld [vmem:[%s7 + $0xa4] sm:$0xf]
      %v6598 = vld [vmem:[%s7 + $0xa8] sm:$0xf]
      %v6599 = vld [vmem:[%s7 + $0xac] sm:$0xf]
      %v6600 = vld [vmem:[%s7 + $0xb0] sm:$0xf]
      %v6601 = vld [vmem:[%s7 + $0xb4] sm:$0xf]
      %v6602 = vld [vmem:[%s7 + $0xb8] sm:$0xf]
      %v6603 = vld [vmem:[%s7 + $0xbc] sm:$0xf]
      %v6604 = vld [vmem:[%s7 + $0xc0] sm:$0xf]
      %v6605 = vld [vmem:[%s7 + $0xc4] sm:$0xf]
      %v6606 = vld [vmem:[%s7 + $0xc8] sm:$0xf]
      %v6607 = vld [vmem:[%s7 + $0xcc] sm:$0xf]
      %v6608 = vld [vmem:[%s7 + $0xd0] sm:$0xf]
      %v6609 = vld [vmem:[%s7 + $0xd4] sm:$0xf]
      %v6610 = vld [vmem:[%s7 + $0xd8] sm:$0xf]
      %v6611 = vld [vmem:[%s7 + $0xdc] sm:$0xf]
      %v6612 = vld [vmem:[%s7 + $0xe0] sm:$0xf]
      %v6613 = vld [vmem:[%s7 + $0xe4] sm:$0xf]
      %v6614 = vld [vmem:[%s7 + $0xe8] sm:$0xf]
      %v6615 = vld [vmem:[%s7 + $0xec] sm:$0xf]
      %v6616 = vld [vmem:[%s7 + $0xf0] sm:$0xf]
      %v6617 = vld [vmem:[%s7 + $0xf4] sm:$0xf]
      %v6618 = vld [vmem:[%s7 + $0xf8] sm:$0xf]
      %v6619 = vld [vmem:[%s7 + $0xfc] sm:$0xf]
      %v6620 = vld [vmem:[%s7 + $0x100] sm:$0xf]
      %v6621 = vld [vmem:[%s7 + $0x104] sm:$0xf]
      %v6622 = vld [vmem:[%s7 + $0x108] sm:$0xf]
      %v6623 = vld [vmem:[%s7 + $0x10c] sm:$0xf]
      %v6624 = vld [vmem:[%s7 + $0x110] sm:$0xf]
      %v6625 = vld [vmem:[%s7 + $0x114] sm:$0xf]
      %v6626 = vld [vmem:[%s7 + $0x118] sm:$0xf]
      %v6627 = vld [vmem:[%s7 + $0x11c] sm:$0xf]
      %v6628 = vld [vmem:[%s7 + $0x120] sm:$0xf]
      %v6629 = vld [vmem:[%s7 + $0x124] sm:$0xf]
      %v6630 = vld [vmem:[%s7 + $0x128] sm:$0xf]
      %v6631 = vld [vmem:[%s7 + $0x12c] sm:$0xf]
      %v6632 = vld [vmem:[%s7 + $0x130] sm:$0xf]
      %v6633 = vld [vmem:[%s7 + $0x134] sm:$0xf]
      %v6634 = vld [vmem:[%s7 + $0x138] sm:$0xf]
      %v6635 = vld [vmem:[%s7 + $0x13c] sm:$0xf]
      %v6636 = vld [vmem:[%s7 + $0x140] sm:$0xf]
      %v6637 = vld [vmem:[%s7 + $0x144] sm:$0xf]
      %v6638 = vld [vmem:[%s7 + $0x148] sm:$0xf]
      %v6639 = vld [vmem:[%s7 + $0x14c] sm:$0xf]
      %v6640 = vld [vmem:[%s7 + $0x150] sm:$0xf]
      %v6641 = vld [vmem:[%s7 + $0x154] sm:$0xf]
      %v6642 = vld [vmem:[%s7 + $0x158] sm:$0xf]
      %v6643 = vld [vmem:[%s7 + $0x15c] sm:$0xf]
      %v6644 = vld [vmem:[%s7 + $0x160] sm:$0xf]
      %v6645 = vld [vmem:[%s7 + $0x164] sm:$0xf]
      %v6646 = vld [vmem:[%s7 + $0x168] sm:$0xf]
      %v6647 = vld [vmem:[%s7 + $0x16c] sm:$0xf]
      %v6648 = vld [vmem:[%s7 + $0x170] sm:$0xf]
      %v6649 = vld [vmem:[%s7 + $0x174] sm:$0xf]
      %v6650 = vld [vmem:[%s7 + $0x178] sm:$0xf]
      %v6651 = vld [vmem:[%s7 + $0x17c] sm:$0xf]
      %v6652 = vld [vmem:[%s7 + $0x180] sm:$0xf]
      %v6653 = vld [vmem:[%s7 + $0x184] sm:$0xf]
      %v6654 = vld [vmem:[%s7 + $0x188] sm:$0xf]
      %v6655 = vld [vmem:[%s7 + $0x18c] sm:$0xf]
      %v6656 = vld [vmem:[%s7 + $0x190] sm:$0xf]
      %v6657 = vld [vmem:[%s7 + $0x194] sm:$0xf]
      %v6658 = vld [vmem:[%s7 + $0x198] sm:$0xf]
      %v6659 = vld [vmem:[%s7 + $0x19c] sm:$0xf]
      %v6660 = vld [vmem:[%s7 + $0x1a0] sm:$0xf]
      %v6661 = vld [vmem:[%s7 + $0x1a4] sm:$0xf]
      %v6662 = vld [vmem:[%s7 + $0x1a8] sm:$0xf]
      %v6663 = vld [vmem:[%s7 + $0x1ac] sm:$0xf]
      %v6664 = vld [vmem:[%s7 + $0x1b0] sm:$0xf]
      %v6665 = vld [vmem:[%s7 + $0x1b4] sm:$0xf]
      %v6666 = vld [vmem:[%s7 + $0x1b8] sm:$0xf]
      %v6667 = vld [vmem:[%s7 + $0x1bc] sm:$0xf]
      %v6668 = vld [vmem:[%s7 + $0x1c0] sm:$0xf]
      %v6669 = vld [vmem:[%s7 + $0x1c4] sm:$0xf]
      %v6670 = vld [vmem:[%s7 + $0x1c8] sm:$0xf]
      %v6671 = vld [vmem:[%s7 + $0x1cc] sm:$0xf]
      %v6672 = vld [vmem:[%s7 + $0x1d0] sm:$0xf]
      %v6673 = vld [vmem:[%s7 + $0x1d4] sm:$0xf]
      %v6674 = vld [vmem:[%s7 + $0x1d8] sm:$0xf]
      %v6675 = vld [vmem:[%s7 + $0x1dc] sm:$0xf]
      %v6676 = vld [vmem:[%s7 + $0x1e0] sm:$0xf]
      %v6677 = vld [vmem:[%s7 + $0x1e4] sm:$0xf]
      %v6678 = vld [vmem:[%s7 + $0x1e8] sm:$0xf]
      %v6679 = vld [vmem:[%s7 + $0x1ec] sm:$0xf]
      %v6680 = vld [vmem:[%s7 + $0x1f0] sm:$0xf]
      %v6681 = vld [vmem:[%s7 + $0x1f4] sm:$0xf]
      %v6682 = vld [vmem:[%s7 + $0x1f8] sm:$0xf]
      %v6683 = vld [vmem:[%s7 + $0x1fc] sm:$0xf]
      %v6684 = vld [vmem:[%s7 + $0x200] sm:$0xf]
      %v6685 = vld [vmem:[%s7 + $0x204] sm:$0xf]
      %v6686 = vld [vmem:[%s7 + $0x208] sm:$0xf]
      %v6687 = vld [vmem:[%s7 + $0x20c] sm:$0xf]
      %v6688 = vld [vmem:[%s7 + $0x210] sm:$0xf]
      %v6689 = vld [vmem:[%s7 + $0x214] sm:$0xf]
      %v6690 = vld [vmem:[%s7 + $0x218] sm:$0xf]
      %v6691 = vld [vmem:[%s7 + $0x21c] sm:$0xf]
      %v6692 = vld [vmem:[%s7 + $0x220] sm:$0xf]
      %v6693 = vld [vmem:[%s7 + $0x224] sm:$0xf]
      %v6694 = vld [vmem:[%s7 + $0x228] sm:$0xf]
      %v6695 = vld [vmem:[%s7 + $0x22c] sm:$0xf]
      %v6696 = vld [vmem:[%s7 + $0x230] sm:$0xf]
      %v6697 = vld [vmem:[%s7 + $0x234] sm:$0xf]
      %v6698 = vld [vmem:[%s7 + $0x238] sm:$0xf]
      %v6699 = vld [vmem:[%s7 + $0x23c] sm:$0xf]
      %v6700 = vld [vmem:[%s8] sm:$0x1]
      %v6702 = vlaneseq
      %v6703 = vshrl.u32 %v6702, 7
      %v6704 = vsub.s32 0, %v6703
      %v6705 = vrot.slane %v6700, %v6704
      %v6851 = vunpack.c.l.b16 %v6556
      %v6852 = vunpack.c.l.b16 %v6557
      %v6853 = vunpack.c.l.b16 %v6558
      %v6854 = vunpack.c.l.b16 %v6559
      %v6855 = vunpack.c.l.b16 %v6560
      %v6856 = vunpack.c.l.b16 %v6561
      %v6857 = vunpack.c.l.b16 %v6562
      %v6858 = vunpack.c.l.b16 %v6563
      %v6859 = vunpack.c.l.b16 %v6564
      %v6860 = vunpack.c.l.b16 %v6565
      %v6861 = vunpack.c.l.b16 %v6566
      %v6862 = vunpack.c.l.b16 %v6567
      %v6863 = vunpack.c.l.b16 %v6568
      %v6864 = vunpack.c.l.b16 %v6569
      %v6865 = vunpack.c.l.b16 %v6570
      %v6866 = vunpack.c.l.b16 %v6571
      %v6867 = vunpack.c.l.b16 %v6572
      %v6868 = vunpack.c.l.b16 %v6573
      %v6869 = vunpack.c.l.b16 %v6574
      %v6870 = vunpack.c.l.b16 %v6575
      %v6871 = vunpack.c.l.b16 %v6576
      %v6872 = vunpack.c.l.b16 %v6577
      %v6873 = vunpack.c.l.b16 %v6578
      %v6874 = vunpack.c.l.b16 %v6579
      %v6875 = vunpack.c.l.b16 %v6580
      %v6876 = vunpack.c.l.b16 %v6581
      %v6877 = vunpack.c.l.b16 %v6582
      %v6878 = vunpack.c.l.b16 %v6583
      %v6879 = vunpack.c.l.b16 %v6584
      %v6880 = vunpack.c.l.b16 %v6585
      %v6881 = vunpack.c.l.b16 %v6586
      %v6882 = vunpack.c.l.b16 %v6587
      %v6883 = vunpack.c.l.b16 %v6588
      %v6884 = vunpack.c.l.b16 %v6589
      %v6885 = vunpack.c.l.b16 %v6590
      %v6886 = vunpack.c.l.b16 %v6591
      %v6887 = vunpack.c.l.b16 %v6592
      %v6888 = vunpack.c.l.b16 %v6593
      %v6889 = vunpack.c.l.b16 %v6594
      %v6890 = vunpack.c.l.b16 %v6595
      %v6891 = vunpack.c.l.b16 %v6596
      %v6892 = vunpack.c.l.b16 %v6597
      %v6893 = vunpack.c.l.b16 %v6598
      %v6894 = vunpack.c.l.b16 %v6599
      %v6895 = vunpack.c.l.b16 %v6600
      %v6896 = vunpack.c.l.b16 %v6601
      %v6897 = vunpack.c.l.b16 %v6602
      %v6898 = vunpack.c.l.b16 %v6603
      %v6899 = vunpack.c.l.b16 %v6604
      %v6900 = vunpack.c.l.b16 %v6605
      %v6901 = vunpack.c.l.b16 %v6606
      %v6902 = vunpack.c.l.b16 %v6607
      %v6903 = vunpack.c.l.b16 %v6608
      %v6904 = vunpack.c.l.b16 %v6609
      %v6905 = vunpack.c.l.b16 %v6610
      %v6906 = vunpack.c.l.b16 %v6611
      %v6907 = vunpack.c.l.b16 %v6612
      %v6908 = vunpack.c.l.b16 %v6613
      %v6909 = vunpack.c.l.b16 %v6614
      %v6910 = vunpack.c.l.b16 %v6615
      %v6911 = vunpack.c.l.b16 %v6616
      %v6912 = vunpack.c.l.b16 %v6617
      %v6913 = vunpack.c.l.b16 %v6618
      %v6914 = vunpack.c.l.b16 %v6619
      %v6915 = vunpack.c.l.b16 %v6620
      %v6916 = vunpack.c.l.b16 %v6621
      %v6917 = vunpack.c.l.b16 %v6622
      %v6918 = vunpack.c.l.b16 %v6623
      %v6919 = vunpack.c.l.b16 %v6624
      %v6920 = vunpack.c.l.b16 %v6625
      %v6921 = vunpack.c.l.b16 %v6626
      %v6922 = vunpack.c.l.b16 %v6627
      %v6923 = vunpack.c.l.b16 %v6628
      %v6924 = vunpack.c.l.b16 %v6629
      %v6925 = vunpack.c.l.b16 %v6630
      %v6926 = vunpack.c.l.b16 %v6631
      %v6927 = vunpack.c.l.b16 %v6632
      %v6928 = vunpack.c.l.b16 %v6633
      %v6929 = vunpack.c.l.b16 %v6634
      %v6930 = vunpack.c.l.b16 %v6635
      %v6931 = vunpack.c.l.b16 %v6636
      %v6932 = vunpack.c.l.b16 %v6637
      %v6933 = vunpack.c.l.b16 %v6638
      %v6934 = vunpack.c.l.b16 %v6639
      %v6935 = vunpack.c.l.b16 %v6640
      %v6936 = vunpack.c.l.b16 %v6641
      %v6937 = vunpack.c.l.b16 %v6642
      %v6938 = vunpack.c.l.b16 %v6643
      %v6939 = vunpack.c.l.b16 %v6644
      %v6940 = vunpack.c.l.b16 %v6645
      %v6941 = vunpack.c.l.b16 %v6646
      %v6942 = vunpack.c.l.b16 %v6647
      %v6943 = vunpack.c.l.b16 %v6648
      %v6944 = vunpack.c.l.b16 %v6649
      %v6945 = vunpack.c.l.b16 %v6650
      %v6946 = vunpack.c.l.b16 %v6651
      %v6947 = vunpack.c.l.b16 %v6652
      %v6948 = vunpack.c.l.b16 %v6653
      %v6949 = vunpack.c.l.b16 %v6654
      %v6950 = vunpack.c.l.b16 %v6655
      %v6951 = vunpack.c.l.b16 %v6656
      %v6952 = vunpack.c.l.b16 %v6657
      %v6953 = vunpack.c.l.b16 %v6658
      %v6954 = vunpack.c.l.b16 %v6659
      %v6955 = vunpack.c.l.b16 %v6660
      %v6956 = vunpack.c.l.b16 %v6661
      %v6957 = vunpack.c.l.b16 %v6662
      %v6958 = vunpack.c.l.b16 %v6663
      %v6959 = vunpack.c.l.b16 %v6664
      %v6960 = vunpack.c.l.b16 %v6665
      %v6961 = vunpack.c.l.b16 %v6666
      %v6962 = vunpack.c.l.b16 %v6667
      %v6963 = vunpack.c.l.b16 %v6668
      %v6964 = vunpack.c.l.b16 %v6669
      %v6965 = vunpack.c.l.b16 %v6670
      %v6966 = vunpack.c.l.b16 %v6671
      %v6967 = vunpack.c.l.b16 %v6672
      %v6968 = vunpack.c.l.b16 %v6673
      %v6969 = vunpack.c.l.b16 %v6674
      %v6970 = vunpack.c.l.b16 %v6675
      %v6971 = vunpack.c.l.b16 %v6676
      %v6972 = vunpack.c.l.b16 %v6677
      %v6973 = vunpack.c.l.b16 %v6678
      %v6974 = vunpack.c.l.b16 %v6679
      %v6975 = vunpack.c.l.b16 %v6680
      %v6976 = vunpack.c.l.b16 %v6681
      %v6977 = vunpack.c.l.b16 %v6682
      %v6978 = vunpack.c.l.b16 %v6683
      %v6979 = vunpack.c.l.b16 %v6684
      %v6980 = vunpack.c.l.b16 %v6685
      %v6981 = vunpack.c.l.b16 %v6686
      %v6982 = vunpack.c.l.b16 %v6687
      %v6983 = vunpack.c.l.b16 %v6688
      %v6984 = vunpack.c.l.b16 %v6689
      %v6985 = vunpack.c.l.b16 %v6690
      %v6986 = vunpack.c.l.b16 %v6691
      %v6987 = vunpack.c.l.b16 %v6692
      %v6988 = vunpack.c.l.b16 %v6693
      %v6989 = vunpack.c.l.b16 %v6694
      %v6990 = vunpack.c.l.b16 %v6695
      %v6991 = vunpack.c.l.b16 %v6696
      %v6992 = vunpack.c.l.b16 %v6697
      %v6993 = vunpack.c.l.b16 %v6698
      %v6994 = vunpack.c.l.b16 %v6699
      %v6995 = vpack.c.b16 %v6852, %v6851
      %v6996 = vpack.c.b16 %v6854, %v6853
      %v6997 = vpack.c.b16 %v6856, %v6855
      %v6998 = vpack.c.b16 %v6858, %v6857
      %v6999 = vpack.c.b16 %v6860, %v6859
      %v7000 = vpack.c.b16 %v6862, %v6861
      %v7001 = vpack.c.b16 %v6864, %v6863
      %v7002 = vpack.c.b16 %v6866, %v6865
      %v7003 = vpack.c.b16 %v6868, %v6867
      %v7004 = vpack.c.b16 %v6870, %v6869
      %v7005 = vpack.c.b16 %v6872, %v6871
      %v7006 = vpack.c.b16 %v6874, %v6873
      %v7007 = vpack.c.b16 %v6876, %v6875
      %v7008 = vpack.c.b16 %v6878, %v6877
      %v7009 = vpack.c.b16 %v6880, %v6879
      %v7010 = vpack.c.b16 %v6882, %v6881
      %v7011 = vpack.c.b16 %v6884, %v6883
      %v7012 = vpack.c.b16 %v6886, %v6885
      %v7013 = vpack.c.b16 %v6888, %v6887
      %v7014 = vpack.c.b16 %v6890, %v6889
      %v7015 = vpack.c.b16 %v6892, %v6891
      %v7016 = vpack.c.b16 %v6894, %v6893
      %v7017 = vpack.c.b16 %v6896, %v6895
      %v7018 = vpack.c.b16 %v6898, %v6897
      %v7019 = vpack.c.b16 %v6900, %v6899
      %v7020 = vpack.c.b16 %v6902, %v6901
      %v7021 = vpack.c.b16 %v6904, %v6903
      %v7022 = vpack.c.b16 %v6906, %v6905
      %v7023 = vpack.c.b16 %v6908, %v6907
      %v7024 = vpack.c.b16 %v6910, %v6909
      %v7025 = vpack.c.b16 %v6912, %v6911
      %v7026 = vpack.c.b16 %v6914, %v6913
      %v7027 = vpack.c.b16 %v6916, %v6915
      %v7028 = vpack.c.b16 %v6918, %v6917
      %v7029 = vpack.c.b16 %v6920, %v6919
      %v7030 = vpack.c.b16 %v6922, %v6921
      %v7031 = vpack.c.b16 %v6924, %v6923
      %v7032 = vpack.c.b16 %v6926, %v6925
      %v7033 = vpack.c.b16 %v6928, %v6927
      %v7034 = vpack.c.b16 %v6930, %v6929
      %v7035 = vpack.c.b16 %v6932, %v6931
      %v7036 = vpack.c.b16 %v6934, %v6933
      %v7037 = vpack.c.b16 %v6936, %v6935
      %v7038 = vpack.c.b16 %v6938, %v6937
      %v7039 = vpack.c.b16 %v6940, %v6939
      %v7040 = vpack.c.b16 %v6942, %v6941
      %v7041 = vpack.c.b16 %v6944, %v6943
      %v7042 = vpack.c.b16 %v6946, %v6945
      %v7043 = vpack.c.b16 %v6948, %v6947
      %v7044 = vpack.c.b16 %v6950, %v6949
      %v7045 = vpack.c.b16 %v6952, %v6951
      %v7046 = vpack.c.b16 %v6954, %v6953
      %v7047 = vpack.c.b16 %v6956, %v6955
      %v7048 = vpack.c.b16 %v6958, %v6957
      %v7049 = vpack.c.b16 %v6960, %v6959
      %v7050 = vpack.c.b16 %v6962, %v6961
      %v7051 = vpack.c.b16 %v6964, %v6963
      %v7052 = vpack.c.b16 %v6966, %v6965
      %v7053 = vpack.c.b16 %v6968, %v6967
      %v7054 = vpack.c.b16 %v6970, %v6969
      %v7055 = vpack.c.b16 %v6972, %v6971
      %v7056 = vpack.c.b16 %v6974, %v6973
      %v7057 = vpack.c.b16 %v6976, %v6975
      %v7058 = vpack.c.b16 %v6978, %v6977
      %v7059 = vpack.c.b16 %v6980, %v6979
      %v7060 = vpack.c.b16 %v6982, %v6981
      %v7061 = vpack.c.b16 %v6984, %v6983
      %v7062 = vpack.c.b16 %v6986, %v6985
      %v7063 = vpack.c.b16 %v6988, %v6987
      %v7064 = vpack.c.b16 %v6990, %v6989
      %v7065 = vpack.c.b16 %v6992, %v6991
      %v7066 = vpack.c.b16 %v6994, %v6993
      %7139 = vmatprep.subr.bf16.mxu0 0
      %7140 = vmatpush1.bf16.msra.mxu0 %v6995
      %7141 = vmatprep.subr.bf16.mxu0 0
      %7142 = vmatpush1.bf16.msra.mxu0 %v6996
      %7143 = vmatprep.subr.bf16.mxu0 0
      %7144 = vmatpush1.bf16.msra.mxu0 %v6997
      %7145 = vmatprep.subr.bf16.mxu0 0
      %7146 = vmatpush1.bf16.msra.mxu0 %v6998
      %7147 = vmatprep.subr.bf16.mxu0 0
      %7148 = vmatpush1.bf16.msra.mxu0 %v6999
      %7149 = vmatprep.subr.bf16.mxu0 0
      %7150 = vmatpush1.bf16.msra.mxu0 %v7000
      %7151 = vmatprep.subr.bf16.mxu0 0
      %7152 = vmatpush1.bf16.msra.mxu0 %v7001
      %7153 = vmatprep.subr.bf16.mxu0 0
      %7154 = vmatpush1.bf16.msra.mxu0 %v7002
      %7155 = vmatprep.subr.bf16.mxu0 0
      %7156 = vmatpush1.bf16.msra.mxu0 %v7003
      %7157 = vmatprep.subr.bf16.mxu0 0
      %7158 = vmatpush1.bf16.msra.mxu0 %v7004
      %7159 = vmatprep.subr.bf16.mxu0 0
      %7160 = vmatpush1.bf16.msra.mxu0 %v7005
      %7161 = vmatprep.subr.bf16.mxu0 0
      %7162 = vmatpush1.bf16.msra.mxu0 %v7006
      %7163 = vmatprep.subr.bf16.mxu0 0
      %7164 = vmatpush1.bf16.msra.mxu0 %v7007
      %7165 = vmatprep.subr.bf16.mxu0 0
      %7166 = vmatpush1.bf16.msra.mxu0 %v7008
      %7167 = vmatprep.subr.bf16.mxu0 0
      %7168 = vmatpush1.bf16.msra.mxu0 %v7009
      %7169 = vmatprep.subr.bf16.mxu0 0
      %7170 = vmatpush1.bf16.msra.mxu0 %v7010
      %7171 = vmatprep.mubr.bf16.mxu0 %v6521
      %7172 = vmatmul.mubr.bf16.gmra.mrb[0].mxu0 %v6520
      %v7173 = vpop.f32.mrb[0].mxu0
      %v7174 = vadd.f32 %v6705, %v7173
      %v7175 = vpop.f32.mrb[0].mxu0
      %v7176 = vpop.f32.mrb[0].mxu0
      %v7177 = vadd.f32 %v6705, %v7176
      %v7178 = vpop.f32.mrb[0].mxu0
      %7179 = vmatprep.mubr.bf16.mxu0 %v6530
      %7180 = vmatmul.mubr.bf16.gmra.mrb[0].mxu0 %v6529
      %v7181 = vpop.f32.mrb[0].mxu0
      %v7182 = vadd.f32 %v6705, %v7181
      %v7183 = vpop.f32.mrb[0].mxu0
      %v7184 = vpop.f32.mrb[0].mxu0
      %v7185 = vadd.f32 %v6705, %v7184
      %v7186 = vpop.f32.mrb[0].mxu0
      %7187 = vmatprep.mubr.bf16.mxu0 %v6539
      %7188 = vmatmul.mubr.bf16.gmra.mrb[0].mxu0 %v6538
      %v7189 = vpop.f32.mrb[0].mxu0
      %v7190 = vadd.f32 %v6705, %v7189
      %v7191 = vpop.f32.mrb[0].mxu0
      %v7192 = vpop.f32.mrb[0].mxu0
      %v7193 = vadd.f32 %v6705, %v7192
      %v7194 = vpop.f32.mrb[0].mxu0
      %7195 = vmatprep.mubr.bf16.mxu0 %v6548
      %7196 = vmatmul.mubr.bf16.gmra.mrb[0].mxu0 %v6547
      %v7197 = vpop.f32.mrb[0].mxu0
      %v7198 = vadd.f32 %v6705, %v7197
      %v7199 = vpop.f32.mrb[0].mxu0
      %v7200 = vpop.f32.mrb[0].mxu0
      %v7201 = vadd.f32 %v6705, %v7200
      %v7202 = vpop.f32.mrb[0].mxu0
      %7203 = vdwg.mxu0
      %7204 = vmatprep.subr.bf16.mxu0 0
      %7205 = vmatpush1.bf16.msra.mxu0 %v7011
      %7206 = vmatprep.subr.bf16.mxu0 0
      %7207 = vmatpush1.bf16.msra.mxu0 %v7012
      %7208 = vmatprep.subr.bf16.mxu0 0
      %7209 = vmatpush1.bf16.msra.mxu0 %v7013
      %7210 = vmatprep.subr.bf16.mxu0 0
      %7211 = vmatpush1.bf16.msra.mxu0 %v7014
      %7212 = vmatprep.subr.bf16.mxu0 0
      %7213 = vmatpush1.bf16.msra.mxu0 %v7015
      %7214 = vmatprep.subr.bf16.mxu0 0
      %7215 = vmatpush1.bf16.msra.mxu0 %v7016
      %7216 = vmatprep.subr.bf16.mxu0 0
      %7217 = vmatpush1.bf16.msra.mxu0 %v7017
      %7218 = vmatprep.subr.bf16.mxu0 0
      %7219 = vmatpush1.bf16.msra.mxu0 %v7018
      %7220 = vmatprep.subr.bf16.mxu0 0
      %7221 = vmatpush1.bf16.msra.mxu0 %v7019
      %7222 = vmatprep.subr.bf16.mxu0 0
      %7223 = vmatpush1.bf16.msra.mxu0 %v7020
      %7224 = vmatprep.subr.bf16.mxu0 0
      %7225 = vmatpush1.bf16.msra.mxu0 %v7021
      %7226 = vmatprep.subr.bf16.mxu0 0
      %7227 = vmatpush1.bf16.msra.mxu0 %v7022
      %7228 = vmatprep.subr.bf16.mxu0 0
      %7229 = vmatpush1.bf16.msra.mxu0 %v7023
      %7230 = vmatprep.subr.bf16.mxu0 0
      %7231 = vmatpush1.bf16.msra.mxu0 %v7024
      %7232 = vmatprep.subr.bf16.mxu0 0
      %7233 = vmatpush1.bf16.msra.mxu0 %v7025
      %7234 = vmatprep.subr.bf16.mxu0 0
      %7235 = vmatpush1.bf16.msra.mxu0 %v7026
      %7236 = vmatprep.mubr.bf16.mxu0 %v6523
      %7237 = vmatmul.mubr.bf16.gmra.mrb[0].mxu0 %v6522
      %v7238 = vpop.f32.mrb[0].mxu0
      %v7239 = vadd.f32 %v7174, %v7238
      %v7240 = vpop.f32.mrb[0].mxu0
      %v7241 = vpop.f32.mrb[0].mxu0
      %v7242 = vadd.f32 %v7177, %v7241
      %v7243 = vpop.f32.mrb[0].mxu0
      %7244 = vmatprep.mubr.bf16.mxu0 %v6532
      %7245 = vmatmul.mubr.bf16.gmra.mrb[0].mxu0 %v6531
      %v7246 = vpop.f32.mrb[0].mxu0
      %v7247 = vadd.f32 %v7182, %v7246
      %v7248 = vpop.f32.mrb[0].mxu0
      %v7249 = vpop.f32.mrb[0].mxu0
      %v7250 = vadd.f32 %v7185, %v7249
      %v7251 = vpop.f32.mrb[0].mxu0
      %7252 = vmatprep.mubr.bf16.mxu0 %v6541
      %7253 = vmatmul.mubr.bf16.gmra.mrb[0].mxu0 %v6540
      %v7254 = vpop.f32.mrb[0].mxu0
      %v7255 = vadd.f32 %v7190, %v7254
      %v7256 = vpop.f32.mrb[0].mxu0
      %v7257 = vpop.f32.mrb[0].mxu0
      %v7258 = vadd.f32 %v7193, %v7257
      %v7259 = vpop.f32.mrb[0].mxu0
      %7260 = vmatprep.mubr.bf16.mxu0 %v6550
      %7261 = vmatmul.mubr.bf16.gmra.mrb[0].mxu0 %v6549
      %v7262 = vpop.f32.mrb[0].mxu0
      %v7263 = vadd.f32 %v7198, %v7262
      %v7264 = vpop.f32.mrb[0].mxu0
      %v7265 = vpop.f32.mrb[0].mxu0
      %v7266 = vadd.f32 %v7201, %v7265
      %v7267 = vpop.f32.mrb[0].mxu0
      %7268 = vdwg.mxu0
      %7269 = vmatprep.subr.bf16.mxu0 0
      %7270 = vmatpush1.bf16.msra.mxu0 %v7027
      %7271 = vmatprep.subr.bf16.mxu0 0
      %7272 = vmatpush1.bf16.msra.mxu0 %v7028
      %7273 = vmatprep.subr.bf16.mxu0 0
      %7274 = vmatpush1.bf16.msra.mxu0 %v7029
      %7275 = vmatprep.subr.bf16.mxu0 0
      %7276 = vmatpush1.bf16.msra.mxu0 %v7030
      %7277 = vmatprep.subr.bf16.mxu0 0
      %7278 = vmatpush1.bf16.msra.mxu0 %v7031
      %7279 = vmatprep.subr.bf16.mxu0 0
      %7280 = vmatpush1.bf16.msra.mxu0 %v7032
      %7281 = vmatprep.subr.bf16.mxu0 0
      %7282 = vmatpush1.bf16.msra.mxu0 %v7033
      %7283 = vmatprep.subr.bf16.mxu0 0
      %7284 = vmatpush1.bf16.msra.mxu0 %v7034
      %7285 = vmatprep.subr.bf16.mxu0 0
      %7286 = vmatpush1.bf16.msra.mxu0 %v7035
      %7287 = vmatprep.subr.bf16.mxu0 0
      %7288 = vmatpush1.bf16.msra.mxu0 %v7036
      %7289 = vmatprep.subr.bf16.mxu0 0
      %7290 = vmatpush1.bf16.msra.mxu0 %v7037
      %7291 = vmatprep.subr.bf16.mxu0 0
      %7292 = vmatpush1.bf16.msra.mxu0 %v7038
      %7293 = vmatprep.subr.bf16.mxu0 0
      %7294 = vmatpush1.bf16.msra.mxu0 %v7039
      %7295 = vmatprep.subr.bf16.mxu0 0
      %7296 = vmatpush1.bf16.msra.mxu0 %v7040
      %7297 = vmatprep.subr.bf16.mxu0 0
      %7298 = vmatpush1.bf16.msra.mxu0 %v7041
      %7299 = vmatprep.subr.bf16.mxu0 0
      %7300 = vmatpush1.bf16.msra.mxu0 %v7042
      %7301 = vmatprep.mubr.bf16.mxu0 %v6525
      %7302 = vmatmul.mubr.bf16.gmra.mrb[0].mxu0 %v6524
      %v7303 = vpop.f32.mrb[0].mxu0
      %v7304 = vadd.f32 %v7239, %v7303
      %v7305 = vpop.f32.mrb[0].mxu0
      %v7306 = vpop.f32.mrb[0].mxu0
      %v7307 = vadd.f32 %v7242, %v7306
      %v7308 = vpop.f32.mrb[0].mxu0
      %7309 = vmatprep.mubr.bf16.mxu0 %v6534
      %7310 = vmatmul.mubr.bf16.gmra.mrb[0].mxu0 %v6533
      %v7311 = vpop.f32.mrb[0].mxu0
      %v7312 = vadd.f32 %v7247, %v7311
      %v7313 = vpop.f32.mrb[0].mxu0
      %v7314 = vpop.f32.mrb[0].mxu0
      %v7315 = vadd.f32 %v7250, %v7314
      %v7316 = vpop.f32.mrb[0].mxu0
      %7317 = vmatprep.mubr.bf16.mxu0 %v6543
      %7318 = vmatmul.mubr.bf16.gmra.mrb[0].mxu0 %v6542
      %v7319 = vpop.f32.mrb[0].mxu0
      %v7320 = vadd.f32 %v7255, %v7319
      %v7321 = vpop.f32.mrb[0].mxu0
      %v7322 = vpop.f32.mrb[0].mxu0
      %v7323 = vadd.f32 %v7258, %v7322
      %v7324 = vpop.f32.mrb[0].mxu0
      %7325 = vmatprep.mubr.bf16.mxu0 %v6552
      %7326 = vmatmul.mubr.bf16.gmra.mrb[0].mxu0 %v6551
      %v7327 = vpop.f32.mrb[0].mxu0
      %v7328 = vadd.f32 %v7263, %v7327
      %v7329 = vpop.f32.mrb[0].mxu0
      %v7330 = vpop.f32.mrb[0].mxu0
      %v7331 = vadd.f32 %v7266, %v7330
      %v7332 = vpop.f32.mrb[0].mxu0
      %7333 = vdwg.mxu0
      %7334 = vmatprep.subr.bf16.mxu0 0
      %7335 = vmatpush1.bf16.msra.mxu0 %v7043
      %7336 = vmatprep.subr.bf16.mxu0 0
      %7337 = vmatpush1.bf16.msra.mxu0 %v7044
      %7338 = vmatprep.subr.bf16.mxu0 0
      %7339 = vmatpush1.bf16.msra.mxu0 %v7045
      %7340 = vmatprep.subr.bf16.mxu0 0
      %7341 = vmatpush1.bf16.msra.mxu0 %v7046
      %7342 = vmatprep.subr.bf16.mxu0 0
      %7343 = vmatpush1.bf16.msra.mxu0 %v7047
      %7344 = vmatprep.subr.bf16.mxu0 0
      %7345 = vmatpush1.bf16.msra.mxu0 %v7048
      %7346 = vmatprep.subr.bf16.mxu0 0
      %7347 = vmatpush1.bf16.msra.mxu0 %v7049
      %7348 = vmatprep.subr.bf16.mxu0 0
      %7349 = vmatpush1.bf16.msra.mxu0 %v7050
      %7350 = vmatprep.subr.bf16.mxu0 0
      %7351 = vmatpush1.bf16.msra.mxu0 %v7051
      %7352 = vmatprep.subr.bf16.mxu0 0
      %7353 = vmatpush1.bf16.msra.mxu0 %v7052
      %7354 = vmatprep.subr.bf16.mxu0 0
      %7355 = vmatpush1.bf16.msra.mxu0 %v7053
      %7356 = vmatprep.subr.bf16.mxu0 0
      %7357 = vmatpush1.bf16.msra.mxu0 %v7054
      %7358 = vmatprep.subr.bf16.mxu0 0
      %7359 = vmatpush1.bf16.msra.mxu0 %v7055
      %7360 = vmatprep.subr.bf16.mxu0 0
      %7361 = vmatpush1.bf16.msra.mxu0 %v7056
      %7362 = vmatprep.subr.bf16.mxu0 0
      %7363 = vmatpush1.bf16.msra.mxu0 %v7057
      %7364 = vmatprep.subr.bf16.mxu0 0
      %7365 = vmatpush1.bf16.msra.mxu0 %v7058
      %7366 = vmatprep.mubr.bf16.mxu0 %v6527
      %7367 = vmatmul.mubr.bf16.gmra.mrb[0].mxu0 %v6526
      %v7368 = vpop.f32.mrb[0].mxu0
      %v7369 = vadd.f32 %v7304, %v7368
      %v7370 = vpop.f32.mrb[0].mxu0
      %v7371 = vpop.f32.mrb[0].mxu0
      %v7372 = vadd.f32 %v7307, %v7371
      %v7373 = vpop.f32.mrb[0].mxu0
      %7374 = vmatprep.mubr.bf16.mxu0 %v6536
      %7375 = vmatmul.mubr.bf16.gmra.mrb[0].mxu0 %v6535
      %v7376 = vpop.f32.mrb[0].mxu0
      %v7377 = vadd.f32 %v7312, %v7376
      %v7378 = vpop.f32.mrb[0].mxu0
      %v7379 = vpop.f32.mrb[0].mxu0
      %v7380 = vadd.f32 %v7315, %v7379
      %v7381 = vpop.f32.mrb[0].mxu0
      %7382 = vmatprep.mubr.bf16.mxu0 %v6545
      %7383 = vmatmul.mubr.bf16.gmra.mrb[0].mxu0 %v6544
      %v7384 = vpop.f32.mrb[0].mxu0
      %v7385 = vadd.f32 %v7320, %v7384
      %v7386 = vpop.f32.mrb[0].mxu0
      %v7387 = vpop.f32.mrb[0].mxu0
      %v7388 = vadd.f32 %v7323, %v7387
      %v7389 = vpop.f32.mrb[0].mxu0
      %7390 = vmatprep.mubr.bf16.mxu0 %v6554
      %7391 = vmatmul.mubr.bf16.gmra.mrb[0].mxu0 %v6553
      %v7392 = vpop.f32.mrb[0].mxu0
      %v7393 = vadd.f32 %v7328, %v7392
      %v7394 = vpop.f32.mrb[0].mxu0
      %v7395 = vpop.f32.mrb[0].mxu0
      %v7396 = vadd.f32 %v7331, %v7395
      %v7397 = vpop.f32.mrb[0].mxu0
      %7398 = vdwg.mxu0
      %7399 = vmatprep.subr.bf16.mxu0 0
      %7400 = vmatpush1.bf16.msra.mxu0 %v7059
      %7401 = vmatprep.subr.bf16.mxu0 0
      %7402 = vmatpush1.bf16.msra.mxu0 %v7060
      %7403 = vmatprep.subr.bf16.mxu0 0
      %7404 = vmatpush1.bf16.msra.mxu0 %v7061
      %7405 = vmatprep.subr.bf16.mxu0 0
      %7406 = vmatpush1.bf16.msra.mxu0 %v7062
      %7407 = vmatprep.subr.bf16.mxu0 0
      %7408 = vmatpush1.bf16.msra.mxu0 %v7063
      %7409 = vmatprep.subr.bf16.mxu0 0
      %7410 = vmatpush1.bf16.msra.mxu0 %v7064
      %7411 = vmatprep.subr.bf16.mxu0 0
      %7412 = vmatpush1.bf16.msra.mxu0 %v7065
      %7413 = vmatprep.subr.bf16.mxu0 0
      %7414 = vmatpush1.bf16.msra.mxu0 %v7066
      %7415 = vmatprep.subr.bf16.mxu0 0
      %7416 = vmatpush1.bf16.msra.mxu0 0
      %7417 = vmatprep.subr.bf16.mxu0 0
      %7418 = vmatpush1.bf16.msra.mxu0 0
      %7419 = vmatprep.subr.bf16.mxu0 0
      %7420 = vmatpush1.bf16.msra.mxu0 0
      %7421 = vmatprep.subr.bf16.mxu0 0
      %7422 = vmatpush1.bf16.msra.mxu0 0
      %7423 = vmatprep.subr.bf16.mxu0 0
      %7424 = vmatpush1.bf16.msra.mxu0 0
      %7425 = vmatprep.subr.bf16.mxu0 0
      %7426 = vmatpush1.bf16.msra.mxu0 0
      %7427 = vmatprep.subr.bf16.mxu0 0
      %7428 = vmatpush1.bf16.msra.mxu0 0
      %7429 = vmatprep.subr.bf16.mxu0 0
      %7430 = vmatpush1.bf16.msra.mxu0 0
      %7431 = vmatprep.mubr.bf16.mxu0 0
      %7432 = vmatmul.mubr.bf16.gmra.mrb[0].mxu0 %v6528
      %v7433 = vpop.f32.mrb[0].mxu0
      %v7434 = vadd.f32 %v7369, %v7433
      %v7435 = vpop.f32.mrb[0].mxu0
      %v7436 = vpop.f32.mrb[0].mxu0
      %v7437 = vadd.f32 %v7372, %v7436
      %v7438 = vpop.f32.mrb[0].mxu0
      %7439 = vmatprep.mubr.bf16.mxu0 0
      %7440 = vmatmul.mubr.bf16.gmra.mrb[0].mxu0 %v6537
      %v7441 = vpop.f32.mrb[0].mxu0
      %v7442 = vadd.f32 %v7377, %v7441
      %v7443 = vpop.f32.mrb[0].mxu0
      %v7444 = vpop.f32.mrb[0].mxu0
      %v7445 = vadd.f32 %v7380, %v7444
      %v7446 = vpop.f32.mrb[0].mxu0
      %7447 = vmatprep.mubr.bf16.mxu0 0
      %7448 = vmatmul.mubr.bf16.gmra.mrb[0].mxu0 %v6546
      %v7449 = vpop.f32.mrb[0].mxu0
      %v7450 = vadd.f32 %v7385, %v7449
      %v7451 = vpop.f32.mrb[0].mxu0
      %v7452 = vpop.f32.mrb[0].mxu0
      %v7453 = vadd.f32 %v7388, %v7452
      %v7454 = vpop.f32.mrb[0].mxu0
      %7455 = vmatprep.mubr.bf16.mxu0 0
      %7456 = vmatmul.mubr.bf16.gmra.mrb[0].mxu0 %v6555
      %v7457 = vpop.f32.mrb[0].mxu0
      %v7458 = vadd.f32 %v7393, %v7457
      %v7459 = vpop.f32.mrb[0].mxu0
      %v7460 = vpop.f32.mrb[0].mxu0
      %v7461 = vadd.f32 %v7396, %v7460
      %v7462 = vpop.f32.mrb[0].mxu0
      %7463 = vdwg.mxu0
      %v7464 = vmax.f32 %v7434, 0.0
      %v7465 = vmax.f32 %v7437, 0.0
      %v7466 = vmax.f32 %v7442, 0.0
      %v7467 = vmax.f32 %v7445, 0.0
      %v7468 = vmax.f32 %v7450, 0.0
      %v7469 = vmax.f32 %v7453, 0.0
      %v7470 = vmax.f32 %v7458, 0.0
      %v7471 = vmax.f32 %v7461, 0.0
      %v7472 = vld [vmem:[%s10] sm:$0xf]
      %v7473 = vld [vmem:[%s10 + $0x4] sm:$0xf]
      %v7474 = vld [vmem:[%s10 + $0x8] sm:$0xf]
      %v7475 = vld [vmem:[%s10 + $0xc] sm:$0xf]
      %v7476 = vld [vmem:[%s10 + $0x10] sm:$0xf]
      %v7477 = vld [vmem:[%s10 + $0x14] sm:$0xf]
      %v7478 = vld [vmem:[%s10 + $0x18] sm:$0xf]
      %v7479 = vld [vmem:[%s10 + $0x1c] sm:$0xf]
      %v7480 = vld [vmem:[%s10 + $0x20] sm:$0xf]
      %v7481 = vld [vmem:[%s10 + $0x24] sm:$0xf]
      %v7482 = vld [vmem:[%s10 + $0x28] sm:$0xf]
      %v7483 = vld [vmem:[%s10 + $0x2c] sm:$0xf]
      %v7484 = vld [vmem:[%s10 + $0x30] sm:$0xf]
      %v7485 = vld [vmem:[%s10 + $0x34] sm:$0xf]
      %v7486 = vld [vmem:[%s10 + $0x38] sm:$0xf]
      %v7487 = vld [vmem:[%s10 + $0x3c] sm:$0xf]
      %v7488 = vld [vmem:[%s10 + $0x40] sm:$0xf]
      %v7489 = vld [vmem:[%s10 + $0x44] sm:$0xf]
      %v7490 = vld [vmem:[%s10 + $0x48] sm:$0xf]
      %v7491 = vld [vmem:[%s10 + $0x4c] sm:$0xf]
      %v7492 = vld [vmem:[%s10 + $0x50] sm:$0xf]
      %v7493 = vld [vmem:[%s10 + $0x54] sm:$0xf]
      %v7494 = vld [vmem:[%s10 + $0x58] sm:$0xf]
      %v7495 = vld [vmem:[%s10 + $0x5c] sm:$0xf]
      %v7496 = vld [vmem:[%s10 + $0x60] sm:$0xf]
      %v7497 = vld [vmem:[%s10 + $0x64] sm:$0xf]
      %v7498 = vld [vmem:[%s10 + $0x68] sm:$0xf]
      %v7499 = vld [vmem:[%s10 + $0x6c] sm:$0xf]
      %v7500 = vld [vmem:[%s10 + $0x70] sm:$0xf]
      %v7501 = vld [vmem:[%s10 + $0x74] sm:$0xf]
      %v7502 = vld [vmem:[%s10 + $0x78] sm:$0xf]
      %v7503 = vld [vmem:[%s10 + $0x7c] sm:$0xf]
      %v7504 = vpack.c.bf16 %v7465, %v7464
      %v7505 = vpack.c.bf16 %v7467, %v7466
      %v7506 = vpack.c.bf16 %v7469, %v7468
      %v7507 = vpack.c.bf16 %v7471, %v7470
      %v7540 = vunpack.c.l.b16 %v7472
      %v7541 = vunpack.c.l.b16 %v7473
      %v7542 = vunpack.c.l.b16 %v7474
      %v7543 = vunpack.c.l.b16 %v7475
      %v7544 = vunpack.c.l.b16 %v7476
      %v7545 = vunpack.c.l.b16 %v7477
      %v7546 = vunpack.c.l.b16 %v7478
      %v7547 = vunpack.c.l.b16 %v7479
      %v7548 = vunpack.c.l.b16 %v7480
      %v7549 = vunpack.c.l.b16 %v7481
      %v7550 = vunpack.c.l.b16 %v7482
      %v7551 = vunpack.c.l.b16 %v7483
      %v7552 = vunpack.c.l.b16 %v7484
      %v7553 = vunpack.c.l.b16 %v7485
      %v7554 = vunpack.c.l.b16 %v7486
      %v7555 = vunpack.c.l.b16 %v7487
      %v7556 = vunpack.c.l.b16 %v7488
      %v7557 = vunpack.c.l.b16 %v7489
      %v7558 = vunpack.c.l.b16 %v7490
      %v7559 = vunpack.c.l.b16 %v7491
      %v7560 = vunpack.c.l.b16 %v7492
      %v7561 = vunpack.c.l.b16 %v7493
      %v7562 = vunpack.c.l.b16 %v7494
      %v7563 = vunpack.c.l.b16 %v7495
      %v7564 = vunpack.c.l.b16 %v7496
      %v7565 = vunpack.c.l.b16 %v7497
      %v7566 = vunpack.c.l.b16 %v7498
      %v7567 = vunpack.c.l.b16 %v7499
      %v7568 = vunpack.c.l.b16 %v7500
      %v7569 = vunpack.c.l.b16 %v7501
      %v7570 = vunpack.c.l.b16 %v7502
      %v7571 = vunpack.c.l.b16 %v7503
      %v7572 = vpack.c.b16 %v7541, %v7540
      %v7573 = vpack.c.b16 %v7543, %v7542
      %v7574 = vpack.c.b16 %v7545, %v7544
      %v7575 = vpack.c.b16 %v7547, %v7546
      %v7576 = vpack.c.b16 %v7549, %v7548
      %v7577 = vpack.c.b16 %v7551, %v7550
      %v7578 = vpack.c.b16 %v7553, %v7552
      %v7579 = vpack.c.b16 %v7555, %v7554
      %v7580 = vpack.c.b16 %v7557, %v7556
      %v7581 = vpack.c.b16 %v7559, %v7558
      %v7582 = vpack.c.b16 %v7561, %v7560
      %v7583 = vpack.c.b16 %v7563, %v7562
      %v7584 = vpack.c.b16 %v7565, %v7564
      %v7585 = vpack.c.b16 %v7567, %v7566
      %v7586 = vpack.c.b16 %v7569, %v7568
      %v7587 = vpack.c.b16 %v7571, %v7570
      %vm7588 = vcmask 523264
      %v7590 = vsel %vm7588, %v7572, 0
      %v7593 = vsel %vm7588, %v7573, 0
      %v7596 = vsel %vm7588, %v7574, 0
      %v7599 = vsel %vm7588, %v7575, 0
      %v7602 = vsel %vm7588, %v7576, 0
      %v7605 = vsel %vm7588, %v7577, 0
      %v7608 = vsel %vm7588, %v7578, 0
      %v7611 = vsel %vm7588, %v7579, 0
      %v7614 = vsel %vm7588, %v7580, 0
      %v7617 = vsel %vm7588, %v7581, 0
      %v7620 = vsel %vm7588, %v7582, 0
      %v7623 = vsel %vm7588, %v7583, 0
      %v7626 = vsel %vm7588, %v7584, 0
      %v7629 = vsel %vm7588, %v7585, 0
      %v7632 = vsel %vm7588, %v7586, 0
      %v7635 = vsel %vm7588, %v7587, 0
      %7637 = vmatprep.subr.bf16.mxu0 0
      %7638 = vmatpush1.bf16.msra.mxu0 %v7504
      %7639 = vmatprep.subr.bf16.mxu0 0
      %7640 = vmatpush1.bf16.msra.mxu0 %v7505
      %7641 = vmatprep.subr.bf16.mxu0 0
      %7642 = vmatpush1.bf16.msra.mxu0 %v7506
      %7643 = vmatprep.subr.bf16.mxu0 0
      %7644 = vmatpush1.bf16.msra.mxu0 %v7507
      %7645 = vmatprep.subr.bf16.mxu0 0
      %7646 = vmatpush1.bf16.msra.mxu0 0
      %7647 = vmatprep.subr.bf16.mxu0 0
      %7648 = vmatpush1.bf16.msra.mxu0 0
      %7649 = vmatprep.subr.bf16.mxu0 0
      %7650 = vmatpush1.bf16.msra.mxu0 0
      %7651 = vmatprep.subr.bf16.mxu0 0
      %7652 = vmatpush1.bf16.msra.mxu0 0
      %7653 = vmatprep.subr.bf16.mxu0 0
      %7654 = vmatpush1.bf16.msra.mxu0 0
      %7655 = vmatprep.subr.bf16.mxu0 0
      %7656 = vmatpush1.bf16.msra.mxu0 0
      %7657 = vmatprep.subr.bf16.mxu0 0
      %7658 = vmatpush1.bf16.msra.mxu0 0
      %7659 = vmatprep.subr.bf16.mxu0 0
      %7660 = vmatpush1.bf16.msra.mxu0 0
      %7661 = vmatprep.subr.bf16.mxu0 0
      %7662 = vmatpush1.bf16.msra.mxu0 0
      %7663 = vmatprep.subr.bf16.mxu0 0
      %7664 = vmatpush1.bf16.msra.mxu0 0
      %7665 = vmatprep.subr.bf16.mxu0 0
      %7666 = vmatpush1.bf16.msra.mxu0 0
      %7667 = vmatprep.subr.bf16.mxu0 0
      %7668 = vmatpush1.bf16.msra.mxu0 0
      %7669 = vmatprep.mubr.bf16.mxu0 0
      %7670 = vmatmul.mubr.bf16.gmra.mrb[0].mxu0 %v7590
      %v7671 = vpop.f32.mrb[0].mxu0
      %v7672 = vadd.f32 0.0, %v7671
      %v7673 = vpop.f32.mrb[0].mxu0
      %v7674 = vpop.f32.mrb[0].mxu0
      %v7675 = vadd.f32 0.0, %v7674
      %v7676 = vpop.f32.mrb[0].mxu0
      %7677 = vmatprep.mubr.bf16.mxu0 0
      %7678 = vmatmul.mubr.bf16.gmra.mrb[0].mxu0 %v7593
      %v7679 = vpop.f32.mrb[0].mxu0
      %v7680 = vadd.f32 0.0, %v7679
      %v7681 = vpop.f32.mrb[0].mxu0
      %v7682 = vpop.f32.mrb[0].mxu0
      %v7683 = vadd.f32 0.0, %v7682
      %v7684 = vpop.f32.mrb[0].mxu0
      %7685 = vmatprep.mubr.bf16.mxu0 0
      %7686 = vmatmul.mubr.bf16.gmra.mrb[0].mxu0 %v7596
      %v7687 = vpop.f32.mrb[0].mxu0
      %v7688 = vadd.f32 0.0, %v7687
      %v7689 = vpop.f32.mrb[0].mxu0
      %v7690 = vpop.f32.mrb[0].mxu0
      %v7691 = vadd.f32 0.0, %v7690
      %v7692 = vpop.f32.mrb[0].mxu0
      %7693 = vmatprep.mubr.bf16.mxu0 0
      %7694 = vmatmul.mubr.bf16.gmra.mrb[0].mxu0 %v7599
      %v7695 = vpop.f32.mrb[0].mxu0
      %v7696 = vadd.f32 0.0, %v7695
      %v7697 = vpop.f32.mrb[0].mxu0
      %v7698 = vpop.f32.mrb[0].mxu0
      %v7699 = vadd.f32 0.0, %v7698
      %v7700 = vpop.f32.mrb[0].mxu0
      %7701 = vmatprep.mubr.bf16.mxu0 0
      %7702 = vmatmul.mubr.bf16.gmra.mrb[0].mxu0 %v7602
      %v7703 = vpop.f32.mrb[0].mxu0
      %v7704 = vadd.f32 0.0, %v7703
      %v7705 = vpop.f32.mrb[0].mxu0
      %v7706 = vpop.f32.mrb[0].mxu0
      %v7707 = vadd.f32 0.0, %v7706
      %v7708 = vpop.f32.mrb[0].mxu0
      %7709 = vmatprep.mubr.bf16.mxu0 0
      %7710 = vmatmul.mubr.bf16.gmra.mrb[0].mxu0 %v7605
      %v7711 = vpop.f32.mrb[0].mxu0
      %v7712 = vadd.f32 0.0, %v7711
      %v7713 = vpop.f32.mrb[0].mxu0
      %v7714 = vpop.f32.mrb[0].mxu0
      %v7715 = vadd.f32 0.0, %v7714
      %v7716 = vpop.f32.mrb[0].mxu0
      %7717 = vmatprep.mubr.bf16.mxu0 0
      %7718 = vmatmul.mubr.bf16.gmra.mrb[0].mxu0 %v7608
      %v7719 = vpop.f32.mrb[0].mxu0
      %v7720 = vadd.f32 0.0, %v7719
      %v7721 = vpop.f32.mrb[0].mxu0
      %v7722 = vpop.f32.mrb[0].mxu0
      %v7723 = vadd.f32 0.0, %v7722
      %v7724 = vpop.f32.mrb[0].mxu0
      %7725 = vmatprep.mubr.bf16.mxu0 0
      %7726 = vmatmul.mubr.bf16.gmra.mrb[0].mxu0 %v7611
      %v7727 = vpop.f32.mrb[0].mxu0
      %v7728 = vadd.f32 0.0, %v7727
      %v7729 = vpop.f32.mrb[0].mxu0
      %v7730 = vpop.f32.mrb[0].mxu0
      %v7731 = vadd.f32 0.0, %v7730
      %v7732 = vpop.f32.mrb[0].mxu0
      %7733 = vmatprep.mubr.bf16.mxu0 0
      %7734 = vmatmul.mubr.bf16.gmra.mrb[0].mxu0 %v7614
      %v7735 = vpop.f32.mrb[0].mxu0
      %v7736 = vadd.f32 0.0, %v7735
      %v7737 = vpop.f32.mrb[0].mxu0
      %v7738 = vpop.f32.mrb[0].mxu0
      %v7739 = vadd.f32 0.0, %v7738
      %v7740 = vpop.f32.mrb[0].mxu0
      %7741 = vmatprep.mubr.bf16.mxu0 0
      %7742 = vmatmul.mubr.bf16.gmra.mrb[0].mxu0 %v7617
      %v7743 = vpop.f32.mrb[0].mxu0
      %v7744 = vadd.f32 0.0, %v7743
      %v7745 = vpop.f32.mrb[0].mxu0
      %v7746 = vpop.f32.mrb[0].mxu0
      %v7747 = vadd.f32 0.0, %v7746
      %v7748 = vpop.f32.mrb[0].mxu0
      %7749 = vmatprep.mubr.bf16.mxu0 0
      %7750 = vmatmul.mubr.bf16.gmra.mrb[0].mxu0 %v7620
      %v7751 = vpop.f32.mrb[0].mxu0
      %v7752 = vadd.f32 0.0, %v7751
      %v7753 = vpop.f32.mrb[0].mxu0
      %v7754 = vpop.f32.mrb[0].mxu0
      %v7755 = vadd.f32 0.0, %v7754
      %v7756 = vpop.f32.mrb[0].mxu0
      %7757 = vmatprep.mubr.bf16.mxu0 0
      %7758 = vmatmul.mubr.bf16.gmra.mrb[0].mxu0 %v7623
      %v7759 = vpop.f32.mrb[0].mxu0
      %v7760 = vadd.f32 0.0, %v7759
      %v7761 = vpop.f32.mrb[0].mxu0
      %v7762 = vpop.f32.mrb[0].mxu0
      %v7763 = vadd.f32 0.0, %v7762
      %v7764 = vpop.f32.mrb[0].mxu0
      %7765 = vmatprep.mubr.bf16.mxu0 0
      %7766 = vmatmul.mubr.bf16.gmra.mrb[0].mxu0 %v7626
      %v7767 = vpop.f32.mrb[0].mxu0
      %v7768 = vadd.f32 0.0, %v7767
      %v7769 = vpop.f32.mrb[0].mxu0
      %v7770 = vpop.f32.mrb[0].mxu0
      %v7771 = vadd.f32 0.0, %v7770
      %v7772 = vpop.f32.mrb[0].mxu0
      %7773 = vmatprep.mubr.bf16.mxu0 0
      %7774 = vmatmul.mubr.bf16.gmra.mrb[0].mxu0 %v7629
      %v7775 = vpop.f32.mrb[0].mxu0
      %v7776 = vadd.f32 0.0, %v7775
      %v7777 = vpop.f32.mrb[0].mxu0
      %v7778 = vpop.f32.mrb[0].mxu0
      %v7779 = vadd.f32 0.0, %v7778
      %v7780 = vpop.f32.mrb[0].mxu0
      %7781 = vmatprep.mubr.bf16.mxu0 0
      %7782 = vmatmul.mubr.bf16.gmra.mrb[0].mxu0 %v7632
      %v7783 = vpop.f32.mrb[0].mxu0
      %v7784 = vadd.f32 0.0, %v7783
      %v7785 = vpop.f32.mrb[0].mxu0
      %v7786 = vpop.f32.mrb[0].mxu0
      %v7787 = vadd.f32 0.0, %v7786
      %v7788 = vpop.f32.mrb[0].mxu0
      %7789 = vmatprep.mubr.bf16.mxu0 0
      %7790 = vmatmul.mubr.bf16.gmra.mrb[0].mxu0 %v7635
      %v7791 = vpop.f32.mrb[0].mxu0
      %v7792 = vadd.f32 0.0, %v7791
      %v7793 = vpop.f32.mrb[0].mxu0
      %v7794 = vpop.f32.mrb[0].mxu0
      %v7795 = vadd.f32 0.0, %v7794
      %v7796 = vpop.f32.mrb[0].mxu0
      %7797 = vdwg.mxu0
      %7798 = vst [vmem:[%s386] sm:$0xff] %v7672
      %7799 = vst [vmem:[%s386 + $0x8] sm:$0xff] %v7675
      %7800 = vst [vmem:[%s386 + $0x10] sm:$0xff] %v7680
      %7801 = vst [vmem:[%s386 + $0x18] sm:$0xff] %v7683
      %7802 = vst [vmem:[%s386 + $0x20] sm:$0xff] %v7688
      %7803 = vst [vmem:[%s386 + $0x28] sm:$0xff] %v7691
      %7804 = vst [vmem:[%s386 + $0x30] sm:$0xff] %v7696
      %7805 = vst [vmem:[%s386 + $0x38] sm:$0xff] %v7699
      %7806 = vst [vmem:[%s386 + $0x40] sm:$0xff] %v7704
      %7807 = vst [vmem:[%s386 + $0x48] sm:$0xff] %v7707
      %7808 = vst [vmem:[%s386 + $0x50] sm:$0xff] %v7712
      %7809 = vst [vmem:[%s386 + $0x58] sm:$0xff] %v7715
      %7810 = vst [vmem:[%s386 + $0x60] sm:$0xff] %v7720
      %7811 = vst [vmem:[%s386 + $0x68] sm:$0xff] %v7723
      %7812 = vst [vmem:[%s386 + $0x70] sm:$0xff] %v7728
      %7813 = vst [vmem:[%s386 + $0x78] sm:$0xff] %v7731
      %7814 = vst [vmem:[%s386 + $0x80] sm:$0xff] %v7736
      %7815 = vst [vmem:[%s386 + $0x88] sm:$0xff] %v7739
      %7816 = vst [vmem:[%s386 + $0x90] sm:$0xff] %v7744
      %7817 = vst [vmem:[%s386 + $0x98] sm:$0xff] %v7747
      %7818 = vst [vmem:[%s386 + $0xa0] sm:$0xff] %v7752
      %7819 = vst [vmem:[%s386 + $0xa8] sm:$0xff] %v7755
      %7820 = vst [vmem:[%s386 + $0xb0] sm:$0xff] %v7760
      %7821 = vst [vmem:[%s386 + $0xb8] sm:$0xff] %v7763
      %7822 = vst [vmem:[%s386 + $0xc0] sm:$0xff] %v7768
      %7823 = vst [vmem:[%s386 + $0xc8] sm:$0xff] %v7771
      %7824 = vst [vmem:[%s386 + $0xd0] sm:$0xff] %v7776
      %7825 = vst [vmem:[%s386 + $0xd8] sm:$0xff] %v7779
      %7826 = vst [vmem:[%s386 + $0xe0] sm:$0xff] %v7784
      %7827 = vst [vmem:[%s386 + $0xe8] sm:$0xff] %v7787
      %7828 = vst [vmem:[%s386 + $0xf0] sm:$0xff] %v7792
      %7829 = vst [vmem:[%s386 + $0xf8] sm:$0xff] %v7795
      %p7830 = scmp.lt.s32.totalorder %s22, 1
      %s7831 = scalar_select %p7830, %s22, 1
      %s7832 = smul.addr %s7831, 32
      %s7833 = smul.addr %s7832, 8
      %s7834 = scalar_lea.vmem %s11, %s7833
      // Predicated region
      $region65: #{unet_old_forward.1} parent=63 // pred_check
        %p7835 = pneg %p276
      $region66: #{unet_old_forward.1} parent=63 // pred_check_branch
        %7837 = sbr.rel (%p7835) target = $region68
      $region67: #{unet_old_forward.1} parent=63 // pred_region
        _
      $region68: #{unet_old_forward.1} parent=63 // pred_fallthru
        _
    $region64: #{unet_old_forward.1} parent=5 // pred_fallthru
      _
    %p7838 = scmp.le.s32.totalorder 2, %s17
    // Predicated region
    $region69: #{unet_old_forward.1} parent=5 // pred_check
      %p7839 = pneg %p7838
    $region70: #{unet_old_forward.1} parent=5 // pred_check_branch
      %7841 = sbr.rel (%p7839) target = $region72
    $region71: #{unet_old_forward.1} parent=5 // pred_region
      %s7842 = ssub.s32 %s17, 2
      // Predicated region
      $region73: #{unet_old_forward.1} parent=71 // pred_check
        %p7843 = pneg %p282
      $region74: #{unet_old_forward.1} parent=71 // pred_check_branch
        %7845 = sbr.rel (%p7843) target = $region76
      $region75: #{unet_old_forward.1} parent=71 // pred_region
        %p7846 = scmp.lt.s32.totalorder %s23, 1
        %s7847 = scalar_select %p7846, %s23, 1
        %s7848 = smul.addr %s7847, 32
        %s7849 = smul.addr %s7848, 8
        %s7850 = scalar_lea.vmem %s11, %s7849
      $region76: #{unet_old_forward.1} parent=71 // pred_fallthru
        _
    $region72: #{unet_old_forward.1} parent=5 // pred_fallthru
      _
  $region6: #{unet_old_forward.1} parent=0 // loop_footer
    %s21 = sadd.s32 1, %s17
  $region7: #{unet_old_forward.1} parent=0 // loop_footer_branch
    %16 = sbr.rel target = $region3
  $region8: #{unet_old_forward.1} parent=0 // loop_exit
    _

</llo_original>
